<compile_context>
chip_gen: v5e
topology: v5e:2x2
jax: 0.10.0
libtpu: 0.0.40
codegen_flags: <defaults>
</compile_context>

<pallas_src>
import math

import jax
import jax.numpy as jnp
from jax.experimental import pallas as pl
from jax.experimental.pallas import tpu as pltpu

# ----------------------------- small config (consistent with the module) ----
VOCAB_SIZE = 512
D_MODEL    = 32
NUM_HEADS  = 4
NUM_LAYERS = 2
BLOCK_SIZE = 16
D_FF       = 4 * D_MODEL
LN_EPS     = 1e-5
HEAD_DIM   = D_MODEL // NUM_HEADS
ATTN_SCALE = 1.0 / math.sqrt(HEAD_DIM)
LANES      = 128     # lane width of the parameter slab


def _round_up(n, m):
    return (n + m - 1) // m * m


# ----------------------------- host-side parameter slab packing -------------
class _Packer:
    """Packs many small 2-D f32 params into one (rows, 128) slab (one DMA)."""

    def __init__(self, width=LANES):
        self.width = width
        self.chunks = []
        self.offset = 0
        self.layout = {}          # name -> (row_offset, rows, cols)   (static ints)

    def add(self, name, arr):
        arr = jnp.asarray(arr, jnp.float32)
        assert arr.ndim == 2 and arr.shape[1] <= self.width, (name, arr.shape)
        r, c = arr.shape
        rp = _round_up(r, 8)                                  # keep 8-sublane alignment
        padded = jnp.zeros((rp, self.width), jnp.float32).at[:r, :c].set(arr)
        self.chunks.append(padded)
        self.layout[name] = (self.offset, r, c)
        self.offset += rp

    def finalize(self):
        return jnp.concatenate(self.chunks, axis=0), self.layout


def pack_params(params, B, T):
    pk = _Packer()
    pk.add("tok_emb", params["tok_emb"])                      # MUST be first (offset 0)
    pk.add("pos", jnp.tile(params["pos_emb"][:T], (B, 1)))    # only T rows, tiled over B

    def add_attn(pfx, ap):
        pk.add(pfx + ".wqkv", ap["wqkv"]); pk.add(pfx + ".bqkv", ap["bqkv"])
        pk.add(pfx + ".wo", ap["wo"]);     pk.add(pfx + ".bo", ap["bo"])

    def add_ffn(pfx, fp):
        pk.add(pfx + ".w1", fp["w1"]); pk.add(pfx + ".b1", fp["b1"])
        pk.add(pfx + ".w2", fp["w2"]); pk.add(pfx + ".b2", fp["b2"])

    for l, lp in enumerate(params["enc_layers"]):
        pfx = f"enc{l}"
        add_attn(pfx + ".sa", lp["self_attn"])
        add_ffn(pfx + ".ffn", lp["ffn"])
        pk.add(pfx + ".n1g", lp["norm1_g"]); pk.add(pfx + ".n1b", lp["norm1_b"])
        pk.add(pfx + ".n2g", lp["norm2_g"]); pk.add(pfx + ".n2b", lp["norm2_b"])

    for l, lp in enumerate(params["dec_layers"]):
        pfx = f"dec{l}"
        add_attn(pfx + ".sa", lp["self_attn"])
        add_attn(pfx + ".ca", lp["cross_attn"])
        add_ffn(pfx + ".ffn", lp["ffn"])
        pk.add(pfx + ".n1g", lp["norm1_g"]); pk.add(pfx + ".n1b", lp["norm1_b"])
        pk.add(pfx + ".n2g", lp["norm2_g"]); pk.add(pfx + ".n2b", lp["norm2_b"])
        pk.add(pfx + ".n3g", lp["norm3_g"]); pk.add(pfx + ".n3b", lp["norm3_b"])

    pk.add("enc_ng", params["enc_norm_g"]); pk.add("enc_nb", params["enc_norm_b"])
    pk.add("dec_ng", params["dec_norm_g"]); pk.add("dec_nb", params["dec_norm_b"])
    slab_p, layout = pk.finalize()

    lm = jnp.concatenate([params["lm_w"], params["lm_b"]], axis=0)   # (D+1, V)
    pad = _round_up(lm.shape[0], 8) - lm.shape[0]
    slab_lm = jnp.pad(lm, ((0, pad), (0, 0)))
    return slab_p, layout, slab_lm


# ----------------------------- fused whole-model kernel ----------------------
def _make_kernel(layout, B, T):
    M = B * T
    D = D_MODEL
    assert layout["tok_emb"][0] == 0

    def kernel(ids_ref, slab_ref, lm_ref, out_ref, emb_ref):
        def g(name):
            off, r, c = layout[name]
            return slab_ref[off:off + r, 0:c]

        # ---- token embedding: direct row gather (ids live in SMEM) --------------
        for i in range(M):
            idx = ids_ref[i]
            emb_ref[pl.ds(i, 1), :] = slab_ref[pl.ds(idx, 1), 0:D]
        x = emb_ref[...] + g("pos")                                   # (M, D)

        def layer_norm(x, gn, bn):
            mean = jnp.mean(x, axis=-1, keepdims=True)
            var = jnp.mean((x - mean) ** 2, axis=-1, keepdims=True)
            inv = jax.lax.rsqrt(var + LN_EPS)                         # EUP rsqrt
            return (x - mean) * inv * g(gn) + g(bn)

        def mha(x_q, x_kv, pfx):
            wqkv = g(pfx + ".wqkv"); bqkv = g(pfx + ".bqkv")          # (D,3D), (1,3D)
            wo = g(pfx + ".wo"); bo = g(pfx + ".bo")                  # (D,D),  (1,D)
            q = jnp.dot(x_q, wqkv[:, :D], preferred_element_type=jnp.float32) + bqkv[:, :D]
            kv = jnp.dot(x_kv, wqkv[:, D:], preferred_element_type=jnp.float32) + bqkv[:, D:]
            k, v = kv[:, :D], kv[:, D:]
            outs = []
            for b in range(B):                                        # attention per sequence
                rs = slice(b * T, (b + 1) * T)                        # static row slice
                acc = jnp.zeros((T, D), jnp.float32)
                for h in range(NUM_HEADS):                            # static lane slices
                    ls = slice(h * HEAD_DIM, (h + 1) * HEAD_DIM)
                    qh = q[rs, ls] * ATTN_SCALE
                    s = jax.lax.dot_general(qh, k[rs, ls], (((1,), (1,)), ((), ())),
                                            preferred_element_type=jnp.float32)   # (T, T)
                    s = s - jnp.max(s, axis=-1, keepdims=True)
                    e = jnp.exp(s)
                    pr = e * pl.reciprocal(jnp.sum(e, axis=-1, keepdims=True), approx=True)
                    hv = jnp.dot(pr, v[rs, ls], preferred_element_type=jnp.float32)
                    # W_o folded into the head loop: pure MXU accumulation, no lane concat
                    acc = acc + jnp.dot(hv, wo[ls, :], preferred_element_type=jnp.float32)
                outs.append(acc)
            o = outs[0] if B == 1 else jnp.concatenate(outs, axis=0)  # (M, D)
            return o + bo

        def ffn(x, pfx):
            h1 = jnp.dot(x, g(pfx + ".w1"), preferred_element_type=jnp.float32) + g(pfx + ".b1")
            h1 = jnp.maximum(h1, 0.0)
            return jnp.dot(h1, g(pfx + ".w2"), preferred_element_type=jnp.float32) + g(pfx + ".b2")

        # ---- encoder (src = x) ---------------------------------------------------
        mem = x
        for l in range(NUM_LAYERS):
            pfx = f"enc{l}"
            mem = layer_norm(mem + mha(mem, mem, pfx + ".sa"), pfx + ".n1g", pfx + ".n1b")
            mem = layer_norm(mem + ffn(mem, pfx + ".ffn"), pfx + ".n2g", pfx + ".n2b")
        mem = layer_norm(mem, "enc_ng", "enc_nb")

        # ---- decoder (tgt = x, memory = mem) --------------------------------------
        y = x
        for l in range(NUM_LAYERS):
            pfx = f"dec{l}"
            y = layer_norm(y + mha(y, y, pfx + ".sa"), pfx + ".n1g", pfx + ".n1b")
            y = layer_norm(y + mha(y, mem, pfx + ".ca"), pfx + ".n2g", pfx + ".n2b")
            y = layer_norm(y + ffn(y, pfx + ".ffn"), pfx + ".n3g", pfx + ".n3b")
        y = layer_norm(y, "dec_ng", "dec_nb")

        # ---- lm head: lane-dense (M, VOCAB) block ----------------------------------
        logits = jnp.dot(y, lm_ref[0:D, :], preferred_element_type=jnp.float32) \
                 + lm_ref[D:D + 1, :]
        out_ref[...] = logits.astype(out_ref.dtype)

    return kernel


# ----------------------------- wrapper ---------------------------------------
def make_gpt_forward(params, B, T):
    assert T <= BLOCK_SIZE
    M = B * T
    slab_p, layout, slab_lm = pack_params(params, B, T)     # packed once, host-side
    kernel = _make_kernel(layout, B, T)

    grid_spec = pltpu.PrefetchScalarGridSpec(
        num_scalar_prefetch=1,                               # ids -> SMEM
        grid=(1,),                                           # single step: whole batch
        in_specs=[
            pl.BlockSpec(slab_p.shape, lambda i, ids: (0, 0)),    # one weight slab DMA
            pl.BlockSpec(slab_lm.shape, lambda i, ids: (0, 0)),   # one lm-head slab DMA
        ],
        out_specs=pl.BlockSpec((M, VOCAB_SIZE), lambda i, ids: (0, 0)),
        scratch_shapes=[pltpu.VMEM((M, D_MODEL), jnp.float32)],   # gathered embeddings
    )

    call = pl.pallas_call(
        kernel,
        out_shape=jax.ShapeDtypeStruct((M, VOCAB_SIZE), jnp.float32),
        grid_spec=grid_spec,
        compiler_params=pltpu.CompilerParams(dimension_semantics=("arbitrary",)),
    )

    def forward(x_ids):
        ids = x_ids.reshape(M).astype(jnp.int32)
        logits = call(ids, slab_p, slab_lm)
        return logits.reshape(B, T, VOCAB_SIZE)

    return forward


# ----------------------------- deterministic parameter init -----------------
def init_params(key):
    keys = iter(jax.random.split(key, 256))
    nk = lambda: next(keys)

    def dense(fan_in, fan_out):
        w = jax.random.normal(nk(), (fan_in, fan_out), jnp.float32) * 0.02
        b = jnp.zeros((1, fan_out), jnp.float32)
        return w, b

    def attn_params():
        wqkv, bqkv = dense(D_MODEL, 3 * D_MODEL)      # fused q|k|v projection
        wo, bo = dense(D_MODEL, D_MODEL)
        return dict(wqkv=wqkv, bqkv=bqkv, wo=wo, bo=bo)

    def ffn_params():
        w1, b1 = dense(D_MODEL, D_FF)
        w2, b2 = dense(D_FF, D_MODEL)
        return dict(w1=w1, b1=b1, w2=w2, b2=b2)

    ones = lambda: jnp.ones((1, D_MODEL), jnp.float32)
    zeros = lambda: jnp.zeros((1, D_MODEL), jnp.float32)

    def enc_layer():
        return dict(self_attn=attn_params(), ffn=ffn_params(),
                    norm1_g=ones(), norm1_b=zeros(),
                    norm2_g=ones(), norm2_b=zeros())

    def dec_layer():
        return dict(self_attn=attn_params(), cross_attn=attn_params(), ffn=ffn_params(),
                    norm1_g=ones(), norm1_b=zeros(),
                    norm2_g=ones(), norm2_b=zeros(),
                    norm3_g=ones(), norm3_b=zeros())

    lm_w, lm_b = dense(D_MODEL, VOCAB_SIZE)
    return dict(
        tok_emb=jax.random.normal(nk(), (VOCAB_SIZE, D_MODEL), jnp.float32) * 0.02,
        pos_emb=jax.random.normal(nk(), (BLOCK_SIZE, D_MODEL), jnp.float32) * 0.02,
        enc_layers=[enc_layer() for _ in range(NUM_LAYERS)],
        dec_layers=[dec_layer() for _ in range(NUM_LAYERS)],
        enc_norm_g=ones(), enc_norm_b=zeros(),
        dec_norm_g=ones(), dec_norm_b=zeros(),
        lm_w=lm_w, lm_b=lm_b,
    )


# ----------------------------- main ------------------------------------------
if __name__ == "__main__":
    key = jax.random.PRNGKey(0)
    pkey, xkey = jax.random.split(key)
    params = init_params(pkey)

    B, T = 2, 8
    x_ids = jax.random.randint(xkey, (B, T), 0, VOCAB_SIZE, dtype=jnp.int32)

    gpt_forward = jax.jit(make_gpt_forward(params, B, T))
    logits = gpt_forward(x_ids)
    jax.block_until_ready(logits)
    assert logits.shape == (B, T, VOCAB_SIZE)
    assert bool(jnp.all(jnp.isfinite(logits)))
    print("KERNEL_OK")
</pallas_src>

<mosaic_0001>
module attributes {stable_mosaic.version = 11 : i64} {
  func.func @kernel(%arg0: i32, %arg1: memref<16xi32, #tpu.memory_space<smem>>, %arg2: memref<1904x128xf32, #tpu.memory_space<vmem>>, %arg3: memref<40x512xf32, #tpu.memory_space<vmem>>, %arg4: memref<16x512xf32, #tpu.memory_space<vmem>>, %arg5: memref<16x32xf32, #tpu.memory_space<vmem>>) attributes {dimension_semantics = [#tpu.dimension_semantics<arbitrary>], iteration_bounds = array<i64: 1>, scalar_prefetch = 1 : i64, scratch_operands = 1 : i64, tpu.core_type = #tpu.core_type<tc>, window_params = [{pipeline_mode = #tpu.pipeline_mode<synchronous>, transform_indices = @transform_0, window_bounds = array<i64: 1904, 128>}, {pipeline_mode = #tpu.pipeline_mode<synchronous>, transform_indices = @transform_1, window_bounds = array<i64: 40, 512>}, {pipeline_mode = #tpu.pipeline_mode<synchronous>, transform_indices = @transform_2, window_bounds = array<i64: 16, 512>}]} {
    %c0 = arith.constant 0 : index
    %0 = memref.load %arg1[%c0] : memref<16xi32, #tpu.memory_space<smem>>
    %1 = arith.index_cast %0 : i32 to index
    %c0_0 = arith.constant 0 : index
    %2 = vector.load %arg2[%1, %c0_0] : memref<1904x128xf32, #tpu.memory_space<vmem>>, vector<1x32xf32>
    %c0_1 = arith.constant 0 : index
    %c0_2 = arith.constant 0 : index
    %3 = vector.load %arg5[%c0_1, %c0_2] : memref<16x32xf32, #tpu.memory_space<vmem>>, vector<1x32xf32>
    tpu.vector_store %arg5[%c0_1, %c0_2], %2 {strides = array<i32>} : memref<16x32xf32, #tpu.memory_space<vmem>>, vector<1x32xf32>,
    %c1 = arith.constant 1 : index
    %4 = memref.load %arg1[%c1] : memref<16xi32, #tpu.memory_space<smem>>
    %5 = arith.index_cast %4 : i32 to index
    %c0_3 = arith.constant 0 : index
    %6 = vector.load %arg2[%5, %c0_3] : memref<1904x128xf32, #tpu.memory_space<vmem>>, vector<1x32xf32>
    %c1_4 = arith.constant 1 : index
    %c0_5 = arith.constant 0 : index
    %7 = vector.load %arg5[%c1_4, %c0_5] : memref<16x32xf32, #tpu.memory_space<vmem>>, vector<1x32xf32>
    tpu.vector_store %arg5[%c1_4, %c0_5], %6 {strides = array<i32>} : memref<16x32xf32, #tpu.memory_space<vmem>>, vector<1x32xf32>,
    %c2 = arith.constant 2 : index
    %8 = memref.load %arg1[%c2] : memref<16xi32, #tpu.memory_space<smem>>
    %9 = arith.index_cast %8 : i32 to index
    %c0_6 = arith.constant 0 : index
    %10 = vector.load %arg2[%9, %c0_6] : memref<1904x128xf32, #tpu.memory_space<vmem>>, vector<1x32xf32>
    %c2_7 = arith.constant 2 : index
    %c0_8 = arith.constant 0 : index
    %11 = vector.load %arg5[%c2_7, %c0_8] : memref<16x32xf32, #tpu.memory_space<vmem>>, vector<1x32xf32>
    tpu.vector_store %arg5[%c2_7, %c0_8], %10 {strides = array<i32>} : memref<16x32xf32, #tpu.memory_space<vmem>>, vector<1x32xf32>,
    %c3 = arith.constant 3 : index
    %12 = memref.load %arg1[%c3] : memref<16xi32, #tpu.memory_space<smem>>
    %13 = arith.index_cast %12 : i32 to index
    %c0_9 = arith.constant 0 : index
    %14 = vector.load %arg2[%13, %c0_9] : memref<1904x128xf32, #tpu.memory_space<vmem>>, vector<1x32xf32>
    %c3_10 = arith.constant 3 : index
    %c0_11 = arith.constant 0 : index
    %15 = vector.load %arg5[%c3_10, %c0_11] : memref<16x32xf32, #tpu.memory_space<vmem>>, vector<1x32xf32>
    tpu.vector_store %arg5[%c3_10, %c0_11], %14 {strides = array<i32>} : memref<16x32xf32, #tpu.memory_space<vmem>>, vector<1x32xf32>,
    %c4 = arith.constant 4 : index
    %16 = memref.load %arg1[%c4] : memref<16xi32, #tpu.memory_space<smem>>
    %17 = arith.index_cast %16 : i32 to index
    %c0_12 = arith.constant 0 : index
    %18 = vector.load %arg2[%17, %c0_12] : memref<1904x128xf32, #tpu.memory_space<vmem>>, vector<1x32xf32>
    %c4_13 = arith.constant 4 : index
    %c0_14 = arith.constant 0 : index
    %19 = vector.load %arg5[%c4_13, %c0_14] : memref<16x32xf32, #tpu.memory_space<vmem>>, vector<1x32xf32>
    tpu.vector_store %arg5[%c4_13, %c0_14], %18 {strides = array<i32>} : memref<16x32xf32, #tpu.memory_space<vmem>>, vector<1x32xf32>,
    %c5 = arith.constant 5 : index
    %20 = memref.load %arg1[%c5] : memref<16xi32, #tpu.memory_space<smem>>
    %21 = arith.index_cast %20 : i32 to index
    %c0_15 = arith.constant 0 : index
    %22 = vector.load %arg2[%21, %c0_15] : memref<1904x128xf32, #tpu.memory_space<vmem>>, vector<1x32xf32>
    %c5_16 = arith.constant 5 : index
    %c0_17 = arith.constant 0 : index
    %23 = vector.load %arg5[%c5_16, %c0_17] : memref<16x32xf32, #tpu.memory_space<vmem>>, vector<1x32xf32>
    tpu.vector_store %arg5[%c5_16, %c0_17], %22 {strides = array<i32>} : memref<16x32xf32, #tpu.memory_space<vmem>>, vector<1x32xf32>,
    %c6 = arith.constant 6 : index
    %24 = memref.load %arg1[%c6] : memref<16xi32, #tpu.memory_space<smem>>
    %25 = arith.index_cast %24 : i32 to index
    %c0_18 = arith.constant 0 : index
    %26 = vector.load %arg2[%25, %c0_18] : memref<1904x128xf32, #tpu.memory_space<vmem>>, vector<1x32xf32>
    %c6_19 = arith.constant 6 : index
    %c0_20 = arith.constant 0 : index
    %27 = vector.load %arg5[%c6_19, %c0_20] : memref<16x32xf32, #tpu.memory_space<vmem>>, vector<1x32xf32>
    tpu.vector_store %arg5[%c6_19, %c0_20], %26 {strides = array<i32>} : memref<16x32xf32, #tpu.memory_space<vmem>>, vector<1x32xf32>,
    %c7 = arith.constant 7 : index
    %28 = memref.load %arg1[%c7] : memref<16xi32, #tpu.memory_space<smem>>
    %29 = arith.index_cast %28 : i32 to index
    %c0_21 = arith.constant 0 : index
    %30 = vector.load %arg2[%29, %c0_21] : memref<1904x128xf32, #tpu.memory_space<vmem>>, vector<1x32xf32>
    %c7_22 = arith.constant 7 : index
    %c0_23 = arith.constant 0 : index
    %31 = vector.load %arg5[%c7_22, %c0_23] : memref<16x32xf32, #tpu.memory_space<vmem>>, vector<1x32xf32>
    tpu.vector_store %arg5[%c7_22, %c0_23], %30 {strides = array<i32>} : memref<16x32xf32, #tpu.memory_space<vmem>>, vector<1x32xf32>,
    %c8 = arith.constant 8 : index
    %32 = memref.load %arg1[%c8] : memref<16xi32, #tpu.memory_space<smem>>
    %33 = arith.index_cast %32 : i32 to index
    %c0_24 = arith.constant 0 : index
    %34 = vector.load %arg2[%33, %c0_24] : memref<1904x128xf32, #tpu.memory_space<vmem>>, vector<1x32xf32>
    %c8_25 = arith.constant 8 : index
    %c0_26 = arith.constant 0 : index
    %35 = vector.load %arg5[%c8_25, %c0_26] : memref<16x32xf32, #tpu.memory_space<vmem>>, vector<1x32xf32>
    tpu.vector_store %arg5[%c8_25, %c0_26], %34 {strides = array<i32>} : memref<16x32xf32, #tpu.memory_space<vmem>>, vector<1x32xf32>,
    %c9 = arith.constant 9 : index
    %36 = memref.load %arg1[%c9] : memref<16xi32, #tpu.memory_space<smem>>
    %37 = arith.index_cast %36 : i32 to index
    %c0_27 = arith.constant 0 : index
    %38 = vector.load %arg2[%37, %c0_27] : memref<1904x128xf32, #tpu.memory_space<vmem>>, vector<1x32xf32>
    %c9_28 = arith.constant 9 : index
    %c0_29 = arith.constant 0 : index
    %39 = vector.load %arg5[%c9_28, %c0_29] : memref<16x32xf32, #tpu.memory_space<vmem>>, vector<1x32xf32>
    tpu.vector_store %arg5[%c9_28, %c0_29], %38 {strides = array<i32>} : memref<16x32xf32, #tpu.memory_space<vmem>>, vector<1x32xf32>,
    %c10 = arith.constant 10 : index
    %40 = memref.load %arg1[%c10] : memref<16xi32, #tpu.memory_space<smem>>
    %41 = arith.index_cast %40 : i32 to index
    %c0_30 = arith.constant 0 : index
    %42 = vector.load %arg2[%41, %c0_30] : memref<1904x128xf32, #tpu.memory_space<vmem>>, vector<1x32xf32>
    %c10_31 = arith.constant 10 : index
    %c0_32 = arith.constant 0 : index
    %43 = vector.load %arg5[%c10_31, %c0_32] : memref<16x32xf32, #tpu.memory_space<vmem>>, vector<1x32xf32>
    tpu.vector_store %arg5[%c10_31, %c0_32], %42 {strides = array<i32>} : memref<16x32xf32, #tpu.memory_space<vmem>>, vector<1x32xf32>,
    %c11 = arith.constant 11 : index
    %44 = memref.load %arg1[%c11] : memref<16xi32, #tpu.memory_space<smem>>
    %45 = arith.index_cast %44 : i32 to index
    %c0_33 = arith.constant 0 : index
    %46 = vector.load %arg2[%45, %c0_33] : memref<1904x128xf32, #tpu.memory_space<vmem>>, vector<1x32xf32>
    %c11_34 = arith.constant 11 : index
    %c0_35 = arith.constant 0 : index
    %47 = vector.load %arg5[%c11_34, %c0_35] : memref<16x32xf32, #tpu.memory_space<vmem>>, vector<1x32xf32>
    tpu.vector_store %arg5[%c11_34, %c0_35], %46 {strides = array<i32>} : memref<16x32xf32, #tpu.memory_space<vmem>>, vector<1x32xf32>,
    %c12 = arith.constant 12 : index
    %48 = memref.load %arg1[%c12] : memref<16xi32, #tpu.memory_space<smem>>
    %49 = arith.index_cast %48 : i32 to index
    %c0_36 = arith.constant 0 : index
    %50 = vector.load %arg2[%49, %c0_36] : memref<1904x128xf32, #tpu.memory_space<vmem>>, vector<1x32xf32>
    %c12_37 = arith.constant 12 : index
    %c0_38 = arith.constant 0 : index
    %51 = vector.load %arg5[%c12_37, %c0_38] : memref<16x32xf32, #tpu.memory_space<vmem>>, vector<1x32xf32>
    tpu.vector_store %arg5[%c12_37, %c0_38], %50 {strides = array<i32>} : memref<16x32xf32, #tpu.memory_space<vmem>>, vector<1x32xf32>,
    %c13 = arith.constant 13 : index
    %52 = memref.load %arg1[%c13] : memref<16xi32, #tpu.memory_space<smem>>
    %53 = arith.index_cast %52 : i32 to index
    %c0_39 = arith.constant 0 : index
    %54 = vector.load %arg2[%53, %c0_39] : memref<1904x128xf32, #tpu.memory_space<vmem>>, vector<1x32xf32>
    %c13_40 = arith.constant 13 : index
    %c0_41 = arith.constant 0 : index
    %55 = vector.load %arg5[%c13_40, %c0_41] : memref<16x32xf32, #tpu.memory_space<vmem>>, vector<1x32xf32>
    tpu.vector_store %arg5[%c13_40, %c0_41], %54 {strides = array<i32>} : memref<16x32xf32, #tpu.memory_space<vmem>>, vector<1x32xf32>,
    %c14 = arith.constant 14 : index
    %56 = memref.load %arg1[%c14] : memref<16xi32, #tpu.memory_space<smem>>
    %57 = arith.index_cast %56 : i32 to index
    %c0_42 = arith.constant 0 : index
    %58 = vector.load %arg2[%57, %c0_42] : memref<1904x128xf32, #tpu.memory_space<vmem>>, vector<1x32xf32>
    %c14_43 = arith.constant 14 : index
    %c0_44 = arith.constant 0 : index
    %59 = vector.load %arg5[%c14_43, %c0_44] : memref<16x32xf32, #tpu.memory_space<vmem>>, vector<1x32xf32>
    tpu.vector_store %arg5[%c14_43, %c0_44], %58 {strides = array<i32>} : memref<16x32xf32, #tpu.memory_space<vmem>>, vector<1x32xf32>,
    %c15 = arith.constant 15 : index
    %60 = memref.load %arg1[%c15] : memref<16xi32, #tpu.memory_space<smem>>
    %61 = arith.index_cast %60 : i32 to index
    %c0_45 = arith.constant 0 : index
    %62 = vector.load %arg2[%61, %c0_45] : memref<1904x128xf32, #tpu.memory_space<vmem>>, vector<1x32xf32>
    %c15_46 = arith.constant 15 : index
    %c0_47 = arith.constant 0 : index
    %63 = vector.load %arg5[%c15_46, %c0_47] : memref<16x32xf32, #tpu.memory_space<vmem>>, vector<1x32xf32>
    tpu.vector_store %arg5[%c15_46, %c0_47], %62 {strides = array<i32>} : memref<16x32xf32, #tpu.memory_space<vmem>>, vector<1x32xf32>,
    %c0_48 = arith.constant 0 : index
    %c0_49 = arith.constant 0 : index
    %64 = vector.load %arg5[%c0_48, %c0_49] : memref<16x32xf32, #tpu.memory_space<vmem>>, vector<16x32xf32>
    %c512 = arith.constant 512 : index
    %c0_50 = arith.constant 0 : index
    %65 = vector.load %arg2[%c512, %c0_50] : memref<1904x128xf32, #tpu.memory_space<vmem>>, vector<16x32xf32>
    %66 = arith.addf %64, %65 : vector<16x32xf32>
    %c528 = arith.constant 528 : index
    %c0_51 = arith.constant 0 : index
    %67 = vector.load %arg2[%c528, %c0_51] : memref<1904x128xf32, #tpu.memory_space<vmem>>, vector<32x96xf32>
    %c560 = arith.constant 560 : index
    %c0_52 = arith.constant 0 : index
    %68 = vector.load %arg2[%c560, %c0_52] : memref<1904x128xf32, #tpu.memory_space<vmem>>, vector<1x96xf32>
    %c568 = arith.constant 568 : index
    %c0_53 = arith.constant 0 : index
    %69 = vector.load %arg2[%c568, %c0_53] : memref<1904x128xf32, #tpu.memory_space<vmem>>, vector<32x32xf32>
    %c600 = arith.constant 600 : index
    %c0_54 = arith.constant 0 : index
    %70 = vector.load %arg2[%c600, %c0_54] : memref<1904x128xf32, #tpu.memory_space<vmem>>, vector<1x32xf32>
    %71 = vector.extract_strided_slice %67 {offsets = [0, 0], sizes = [32, 32], strides = [1, 1]} : vector<32x96xf32> to vector<32x32xf32>
    %cst = arith.constant dense<0.000000e+00> : vector<16x32xf32>
    %72 = tpu.matmul %66, %71, %cst {dimension_numbers = #tpu.dot_dimension_numbers<[1], [0], [0], [1], [0, 0, 1, 1], [], []>} : vector<16x32xf32>, vector<32x32xf32>, vector<16x32xf32> -> vector<16x32xf32>
    %73 = vector.extract_strided_slice %68 {offsets = [0, 0], sizes = [1, 32], strides = [1, 1]} : vector<1x96xf32> to vector<1x32xf32>
    %74 = vector.broadcast %73 : vector<1x32xf32> to vector<16x32xf32>
    %75 = arith.addf %72, %74 : vector<16x32xf32>
    %76 = vector.extract_strided_slice %67 {offsets = [0, 32], sizes = [32, 64], strides = [1, 1]} : vector<32x96xf32> to vector<32x64xf32>
    %cst_55 = arith.constant dense<0.000000e+00> : vector<16x64xf32>
    %77 = tpu.matmul %66, %76, %cst_55 {dimension_numbers = #tpu.dot_dimension_numbers<[1], [0], [0], [1], [0, 0, 1, 1], [], []>} : vector<16x32xf32>, vector<32x64xf32>, vector<16x64xf32> -> vector<16x64xf32>
    %78 = vector.extract_strided_slice %68 {offsets = [0, 32], sizes = [1, 64], strides = [1, 1]} : vector<1x96xf32> to vector<1x64xf32>
    %79 = vector.broadcast %78 : vector<1x64xf32> to vector<16x64xf32>
    %80 = arith.addf %77, %79 : vector<16x64xf32>
    %81 = vector.extract_strided_slice %80 {offsets = [0, 0], sizes = [16, 32], strides = [1, 1]} : vector<16x64xf32> to vector<16x32xf32>
    %82 = vector.extract_strided_slice %80 {offsets = [0, 32], sizes = [16, 32], strides = [1, 1]} : vector<16x64xf32> to vector<16x32xf32>
    %cst_56 = arith.constant 0.000000e+00 : f32
    %83 = vector.broadcast %cst_56 : f32 to vector<8x32xf32>
    %84 = vector.extract_strided_slice %75 {offsets = [0, 0], sizes = [8, 8], strides = [1, 1]} : vector<16x32xf32> to vector<8x8xf32>
    %cst_57 = arith.constant 0.353553385 : f32
    %85 = vector.broadcast %cst_57 : f32 to vector<8x8xf32>
    %86 = arith.mulf %84, %85 : vector<8x8xf32>
    %87 = vector.extract_strided_slice %81 {offsets = [0, 0], sizes = [8, 8], strides = [1, 1]} : vector<16x32xf32> to vector<8x8xf32>
    %cst_58 = arith.constant dense<0.000000e+00> : vector<8x8xf32>
    %88 = tpu.matmul %86, %87, %cst_58 {dimension_numbers = #tpu.dot_dimension_numbers<[1], [1], [0], [0], [0, 0, 1, 0], [], []>} : vector<8x8xf32>, vector<8x8xf32>, vector<8x8xf32> -> vector<8x8xf32>
    %cst_59 = arith.constant dense<0xFF800000> : vector<8xf32>
    %89 = vector.multi_reduction <maximumf>, %88, %cst_59 [1] : vector<8x8xf32> to vector<8xf32>
    %90 = vector.shape_cast %89 : vector<8xf32> to vector<8x1xf32>
    %91 = vector.broadcast %90 : vector<8x1xf32> to vector<8x8xf32>
    %92 = arith.subf %88, %91 : vector<8x8xf32>
    %93 = math.exp %92 : vector<8x8xf32>
    %cst_60 = arith.constant dense<0.000000e+00> : vector<8xf32>
    %94 = vector.multi_reduction <add>, %93, %cst_60 [1] : vector<8x8xf32> to vector<8xf32>
    %95 = vector.shape_cast %94 : vector<8xf32> to vector<8x1xf32>
    %96 = tpu.reciprocal %95 {approx = true} : vector<8x1xf32> -> vector<8x1xf32>
    %97 = vector.broadcast %96 : vector<8x1xf32> to vector<8x8xf32>
    %98 = arith.mulf %93, %97 : vector<8x8xf32>
    %99 = vector.extract_strided_slice %82 {offsets = [0, 0], sizes = [8, 8], strides = [1, 1]} : vector<16x32xf32> to vector<8x8xf32>
    %cst_61 = arith.constant dense<0.000000e+00> : vector<8x8xf32>
    %100 = tpu.matmul %98, %99, %cst_61 {dimension_numbers = #tpu.dot_dimension_numbers<[1], [0], [0], [1], [0, 0, 1, 1], [], []>} : vector<8x8xf32>, vector<8x8xf32>, vector<8x8xf32> -> vector<8x8xf32>
    %101 = vector.extract_strided_slice %69 {offsets = [0, 0], sizes = [8, 32], strides = [1, 1]} : vector<32x32xf32> to vector<8x32xf32>
    %cst_62 = arith.constant dense<0.000000e+00> : vector<8x32xf32>
    %102 = tpu.matmul %100, %101, %cst_62 {dimension_numbers = #tpu.dot_dimension_numbers<[1], [0], [0], [1], [0, 0, 1, 1], [], []>} : vector<8x8xf32>, vector<8x32xf32>, vector<8x32xf32> -> vector<8x32xf32>
    %103 = arith.addf %83, %102 : vector<8x32xf32>
    %104 = vector.extract_strided_slice %75 {offsets = [0, 8], sizes = [8, 8], strides = [1, 1]} : vector<16x32xf32> to vector<8x8xf32>
    %cst_63 = arith.constant 0.353553385 : f32
    %105 = vector.broadcast %cst_63 : f32 to vector<8x8xf32>
    %106 = arith.mulf %104, %105 : vector<8x8xf32>
    %107 = vector.extract_strided_slice %81 {offsets = [0, 8], sizes = [8, 8], strides = [1, 1]} : vector<16x32xf32> to vector<8x8xf32>
    %cst_64 = arith.constant dense<0.000000e+00> : vector<8x8xf32>
    %108 = tpu.matmul %106, %107, %cst_64 {dimension_numbers = #tpu.dot_dimension_numbers<[1], [1], [0], [0], [0, 0, 1, 0], [], []>} : vector<8x8xf32>, vector<8x8xf32>, vector<8x8xf32> -> vector<8x8xf32>
    %cst_65 = arith.constant dense<0xFF800000> : vector<8xf32>
    %109 = vector.multi_reduction <maximumf>, %108, %cst_65 [1] : vector<8x8xf32> to vector<8xf32>
    %110 = vector.shape_cast %109 : vector<8xf32> to vector<8x1xf32>
    %111 = vector.broadcast %110 : vector<8x1xf32> to vector<8x8xf32>
    %112 = arith.subf %108, %111 : vector<8x8xf32>
    %113 = math.exp %112 : vector<8x8xf32>
    %cst_66 = arith.constant dense<0.000000e+00> : vector<8xf32>
    %114 = vector.multi_reduction <add>, %113, %cst_66 [1] : vector<8x8xf32> to vector<8xf32>
    %115 = vector.shape_cast %114 : vector<8xf32> to vector<8x1xf32>
    %116 = tpu.reciprocal %115 {approx = true} : vector<8x1xf32> -> vector<8x1xf32>
    %117 = vector.broadcast %116 : vector<8x1xf32> to vector<8x8xf32>
    %118 = arith.mulf %113, %117 : vector<8x8xf32>
    %119 = vector.extract_strided_slice %82 {offsets = [0, 8], sizes = [8, 8], strides = [1, 1]} : vector<16x32xf32> to vector<8x8xf32>
    %cst_67 = arith.constant dense<0.000000e+00> : vector<8x8xf32>
    %120 = tpu.matmul %118, %119, %cst_67 {dimension_numbers = #tpu.dot_dimension_numbers<[1], [0], [0], [1], [0, 0, 1, 1], [], []>} : vector<8x8xf32>, vector<8x8xf32>, vector<8x8xf32> -> vector<8x8xf32>
    %121 = vector.extract_strided_slice %69 {offsets = [8, 0], sizes = [8, 32], strides = [1, 1]} : vector<32x32xf32> to vector<8x32xf32>
    %cst_68 = arith.constant dense<0.000000e+00> : vector<8x32xf32>
    %122 = tpu.matmul %120, %121, %cst_68 {dimension_numbers = #tpu.dot_dimension_numbers<[1], [0], [0], [1], [0, 0, 1, 1], [], []>} : vector<8x8xf32>, vector<8x32xf32>, vector<8x32xf32> -> vector<8x32xf32>
    %123 = arith.addf %103, %122 : vector<8x32xf32>
    %124 = vector.extract_strided_slice %75 {offsets = [0, 16], sizes = [8, 8], strides = [1, 1]} : vector<16x32xf32> to vector<8x8xf32>
    %cst_69 = arith.constant 0.353553385 : f32
    %125 = vector.broadcast %cst_69 : f32 to vector<8x8xf32>
    %126 = arith.mulf %124, %125 : vector<8x8xf32>
    %127 = vector.extract_strided_slice %81 {offsets = [0, 16], sizes = [8, 8], strides = [1, 1]} : vector<16x32xf32> to vector<8x8xf32>
    %cst_70 = arith.constant dense<0.000000e+00> : vector<8x8xf32>
    %128 = tpu.matmul %126, %127, %cst_70 {dimension_numbers = #tpu.dot_dimension_numbers<[1], [1], [0], [0], [0, 0, 1, 0], [], []>} : vector<8x8xf32>, vector<8x8xf32>, vector<8x8xf32> -> vector<8x8xf32>
    %cst_71 = arith.constant dense<0xFF800000> : vector<8xf32>
    %129 = vector.multi_reduction <maximumf>, %128, %cst_71 [1] : vector<8x8xf32> to vector<8xf32>
    %130 = vector.shape_cast %129 : vector<8xf32> to vector<8x1xf32>
    %131 = vector.broadcast %130 : vector<8x1xf32> to vector<8x8xf32>
    %132 = arith.subf %128, %131 : vector<8x8xf32>
    %133 = math.exp %132 : vector<8x8xf32>
    %cst_72 = arith.constant dense<0.000000e+00> : vector<8xf32>
    %134 = vector.multi_reduction <add>, %133, %cst_72 [1] : vector<8x8xf32> to vector<8xf32>
    %135 = vector.shape_cast %134 : vector<8xf32> to vector<8x1xf32>
    %136 = tpu.reciprocal %135 {approx = true} : vector<8x1xf32> -> vector<8x1xf32>
    %137 = vector.broadcast %136 : vector<8x1xf32> to vector<8x8xf32>
    %138 = arith.mulf %133, %137 : vector<8x8xf32>
    %139 = vector.extract_strided_slice %82 {offsets = [0, 16], sizes = [8, 8], strides = [1, 1]} : vector<16x32xf32> to vector<8x8xf32>
    %cst_73 = arith.constant dense<0.000000e+00> : vector<8x8xf32>
    %140 = tpu.matmul %138, %139, %cst_73 {dimension_numbers = #tpu.dot_dimension_numbers<[1], [0], [0], [1], [0, 0, 1, 1], [], []>} : vector<8x8xf32>, vector<8x8xf32>, vector<8x8xf32> -> vector<8x8xf32>
    %141 = vector.extract_strided_slice %69 {offsets = [16, 0], sizes = [8, 32], strides = [1, 1]} : vector<32x32xf32> to vector<8x32xf32>
    %cst_74 = arith.constant dense<0.000000e+00> : vector<8x32xf32>
    %142 = tpu.matmul %140, %141, %cst_74 {dimension_numbers = #tpu.dot_dimension_numbers<[1], [0], [0], [1], [0, 0, 1, 1], [], []>} : vector<8x8xf32>, vector<8x32xf32>, vector<8x32xf32> -> vector<8x32xf32>
    %143 = arith.addf %123, %142 : vector<8x32xf32>
    %144 = vector.extract_strided_slice %75 {offsets = [0, 24], sizes = [8, 8], strides = [1, 1]} : vector<16x32xf32> to vector<8x8xf32>
    %cst_75 = arith.constant 0.353553385 : f32
    %145 = vector.broadcast %cst_75 : f32 to vector<8x8xf32>
    %146 = arith.mulf %144, %145 : vector<8x8xf32>
    %147 = vector.extract_strided_slice %81 {offsets = [0, 24], sizes = [8, 8], strides = [1, 1]} : vector<16x32xf32> to vector<8x8xf32>
    %cst_76 = arith.constant dense<0.000000e+00> : vector<8x8xf32>
    %148 = tpu.matmul %146, %147, %cst_76 {dimension_numbers = #tpu.dot_dimension_numbers<[1], [1], [0], [0], [0, 0, 1, 0], [], []>} : vector<8x8xf32>, vector<8x8xf32>, vector<8x8xf32> -> vector<8x8xf32>
    %cst_77 = arith.constant dense<0xFF800000> : vector<8xf32>
    %149 = vector.multi_reduction <maximumf>, %148, %cst_77 [1] : vector<8x8xf32> to vector<8xf32>
    %150 = vector.shape_cast %149 : vector<8xf32> to vector<8x1xf32>
    %151 = vector.broadcast %150 : vector<8x1xf32> to vector<8x8xf32>
    %152 = arith.subf %148, %151 : vector<8x8xf32>
    %153 = math.exp %152 : vector<8x8xf32>
    %cst_78 = arith.constant dense<0.000000e+00> : vector<8xf32>
    %154 = vector.multi_reduction <add>, %153, %cst_78 [1] : vector<8x8xf32> to vector<8xf32>
    %155 = vector.shape_cast %154 : vector<8xf32> to vector<8x1xf32>
    %156 = tpu.reciprocal %155 {approx = true} : vector<8x1xf32> -> vector<8x1xf32>
    %157 = vector.broadcast %156 : vector<8x1xf32> to vector<8x8xf32>
    %158 = arith.mulf %153, %157 : vector<8x8xf32>
    %159 = vector.extract_strided_slice %82 {offsets = [0, 24], sizes = [8, 8], strides = [1, 1]} : vector<16x32xf32> to vector<8x8xf32>
    %cst_79 = arith.constant dense<0.000000e+00> : vector<8x8xf32>
    %160 = tpu.matmul %158, %159, %cst_79 {dimension_numbers = #tpu.dot_dimension_numbers<[1], [0], [0], [1], [0, 0, 1, 1], [], []>} : vector<8x8xf32>, vector<8x8xf32>, vector<8x8xf32> -> vector<8x8xf32>
    %161 = vector.extract_strided_slice %69 {offsets = [24, 0], sizes = [8, 32], strides = [1, 1]} : vector<32x32xf32> to vector<8x32xf32>
    %cst_80 = arith.constant dense<0.000000e+00> : vector<8x32xf32>
    %162 = tpu.matmul %160, %161, %cst_80 {dimension_numbers = #tpu.dot_dimension_numbers<[1], [0], [0], [1], [0, 0, 1, 1], [], []>} : vector<8x8xf32>, vector<8x32xf32>, vector<8x32xf32> -> vector<8x32xf32>
    %163 = arith.addf %143, %162 : vector<8x32xf32>
    %cst_81 = arith.constant 0.000000e+00 : f32
    %164 = vector.broadcast %cst_81 : f32 to vector<8x32xf32>
    %165 = vector.extract_strided_slice %75 {offsets = [8, 0], sizes = [8, 8], strides = [1, 1]} : vector<16x32xf32> to vector<8x8xf32>
    %cst_82 = arith.constant 0.353553385 : f32
    %166 = vector.broadcast %cst_82 : f32 to vector<8x8xf32>
    %167 = arith.mulf %165, %166 : vector<8x8xf32>
    %168 = vector.extract_strided_slice %81 {offsets = [8, 0], sizes = [8, 8], strides = [1, 1]} : vector<16x32xf32> to vector<8x8xf32>
    %cst_83 = arith.constant dense<0.000000e+00> : vector<8x8xf32>
    %169 = tpu.matmul %167, %168, %cst_83 {dimension_numbers = #tpu.dot_dimension_numbers<[1], [1], [0], [0], [0, 0, 1, 0], [], []>} : vector<8x8xf32>, vector<8x8xf32>, vector<8x8xf32> -> vector<8x8xf32>
    %cst_84 = arith.constant dense<0xFF800000> : vector<8xf32>
    %170 = vector.multi_reduction <maximumf>, %169, %cst_84 [1] : vector<8x8xf32> to vector<8xf32>
    %171 = vector.shape_cast %170 : vector<8xf32> to vector<8x1xf32>
    %172 = vector.broadcast %171 : vector<8x1xf32> to vector<8x8xf32>
    %173 = arith.subf %169, %172 : vector<8x8xf32>
    %174 = math.exp %173 : vector<8x8xf32>
    %cst_85 = arith.constant dense<0.000000e+00> : vector<8xf32>
    %175 = vector.multi_reduction <add>, %174, %cst_85 [1] : vector<8x8xf32> to vector<8xf32>
    %176 = vector.shape_cast %175 : vector<8xf32> to vector<8x1xf32>
    %177 = tpu.reciprocal %176 {approx = true} : vector<8x1xf32> -> vector<8x1xf32>
    %178 = vector.broadcast %177 : vector<8x1xf32> to vector<8x8xf32>
    %179 = arith.mulf %174, %178 : vector<8x8xf32>
    %180 = vector.extract_strided_slice %82 {offsets = [8, 0], sizes = [8, 8], strides = [1, 1]} : vector<16x32xf32> to vector<8x8xf32>
    %cst_86 = arith.constant dense<0.000000e+00> : vector<8x8xf32>
    %181 = tpu.matmul %179, %180, %cst_86 {dimension_numbers = #tpu.dot_dimension_numbers<[1], [0], [0], [1], [0, 0, 1, 1], [], []>} : vector<8x8xf32>, vector<8x8xf32>, vector<8x8xf32> -> vector<8x8xf32>
    %182 = vector.extract_strided_slice %69 {offsets = [0, 0], sizes = [8, 32], strides = [1, 1]} : vector<32x32xf32> to vector<8x32xf32>
    %cst_87 = arith.constant dense<0.000000e+00> : vector<8x32xf32>
    %183 = tpu.matmul %181, %182, %cst_87 {dimension_numbers = #tpu.dot_dimension_numbers<[1], [0], [0], [1], [0, 0, 1, 1], [], []>} : vector<8x8xf32>, vector<8x32xf32>, vector<8x32xf32> -> vector<8x32xf32>
    %184 = arith.addf %164, %183 : vector<8x32xf32>
    %185 = vector.extract_strided_slice %75 {offsets = [8, 8], sizes = [8, 8], strides = [1, 1]} : vector<16x32xf32> to vector<8x8xf32>
    %cst_88 = arith.constant 0.353553385 : f32
    %186 = vector.broadcast %cst_88 : f32 to vector<8x8xf32>
    %187 = arith.mulf %185, %186 : vector<8x8xf32>
    %188 = vector.extract_strided_slice %81 {offsets = [8, 8], sizes = [8, 8], strides = [1, 1]} : vector<16x32xf32> to vector<8x8xf32>
    %cst_89 = arith.constant dense<0.000000e+00> : vector<8x8xf32>
    %189 = tpu.matmul %187, %188, %cst_89 {dimension_numbers = #tpu.dot_dimension_numbers<[1], [1], [0], [0], [0, 0, 1, 0], [], []>} : vector<8x8xf32>, vector<8x8xf32>, vector<8x8xf32> -> vector<8x8xf32>
    %cst_90 = arith.constant dense<0xFF800000> : vector<8xf32>
    %190 = vector.multi_reduction <maximumf>, %189, %cst_90 [1] : vector<8x8xf32> to vector<8xf32>
    %191 = vector.shape_cast %190 : vector<8xf32> to vector<8x1xf32>
    %192 = vector.broadcast %191 : vector<8x1xf32> to vector<8x8xf32>
    %193 = arith.subf %189, %192 : vector<8x8xf32>
    %194 = math.exp %193 : vector<8x8xf32>
    %cst_91 = arith.constant dense<0.000000e+00> : vector<8xf32>
    %195 = vector.multi_reduction <add>, %194, %cst_91 [1] : vector<8x8xf32> to vector<8xf32>
    %196 = vector.shape_cast %195 : vector<8xf32> to vector<8x1xf32>
    %197 = tpu.reciprocal %196 {approx = true} : vector<8x1xf32> -> vector<8x1xf32>
    %198 = vector.broadcast %197 : vector<8x1xf32> to vector<8x8xf32>
    %199 = arith.mulf %194, %198 : vector<8x8xf32>
    %200 = vector.extract_strided_slice %82 {offsets = [8, 8], sizes = [8, 8], strides = [1, 1]} : vector<16x32xf32> to vector<8x8xf32>
    %cst_92 = arith.constant dense<0.000000e+00> : vector<8x8xf32>
    %201 = tpu.matmul %199, %200, %cst_92 {dimension_numbers = #tpu.dot_dimension_numbers<[1], [0], [0], [1], [0, 0, 1, 1], [], []>} : vector<8x8xf32>, vector<8x8xf32>, vector<8x8xf32> -> vector<8x8xf32>
    %202 = vector.extract_strided_slice %69 {offsets = [8, 0], sizes = [8, 32], strides = [1, 1]} : vector<32x32xf32> to vector<8x32xf32>
    %cst_93 = arith.constant dense<0.000000e+00> : vector<8x32xf32>
    %203 = tpu.matmul %201, %202, %cst_93 {dimension_numbers = #tpu.dot_dimension_numbers<[1], [0], [0], [1], [0, 0, 1, 1], [], []>} : vector<8x8xf32>, vector<8x32xf32>, vector<8x32xf32> -> vector<8x32xf32>
    %204 = arith.addf %184, %203 : vector<8x32xf32>
    %205 = vector.extract_strided_slice %75 {offsets = [8, 16], sizes = [8, 8], strides = [1, 1]} : vector<16x32xf32> to vector<8x8xf32>
    %cst_94 = arith.constant 0.353553385 : f32
    %206 = vector.broadcast %cst_94 : f32 to vector<8x8xf32>
    %207 = arith.mulf %205, %206 : vector<8x8xf32>
    %208 = vector.extract_strided_slice %81 {offsets = [8, 16], sizes = [8, 8], strides = [1, 1]} : vector<16x32xf32> to vector<8x8xf32>
    %cst_95 = arith.constant dense<0.000000e+00> : vector<8x8xf32>
    %209 = tpu.matmul %207, %208, %cst_95 {dimension_numbers = #tpu.dot_dimension_numbers<[1], [1], [0], [0], [0, 0, 1, 0], [], []>} : vector<8x8xf32>, vector<8x8xf32>, vector<8x8xf32> -> vector<8x8xf32>
    %cst_96 = arith.constant dense<0xFF800000> : vector<8xf32>
    %210 = vector.multi_reduction <maximumf>, %209, %cst_96 [1] : vector<8x8xf32> to vector<8xf32>
    %211 = vector.shape_cast %210 : vector<8xf32> to vector<8x1xf32>
    %212 = vector.broadcast %211 : vector<8x1xf32> to vector<8x8xf32>
    %213 = arith.subf %209, %212 : vector<8x8xf32>
    %214 = math.exp %213 : vector<8x8xf32>
    %cst_97 = arith.constant dense<0.000000e+00> : vector<8xf32>
    %215 = vector.multi_reduction <add>, %214, %cst_97 [1] : vector<8x8xf32> to vector<8xf32>
    %216 = vector.shape_cast %215 : vector<8xf32> to vector<8x1xf32>
    %217 = tpu.reciprocal %216 {approx = true} : vector<8x1xf32> -> vector<8x1xf32>
    %218 = vector.broadcast %217 : vector<8x1xf32> to vector<8x8xf32>
    %219 = arith.mulf %214, %218 : vector<8x8xf32>
    %220 = vector.extract_strided_slice %82 {offsets = [8, 16], sizes = [8, 8], strides = [1, 1]} : vector<16x32xf32> to vector<8x8xf32>
    %cst_98 = arith.constant dense<0.000000e+00> : vector<8x8xf32>
    %221 = tpu.matmul %219, %220, %cst_98 {dimension_numbers = #tpu.dot_dimension_numbers<[1], [0], [0], [1], [0, 0, 1, 1], [], []>} : vector<8x8xf32>, vector<8x8xf32>, vector<8x8xf32> -> vector<8x8xf32>
    %222 = vector.extract_strided_slice %69 {offsets = [16, 0], sizes = [8, 32], strides = [1, 1]} : vector<32x32xf32> to vector<8x32xf32>
    %cst_99 = arith.constant dense<0.000000e+00> : vector<8x32xf32>
    %223 = tpu.matmul %221, %222, %cst_99 {dimension_numbers = #tpu.dot_dimension_numbers<[1], [0], [0], [1], [0, 0, 1, 1], [], []>} : vector<8x8xf32>, vector<8x32xf32>, vector<8x32xf32> -> vector<8x32xf32>
    %224 = arith.addf %204, %223 : vector<8x32xf32>
    %225 = vector.extract_strided_slice %75 {offsets = [8, 24], sizes = [8, 8], strides = [1, 1]} : vector<16x32xf32> to vector<8x8xf32>
    %cst_100 = arith.constant 0.353553385 : f32
    %226 = vector.broadcast %cst_100 : f32 to vector<8x8xf32>
    %227 = arith.mulf %225, %226 : vector<8x8xf32>
    %228 = vector.extract_strided_slice %81 {offsets = [8, 24], sizes = [8, 8], strides = [1, 1]} : vector<16x32xf32> to vector<8x8xf32>
    %cst_101 = arith.constant dense<0.000000e+00> : vector<8x8xf32>
    %229 = tpu.matmul %227, %228, %cst_101 {dimension_numbers = #tpu.dot_dimension_numbers<[1], [1], [0], [0], [0, 0, 1, 0], [], []>} : vector<8x8xf32>, vector<8x8xf32>, vector<8x8xf32> -> vector<8x8xf32>
    %cst_102 = arith.constant dense<0xFF800000> : vector<8xf32>
    %230 = vector.multi_reduction <maximumf>, %229, %cst_102 [1] : vector<8x8xf32> to vector<8xf32>
    %231 = vector.shape_cast %230 : vector<8xf32> to vector<8x1xf32>
    %232 = vector.broadcast %231 : vector<8x1xf32> to vector<8x8xf32>
    %233 = arith.subf %229, %232 : vector<8x8xf32>
    %234 = math.exp %233 : vector<8x8xf32>
    %cst_103 = arith.constant dense<0.000000e+00> : vector<8xf32>
    %235 = vector.multi_reduction <add>, %234, %cst_103 [1] : vector<8x8xf32> to vector<8xf32>
    %236 = vector.shape_cast %235 : vector<8xf32> to vector<8x1xf32>
    %237 = tpu.reciprocal %236 {approx = true} : vector<8x1xf32> -> vector<8x1xf32>
    %238 = vector.broadcast %237 : vector<8x1xf32> to vector<8x8xf32>
    %239 = arith.mulf %234, %238 : vector<8x8xf32>
    %240 = vector.extract_strided_slice %82 {offsets = [8, 24], sizes = [8, 8], strides = [1, 1]} : vector<16x32xf32> to vector<8x8xf32>
    %cst_104 = arith.constant dense<0.000000e+00> : vector<8x8xf32>
    %241 = tpu.matmul %239, %240, %cst_104 {dimension_numbers = #tpu.dot_dimension_numbers<[1], [0], [0], [1], [0, 0, 1, 1], [], []>} : vector<8x8xf32>, vector<8x8xf32>, vector<8x8xf32> -> vector<8x8xf32>
    %242 = vector.extract_strided_slice %69 {offsets = [24, 0], sizes = [8, 32], strides = [1, 1]} : vector<32x32xf32> to vector<8x32xf32>
    %cst_105 = arith.constant dense<0.000000e+00> : vector<8x32xf32>
    %243 = tpu.matmul %241, %242, %cst_105 {dimension_numbers = #tpu.dot_dimension_numbers<[1], [0], [0], [1], [0, 0, 1, 1], [], []>} : vector<8x8xf32>, vector<8x32xf32>, vector<8x32xf32> -> vector<8x32xf32>
    %244 = arith.addf %224, %243 : vector<8x32xf32>
    %245 = tpu.concatenate %163, %244 in 0 : vector<8x32xf32>, vector<8x32xf32> -> vector<16x32xf32>
    %246 = vector.broadcast %70 : vector<1x32xf32> to vector<16x32xf32>
    %247 = arith.addf %245, %246 : vector<16x32xf32>
    %248 = arith.addf %66, %247 : vector<16x32xf32>
    %cst_106 = arith.constant dense<0.000000e+00> : vector<16xf32>
    %249 = vector.multi_reduction <add>, %248, %cst_106 [1] : vector<16x32xf32> to vector<16xf32>
    %250 = vector.shape_cast %249 : vector<16xf32> to vector<16x1xf32>
    %cst_107 = arith.constant 3.200000e+01 : f32
    %251 = vector.broadcast %cst_107 : f32 to vector<16x1xf32>
    %252 = arith.divf %250, %251 : vector<16x1xf32>
    %253 = vector.broadcast %252 : vector<16x1xf32> to vector<16x32xf32>
    %254 = arith.subf %248, %253 : vector<16x32xf32>
    %255 = arith.mulf %254, %254 : vector<16x32xf32>
    %cst_108 = arith.constant dense<0.000000e+00> : vector<16xf32>
    %256 = vector.multi_reduction <add>, %255, %cst_108 [1] : vector<16x32xf32> to vector<16xf32>
    %257 = vector.shape_cast %256 : vector<16xf32> to vector<16x1xf32>
    %cst_109 = arith.constant 3.200000e+01 : f32
    %258 = vector.broadcast %cst_109 : f32 to vector<16x1xf32>
    %259 = arith.divf %257, %258 : vector<16x1xf32>
    %cst_110 = arith.constant 9.99999974E-6 : f32
    %260 = vector.broadcast %cst_110 : f32 to vector<16x1xf32>
    %261 = arith.addf %259, %260 : vector<16x1xf32>
    %262 = math.rsqrt %261 : vector<16x1xf32>
    %263 = vector.broadcast %252 : vector<16x1xf32> to vector<16x32xf32>
    %264 = arith.subf %248, %263 : vector<16x32xf32>
    %265 = vector.broadcast %262 : vector<16x1xf32> to vector<16x32xf32>
    %266 = arith.mulf %264, %265 : vector<16x32xf32>
    %c784 = arith.constant 784 : index
    %c0_111 = arith.constant 0 : index
    %267 = vector.load %arg2[%c784, %c0_111] : memref<1904x128xf32, #tpu.memory_space<vmem>>, vector<1x32xf32>
    %268 = vector.broadcast %267 : vector<1x32xf32> to vector<16x32xf32>
    %269 = arith.mulf %266, %268 : vector<16x32xf32>
    %c792 = arith.constant 792 : index
    %c0_112 = arith.constant 0 : index
    %270 = vector.load %arg2[%c792, %c0_112] : memref<1904x128xf32, #tpu.memory_space<vmem>>, vector<1x32xf32>
    %271 = vector.broadcast %270 : vector<1x32xf32> to vector<16x32xf32>
    %272 = arith.addf %269, %271 : vector<16x32xf32>
    %c608 = arith.constant 608 : index
    %c0_113 = arith.constant 0 : index
    %273 = vector.load %arg2[%c608, %c0_113] : memref<1904x128xf32, #tpu.memory_space<vmem>>, vector<32x128xf32>
    %cst_114 = arith.constant dense<0.000000e+00> : vector<16x128xf32>
    %274 = tpu.matmul %272, %273, %cst_114 {dimension_numbers = #tpu.dot_dimension_numbers<[1], [0], [0], [1], [0, 0, 1, 1], [], []>} : vector<16x32xf32>, vector<32x128xf32>, vector<16x128xf32> -> vector<16x128xf32>
    %c640 = arith.constant 640 : index
    %c0_115 = arith.constant 0 : index
    %275 = vector.load %arg2[%c640, %c0_115] : memref<1904x128xf32, #tpu.memory_space<vmem>>, vector<1x128xf32>
    %276 = vector.broadcast %275 : vector<1x128xf32> to vector<16x128xf32>
    %277 = arith.addf %274, %276 : vector<16x128xf32>
    %cst_116 = arith.constant 0.000000e+00 : f32
    %278 = vector.broadcast %cst_116 : f32 to vector<16x128xf32>
    %279 = arith.maximumf %277, %278 : vector<16x128xf32>
    %c648 = arith.constant 648 : index
    %c0_117 = arith.constant 0 : index
    %280 = vector.load %arg2[%c648, %c0_117] : memref<1904x128xf32, #tpu.memory_space<vmem>>, vector<128x32xf32>
    %cst_118 = arith.constant dense<0.000000e+00> : vector<16x32xf32>
    %281 = tpu.matmul %279, %280, %cst_118 {dimension_numbers = #tpu.dot_dimension_numbers<[1], [0], [0], [1], [0, 0, 1, 1], [], []>} : vector<16x128xf32>, vector<128x32xf32>, vector<16x32xf32> -> vector<16x32xf32>
    %c776 = arith.constant 776 : index
    %c0_119 = arith.constant 0 : index
    %282 = vector.load %arg2[%c776, %c0_119] : memref<1904x128xf32, #tpu.memory_space<vmem>>, vector<1x32xf32>
    %283 = vector.broadcast %282 : vector<1x32xf32> to vector<16x32xf32>
    %284 = arith.addf %281, %283 : vector<16x32xf32>
    %285 = arith.addf %272, %284 : vector<16x32xf32>
    %cst_120 = arith.constant dense<0.000000e+00> : vector<16xf32>
    %286 = vector.multi_reduction <add>, %285, %cst_120 [1] : vector<16x32xf32> to vector<16xf32>
    %287 = vector.shape_cast %286 : vector<16xf32> to vector<16x1xf32>
    %cst_121 = arith.constant 3.200000e+01 : f32
    %288 = vector.broadcast %cst_121 : f32 to vector<16x1xf32>
    %289 = arith.divf %287, %288 : vector<16x1xf32>
    %290 = vector.broadcast %289 : vector<16x1xf32> to vector<16x32xf32>
    %291 = arith.subf %285, %290 : vector<16x32xf32>
    %292 = arith.mulf %291, %291 : vector<16x32xf32>
    %cst_122 = arith.constant dense<0.000000e+00> : vector<16xf32>
    %293 = vector.multi_reduction <add>, %292, %cst_122 [1] : vector<16x32xf32> to vector<16xf32>
    %294 = vector.shape_cast %293 : vector<16xf32> to vector<16x1xf32>
    %cst_123 = arith.constant 3.200000e+01 : f32
    %295 = vector.broadcast %cst_123 : f32 to vector<16x1xf32>
    %296 = arith.divf %294, %295 : vector<16x1xf32>
    %cst_124 = arith.constant 9.99999974E-6 : f32
    %297 = vector.broadcast %cst_124 : f32 to vector<16x1xf32>
    %298 = arith.addf %296, %297 : vector<16x1xf32>
    %299 = math.rsqrt %298 : vector<16x1xf32>
    %300 = vector.broadcast %289 : vector<16x1xf32> to vector<16x32xf32>
    %301 = arith.subf %285, %300 : vector<16x32xf32>
    %302 = vector.broadcast %299 : vector<16x1xf32> to vector<16x32xf32>
    %303 = arith.mulf %301, %302 : vector<16x32xf32>
    %c800 = arith.constant 800 : index
    %c0_125 = arith.constant 0 : index
    %304 = vector.load %arg2[%c800, %c0_125] : memref<1904x128xf32, #tpu.memory_space<vmem>>, vector<1x32xf32>
    %305 = vector.broadcast %304 : vector<1x32xf32> to vector<16x32xf32>
    %306 = arith.mulf %303, %305 : vector<16x32xf32>
    %c808 = arith.constant 808 : index
    %c0_126 = arith.constant 0 : index
    %307 = vector.load %arg2[%c808, %c0_126] : memref<1904x128xf32, #tpu.memory_space<vmem>>, vector<1x32xf32>
    %308 = vector.broadcast %307 : vector<1x32xf32> to vector<16x32xf32>
    %309 = arith.addf %306, %308 : vector<16x32xf32>
    %c816 = arith.constant 816 : index
    %c0_127 = arith.constant 0 : index
    %310 = vector.load %arg2[%c816, %c0_127] : memref<1904x128xf32, #tpu.memory_space<vmem>>, vector<32x96xf32>
    %c848 = arith.constant 848 : index
    %c0_128 = arith.constant 0 : index
    %311 = vector.load %arg2[%c848, %c0_128] : memref<1904x128xf32, #tpu.memory_space<vmem>>, vector<1x96xf32>
    %c856 = arith.constant 856 : index
    %c0_129 = arith.constant 0 : index
    %312 = vector.load %arg2[%c856, %c0_129] : memref<1904x128xf32, #tpu.memory_space<vmem>>, vector<32x32xf32>
    %c888 = arith.constant 888 : index
    %c0_130 = arith.constant 0 : index
    %313 = vector.load %arg2[%c888, %c0_130] : memref<1904x128xf32, #tpu.memory_space<vmem>>, vector<1x32xf32>
    %314 = vector.extract_strided_slice %310 {offsets = [0, 0], sizes = [32, 32], strides = [1, 1]} : vector<32x96xf32> to vector<32x32xf32>
    %cst_131 = arith.constant dense<0.000000e+00> : vector<16x32xf32>
    %315 = tpu.matmul %309, %314, %cst_131 {dimension_numbers = #tpu.dot_dimension_numbers<[1], [0], [0], [1], [0, 0, 1, 1], [], []>} : vector<16x32xf32>, vector<32x32xf32>, vector<16x32xf32> -> vector<16x32xf32>
    %316 = vector.extract_strided_slice %311 {offsets = [0, 0], sizes = [1, 32], strides = [1, 1]} : vector<1x96xf32> to vector<1x32xf32>
    %317 = vector.broadcast %316 : vector<1x32xf32> to vector<16x32xf32>
    %318 = arith.addf %315, %317 : vector<16x32xf32>
    %319 = vector.extract_strided_slice %310 {offsets = [0, 32], sizes = [32, 64], strides = [1, 1]} : vector<32x96xf32> to vector<32x64xf32>
    %cst_132 = arith.constant dense<0.000000e+00> : vector<16x64xf32>
    %320 = tpu.matmul %309, %319, %cst_132 {dimension_numbers = #tpu.dot_dimension_numbers<[1], [0], [0], [1], [0, 0, 1, 1], [], []>} : vector<16x32xf32>, vector<32x64xf32>, vector<16x64xf32> -> vector<16x64xf32>
    %321 = vector.extract_strided_slice %311 {offsets = [0, 32], sizes = [1, 64], strides = [1, 1]} : vector<1x96xf32> to vector<1x64xf32>
    %322 = vector.broadcast %321 : vector<1x64xf32> to vector<16x64xf32>
    %323 = arith.addf %320, %322 : vector<16x64xf32>
    %324 = vector.extract_strided_slice %323 {offsets = [0, 0], sizes = [16, 32], strides = [1, 1]} : vector<16x64xf32> to vector<16x32xf32>
    %325 = vector.extract_strided_slice %323 {offsets = [0, 32], sizes = [16, 32], strides = [1, 1]} : vector<16x64xf32> to vector<16x32xf32>
    %cst_133 = arith.constant 0.000000e+00 : f32
    %326 = vector.broadcast %cst_133 : f32 to vector<8x32xf32>
    %327 = vector.extract_strided_slice %318 {offsets = [0, 0], sizes = [8, 8], strides = [1, 1]} : vector<16x32xf32> to vector<8x8xf32>
    %cst_134 = arith.constant 0.353553385 : f32
    %328 = vector.broadcast %cst_134 : f32 to vector<8x8xf32>
    %329 = arith.mulf %327, %328 : vector<8x8xf32>
    %330 = vector.extract_strided_slice %324 {offsets = [0, 0], sizes = [8, 8], strides = [1, 1]} : vector<16x32xf32> to vector<8x8xf32>
    %cst_135 = arith.constant dense<0.000000e+00> : vector<8x8xf32>
    %331 = tpu.matmul %329, %330, %cst_135 {dimension_numbers = #tpu.dot_dimension_numbers<[1], [1], [0], [0], [0, 0, 1, 0], [], []>} : vector<8x8xf32>, vector<8x8xf32>, vector<8x8xf32> -> vector<8x8xf32>
    %cst_136 = arith.constant dense<0xFF800000> : vector<8xf32>
    %332 = vector.multi_reduction <maximumf>, %331, %cst_136 [1] : vector<8x8xf32> to vector<8xf32>
    %333 = vector.shape_cast %332 : vector<8xf32> to vector<8x1xf32>
    %334 = vector.broadcast %333 : vector<8x1xf32> to vector<8x8xf32>
    %335 = arith.subf %331, %334 : vector<8x8xf32>
    %336 = math.exp %335 : vector<8x8xf32>
    %cst_137 = arith.constant dense<0.000000e+00> : vector<8xf32>
    %337 = vector.multi_reduction <add>, %336, %cst_137 [1] : vector<8x8xf32> to vector<8xf32>
    %338 = vector.shape_cast %337 : vector<8xf32> to vector<8x1xf32>
    %339 = tpu.reciprocal %338 {approx = true} : vector<8x1xf32> -> vector<8x1xf32>
    %340 = vector.broadcast %339 : vector<8x1xf32> to vector<8x8xf32>
    %341 = arith.mulf %336, %340 : vector<8x8xf32>
    %342 = vector.extract_strided_slice %325 {offsets = [0, 0], sizes = [8, 8], strides = [1, 1]} : vector<16x32xf32> to vector<8x8xf32>
    %cst_138 = arith.constant dense<0.000000e+00> : vector<8x8xf32>
    %343 = tpu.matmul %341, %342, %cst_138 {dimension_numbers = #tpu.dot_dimension_numbers<[1], [0], [0], [1], [0, 0, 1, 1], [], []>} : vector<8x8xf32>, vector<8x8xf32>, vector<8x8xf32> -> vector<8x8xf32>
    %344 = vector.extract_strided_slice %312 {offsets = [0, 0], sizes = [8, 32], strides = [1, 1]} : vector<32x32xf32> to vector<8x32xf32>
    %cst_139 = arith.constant dense<0.000000e+00> : vector<8x32xf32>
    %345 = tpu.matmul %343, %344, %cst_139 {dimension_numbers = #tpu.dot_dimension_numbers<[1], [0], [0], [1], [0, 0, 1, 1], [], []>} : vector<8x8xf32>, vector<8x32xf32>, vector<8x32xf32> -> vector<8x32xf32>
    %346 = arith.addf %326, %345 : vector<8x32xf32>
    %347 = vector.extract_strided_slice %318 {offsets = [0, 8], sizes = [8, 8], strides = [1, 1]} : vector<16x32xf32> to vector<8x8xf32>
    %cst_140 = arith.constant 0.353553385 : f32
    %348 = vector.broadcast %cst_140 : f32 to vector<8x8xf32>
    %349 = arith.mulf %347, %348 : vector<8x8xf32>
    %350 = vector.extract_strided_slice %324 {offsets = [0, 8], sizes = [8, 8], strides = [1, 1]} : vector<16x32xf32> to vector<8x8xf32>
    %cst_141 = arith.constant dense<0.000000e+00> : vector<8x8xf32>
    %351 = tpu.matmul %349, %350, %cst_141 {dimension_numbers = #tpu.dot_dimension_numbers<[1], [1], [0], [0], [0, 0, 1, 0], [], []>} : vector<8x8xf32>, vector<8x8xf32>, vector<8x8xf32> -> vector<8x8xf32>
    %cst_142 = arith.constant dense<0xFF800000> : vector<8xf32>
    %352 = vector.multi_reduction <maximumf>, %351, %cst_142 [1] : vector<8x8xf32> to vector<8xf32>
    %353 = vector.shape_cast %352 : vector<8xf32> to vector<8x1xf32>
    %354 = vector.broadcast %353 : vector<8x1xf32> to vector<8x8xf32>
    %355 = arith.subf %351, %354 : vector<8x8xf32>
    %356 = math.exp %355 : vector<8x8xf32>
    %cst_143 = arith.constant dense<0.000000e+00> : vector<8xf32>
    %357 = vector.multi_reduction <add>, %356, %cst_143 [1] : vector<8x8xf32> to vector<8xf32>
    %358 = vector.shape_cast %357 : vector<8xf32> to vector<8x1xf32>
    %359 = tpu.reciprocal %358 {approx = true} : vector<8x1xf32> -> vector<8x1xf32>
    %360 = vector.broadcast %359 : vector<8x1xf32> to vector<8x8xf32>
    %361 = arith.mulf %356, %360 : vector<8x8xf32>
    %362 = vector.extract_strided_slice %325 {offsets = [0, 8], sizes = [8, 8], strides = [1, 1]} : vector<16x32xf32> to vector<8x8xf32>
    %cst_144 = arith.constant dense<0.000000e+00> : vector<8x8xf32>
    %363 = tpu.matmul %361, %362, %cst_144 {dimension_numbers = #tpu.dot_dimension_numbers<[1], [0], [0], [1], [0, 0, 1, 1], [], []>} : vector<8x8xf32>, vector<8x8xf32>, vector<8x8xf32> -> vector<8x8xf32>
    %364 = vector.extract_strided_slice %312 {offsets = [8, 0], sizes = [8, 32], strides = [1, 1]} : vector<32x32xf32> to vector<8x32xf32>
    %cst_145 = arith.constant dense<0.000000e+00> : vector<8x32xf32>
    %365 = tpu.matmul %363, %364, %cst_145 {dimension_numbers = #tpu.dot_dimension_numbers<[1], [0], [0], [1], [0, 0, 1, 1], [], []>} : vector<8x8xf32>, vector<8x32xf32>, vector<8x32xf32> -> vector<8x32xf32>
    %366 = arith.addf %346, %365 : vector<8x32xf32>
    %367 = vector.extract_strided_slice %318 {offsets = [0, 16], sizes = [8, 8], strides = [1, 1]} : vector<16x32xf32> to vector<8x8xf32>
    %cst_146 = arith.constant 0.353553385 : f32
    %368 = vector.broadcast %cst_146 : f32 to vector<8x8xf32>
    %369 = arith.mulf %367, %368 : vector<8x8xf32>
    %370 = vector.extract_strided_slice %324 {offsets = [0, 16], sizes = [8, 8], strides = [1, 1]} : vector<16x32xf32> to vector<8x8xf32>
    %cst_147 = arith.constant dense<0.000000e+00> : vector<8x8xf32>
    %371 = tpu.matmul %369, %370, %cst_147 {dimension_numbers = #tpu.dot_dimension_numbers<[1], [1], [0], [0], [0, 0, 1, 0], [], []>} : vector<8x8xf32>, vector<8x8xf32>, vector<8x8xf32> -> vector<8x8xf32>
    %cst_148 = arith.constant dense<0xFF800000> : vector<8xf32>
    %372 = vector.multi_reduction <maximumf>, %371, %cst_148 [1] : vector<8x8xf32> to vector<8xf32>
    %373 = vector.shape_cast %372 : vector<8xf32> to vector<8x1xf32>
    %374 = vector.broadcast %373 : vector<8x1xf32> to vector<8x8xf32>
    %375 = arith.subf %371, %374 : vector<8x8xf32>
    %376 = math.exp %375 : vector<8x8xf32>
    %cst_149 = arith.constant dense<0.000000e+00> : vector<8xf32>
    %377 = vector.multi_reduction <add>, %376, %cst_149 [1] : vector<8x8xf32> to vector<8xf32>
    %378 = vector.shape_cast %377 : vector<8xf32> to vector<8x1xf32>
    %379 = tpu.reciprocal %378 {approx = true} : vector<8x1xf32> -> vector<8x1xf32>
    %380 = vector.broadcast %379 : vector<8x1xf32> to vector<8x8xf32>
    %381 = arith.mulf %376, %380 : vector<8x8xf32>
    %382 = vector.extract_strided_slice %325 {offsets = [0, 16], sizes = [8, 8], strides = [1, 1]} : vector<16x32xf32> to vector<8x8xf32>
    %cst_150 = arith.constant dense<0.000000e+00> : vector<8x8xf32>
    %383 = tpu.matmul %381, %382, %cst_150 {dimension_numbers = #tpu.dot_dimension_numbers<[1], [0], [0], [1], [0, 0, 1, 1], [], []>} : vector<8x8xf32>, vector<8x8xf32>, vector<8x8xf32> -> vector<8x8xf32>
    %384 = vector.extract_strided_slice %312 {offsets = [16, 0], sizes = [8, 32], strides = [1, 1]} : vector<32x32xf32> to vector<8x32xf32>
    %cst_151 = arith.constant dense<0.000000e+00> : vector<8x32xf32>
    %385 = tpu.matmul %383, %384, %cst_151 {dimension_numbers = #tpu.dot_dimension_numbers<[1], [0], [0], [1], [0, 0, 1, 1], [], []>} : vector<8x8xf32>, vector<8x32xf32>, vector<8x32xf32> -> vector<8x32xf32>
    %386 = arith.addf %366, %385 : vector<8x32xf32>
    %387 = vector.extract_strided_slice %318 {offsets = [0, 24], sizes = [8, 8], strides = [1, 1]} : vector<16x32xf32> to vector<8x8xf32>
    %cst_152 = arith.constant 0.353553385 : f32
    %388 = vector.broadcast %cst_152 : f32 to vector<8x8xf32>
    %389 = arith.mulf %387, %388 : vector<8x8xf32>
    %390 = vector.extract_strided_slice %324 {offsets = [0, 24], sizes = [8, 8], strides = [1, 1]} : vector<16x32xf32> to vector<8x8xf32>
    %cst_153 = arith.constant dense<0.000000e+00> : vector<8x8xf32>
    %391 = tpu.matmul %389, %390, %cst_153 {dimension_numbers = #tpu.dot_dimension_numbers<[1], [1], [0], [0], [0, 0, 1, 0], [], []>} : vector<8x8xf32>, vector<8x8xf32>, vector<8x8xf32> -> vector<8x8xf32>
    %cst_154 = arith.constant dense<0xFF800000> : vector<8xf32>
    %392 = vector.multi_reduction <maximumf>, %391, %cst_154 [1] : vector<8x8xf32> to vector<8xf32>
    %393 = vector.shape_cast %392 : vector<8xf32> to vector<8x1xf32>
    %394 = vector.broadcast %393 : vector<8x1xf32> to vector<8x8xf32>
    %395 = arith.subf %391, %394 : vector<8x8xf32>
    %396 = math.exp %395 : vector<8x8xf32>
    %cst_155 = arith.constant dense<0.000000e+00> : vector<8xf32>
    %397 = vector.multi_reduction <add>, %396, %cst_155 [1] : vector<8x8xf32> to vector<8xf32>
    %398 = vector.shape_cast %397 : vector<8xf32> to vector<8x1xf32>
    %399 = tpu.reciprocal %398 {approx = true} : vector<8x1xf32> -> vector<8x1xf32>
    %400 = vector.broadcast %399 : vector<8x1xf32> to vector<8x8xf32>
    %401 = arith.mulf %396, %400 : vector<8x8xf32>
    %402 = vector.extract_strided_slice %325 {offsets = [0, 24], sizes = [8, 8], strides = [1, 1]} : vector<16x32xf32> to vector<8x8xf32>
    %cst_156 = arith.constant dense<0.000000e+00> : vector<8x8xf32>
    %403 = tpu.matmul %401, %402, %cst_156 {dimension_numbers = #tpu.dot_dimension_numbers<[1], [0], [0], [1], [0, 0, 1, 1], [], []>} : vector<8x8xf32>, vector<8x8xf32>, vector<8x8xf32> -> vector<8x8xf32>
    %404 = vector.extract_strided_slice %312 {offsets = [24, 0], sizes = [8, 32], strides = [1, 1]} : vector<32x32xf32> to vector<8x32xf32>
    %cst_157 = arith.constant dense<0.000000e+00> : vector<8x32xf32>
    %405 = tpu.matmul %403, %404, %cst_157 {dimension_numbers = #tpu.dot_dimension_numbers<[1], [0], [0], [1], [0, 0, 1, 1], [], []>} : vector<8x8xf32>, vector<8x32xf32>, vector<8x32xf32> -> vector<8x32xf32>
    %406 = arith.addf %386, %405 : vector<8x32xf32>
    %cst_158 = arith.constant 0.000000e+00 : f32
    %407 = vector.broadcast %cst_158 : f32 to vector<8x32xf32>
    %408 = vector.extract_strided_slice %318 {offsets = [8, 0], sizes = [8, 8], strides = [1, 1]} : vector<16x32xf32> to vector<8x8xf32>
    %cst_159 = arith.constant 0.353553385 : f32
    %409 = vector.broadcast %cst_159 : f32 to vector<8x8xf32>
    %410 = arith.mulf %408, %409 : vector<8x8xf32>
    %411 = vector.extract_strided_slice %324 {offsets = [8, 0], sizes = [8, 8], strides = [1, 1]} : vector<16x32xf32> to vector<8x8xf32>
    %cst_160 = arith.constant dense<0.000000e+00> : vector<8x8xf32>
    %412 = tpu.matmul %410, %411, %cst_160 {dimension_numbers = #tpu.dot_dimension_numbers<[1], [1], [0], [0], [0, 0, 1, 0], [], []>} : vector<8x8xf32>, vector<8x8xf32>, vector<8x8xf32> -> vector<8x8xf32>
    %cst_161 = arith.constant dense<0xFF800000> : vector<8xf32>
    %413 = vector.multi_reduction <maximumf>, %412, %cst_161 [1] : vector<8x8xf32> to vector<8xf32>
    %414 = vector.shape_cast %413 : vector<8xf32> to vector<8x1xf32>
    %415 = vector.broadcast %414 : vector<8x1xf32> to vector<8x8xf32>
    %416 = arith.subf %412, %415 : vector<8x8xf32>
    %417 = math.exp %416 : vector<8x8xf32>
    %cst_162 = arith.constant dense<0.000000e+00> : vector<8xf32>
    %418 = vector.multi_reduction <add>, %417, %cst_162 [1] : vector<8x8xf32> to vector<8xf32>
    %419 = vector.shape_cast %418 : vector<8xf32> to vector<8x1xf32>
    %420 = tpu.reciprocal %419 {approx = true} : vector<8x1xf32> -> vector<8x1xf32>
    %421 = vector.broadcast %420 : vector<8x1xf32> to vector<8x8xf32>
    %422 = arith.mulf %417, %421 : vector<8x8xf32>
    %423 = vector.extract_strided_slice %325 {offsets = [8, 0], sizes = [8, 8], strides = [1, 1]} : vector<16x32xf32> to vector<8x8xf32>
    %cst_163 = arith.constant dense<0.000000e+00> : vector<8x8xf32>
    %424 = tpu.matmul %422, %423, %cst_163 {dimension_numbers = #tpu.dot_dimension_numbers<[1], [0], [0], [1], [0, 0, 1, 1], [], []>} : vector<8x8xf32>, vector<8x8xf32>, vector<8x8xf32> -> vector<8x8xf32>
    %425 = vector.extract_strided_slice %312 {offsets = [0, 0], sizes = [8, 32], strides = [1, 1]} : vector<32x32xf32> to vector<8x32xf32>
    %cst_164 = arith.constant dense<0.000000e+00> : vector<8x32xf32>
    %426 = tpu.matmul %424, %425, %cst_164 {dimension_numbers = #tpu.dot_dimension_numbers<[1], [0], [0], [1], [0, 0, 1, 1], [], []>} : vector<8x8xf32>, vector<8x32xf32>, vector<8x32xf32> -> vector<8x32xf32>
    %427 = arith.addf %407, %426 : vector<8x32xf32>
    %428 = vector.extract_strided_slice %318 {offsets = [8, 8], sizes = [8, 8], strides = [1, 1]} : vector<16x32xf32> to vector<8x8xf32>
    %cst_165 = arith.constant 0.353553385 : f32
    %429 = vector.broadcast %cst_165 : f32 to vector<8x8xf32>
    %430 = arith.mulf %428, %429 : vector<8x8xf32>
    %431 = vector.extract_strided_slice %324 {offsets = [8, 8], sizes = [8, 8], strides = [1, 1]} : vector<16x32xf32> to vector<8x8xf32>
    %cst_166 = arith.constant dense<0.000000e+00> : vector<8x8xf32>
    %432 = tpu.matmul %430, %431, %cst_166 {dimension_numbers = #tpu.dot_dimension_numbers<[1], [1], [0], [0], [0, 0, 1, 0], [], []>} : vector<8x8xf32>, vector<8x8xf32>, vector<8x8xf32> -> vector<8x8xf32>
    %cst_167 = arith.constant dense<0xFF800000> : vector<8xf32>
    %433 = vector.multi_reduction <maximumf>, %432, %cst_167 [1] : vector<8x8xf32> to vector<8xf32>
    %434 = vector.shape_cast %433 : vector<8xf32> to vector<8x1xf32>
    %435 = vector.broadcast %434 : vector<8x1xf32> to vector<8x8xf32>
    %436 = arith.subf %432, %435 : vector<8x8xf32>
    %437 = math.exp %436 : vector<8x8xf32>
    %cst_168 = arith.constant dense<0.000000e+00> : vector<8xf32>
    %438 = vector.multi_reduction <add>, %437, %cst_168 [1] : vector<8x8xf32> to vector<8xf32>
    %439 = vector.shape_cast %438 : vector<8xf32> to vector<8x1xf32>
    %440 = tpu.reciprocal %439 {approx = true} : vector<8x1xf32> -> vector<8x1xf32>
    %441 = vector.broadcast %440 : vector<8x1xf32> to vector<8x8xf32>
    %442 = arith.mulf %437, %441 : vector<8x8xf32>
    %443 = vector.extract_strided_slice %325 {offsets = [8, 8], sizes = [8, 8], strides = [1, 1]} : vector<16x32xf32> to vector<8x8xf32>
    %cst_169 = arith.constant dense<0.000000e+00> : vector<8x8xf32>
    %444 = tpu.matmul %442, %443, %cst_169 {dimension_numbers = #tpu.dot_dimension_numbers<[1], [0], [0], [1], [0, 0, 1, 1], [], []>} : vector<8x8xf32>, vector<8x8xf32>, vector<8x8xf32> -> vector<8x8xf32>
    %445 = vector.extract_strided_slice %312 {offsets = [8, 0], sizes = [8, 32], strides = [1, 1]} : vector<32x32xf32> to vector<8x32xf32>
    %cst_170 = arith.constant dense<0.000000e+00> : vector<8x32xf32>
    %446 = tpu.matmul %444, %445, %cst_170 {dimension_numbers = #tpu.dot_dimension_numbers<[1], [0], [0], [1], [0, 0, 1, 1], [], []>} : vector<8x8xf32>, vector<8x32xf32>, vector<8x32xf32> -> vector<8x32xf32>
    %447 = arith.addf %427, %446 : vector<8x32xf32>
    %448 = vector.extract_strided_slice %318 {offsets = [8, 16], sizes = [8, 8], strides = [1, 1]} : vector<16x32xf32> to vector<8x8xf32>
    %cst_171 = arith.constant 0.353553385 : f32
    %449 = vector.broadcast %cst_171 : f32 to vector<8x8xf32>
    %450 = arith.mulf %448, %449 : vector<8x8xf32>
    %451 = vector.extract_strided_slice %324 {offsets = [8, 16], sizes = [8, 8], strides = [1, 1]} : vector<16x32xf32> to vector<8x8xf32>
    %cst_172 = arith.constant dense<0.000000e+00> : vector<8x8xf32>
    %452 = tpu.matmul %450, %451, %cst_172 {dimension_numbers = #tpu.dot_dimension_numbers<[1], [1], [0], [0], [0, 0, 1, 0], [], []>} : vector<8x8xf32>, vector<8x8xf32>, vector<8x8xf32> -> vector<8x8xf32>
    %cst_173 = arith.constant dense<0xFF800000> : vector<8xf32>
    %453 = vector.multi_reduction <maximumf>, %452, %cst_173 [1] : vector<8x8xf32> to vector<8xf32>
    %454 = vector.shape_cast %453 : vector<8xf32> to vector<8x1xf32>
    %455 = vector.broadcast %454 : vector<8x1xf32> to vector<8x8xf32>
    %456 = arith.subf %452, %455 : vector<8x8xf32>
    %457 = math.exp %456 : vector<8x8xf32>
    %cst_174 = arith.constant dense<0.000000e+00> : vector<8xf32>
    %458 = vector.multi_reduction <add>, %457, %cst_174 [1] : vector<8x8xf32> to vector<8xf32>
    %459 = vector.shape_cast %458 : vector<8xf32> to vector<8x1xf32>
    %460 = tpu.reciprocal %459 {approx = true} : vector<8x1xf32> -> vector<8x1xf32>
    %461 = vector.broadcast %460 : vector<8x1xf32> to vector<8x8xf32>
    %462 = arith.mulf %457, %461 : vector<8x8xf32>
    %463 = vector.extract_strided_slice %325 {offsets = [8, 16], sizes = [8, 8], strides = [1, 1]} : vector<16x32xf32> to vector<8x8xf32>
    %cst_175 = arith.constant dense<0.000000e+00> : vector<8x8xf32>
    %464 = tpu.matmul %462, %463, %cst_175 {dimension_numbers = #tpu.dot_dimension_numbers<[1], [0], [0], [1], [0, 0, 1, 1], [], []>} : vector<8x8xf32>, vector<8x8xf32>, vector<8x8xf32> -> vector<8x8xf32>
    %465 = vector.extract_strided_slice %312 {offsets = [16, 0], sizes = [8, 32], strides = [1, 1]} : vector<32x32xf32> to vector<8x32xf32>
    %cst_176 = arith.constant dense<0.000000e+00> : vector<8x32xf32>
    %466 = tpu.matmul %464, %465, %cst_176 {dimension_numbers = #tpu.dot_dimension_numbers<[1], [0], [0], [1], [0, 0, 1, 1], [], []>} : vector<8x8xf32>, vector<8x32xf32>, vector<8x32xf32> -> vector<8x32xf32>
    %467 = arith.addf %447, %466 : vector<8x32xf32>
    %468 = vector.extract_strided_slice %318 {offsets = [8, 24], sizes = [8, 8], strides = [1, 1]} : vector<16x32xf32> to vector<8x8xf32>
    %cst_177 = arith.constant 0.353553385 : f32
    %469 = vector.broadcast %cst_177 : f32 to vector<8x8xf32>
    %470 = arith.mulf %468, %469 : vector<8x8xf32>
    %471 = vector.extract_strided_slice %324 {offsets = [8, 24], sizes = [8, 8], strides = [1, 1]} : vector<16x32xf32> to vector<8x8xf32>
    %cst_178 = arith.constant dense<0.000000e+00> : vector<8x8xf32>
    %472 = tpu.matmul %470, %471, %cst_178 {dimension_numbers = #tpu.dot_dimension_numbers<[1], [1], [0], [0], [0, 0, 1, 0], [], []>} : vector<8x8xf32>, vector<8x8xf32>, vector<8x8xf32> -> vector<8x8xf32>
    %cst_179 = arith.constant dense<0xFF800000> : vector<8xf32>
    %473 = vector.multi_reduction <maximumf>, %472, %cst_179 [1] : vector<8x8xf32> to vector<8xf32>
    %474 = vector.shape_cast %473 : vector<8xf32> to vector<8x1xf32>
    %475 = vector.broadcast %474 : vector<8x1xf32> to vector<8x8xf32>
    %476 = arith.subf %472, %475 : vector<8x8xf32>
    %477 = math.exp %476 : vector<8x8xf32>
    %cst_180 = arith.constant dense<0.000000e+00> : vector<8xf32>
    %478 = vector.multi_reduction <add>, %477, %cst_180 [1] : vector<8x8xf32> to vector<8xf32>
    %479 = vector.shape_cast %478 : vector<8xf32> to vector<8x1xf32>
    %480 = tpu.reciprocal %479 {approx = true} : vector<8x1xf32> -> vector<8x1xf32>
    %481 = vector.broadcast %480 : vector<8x1xf32> to vector<8x8xf32>
    %482 = arith.mulf %477, %481 : vector<8x8xf32>
    %483 = vector.extract_strided_slice %325 {offsets = [8, 24], sizes = [8, 8], strides = [1, 1]} : vector<16x32xf32> to vector<8x8xf32>
    %cst_181 = arith.constant dense<0.000000e+00> : vector<8x8xf32>
    %484 = tpu.matmul %482, %483, %cst_181 {dimension_numbers = #tpu.dot_dimension_numbers<[1], [0], [0], [1], [0, 0, 1, 1], [], []>} : vector<8x8xf32>, vector<8x8xf32>, vector<8x8xf32> -> vector<8x8xf32>
    %485 = vector.extract_strided_slice %312 {offsets = [24, 0], sizes = [8, 32], strides = [1, 1]} : vector<32x32xf32> to vector<8x32xf32>
    %cst_182 = arith.constant dense<0.000000e+00> : vector<8x32xf32>
    %486 = tpu.matmul %484, %485, %cst_182 {dimension_numbers = #tpu.dot_dimension_numbers<[1], [0], [0], [1], [0, 0, 1, 1], [], []>} : vector<8x8xf32>, vector<8x32xf32>, vector<8x32xf32> -> vector<8x32xf32>
    %487 = arith.addf %467, %486 : vector<8x32xf32>
    %488 = tpu.concatenate %406, %487 in 0 : vector<8x32xf32>, vector<8x32xf32> -> vector<16x32xf32>
    %489 = vector.broadcast %313 : vector<1x32xf32> to vector<16x32xf32>
    %490 = arith.addf %488, %489 : vector<16x32xf32>
    %491 = arith.addf %309, %490 : vector<16x32xf32>
    %cst_183 = arith.constant dense<0.000000e+00> : vector<16xf32>
    %492 = vector.multi_reduction <add>, %491, %cst_183 [1] : vector<16x32xf32> to vector<16xf32>
    %493 = vector.shape_cast %492 : vector<16xf32> to vector<16x1xf32>
    %cst_184 = arith.constant 3.200000e+01 : f32
    %494 = vector.broadcast %cst_184 : f32 to vector<16x1xf32>
    %495 = arith.divf %493, %494 : vector<16x1xf32>
    %496 = vector.broadcast %495 : vector<16x1xf32> to vector<16x32xf32>
    %497 = arith.subf %491, %496 : vector<16x32xf32>
    %498 = arith.mulf %497, %497 : vector<16x32xf32>
    %cst_185 = arith.constant dense<0.000000e+00> : vector<16xf32>
    %499 = vector.multi_reduction <add>, %498, %cst_185 [1] : vector<16x32xf32> to vector<16xf32>
    %500 = vector.shape_cast %499 : vector<16xf32> to vector<16x1xf32>
    %cst_186 = arith.constant 3.200000e+01 : f32
    %501 = vector.broadcast %cst_186 : f32 to vector<16x1xf32>
    %502 = arith.divf %500, %501 : vector<16x1xf32>
    %cst_187 = arith.constant 9.99999974E-6 : f32
    %503 = vector.broadcast %cst_187 : f32 to vector<16x1xf32>
    %504 = arith.addf %502, %503 : vector<16x1xf32>
    %505 = math.rsqrt %504 : vector<16x1xf32>
    %506 = vector.broadcast %495 : vector<16x1xf32> to vector<16x32xf32>
    %507 = arith.subf %491, %506 : vector<16x32xf32>
    %508 = vector.broadcast %505 : vector<16x1xf32> to vector<16x32xf32>
    %509 = arith.mulf %507, %508 : vector<16x32xf32>
    %c1072 = arith.constant 1072 : index
    %c0_188 = arith.constant 0 : index
    %510 = vector.load %arg2[%c1072, %c0_188] : memref<1904x128xf32, #tpu.memory_space<vmem>>, vector<1x32xf32>
    %511 = vector.broadcast %510 : vector<1x32xf32> to vector<16x32xf32>
    %512 = arith.mulf %509, %511 : vector<16x32xf32>
    %c1080 = arith.constant 1080 : index
    %c0_189 = arith.constant 0 : index
    %513 = vector.load %arg2[%c1080, %c0_189] : memref<1904x128xf32, #tpu.memory_space<vmem>>, vector<1x32xf32>
    %514 = vector.broadcast %513 : vector<1x32xf32> to vector<16x32xf32>
    %515 = arith.addf %512, %514 : vector<16x32xf32>
    %c896 = arith.constant 896 : index
    %c0_190 = arith.constant 0 : index
    %516 = vector.load %arg2[%c896, %c0_190] : memref<1904x128xf32, #tpu.memory_space<vmem>>, vector<32x128xf32>
    %cst_191 = arith.constant dense<0.000000e+00> : vector<16x128xf32>
    %517 = tpu.matmul %515, %516, %cst_191 {dimension_numbers = #tpu.dot_dimension_numbers<[1], [0], [0], [1], [0, 0, 1, 1], [], []>} : vector<16x32xf32>, vector<32x128xf32>, vector<16x128xf32> -> vector<16x128xf32>
    %c928 = arith.constant 928 : index
    %c0_192 = arith.constant 0 : index
    %518 = vector.load %arg2[%c928, %c0_192] : memref<1904x128xf32, #tpu.memory_space<vmem>>, vector<1x128xf32>
    %519 = vector.broadcast %518 : vector<1x128xf32> to vector<16x128xf32>
    %520 = arith.addf %517, %519 : vector<16x128xf32>
    %cst_193 = arith.constant 0.000000e+00 : f32
    %521 = vector.broadcast %cst_193 : f32 to vector<16x128xf32>
    %522 = arith.maximumf %520, %521 : vector<16x128xf32>
    %c936 = arith.constant 936 : index
    %c0_194 = arith.constant 0 : index
    %523 = vector.load %arg2[%c936, %c0_194] : memref<1904x128xf32, #tpu.memory_space<vmem>>, vector<128x32xf32>
    %cst_195 = arith.constant dense<0.000000e+00> : vector<16x32xf32>
    %524 = tpu.matmul %522, %523, %cst_195 {dimension_numbers = #tpu.dot_dimension_numbers<[1], [0], [0], [1], [0, 0, 1, 1], [], []>} : vector<16x128xf32>, vector<128x32xf32>, vector<16x32xf32> -> vector<16x32xf32>
    %c1064 = arith.constant 1064 : index
    %c0_196 = arith.constant 0 : index
    %525 = vector.load %arg2[%c1064, %c0_196] : memref<1904x128xf32, #tpu.memory_space<vmem>>, vector<1x32xf32>
    %526 = vector.broadcast %525 : vector<1x32xf32> to vector<16x32xf32>
    %527 = arith.addf %524, %526 : vector<16x32xf32>
    %528 = arith.addf %515, %527 : vector<16x32xf32>
    %cst_197 = arith.constant dense<0.000000e+00> : vector<16xf32>
    %529 = vector.multi_reduction <add>, %528, %cst_197 [1] : vector<16x32xf32> to vector<16xf32>
    %530 = vector.shape_cast %529 : vector<16xf32> to vector<16x1xf32>
    %cst_198 = arith.constant 3.200000e+01 : f32
    %531 = vector.broadcast %cst_198 : f32 to vector<16x1xf32>
    %532 = arith.divf %530, %531 : vector<16x1xf32>
    %533 = vector.broadcast %532 : vector<16x1xf32> to vector<16x32xf32>
    %534 = arith.subf %528, %533 : vector<16x32xf32>
    %535 = arith.mulf %534, %534 : vector<16x32xf32>
    %cst_199 = arith.constant dense<0.000000e+00> : vector<16xf32>
    %536 = vector.multi_reduction <add>, %535, %cst_199 [1] : vector<16x32xf32> to vector<16xf32>
    %537 = vector.shape_cast %536 : vector<16xf32> to vector<16x1xf32>
    %cst_200 = arith.constant 3.200000e+01 : f32
    %538 = vector.broadcast %cst_200 : f32 to vector<16x1xf32>
    %539 = arith.divf %537, %538 : vector<16x1xf32>
    %cst_201 = arith.constant 9.99999974E-6 : f32
    %540 = vector.broadcast %cst_201 : f32 to vector<16x1xf32>
    %541 = arith.addf %539, %540 : vector<16x1xf32>
    %542 = math.rsqrt %541 : vector<16x1xf32>
    %543 = vector.broadcast %532 : vector<16x1xf32> to vector<16x32xf32>
    %544 = arith.subf %528, %543 : vector<16x32xf32>
    %545 = vector.broadcast %542 : vector<16x1xf32> to vector<16x32xf32>
    %546 = arith.mulf %544, %545 : vector<16x32xf32>
    %c1088 = arith.constant 1088 : index
    %c0_202 = arith.constant 0 : index
    %547 = vector.load %arg2[%c1088, %c0_202] : memref<1904x128xf32, #tpu.memory_space<vmem>>, vector<1x32xf32>
    %548 = vector.broadcast %547 : vector<1x32xf32> to vector<16x32xf32>
    %549 = arith.mulf %546, %548 : vector<16x32xf32>
    %c1096 = arith.constant 1096 : index
    %c0_203 = arith.constant 0 : index
    %550 = vector.load %arg2[%c1096, %c0_203] : memref<1904x128xf32, #tpu.memory_space<vmem>>, vector<1x32xf32>
    %551 = vector.broadcast %550 : vector<1x32xf32> to vector<16x32xf32>
    %552 = arith.addf %549, %551 : vector<16x32xf32>
    %cst_204 = arith.constant dense<0.000000e+00> : vector<16xf32>
    %553 = vector.multi_reduction <add>, %552, %cst_204 [1] : vector<16x32xf32> to vector<16xf32>
    %554 = vector.shape_cast %553 : vector<16xf32> to vector<16x1xf32>
    %cst_205 = arith.constant 3.200000e+01 : f32
    %555 = vector.broadcast %cst_205 : f32 to vector<16x1xf32>
    %556 = arith.divf %554, %555 : vector<16x1xf32>
    %557 = vector.broadcast %556 : vector<16x1xf32> to vector<16x32xf32>
    %558 = arith.subf %552, %557 : vector<16x32xf32>
    %559 = arith.mulf %558, %558 : vector<16x32xf32>
    %cst_206 = arith.constant dense<0.000000e+00> : vector<16xf32>
    %560 = vector.multi_reduction <add>, %559, %cst_206 [1] : vector<16x32xf32> to vector<16xf32>
    %561 = vector.shape_cast %560 : vector<16xf32> to vector<16x1xf32>
    %cst_207 = arith.constant 3.200000e+01 : f32
    %562 = vector.broadcast %cst_207 : f32 to vector<16x1xf32>
    %563 = arith.divf %561, %562 : vector<16x1xf32>
    %cst_208 = arith.constant 9.99999974E-6 : f32
    %564 = vector.broadcast %cst_208 : f32 to vector<16x1xf32>
    %565 = arith.addf %563, %564 : vector<16x1xf32>
    %566 = math.rsqrt %565 : vector<16x1xf32>
    %567 = vector.broadcast %556 : vector<16x1xf32> to vector<16x32xf32>
    %568 = arith.subf %552, %567 : vector<16x32xf32>
    %569 = vector.broadcast %566 : vector<16x1xf32> to vector<16x32xf32>
    %570 = arith.mulf %568, %569 : vector<16x32xf32>
    %c1872 = arith.constant 1872 : index
    %c0_209 = arith.constant 0 : index
    %571 = vector.load %arg2[%c1872, %c0_209] : memref<1904x128xf32, #tpu.memory_space<vmem>>, vector<1x32xf32>
    %572 = vector.broadcast %571 : vector<1x32xf32> to vector<16x32xf32>
    %573 = arith.mulf %570, %572 : vector<16x32xf32>
    %c1880 = arith.constant 1880 : index
    %c0_210 = arith.constant 0 : index
    %574 = vector.load %arg2[%c1880, %c0_210] : memref<1904x128xf32, #tpu.memory_space<vmem>>, vector<1x32xf32>
    %575 = vector.broadcast %574 : vector<1x32xf32> to vector<16x32xf32>
    %576 = arith.addf %573, %575 : vector<16x32xf32>
    %c1104 = arith.constant 1104 : index
    %c0_211 = arith.constant 0 : index
    %577 = vector.load %arg2[%c1104, %c0_211] : memref<1904x128xf32, #tpu.memory_space<vmem>>, vector<32x96xf32>
    %c1136 = arith.constant 1136 : index
    %c0_212 = arith.constant 0 : index
    %578 = vector.load %arg2[%c1136, %c0_212] : memref<1904x128xf32, #tpu.memory_space<vmem>>, vector<1x96xf32>
    %c1144 = arith.constant 1144 : index
    %c0_213 = arith.constant 0 : index
    %579 = vector.load %arg2[%c1144, %c0_213] : memref<1904x128xf32, #tpu.memory_space<vmem>>, vector<32x32xf32>
    %c1176 = arith.constant 1176 : index
    %c0_214 = arith.constant 0 : index
    %580 = vector.load %arg2[%c1176, %c0_214] : memref<1904x128xf32, #tpu.memory_space<vmem>>, vector<1x32xf32>
    %581 = vector.extract_strided_slice %577 {offsets = [0, 0], sizes = [32, 32], strides = [1, 1]} : vector<32x96xf32> to vector<32x32xf32>
    %cst_215 = arith.constant dense<0.000000e+00> : vector<16x32xf32>
    %582 = tpu.matmul %66, %581, %cst_215 {dimension_numbers = #tpu.dot_dimension_numbers<[1], [0], [0], [1], [0, 0, 1, 1], [], []>} : vector<16x32xf32>, vector<32x32xf32>, vector<16x32xf32> -> vector<16x32xf32>
    %583 = vector.extract_strided_slice %578 {offsets = [0, 0], sizes = [1, 32], strides = [1, 1]} : vector<1x96xf32> to vector<1x32xf32>
    %584 = vector.broadcast %583 : vector<1x32xf32> to vector<16x32xf32>
    %585 = arith.addf %582, %584 : vector<16x32xf32>
    %586 = vector.extract_strided_slice %577 {offsets = [0, 32], sizes = [32, 64], strides = [1, 1]} : vector<32x96xf32> to vector<32x64xf32>
    %cst_216 = arith.constant dense<0.000000e+00> : vector<16x64xf32>
    %587 = tpu.matmul %66, %586, %cst_216 {dimension_numbers = #tpu.dot_dimension_numbers<[1], [0], [0], [1], [0, 0, 1, 1], [], []>} : vector<16x32xf32>, vector<32x64xf32>, vector<16x64xf32> -> vector<16x64xf32>
    %588 = vector.extract_strided_slice %578 {offsets = [0, 32], sizes = [1, 64], strides = [1, 1]} : vector<1x96xf32> to vector<1x64xf32>
    %589 = vector.broadcast %588 : vector<1x64xf32> to vector<16x64xf32>
    %590 = arith.addf %587, %589 : vector<16x64xf32>
    %591 = vector.extract_strided_slice %590 {offsets = [0, 0], sizes = [16, 32], strides = [1, 1]} : vector<16x64xf32> to vector<16x32xf32>
    %592 = vector.extract_strided_slice %590 {offsets = [0, 32], sizes = [16, 32], strides = [1, 1]} : vector<16x64xf32> to vector<16x32xf32>
    %cst_217 = arith.constant 0.000000e+00 : f32
    %593 = vector.broadcast %cst_217 : f32 to vector<8x32xf32>
    %594 = vector.extract_strided_slice %585 {offsets = [0, 0], sizes = [8, 8], strides = [1, 1]} : vector<16x32xf32> to vector<8x8xf32>
    %cst_218 = arith.constant 0.353553385 : f32
    %595 = vector.broadcast %cst_218 : f32 to vector<8x8xf32>
    %596 = arith.mulf %594, %595 : vector<8x8xf32>
    %597 = vector.extract_strided_slice %591 {offsets = [0, 0], sizes = [8, 8], strides = [1, 1]} : vector<16x32xf32> to vector<8x8xf32>
    %cst_219 = arith.constant dense<0.000000e+00> : vector<8x8xf32>
    %598 = tpu.matmul %596, %597, %cst_219 {dimension_numbers = #tpu.dot_dimension_numbers<[1], [1], [0], [0], [0, 0, 1, 0], [], []>} : vector<8x8xf32>, vector<8x8xf32>, vector<8x8xf32> -> vector<8x8xf32>
    %cst_220 = arith.constant dense<0xFF800000> : vector<8xf32>
    %599 = vector.multi_reduction <maximumf>, %598, %cst_220 [1] : vector<8x8xf32> to vector<8xf32>
    %600 = vector.shape_cast %599 : vector<8xf32> to vector<8x1xf32>
    %601 = vector.broadcast %600 : vector<8x1xf32> to vector<8x8xf32>
    %602 = arith.subf %598, %601 : vector<8x8xf32>
    %603 = math.exp %602 : vector<8x8xf32>
    %cst_221 = arith.constant dense<0.000000e+00> : vector<8xf32>
    %604 = vector.multi_reduction <add>, %603, %cst_221 [1] : vector<8x8xf32> to vector<8xf32>
    %605 = vector.shape_cast %604 : vector<8xf32> to vector<8x1xf32>
    %606 = tpu.reciprocal %605 {approx = true} : vector<8x1xf32> -> vector<8x1xf32>
    %607 = vector.broadcast %606 : vector<8x1xf32> to vector<8x8xf32>
    %608 = arith.mulf %603, %607 : vector<8x8xf32>
    %609 = vector.extract_strided_slice %592 {offsets = [0, 0], sizes = [8, 8], strides = [1, 1]} : vector<16x32xf32> to vector<8x8xf32>
    %cst_222 = arith.constant dense<0.000000e+00> : vector<8x8xf32>
    %610 = tpu.matmul %608, %609, %cst_222 {dimension_numbers = #tpu.dot_dimension_numbers<[1], [0], [0], [1], [0, 0, 1, 1], [], []>} : vector<8x8xf32>, vector<8x8xf32>, vector<8x8xf32> -> vector<8x8xf32>
    %611 = vector.extract_strided_slice %579 {offsets = [0, 0], sizes = [8, 32], strides = [1, 1]} : vector<32x32xf32> to vector<8x32xf32>
    %cst_223 = arith.constant dense<0.000000e+00> : vector<8x32xf32>
    %612 = tpu.matmul %610, %611, %cst_223 {dimension_numbers = #tpu.dot_dimension_numbers<[1], [0], [0], [1], [0, 0, 1, 1], [], []>} : vector<8x8xf32>, vector<8x32xf32>, vector<8x32xf32> -> vector<8x32xf32>
    %613 = arith.addf %593, %612 : vector<8x32xf32>
    %614 = vector.extract_strided_slice %585 {offsets = [0, 8], sizes = [8, 8], strides = [1, 1]} : vector<16x32xf32> to vector<8x8xf32>
    %cst_224 = arith.constant 0.353553385 : f32
    %615 = vector.broadcast %cst_224 : f32 to vector<8x8xf32>
    %616 = arith.mulf %614, %615 : vector<8x8xf32>
    %617 = vector.extract_strided_slice %591 {offsets = [0, 8], sizes = [8, 8], strides = [1, 1]} : vector<16x32xf32> to vector<8x8xf32>
    %cst_225 = arith.constant dense<0.000000e+00> : vector<8x8xf32>
    %618 = tpu.matmul %616, %617, %cst_225 {dimension_numbers = #tpu.dot_dimension_numbers<[1], [1], [0], [0], [0, 0, 1, 0], [], []>} : vector<8x8xf32>, vector<8x8xf32>, vector<8x8xf32> -> vector<8x8xf32>
    %cst_226 = arith.constant dense<0xFF800000> : vector<8xf32>
    %619 = vector.multi_reduction <maximumf>, %618, %cst_226 [1] : vector<8x8xf32> to vector<8xf32>
    %620 = vector.shape_cast %619 : vector<8xf32> to vector<8x1xf32>
    %621 = vector.broadcast %620 : vector<8x1xf32> to vector<8x8xf32>
    %622 = arith.subf %618, %621 : vector<8x8xf32>
    %623 = math.exp %622 : vector<8x8xf32>
    %cst_227 = arith.constant dense<0.000000e+00> : vector<8xf32>
    %624 = vector.multi_reduction <add>, %623, %cst_227 [1] : vector<8x8xf32> to vector<8xf32>
    %625 = vector.shape_cast %624 : vector<8xf32> to vector<8x1xf32>
    %626 = tpu.reciprocal %625 {approx = true} : vector<8x1xf32> -> vector<8x1xf32>
    %627 = vector.broadcast %626 : vector<8x1xf32> to vector<8x8xf32>
    %628 = arith.mulf %623, %627 : vector<8x8xf32>
    %629 = vector.extract_strided_slice %592 {offsets = [0, 8], sizes = [8, 8], strides = [1, 1]} : vector<16x32xf32> to vector<8x8xf32>
    %cst_228 = arith.constant dense<0.000000e+00> : vector<8x8xf32>
    %630 = tpu.matmul %628, %629, %cst_228 {dimension_numbers = #tpu.dot_dimension_numbers<[1], [0], [0], [1], [0, 0, 1, 1], [], []>} : vector<8x8xf32>, vector<8x8xf32>, vector<8x8xf32> -> vector<8x8xf32>
    %631 = vector.extract_strided_slice %579 {offsets = [8, 0], sizes = [8, 32], strides = [1, 1]} : vector<32x32xf32> to vector<8x32xf32>
    %cst_229 = arith.constant dense<0.000000e+00> : vector<8x32xf32>
    %632 = tpu.matmul %630, %631, %cst_229 {dimension_numbers = #tpu.dot_dimension_numbers<[1], [0], [0], [1], [0, 0, 1, 1], [], []>} : vector<8x8xf32>, vector<8x32xf32>, vector<8x32xf32> -> vector<8x32xf32>
    %633 = arith.addf %613, %632 : vector<8x32xf32>
    %634 = vector.extract_strided_slice %585 {offsets = [0, 16], sizes = [8, 8], strides = [1, 1]} : vector<16x32xf32> to vector<8x8xf32>
    %cst_230 = arith.constant 0.353553385 : f32
    %635 = vector.broadcast %cst_230 : f32 to vector<8x8xf32>
    %636 = arith.mulf %634, %635 : vector<8x8xf32>
    %637 = vector.extract_strided_slice %591 {offsets = [0, 16], sizes = [8, 8], strides = [1, 1]} : vector<16x32xf32> to vector<8x8xf32>
    %cst_231 = arith.constant dense<0.000000e+00> : vector<8x8xf32>
    %638 = tpu.matmul %636, %637, %cst_231 {dimension_numbers = #tpu.dot_dimension_numbers<[1], [1], [0], [0], [0, 0, 1, 0], [], []>} : vector<8x8xf32>, vector<8x8xf32>, vector<8x8xf32> -> vector<8x8xf32>
    %cst_232 = arith.constant dense<0xFF800000> : vector<8xf32>
    %639 = vector.multi_reduction <maximumf>, %638, %cst_232 [1] : vector<8x8xf32> to vector<8xf32>
    %640 = vector.shape_cast %639 : vector<8xf32> to vector<8x1xf32>
    %641 = vector.broadcast %640 : vector<8x1xf32> to vector<8x8xf32>
    %642 = arith.subf %638, %641 : vector<8x8xf32>
    %643 = math.exp %642 : vector<8x8xf32>
    %cst_233 = arith.constant dense<0.000000e+00> : vector<8xf32>
    %644 = vector.multi_reduction <add>, %643, %cst_233 [1] : vector<8x8xf32> to vector<8xf32>
    %645 = vector.shape_cast %644 : vector<8xf32> to vector<8x1xf32>
    %646 = tpu.reciprocal %645 {approx = true} : vector<8x1xf32> -> vector<8x1xf32>
    %647 = vector.broadcast %646 : vector<8x1xf32> to vector<8x8xf32>
    %648 = arith.mulf %643, %647 : vector<8x8xf32>
    %649 = vector.extract_strided_slice %592 {offsets = [0, 16], sizes = [8, 8], strides = [1, 1]} : vector<16x32xf32> to vector<8x8xf32>
    %cst_234 = arith.constant dense<0.000000e+00> : vector<8x8xf32>
    %650 = tpu.matmul %648, %649, %cst_234 {dimension_numbers = #tpu.dot_dimension_numbers<[1], [0], [0], [1], [0, 0, 1, 1], [], []>} : vector<8x8xf32>, vector<8x8xf32>, vector<8x8xf32> -> vector<8x8xf32>
    %651 = vector.extract_strided_slice %579 {offsets = [16, 0], sizes = [8, 32], strides = [1, 1]} : vector<32x32xf32> to vector<8x32xf32>
    %cst_235 = arith.constant dense<0.000000e+00> : vector<8x32xf32>
    %652 = tpu.matmul %650, %651, %cst_235 {dimension_numbers = #tpu.dot_dimension_numbers<[1], [0], [0], [1], [0, 0, 1, 1], [], []>} : vector<8x8xf32>, vector<8x32xf32>, vector<8x32xf32> -> vector<8x32xf32>
    %653 = arith.addf %633, %652 : vector<8x32xf32>
    %654 = vector.extract_strided_slice %585 {offsets = [0, 24], sizes = [8, 8], strides = [1, 1]} : vector<16x32xf32> to vector<8x8xf32>
    %cst_236 = arith.constant 0.353553385 : f32
    %655 = vector.broadcast %cst_236 : f32 to vector<8x8xf32>
    %656 = arith.mulf %654, %655 : vector<8x8xf32>
    %657 = vector.extract_strided_slice %591 {offsets = [0, 24], sizes = [8, 8], strides = [1, 1]} : vector<16x32xf32> to vector<8x8xf32>
    %cst_237 = arith.constant dense<0.000000e+00> : vector<8x8xf32>
    %658 = tpu.matmul %656, %657, %cst_237 {dimension_numbers = #tpu.dot_dimension_numbers<[1], [1], [0], [0], [0, 0, 1, 0], [], []>} : vector<8x8xf32>, vector<8x8xf32>, vector<8x8xf32> -> vector<8x8xf32>
    %cst_238 = arith.constant dense<0xFF800000> : vector<8xf32>
    %659 = vector.multi_reduction <maximumf>, %658, %cst_238 [1] : vector<8x8xf32> to vector<8xf32>
    %660 = vector.shape_cast %659 : vector<8xf32> to vector<8x1xf32>
    %661 = vector.broadcast %660 : vector<8x1xf32> to vector<8x8xf32>
    %662 = arith.subf %658, %661 : vector<8x8xf32>
    %663 = math.exp %662 : vector<8x8xf32>
    %cst_239 = arith.constant dense<0.000000e+00> : vector<8xf32>
    %664 = vector.multi_reduction <add>, %663, %cst_239 [1] : vector<8x8xf32> to vector<8xf32>
    %665 = vector.shape_cast %664 : vector<8xf32> to vector<8x1xf32>
    %666 = tpu.reciprocal %665 {approx = true} : vector<8x1xf32> -> vector<8x1xf32>
    %667 = vector.broadcast %666 : vector<8x1xf32> to vector<8x8xf32>
    %668 = arith.mulf %663, %667 : vector<8x8xf32>
    %669 = vector.extract_strided_slice %592 {offsets = [0, 24], sizes = [8, 8], strides = [1, 1]} : vector<16x32xf32> to vector<8x8xf32>
    %cst_240 = arith.constant dense<0.000000e+00> : vector<8x8xf32>
    %670 = tpu.matmul %668, %669, %cst_240 {dimension_numbers = #tpu.dot_dimension_numbers<[1], [0], [0], [1], [0, 0, 1, 1], [], []>} : vector<8x8xf32>, vector<8x8xf32>, vector<8x8xf32> -> vector<8x8xf32>
    %671 = vector.extract_strided_slice %579 {offsets = [24, 0], sizes = [8, 32], strides = [1, 1]} : vector<32x32xf32> to vector<8x32xf32>
    %cst_241 = arith.constant dense<0.000000e+00> : vector<8x32xf32>
    %672 = tpu.matmul %670, %671, %cst_241 {dimension_numbers = #tpu.dot_dimension_numbers<[1], [0], [0], [1], [0, 0, 1, 1], [], []>} : vector<8x8xf32>, vector<8x32xf32>, vector<8x32xf32> -> vector<8x32xf32>
    %673 = arith.addf %653, %672 : vector<8x32xf32>
    %cst_242 = arith.constant 0.000000e+00 : f32
    %674 = vector.broadcast %cst_242 : f32 to vector<8x32xf32>
    %675 = vector.extract_strided_slice %585 {offsets = [8, 0], sizes = [8, 8], strides = [1, 1]} : vector<16x32xf32> to vector<8x8xf32>
    %cst_243 = arith.constant 0.353553385 : f32
    %676 = vector.broadcast %cst_243 : f32 to vector<8x8xf32>
    %677 = arith.mulf %675, %676 : vector<8x8xf32>
    %678 = vector.extract_strided_slice %591 {offsets = [8, 0], sizes = [8, 8], strides = [1, 1]} : vector<16x32xf32> to vector<8x8xf32>
    %cst_244 = arith.constant dense<0.000000e+00> : vector<8x8xf32>
    %679 = tpu.matmul %677, %678, %cst_244 {dimension_numbers = #tpu.dot_dimension_numbers<[1], [1], [0], [0], [0, 0, 1, 0], [], []>} : vector<8x8xf32>, vector<8x8xf32>, vector<8x8xf32> -> vector<8x8xf32>
    %cst_245 = arith.constant dense<0xFF800000> : vector<8xf32>
    %680 = vector.multi_reduction <maximumf>, %679, %cst_245 [1] : vector<8x8xf32> to vector<8xf32>
    %681 = vector.shape_cast %680 : vector<8xf32> to vector<8x1xf32>
    %682 = vector.broadcast %681 : vector<8x1xf32> to vector<8x8xf32>
    %683 = arith.subf %679, %682 : vector<8x8xf32>
    %684 = math.exp %683 : vector<8x8xf32>
    %cst_246 = arith.constant dense<0.000000e+00> : vector<8xf32>
    %685 = vector.multi_reduction <add>, %684, %cst_246 [1] : vector<8x8xf32> to vector<8xf32>
    %686 = vector.shape_cast %685 : vector<8xf32> to vector<8x1xf32>
    %687 = tpu.reciprocal %686 {approx = true} : vector<8x1xf32> -> vector<8x1xf32>
    %688 = vector.broadcast %687 : vector<8x1xf32> to vector<8x8xf32>
    %689 = arith.mulf %684, %688 : vector<8x8xf32>
    %690 = vector.extract_strided_slice %592 {offsets = [8, 0], sizes = [8, 8], strides = [1, 1]} : vector<16x32xf32> to vector<8x8xf32>
    %cst_247 = arith.constant dense<0.000000e+00> : vector<8x8xf32>
    %691 = tpu.matmul %689, %690, %cst_247 {dimension_numbers = #tpu.dot_dimension_numbers<[1], [0], [0], [1], [0, 0, 1, 1], [], []>} : vector<8x8xf32>, vector<8x8xf32>, vector<8x8xf32> -> vector<8x8xf32>
    %692 = vector.extract_strided_slice %579 {offsets = [0, 0], sizes = [8, 32], strides = [1, 1]} : vector<32x32xf32> to vector<8x32xf32>
    %cst_248 = arith.constant dense<0.000000e+00> : vector<8x32xf32>
    %693 = tpu.matmul %691, %692, %cst_248 {dimension_numbers = #tpu.dot_dimension_numbers<[1], [0], [0], [1], [0, 0, 1, 1], [], []>} : vector<8x8xf32>, vector<8x32xf32>, vector<8x32xf32> -> vector<8x32xf32>
    %694 = arith.addf %674, %693 : vector<8x32xf32>
    %695 = vector.extract_strided_slice %585 {offsets = [8, 8], sizes = [8, 8], strides = [1, 1]} : vector<16x32xf32> to vector<8x8xf32>
    %cst_249 = arith.constant 0.353553385 : f32
    %696 = vector.broadcast %cst_249 : f32 to vector<8x8xf32>
    %697 = arith.mulf %695, %696 : vector<8x8xf32>
    %698 = vector.extract_strided_slice %591 {offsets = [8, 8], sizes = [8, 8], strides = [1, 1]} : vector<16x32xf32> to vector<8x8xf32>
    %cst_250 = arith.constant dense<0.000000e+00> : vector<8x8xf32>
    %699 = tpu.matmul %697, %698, %cst_250 {dimension_numbers = #tpu.dot_dimension_numbers<[1], [1], [0], [0], [0, 0, 1, 0], [], []>} : vector<8x8xf32>, vector<8x8xf32>, vector<8x8xf32> -> vector<8x8xf32>
    %cst_251 = arith.constant dense<0xFF800000> : vector<8xf32>
    %700 = vector.multi_reduction <maximumf>, %699, %cst_251 [1] : vector<8x8xf32> to vector<8xf32>
    %701 = vector.shape_cast %700 : vector<8xf32> to vector<8x1xf32>
    %702 = vector.broadcast %701 : vector<8x1xf32> to vector<8x8xf32>
    %703 = arith.subf %699, %702 : vector<8x8xf32>
    %704 = math.exp %703 : vector<8x8xf32>
    %cst_252 = arith.constant dense<0.000000e+00> : vector<8xf32>
    %705 = vector.multi_reduction <add>, %704, %cst_252 [1] : vector<8x8xf32> to vector<8xf32>
    %706 = vector.shape_cast %705 : vector<8xf32> to vector<8x1xf32>
    %707 = tpu.reciprocal %706 {approx = true} : vector<8x1xf32> -> vector<8x1xf32>
    %708 = vector.broadcast %707 : vector<8x1xf32> to vector<8x8xf32>
    %709 = arith.mulf %704, %708 : vector<8x8xf32>
    %710 = vector.extract_strided_slice %592 {offsets = [8, 8], sizes = [8, 8], strides = [1, 1]} : vector<16x32xf32> to vector<8x8xf32>
    %cst_253 = arith.constant dense<0.000000e+00> : vector<8x8xf32>
    %711 = tpu.matmul %709, %710, %cst_253 {dimension_numbers = #tpu.dot_dimension_numbers<[1], [0], [0], [1], [0, 0, 1, 1], [], []>} : vector<8x8xf32>, vector<8x8xf32>, vector<8x8xf32> -> vector<8x8xf32>
    %712 = vector.extract_strided_slice %579 {offsets = [8, 0], sizes = [8, 32], strides = [1, 1]} : vector<32x32xf32> to vector<8x32xf32>
    %cst_254 = arith.constant dense<0.000000e+00> : vector<8x32xf32>
    %713 = tpu.matmul %711, %712, %cst_254 {dimension_numbers = #tpu.dot_dimension_numbers<[1], [0], [0], [1], [0, 0, 1, 1], [], []>} : vector<8x8xf32>, vector<8x32xf32>, vector<8x32xf32> -> vector<8x32xf32>
    %714 = arith.addf %694, %713 : vector<8x32xf32>
    %715 = vector.extract_strided_slice %585 {offsets = [8, 16], sizes = [8, 8], strides = [1, 1]} : vector<16x32xf32> to vector<8x8xf32>
    %cst_255 = arith.constant 0.353553385 : f32
    %716 = vector.broadcast %cst_255 : f32 to vector<8x8xf32>
    %717 = arith.mulf %715, %716 : vector<8x8xf32>
    %718 = vector.extract_strided_slice %591 {offsets = [8, 16], sizes = [8, 8], strides = [1, 1]} : vector<16x32xf32> to vector<8x8xf32>
    %cst_256 = arith.constant dense<0.000000e+00> : vector<8x8xf32>
    %719 = tpu.matmul %717, %718, %cst_256 {dimension_numbers = #tpu.dot_dimension_numbers<[1], [1], [0], [0], [0, 0, 1, 0], [], []>} : vector<8x8xf32>, vector<8x8xf32>, vector<8x8xf32> -> vector<8x8xf32>
    %cst_257 = arith.constant dense<0xFF800000> : vector<8xf32>
    %720 = vector.multi_reduction <maximumf>, %719, %cst_257 [1] : vector<8x8xf32> to vector<8xf32>
    %721 = vector.shape_cast %720 : vector<8xf32> to vector<8x1xf32>
    %722 = vector.broadcast %721 : vector<8x1xf32> to vector<8x8xf32>
    %723 = arith.subf %719, %722 : vector<8x8xf32>
    %724 = math.exp %723 : vector<8x8xf32>
    %cst_258 = arith.constant dense<0.000000e+00> : vector<8xf32>
    %725 = vector.multi_reduction <add>, %724, %cst_258 [1] : vector<8x8xf32> to vector<8xf32>
    %726 = vector.shape_cast %725 : vector<8xf32> to vector<8x1xf32>
    %727 = tpu.reciprocal %726 {approx = true} : vector<8x1xf32> -> vector<8x1xf32>
    %728 = vector.broadcast %727 : vector<8x1xf32> to vector<8x8xf32>
    %729 = arith.mulf %724, %728 : vector<8x8xf32>
    %730 = vector.extract_strided_slice %592 {offsets = [8, 16], sizes = [8, 8], strides = [1, 1]} : vector<16x32xf32> to vector<8x8xf32>
    %cst_259 = arith.constant dense<0.000000e+00> : vector<8x8xf32>
    %731 = tpu.matmul %729, %730, %cst_259 {dimension_numbers = #tpu.dot_dimension_numbers<[1], [0], [0], [1], [0, 0, 1, 1], [], []>} : vector<8x8xf32>, vector<8x8xf32>, vector<8x8xf32> -> vector<8x8xf32>
    %732 = vector.extract_strided_slice %579 {offsets = [16, 0], sizes = [8, 32], strides = [1, 1]} : vector<32x32xf32> to vector<8x32xf32>
    %cst_260 = arith.constant dense<0.000000e+00> : vector<8x32xf32>
    %733 = tpu.matmul %731, %732, %cst_260 {dimension_numbers = #tpu.dot_dimension_numbers<[1], [0], [0], [1], [0, 0, 1, 1], [], []>} : vector<8x8xf32>, vector<8x32xf32>, vector<8x32xf32> -> vector<8x32xf32>
    %734 = arith.addf %714, %733 : vector<8x32xf32>
    %735 = vector.extract_strided_slice %585 {offsets = [8, 24], sizes = [8, 8], strides = [1, 1]} : vector<16x32xf32> to vector<8x8xf32>
    %cst_261 = arith.constant 0.353553385 : f32
    %736 = vector.broadcast %cst_261 : f32 to vector<8x8xf32>
    %737 = arith.mulf %735, %736 : vector<8x8xf32>
    %738 = vector.extract_strided_slice %591 {offsets = [8, 24], sizes = [8, 8], strides = [1, 1]} : vector<16x32xf32> to vector<8x8xf32>
    %cst_262 = arith.constant dense<0.000000e+00> : vector<8x8xf32>
    %739 = tpu.matmul %737, %738, %cst_262 {dimension_numbers = #tpu.dot_dimension_numbers<[1], [1], [0], [0], [0, 0, 1, 0], [], []>} : vector<8x8xf32>, vector<8x8xf32>, vector<8x8xf32> -> vector<8x8xf32>
    %cst_263 = arith.constant dense<0xFF800000> : vector<8xf32>
    %740 = vector.multi_reduction <maximumf>, %739, %cst_263 [1] : vector<8x8xf32> to vector<8xf32>
    %741 = vector.shape_cast %740 : vector<8xf32> to vector<8x1xf32>
    %742 = vector.broadcast %741 : vector<8x1xf32> to vector<8x8xf32>
    %743 = arith.subf %739, %742 : vector<8x8xf32>
    %744 = math.exp %743 : vector<8x8xf32>
    %cst_264 = arith.constant dense<0.000000e+00> : vector<8xf32>
    %745 = vector.multi_reduction <add>, %744, %cst_264 [1] : vector<8x8xf32> to vector<8xf32>
    %746 = vector.shape_cast %745 : vector<8xf32> to vector<8x1xf32>
    %747 = tpu.reciprocal %746 {approx = true} : vector<8x1xf32> -> vector<8x1xf32>
    %748 = vector.broadcast %747 : vector<8x1xf32> to vector<8x8xf32>
    %749 = arith.mulf %744, %748 : vector<8x8xf32>
    %750 = vector.extract_strided_slice %592 {offsets = [8, 24], sizes = [8, 8], strides = [1, 1]} : vector<16x32xf32> to vector<8x8xf32>
    %cst_265 = arith.constant dense<0.000000e+00> : vector<8x8xf32>
    %751 = tpu.matmul %749, %750, %cst_265 {dimension_numbers = #tpu.dot_dimension_numbers<[1], [0], [0], [1], [0, 0, 1, 1], [], []>} : vector<8x8xf32>, vector<8x8xf32>, vector<8x8xf32> -> vector<8x8xf32>
    %752 = vector.extract_strided_slice %579 {offsets = [24, 0], sizes = [8, 32], strides = [1, 1]} : vector<32x32xf32> to vector<8x32xf32>
    %cst_266 = arith.constant dense<0.000000e+00> : vector<8x32xf32>
    %753 = tpu.matmul %751, %752, %cst_266 {dimension_numbers = #tpu.dot_dimension_numbers<[1], [0], [0], [1], [0, 0, 1, 1], [], []>} : vector<8x8xf32>, vector<8x32xf32>, vector<8x32xf32> -> vector<8x32xf32>
    %754 = arith.addf %734, %753 : vector<8x32xf32>
    %755 = tpu.concatenate %673, %754 in 0 : vector<8x32xf32>, vector<8x32xf32> -> vector<16x32xf32>
    %756 = vector.broadcast %580 : vector<1x32xf32> to vector<16x32xf32>
    %757 = arith.addf %755, %756 : vector<16x32xf32>
    %758 = arith.addf %66, %757 : vector<16x32xf32>
    %cst_267 = arith.constant dense<0.000000e+00> : vector<16xf32>
    %759 = vector.multi_reduction <add>, %758, %cst_267 [1] : vector<16x32xf32> to vector<16xf32>
    %760 = vector.shape_cast %759 : vector<16xf32> to vector<16x1xf32>
    %cst_268 = arith.constant 3.200000e+01 : f32
    %761 = vector.broadcast %cst_268 : f32 to vector<16x1xf32>
    %762 = arith.divf %760, %761 : vector<16x1xf32>
    %763 = vector.broadcast %762 : vector<16x1xf32> to vector<16x32xf32>
    %764 = arith.subf %758, %763 : vector<16x32xf32>
    %765 = arith.mulf %764, %764 : vector<16x32xf32>
    %cst_269 = arith.constant dense<0.000000e+00> : vector<16xf32>
    %766 = vector.multi_reduction <add>, %765, %cst_269 [1] : vector<16x32xf32> to vector<16xf32>
    %767 = vector.shape_cast %766 : vector<16xf32> to vector<16x1xf32>
    %cst_270 = arith.constant 3.200000e+01 : f32
    %768 = vector.broadcast %cst_270 : f32 to vector<16x1xf32>
    %769 = arith.divf %767, %768 : vector<16x1xf32>
    %cst_271 = arith.constant 9.99999974E-6 : f32
    %770 = vector.broadcast %cst_271 : f32 to vector<16x1xf32>
    %771 = arith.addf %769, %770 : vector<16x1xf32>
    %772 = math.rsqrt %771 : vector<16x1xf32>
    %773 = vector.broadcast %762 : vector<16x1xf32> to vector<16x32xf32>
    %774 = arith.subf %758, %773 : vector<16x32xf32>
    %775 = vector.broadcast %772 : vector<16x1xf32> to vector<16x32xf32>
    %776 = arith.mulf %774, %775 : vector<16x32xf32>
    %c1440 = arith.constant 1440 : index
    %c0_272 = arith.constant 0 : index
    %777 = vector.load %arg2[%c1440, %c0_272] : memref<1904x128xf32, #tpu.memory_space<vmem>>, vector<1x32xf32>
    %778 = vector.broadcast %777 : vector<1x32xf32> to vector<16x32xf32>
    %779 = arith.mulf %776, %778 : vector<16x32xf32>
    %c1448 = arith.constant 1448 : index
    %c0_273 = arith.constant 0 : index
    %780 = vector.load %arg2[%c1448, %c0_273] : memref<1904x128xf32, #tpu.memory_space<vmem>>, vector<1x32xf32>
    %781 = vector.broadcast %780 : vector<1x32xf32> to vector<16x32xf32>
    %782 = arith.addf %779, %781 : vector<16x32xf32>
    %c1184 = arith.constant 1184 : index
    %c0_274 = arith.constant 0 : index
    %783 = vector.load %arg2[%c1184, %c0_274] : memref<1904x128xf32, #tpu.memory_space<vmem>>, vector<32x96xf32>
    %c1216 = arith.constant 1216 : index
    %c0_275 = arith.constant 0 : index
    %784 = vector.load %arg2[%c1216, %c0_275] : memref<1904x128xf32, #tpu.memory_space<vmem>>, vector<1x96xf32>
    %c1224 = arith.constant 1224 : index
    %c0_276 = arith.constant 0 : index
    %785 = vector.load %arg2[%c1224, %c0_276] : memref<1904x128xf32, #tpu.memory_space<vmem>>, vector<32x32xf32>
    %c1256 = arith.constant 1256 : index
    %c0_277 = arith.constant 0 : index
    %786 = vector.load %arg2[%c1256, %c0_277] : memref<1904x128xf32, #tpu.memory_space<vmem>>, vector<1x32xf32>
    %787 = vector.extract_strided_slice %783 {offsets = [0, 0], sizes = [32, 32], strides = [1, 1]} : vector<32x96xf32> to vector<32x32xf32>
    %cst_278 = arith.constant dense<0.000000e+00> : vector<16x32xf32>
    %788 = tpu.matmul %782, %787, %cst_278 {dimension_numbers = #tpu.dot_dimension_numbers<[1], [0], [0], [1], [0, 0, 1, 1], [], []>} : vector<16x32xf32>, vector<32x32xf32>, vector<16x32xf32> -> vector<16x32xf32>
    %789 = vector.extract_strided_slice %784 {offsets = [0, 0], sizes = [1, 32], strides = [1, 1]} : vector<1x96xf32> to vector<1x32xf32>
    %790 = vector.broadcast %789 : vector<1x32xf32> to vector<16x32xf32>
    %791 = arith.addf %788, %790 : vector<16x32xf32>
    %792 = vector.extract_strided_slice %783 {offsets = [0, 32], sizes = [32, 64], strides = [1, 1]} : vector<32x96xf32> to vector<32x64xf32>
    %cst_279 = arith.constant dense<0.000000e+00> : vector<16x64xf32>
    %793 = tpu.matmul %576, %792, %cst_279 {dimension_numbers = #tpu.dot_dimension_numbers<[1], [0], [0], [1], [0, 0, 1, 1], [], []>} : vector<16x32xf32>, vector<32x64xf32>, vector<16x64xf32> -> vector<16x64xf32>
    %794 = vector.extract_strided_slice %784 {offsets = [0, 32], sizes = [1, 64], strides = [1, 1]} : vector<1x96xf32> to vector<1x64xf32>
    %795 = vector.broadcast %794 : vector<1x64xf32> to vector<16x64xf32>
    %796 = arith.addf %793, %795 : vector<16x64xf32>
    %797 = vector.extract_strided_slice %796 {offsets = [0, 0], sizes = [16, 32], strides = [1, 1]} : vector<16x64xf32> to vector<16x32xf32>
    %798 = vector.extract_strided_slice %796 {offsets = [0, 32], sizes = [16, 32], strides = [1, 1]} : vector<16x64xf32> to vector<16x32xf32>
    %cst_280 = arith.constant 0.000000e+00 : f32
    %799 = vector.broadcast %cst_280 : f32 to vector<8x32xf32>
    %800 = vector.extract_strided_slice %791 {offsets = [0, 0], sizes = [8, 8], strides = [1, 1]} : vector<16x32xf32> to vector<8x8xf32>
    %cst_281 = arith.constant 0.353553385 : f32
    %801 = vector.broadcast %cst_281 : f32 to vector<8x8xf32>
    %802 = arith.mulf %800, %801 : vector<8x8xf32>
    %803 = vector.extract_strided_slice %797 {offsets = [0, 0], sizes = [8, 8], strides = [1, 1]} : vector<16x32xf32> to vector<8x8xf32>
    %cst_282 = arith.constant dense<0.000000e+00> : vector<8x8xf32>
    %804 = tpu.matmul %802, %803, %cst_282 {dimension_numbers = #tpu.dot_dimension_numbers<[1], [1], [0], [0], [0, 0, 1, 0], [], []>} : vector<8x8xf32>, vector<8x8xf32>, vector<8x8xf32> -> vector<8x8xf32>
    %cst_283 = arith.constant dense<0xFF800000> : vector<8xf32>
    %805 = vector.multi_reduction <maximumf>, %804, %cst_283 [1] : vector<8x8xf32> to vector<8xf32>
    %806 = vector.shape_cast %805 : vector<8xf32> to vector<8x1xf32>
    %807 = vector.broadcast %806 : vector<8x1xf32> to vector<8x8xf32>
    %808 = arith.subf %804, %807 : vector<8x8xf32>
    %809 = math.exp %808 : vector<8x8xf32>
    %cst_284 = arith.constant dense<0.000000e+00> : vector<8xf32>
    %810 = vector.multi_reduction <add>, %809, %cst_284 [1] : vector<8x8xf32> to vector<8xf32>
    %811 = vector.shape_cast %810 : vector<8xf32> to vector<8x1xf32>
    %812 = tpu.reciprocal %811 {approx = true} : vector<8x1xf32> -> vector<8x1xf32>
    %813 = vector.broadcast %812 : vector<8x1xf32> to vector<8x8xf32>
    %814 = arith.mulf %809, %813 : vector<8x8xf32>
    %815 = vector.extract_strided_slice %798 {offsets = [0, 0], sizes = [8, 8], strides = [1, 1]} : vector<16x32xf32> to vector<8x8xf32>
    %cst_285 = arith.constant dense<0.000000e+00> : vector<8x8xf32>
    %816 = tpu.matmul %814, %815, %cst_285 {dimension_numbers = #tpu.dot_dimension_numbers<[1], [0], [0], [1], [0, 0, 1, 1], [], []>} : vector<8x8xf32>, vector<8x8xf32>, vector<8x8xf32> -> vector<8x8xf32>
    %817 = vector.extract_strided_slice %785 {offsets = [0, 0], sizes = [8, 32], strides = [1, 1]} : vector<32x32xf32> to vector<8x32xf32>
    %cst_286 = arith.constant dense<0.000000e+00> : vector<8x32xf32>
    %818 = tpu.matmul %816, %817, %cst_286 {dimension_numbers = #tpu.dot_dimension_numbers<[1], [0], [0], [1], [0, 0, 1, 1], [], []>} : vector<8x8xf32>, vector<8x32xf32>, vector<8x32xf32> -> vector<8x32xf32>
    %819 = arith.addf %799, %818 : vector<8x32xf32>
    %820 = vector.extract_strided_slice %791 {offsets = [0, 8], sizes = [8, 8], strides = [1, 1]} : vector<16x32xf32> to vector<8x8xf32>
    %cst_287 = arith.constant 0.353553385 : f32
    %821 = vector.broadcast %cst_287 : f32 to vector<8x8xf32>
    %822 = arith.mulf %820, %821 : vector<8x8xf32>
    %823 = vector.extract_strided_slice %797 {offsets = [0, 8], sizes = [8, 8], strides = [1, 1]} : vector<16x32xf32> to vector<8x8xf32>
    %cst_288 = arith.constant dense<0.000000e+00> : vector<8x8xf32>
    %824 = tpu.matmul %822, %823, %cst_288 {dimension_numbers = #tpu.dot_dimension_numbers<[1], [1], [0], [0], [0, 0, 1, 0], [], []>} : vector<8x8xf32>, vector<8x8xf32>, vector<8x8xf32> -> vector<8x8xf32>
    %cst_289 = arith.constant dense<0xFF800000> : vector<8xf32>
    %825 = vector.multi_reduction <maximumf>, %824, %cst_289 [1] : vector<8x8xf32> to vector<8xf32>
    %826 = vector.shape_cast %825 : vector<8xf32> to vector<8x1xf32>
    %827 = vector.broadcast %826 : vector<8x1xf32> to vector<8x8xf32>
    %828 = arith.subf %824, %827 : vector<8x8xf32>
    %829 = math.exp %828 : vector<8x8xf32>
    %cst_290 = arith.constant dense<0.000000e+00> : vector<8xf32>
    %830 = vector.multi_reduction <add>, %829, %cst_290 [1] : vector<8x8xf32> to vector<8xf32>
    %831 = vector.shape_cast %830 : vector<8xf32> to vector<8x1xf32>
    %832 = tpu.reciprocal %831 {approx = true} : vector<8x1xf32> -> vector<8x1xf32>
    %833 = vector.broadcast %832 : vector<8x1xf32> to vector<8x8xf32>
    %834 = arith.mulf %829, %833 : vector<8x8xf32>
    %835 = vector.extract_strided_slice %798 {offsets = [0, 8], sizes = [8, 8], strides = [1, 1]} : vector<16x32xf32> to vector<8x8xf32>
    %cst_291 = arith.constant dense<0.000000e+00> : vector<8x8xf32>
    %836 = tpu.matmul %834, %835, %cst_291 {dimension_numbers = #tpu.dot_dimension_numbers<[1], [0], [0], [1], [0, 0, 1, 1], [], []>} : vector<8x8xf32>, vector<8x8xf32>, vector<8x8xf32> -> vector<8x8xf32>
    %837 = vector.extract_strided_slice %785 {offsets = [8, 0], sizes = [8, 32], strides = [1, 1]} : vector<32x32xf32> to vector<8x32xf32>
    %cst_292 = arith.constant dense<0.000000e+00> : vector<8x32xf32>
    %838 = tpu.matmul %836, %837, %cst_292 {dimension_numbers = #tpu.dot_dimension_numbers<[1], [0], [0], [1], [0, 0, 1, 1], [], []>} : vector<8x8xf32>, vector<8x32xf32>, vector<8x32xf32> -> vector<8x32xf32>
    %839 = arith.addf %819, %838 : vector<8x32xf32>
    %840 = vector.extract_strided_slice %791 {offsets = [0, 16], sizes = [8, 8], strides = [1, 1]} : vector<16x32xf32> to vector<8x8xf32>
    %cst_293 = arith.constant 0.353553385 : f32
    %841 = vector.broadcast %cst_293 : f32 to vector<8x8xf32>
    %842 = arith.mulf %840, %841 : vector<8x8xf32>
    %843 = vector.extract_strided_slice %797 {offsets = [0, 16], sizes = [8, 8], strides = [1, 1]} : vector<16x32xf32> to vector<8x8xf32>
    %cst_294 = arith.constant dense<0.000000e+00> : vector<8x8xf32>
    %844 = tpu.matmul %842, %843, %cst_294 {dimension_numbers = #tpu.dot_dimension_numbers<[1], [1], [0], [0], [0, 0, 1, 0], [], []>} : vector<8x8xf32>, vector<8x8xf32>, vector<8x8xf32> -> vector<8x8xf32>
    %cst_295 = arith.constant dense<0xFF800000> : vector<8xf32>
    %845 = vector.multi_reduction <maximumf>, %844, %cst_295 [1] : vector<8x8xf32> to vector<8xf32>
    %846 = vector.shape_cast %845 : vector<8xf32> to vector<8x1xf32>
    %847 = vector.broadcast %846 : vector<8x1xf32> to vector<8x8xf32>
    %848 = arith.subf %844, %847 : vector<8x8xf32>
    %849 = math.exp %848 : vector<8x8xf32>
    %cst_296 = arith.constant dense<0.000000e+00> : vector<8xf32>
    %850 = vector.multi_reduction <add>, %849, %cst_296 [1] : vector<8x8xf32> to vector<8xf32>
    %851 = vector.shape_cast %850 : vector<8xf32> to vector<8x1xf32>
    %852 = tpu.reciprocal %851 {approx = true} : vector<8x1xf32> -> vector<8x1xf32>
    %853 = vector.broadcast %852 : vector<8x1xf32> to vector<8x8xf32>
    %854 = arith.mulf %849, %853 : vector<8x8xf32>
    %855 = vector.extract_strided_slice %798 {offsets = [0, 16], sizes = [8, 8], strides = [1, 1]} : vector<16x32xf32> to vector<8x8xf32>
    %cst_297 = arith.constant dense<0.000000e+00> : vector<8x8xf32>
    %856 = tpu.matmul %854, %855, %cst_297 {dimension_numbers = #tpu.dot_dimension_numbers<[1], [0], [0], [1], [0, 0, 1, 1], [], []>} : vector<8x8xf32>, vector<8x8xf32>, vector<8x8xf32> -> vector<8x8xf32>
    %857 = vector.extract_strided_slice %785 {offsets = [16, 0], sizes = [8, 32], strides = [1, 1]} : vector<32x32xf32> to vector<8x32xf32>
    %cst_298 = arith.constant dense<0.000000e+00> : vector<8x32xf32>
    %858 = tpu.matmul %856, %857, %cst_298 {dimension_numbers = #tpu.dot_dimension_numbers<[1], [0], [0], [1], [0, 0, 1, 1], [], []>} : vector<8x8xf32>, vector<8x32xf32>, vector<8x32xf32> -> vector<8x32xf32>
    %859 = arith.addf %839, %858 : vector<8x32xf32>
    %860 = vector.extract_strided_slice %791 {offsets = [0, 24], sizes = [8, 8], strides = [1, 1]} : vector<16x32xf32> to vector<8x8xf32>
    %cst_299 = arith.constant 0.353553385 : f32
    %861 = vector.broadcast %cst_299 : f32 to vector<8x8xf32>
    %862 = arith.mulf %860, %861 : vector<8x8xf32>
    %863 = vector.extract_strided_slice %797 {offsets = [0, 24], sizes = [8, 8], strides = [1, 1]} : vector<16x32xf32> to vector<8x8xf32>
    %cst_300 = arith.constant dense<0.000000e+00> : vector<8x8xf32>
    %864 = tpu.matmul %862, %863, %cst_300 {dimension_numbers = #tpu.dot_dimension_numbers<[1], [1], [0], [0], [0, 0, 1, 0], [], []>} : vector<8x8xf32>, vector<8x8xf32>, vector<8x8xf32> -> vector<8x8xf32>
    %cst_301 = arith.constant dense<0xFF800000> : vector<8xf32>
    %865 = vector.multi_reduction <maximumf>, %864, %cst_301 [1] : vector<8x8xf32> to vector<8xf32>
    %866 = vector.shape_cast %865 : vector<8xf32> to vector<8x1xf32>
    %867 = vector.broadcast %866 : vector<8x1xf32> to vector<8x8xf32>
    %868 = arith.subf %864, %867 : vector<8x8xf32>
    %869 = math.exp %868 : vector<8x8xf32>
    %cst_302 = arith.constant dense<0.000000e+00> : vector<8xf32>
    %870 = vector.multi_reduction <add>, %869, %cst_302 [1] : vector<8x8xf32> to vector<8xf32>
    %871 = vector.shape_cast %870 : vector<8xf32> to vector<8x1xf32>
    %872 = tpu.reciprocal %871 {approx = true} : vector<8x1xf32> -> vector<8x1xf32>
    %873 = vector.broadcast %872 : vector<8x1xf32> to vector<8x8xf32>
    %874 = arith.mulf %869, %873 : vector<8x8xf32>
    %875 = vector.extract_strided_slice %798 {offsets = [0, 24], sizes = [8, 8], strides = [1, 1]} : vector<16x32xf32> to vector<8x8xf32>
    %cst_303 = arith.constant dense<0.000000e+00> : vector<8x8xf32>
    %876 = tpu.matmul %874, %875, %cst_303 {dimension_numbers = #tpu.dot_dimension_numbers<[1], [0], [0], [1], [0, 0, 1, 1], [], []>} : vector<8x8xf32>, vector<8x8xf32>, vector<8x8xf32> -> vector<8x8xf32>
    %877 = vector.extract_strided_slice %785 {offsets = [24, 0], sizes = [8, 32], strides = [1, 1]} : vector<32x32xf32> to vector<8x32xf32>
    %cst_304 = arith.constant dense<0.000000e+00> : vector<8x32xf32>
    %878 = tpu.matmul %876, %877, %cst_304 {dimension_numbers = #tpu.dot_dimension_numbers<[1], [0], [0], [1], [0, 0, 1, 1], [], []>} : vector<8x8xf32>, vector<8x32xf32>, vector<8x32xf32> -> vector<8x32xf32>
    %879 = arith.addf %859, %878 : vector<8x32xf32>
    %cst_305 = arith.constant 0.000000e+00 : f32
    %880 = vector.broadcast %cst_305 : f32 to vector<8x32xf32>
    %881 = vector.extract_strided_slice %791 {offsets = [8, 0], sizes = [8, 8], strides = [1, 1]} : vector<16x32xf32> to vector<8x8xf32>
    %cst_306 = arith.constant 0.353553385 : f32
    %882 = vector.broadcast %cst_306 : f32 to vector<8x8xf32>
    %883 = arith.mulf %881, %882 : vector<8x8xf32>
    %884 = vector.extract_strided_slice %797 {offsets = [8, 0], sizes = [8, 8], strides = [1, 1]} : vector<16x32xf32> to vector<8x8xf32>
    %cst_307 = arith.constant dense<0.000000e+00> : vector<8x8xf32>
    %885 = tpu.matmul %883, %884, %cst_307 {dimension_numbers = #tpu.dot_dimension_numbers<[1], [1], [0], [0], [0, 0, 1, 0], [], []>} : vector<8x8xf32>, vector<8x8xf32>, vector<8x8xf32> -> vector<8x8xf32>
    %cst_308 = arith.constant dense<0xFF800000> : vector<8xf32>
    %886 = vector.multi_reduction <maximumf>, %885, %cst_308 [1] : vector<8x8xf32> to vector<8xf32>
    %887 = vector.shape_cast %886 : vector<8xf32> to vector<8x1xf32>
    %888 = vector.broadcast %887 : vector<8x1xf32> to vector<8x8xf32>
    %889 = arith.subf %885, %888 : vector<8x8xf32>
    %890 = math.exp %889 : vector<8x8xf32>
    %cst_309 = arith.constant dense<0.000000e+00> : vector<8xf32>
    %891 = vector.multi_reduction <add>, %890, %cst_309 [1] : vector<8x8xf32> to vector<8xf32>
    %892 = vector.shape_cast %891 : vector<8xf32> to vector<8x1xf32>
    %893 = tpu.reciprocal %892 {approx = true} : vector<8x1xf32> -> vector<8x1xf32>
    %894 = vector.broadcast %893 : vector<8x1xf32> to vector<8x8xf32>
    %895 = arith.mulf %890, %894 : vector<8x8xf32>
    %896 = vector.extract_strided_slice %798 {offsets = [8, 0], sizes = [8, 8], strides = [1, 1]} : vector<16x32xf32> to vector<8x8xf32>
    %cst_310 = arith.constant dense<0.000000e+00> : vector<8x8xf32>
    %897 = tpu.matmul %895, %896, %cst_310 {dimension_numbers = #tpu.dot_dimension_numbers<[1], [0], [0], [1], [0, 0, 1, 1], [], []>} : vector<8x8xf32>, vector<8x8xf32>, vector<8x8xf32> -> vector<8x8xf32>
    %898 = vector.extract_strided_slice %785 {offsets = [0, 0], sizes = [8, 32], strides = [1, 1]} : vector<32x32xf32> to vector<8x32xf32>
    %cst_311 = arith.constant dense<0.000000e+00> : vector<8x32xf32>
    %899 = tpu.matmul %897, %898, %cst_311 {dimension_numbers = #tpu.dot_dimension_numbers<[1], [0], [0], [1], [0, 0, 1, 1], [], []>} : vector<8x8xf32>, vector<8x32xf32>, vector<8x32xf32> -> vector<8x32xf32>
    %900 = arith.addf %880, %899 : vector<8x32xf32>
    %901 = vector.extract_strided_slice %791 {offsets = [8, 8], sizes = [8, 8], strides = [1, 1]} : vector<16x32xf32> to vector<8x8xf32>
    %cst_312 = arith.constant 0.353553385 : f32
    %902 = vector.broadcast %cst_312 : f32 to vector<8x8xf32>
    %903 = arith.mulf %901, %902 : vector<8x8xf32>
    %904 = vector.extract_strided_slice %797 {offsets = [8, 8], sizes = [8, 8], strides = [1, 1]} : vector<16x32xf32> to vector<8x8xf32>
    %cst_313 = arith.constant dense<0.000000e+00> : vector<8x8xf32>
    %905 = tpu.matmul %903, %904, %cst_313 {dimension_numbers = #tpu.dot_dimension_numbers<[1], [1], [0], [0], [0, 0, 1, 0], [], []>} : vector<8x8xf32>, vector<8x8xf32>, vector<8x8xf32> -> vector<8x8xf32>
    %cst_314 = arith.constant dense<0xFF800000> : vector<8xf32>
    %906 = vector.multi_reduction <maximumf>, %905, %cst_314 [1] : vector<8x8xf32> to vector<8xf32>
    %907 = vector.shape_cast %906 : vector<8xf32> to vector<8x1xf32>
    %908 = vector.broadcast %907 : vector<8x1xf32> to vector<8x8xf32>
    %909 = arith.subf %905, %908 : vector<8x8xf32>
    %910 = math.exp %909 : vector<8x8xf32>
    %cst_315 = arith.constant dense<0.000000e+00> : vector<8xf32>
    %911 = vector.multi_reduction <add>, %910, %cst_315 [1] : vector<8x8xf32> to vector<8xf32>
    %912 = vector.shape_cast %911 : vector<8xf32> to vector<8x1xf32>
    %913 = tpu.reciprocal %912 {approx = true} : vector<8x1xf32> -> vector<8x1xf32>
    %914 = vector.broadcast %913 : vector<8x1xf32> to vector<8x8xf32>
    %915 = arith.mulf %910, %914 : vector<8x8xf32>
    %916 = vector.extract_strided_slice %798 {offsets = [8, 8], sizes = [8, 8], strides = [1, 1]} : vector<16x32xf32> to vector<8x8xf32>
    %cst_316 = arith.constant dense<0.000000e+00> : vector<8x8xf32>
    %917 = tpu.matmul %915, %916, %cst_316 {dimension_numbers = #tpu.dot_dimension_numbers<[1], [0], [0], [1], [0, 0, 1, 1], [], []>} : vector<8x8xf32>, vector<8x8xf32>, vector<8x8xf32> -> vector<8x8xf32>
    %918 = vector.extract_strided_slice %785 {offsets = [8, 0], sizes = [8, 32], strides = [1, 1]} : vector<32x32xf32> to vector<8x32xf32>
    %cst_317 = arith.constant dense<0.000000e+00> : vector<8x32xf32>
    %919 = tpu.matmul %917, %918, %cst_317 {dimension_numbers = #tpu.dot_dimension_numbers<[1], [0], [0], [1], [0, 0, 1, 1], [], []>} : vector<8x8xf32>, vector<8x32xf32>, vector<8x32xf32> -> vector<8x32xf32>
    %920 = arith.addf %900, %919 : vector<8x32xf32>
    %921 = vector.extract_strided_slice %791 {offsets = [8, 16], sizes = [8, 8], strides = [1, 1]} : vector<16x32xf32> to vector<8x8xf32>
    %cst_318 = arith.constant 0.353553385 : f32
    %922 = vector.broadcast %cst_318 : f32 to vector<8x8xf32>
    %923 = arith.mulf %921, %922 : vector<8x8xf32>
    %924 = vector.extract_strided_slice %797 {offsets = [8, 16], sizes = [8, 8], strides = [1, 1]} : vector<16x32xf32> to vector<8x8xf32>
    %cst_319 = arith.constant dense<0.000000e+00> : vector<8x8xf32>
    %925 = tpu.matmul %923, %924, %cst_319 {dimension_numbers = #tpu.dot_dimension_numbers<[1], [1], [0], [0], [0, 0, 1, 0], [], []>} : vector<8x8xf32>, vector<8x8xf32>, vector<8x8xf32> -> vector<8x8xf32>
    %cst_320 = arith.constant dense<0xFF800000> : vector<8xf32>
    %926 = vector.multi_reduction <maximumf>, %925, %cst_320 [1] : vector<8x8xf32> to vector<8xf32>
    %927 = vector.shape_cast %926 : vector<8xf32> to vector<8x1xf32>
    %928 = vector.broadcast %927 : vector<8x1xf32> to vector<8x8xf32>
    %929 = arith.subf %925, %928 : vector<8x8xf32>
    %930 = math.exp %929 : vector<8x8xf32>
    %cst_321 = arith.constant dense<0.000000e+00> : vector<8xf32>
    %931 = vector.multi_reduction <add>, %930, %cst_321 [1] : vector<8x8xf32> to vector<8xf32>
    %932 = vector.shape_cast %931 : vector<8xf32> to vector<8x1xf32>
    %933 = tpu.reciprocal %932 {approx = true} : vector<8x1xf32> -> vector<8x1xf32>
    %934 = vector.broadcast %933 : vector<8x1xf32> to vector<8x8xf32>
    %935 = arith.mulf %930, %934 : vector<8x8xf32>
    %936 = vector.extract_strided_slice %798 {offsets = [8, 16], sizes = [8, 8], strides = [1, 1]} : vector<16x32xf32> to vector<8x8xf32>
    %cst_322 = arith.constant dense<0.000000e+00> : vector<8x8xf32>
    %937 = tpu.matmul %935, %936, %cst_322 {dimension_numbers = #tpu.dot_dimension_numbers<[1], [0], [0], [1], [0, 0, 1, 1], [], []>} : vector<8x8xf32>, vector<8x8xf32>, vector<8x8xf32> -> vector<8x8xf32>
    %938 = vector.extract_strided_slice %785 {offsets = [16, 0], sizes = [8, 32], strides = [1, 1]} : vector<32x32xf32> to vector<8x32xf32>
    %cst_323 = arith.constant dense<0.000000e+00> : vector<8x32xf32>
    %939 = tpu.matmul %937, %938, %cst_323 {dimension_numbers = #tpu.dot_dimension_numbers<[1], [0], [0], [1], [0, 0, 1, 1], [], []>} : vector<8x8xf32>, vector<8x32xf32>, vector<8x32xf32> -> vector<8x32xf32>
    %940 = arith.addf %920, %939 : vector<8x32xf32>
    %941 = vector.extract_strided_slice %791 {offsets = [8, 24], sizes = [8, 8], strides = [1, 1]} : vector<16x32xf32> to vector<8x8xf32>
    %cst_324 = arith.constant 0.353553385 : f32
    %942 = vector.broadcast %cst_324 : f32 to vector<8x8xf32>
    %943 = arith.mulf %941, %942 : vector<8x8xf32>
    %944 = vector.extract_strided_slice %797 {offsets = [8, 24], sizes = [8, 8], strides = [1, 1]} : vector<16x32xf32> to vector<8x8xf32>
    %cst_325 = arith.constant dense<0.000000e+00> : vector<8x8xf32>
    %945 = tpu.matmul %943, %944, %cst_325 {dimension_numbers = #tpu.dot_dimension_numbers<[1], [1], [0], [0], [0, 0, 1, 0], [], []>} : vector<8x8xf32>, vector<8x8xf32>, vector<8x8xf32> -> vector<8x8xf32>
    %cst_326 = arith.constant dense<0xFF800000> : vector<8xf32>
    %946 = vector.multi_reduction <maximumf>, %945, %cst_326 [1] : vector<8x8xf32> to vector<8xf32>
    %947 = vector.shape_cast %946 : vector<8xf32> to vector<8x1xf32>
    %948 = vector.broadcast %947 : vector<8x1xf32> to vector<8x8xf32>
    %949 = arith.subf %945, %948 : vector<8x8xf32>
    %950 = math.exp %949 : vector<8x8xf32>
    %cst_327 = arith.constant dense<0.000000e+00> : vector<8xf32>
    %951 = vector.multi_reduction <add>, %950, %cst_327 [1] : vector<8x8xf32> to vector<8xf32>
    %952 = vector.shape_cast %951 : vector<8xf32> to vector<8x1xf32>
    %953 = tpu.reciprocal %952 {approx = true} : vector<8x1xf32> -> vector<8x1xf32>
    %954 = vector.broadcast %953 : vector<8x1xf32> to vector<8x8xf32>
    %955 = arith.mulf %950, %954 : vector<8x8xf32>
    %956 = vector.extract_strided_slice %798 {offsets = [8, 24], sizes = [8, 8], strides = [1, 1]} : vector<16x32xf32> to vector<8x8xf32>
    %cst_328 = arith.constant dense<0.000000e+00> : vector<8x8xf32>
    %957 = tpu.matmul %955, %956, %cst_328 {dimension_numbers = #tpu.dot_dimension_numbers<[1], [0], [0], [1], [0, 0, 1, 1], [], []>} : vector<8x8xf32>, vector<8x8xf32>, vector<8x8xf32> -> vector<8x8xf32>
    %958 = vector.extract_strided_slice %785 {offsets = [24, 0], sizes = [8, 32], strides = [1, 1]} : vector<32x32xf32> to vector<8x32xf32>
    %cst_329 = arith.constant dense<0.000000e+00> : vector<8x32xf32>
    %959 = tpu.matmul %957, %958, %cst_329 {dimension_numbers = #tpu.dot_dimension_numbers<[1], [0], [0], [1], [0, 0, 1, 1], [], []>} : vector<8x8xf32>, vector<8x32xf32>, vector<8x32xf32> -> vector<8x32xf32>
    %960 = arith.addf %940, %959 : vector<8x32xf32>
    %961 = tpu.concatenate %879, %960 in 0 : vector<8x32xf32>, vector<8x32xf32> -> vector<16x32xf32>
    %962 = vector.broadcast %786 : vector<1x32xf32> to vector<16x32xf32>
    %963 = arith.addf %961, %962 : vector<16x32xf32>
    %964 = arith.addf %782, %963 : vector<16x32xf32>
    %cst_330 = arith.constant dense<0.000000e+00> : vector<16xf32>
    %965 = vector.multi_reduction <add>, %964, %cst_330 [1] : vector<16x32xf32> to vector<16xf32>
    %966 = vector.shape_cast %965 : vector<16xf32> to vector<16x1xf32>
    %cst_331 = arith.constant 3.200000e+01 : f32
    %967 = vector.broadcast %cst_331 : f32 to vector<16x1xf32>
    %968 = arith.divf %966, %967 : vector<16x1xf32>
    %969 = vector.broadcast %968 : vector<16x1xf32> to vector<16x32xf32>
    %970 = arith.subf %964, %969 : vector<16x32xf32>
    %971 = arith.mulf %970, %970 : vector<16x32xf32>
    %cst_332 = arith.constant dense<0.000000e+00> : vector<16xf32>
    %972 = vector.multi_reduction <add>, %971, %cst_332 [1] : vector<16x32xf32> to vector<16xf32>
    %973 = vector.shape_cast %972 : vector<16xf32> to vector<16x1xf32>
    %cst_333 = arith.constant 3.200000e+01 : f32
    %974 = vector.broadcast %cst_333 : f32 to vector<16x1xf32>
    %975 = arith.divf %973, %974 : vector<16x1xf32>
    %cst_334 = arith.constant 9.99999974E-6 : f32
    %976 = vector.broadcast %cst_334 : f32 to vector<16x1xf32>
    %977 = arith.addf %975, %976 : vector<16x1xf32>
    %978 = math.rsqrt %977 : vector<16x1xf32>
    %979 = vector.broadcast %968 : vector<16x1xf32> to vector<16x32xf32>
    %980 = arith.subf %964, %979 : vector<16x32xf32>
    %981 = vector.broadcast %978 : vector<16x1xf32> to vector<16x32xf32>
    %982 = arith.mulf %980, %981 : vector<16x32xf32>
    %c1456 = arith.constant 1456 : index
    %c0_335 = arith.constant 0 : index
    %983 = vector.load %arg2[%c1456, %c0_335] : memref<1904x128xf32, #tpu.memory_space<vmem>>, vector<1x32xf32>
    %984 = vector.broadcast %983 : vector<1x32xf32> to vector<16x32xf32>
    %985 = arith.mulf %982, %984 : vector<16x32xf32>
    %c1464 = arith.constant 1464 : index
    %c0_336 = arith.constant 0 : index
    %986 = vector.load %arg2[%c1464, %c0_336] : memref<1904x128xf32, #tpu.memory_space<vmem>>, vector<1x32xf32>
    %987 = vector.broadcast %986 : vector<1x32xf32> to vector<16x32xf32>
    %988 = arith.addf %985, %987 : vector<16x32xf32>
    %c1264 = arith.constant 1264 : index
    %c0_337 = arith.constant 0 : index
    %989 = vector.load %arg2[%c1264, %c0_337] : memref<1904x128xf32, #tpu.memory_space<vmem>>, vector<32x128xf32>
    %cst_338 = arith.constant dense<0.000000e+00> : vector<16x128xf32>
    %990 = tpu.matmul %988, %989, %cst_338 {dimension_numbers = #tpu.dot_dimension_numbers<[1], [0], [0], [1], [0, 0, 1, 1], [], []>} : vector<16x32xf32>, vector<32x128xf32>, vector<16x128xf32> -> vector<16x128xf32>
    %c1296 = arith.constant 1296 : index
    %c0_339 = arith.constant 0 : index
    %991 = vector.load %arg2[%c1296, %c0_339] : memref<1904x128xf32, #tpu.memory_space<vmem>>, vector<1x128xf32>
    %992 = vector.broadcast %991 : vector<1x128xf32> to vector<16x128xf32>
    %993 = arith.addf %990, %992 : vector<16x128xf32>
    %cst_340 = arith.constant 0.000000e+00 : f32
    %994 = vector.broadcast %cst_340 : f32 to vector<16x128xf32>
    %995 = arith.maximumf %993, %994 : vector<16x128xf32>
    %c1304 = arith.constant 1304 : index
    %c0_341 = arith.constant 0 : index
    %996 = vector.load %arg2[%c1304, %c0_341] : memref<1904x128xf32, #tpu.memory_space<vmem>>, vector<128x32xf32>
    %cst_342 = arith.constant dense<0.000000e+00> : vector<16x32xf32>
    %997 = tpu.matmul %995, %996, %cst_342 {dimension_numbers = #tpu.dot_dimension_numbers<[1], [0], [0], [1], [0, 0, 1, 1], [], []>} : vector<16x128xf32>, vector<128x32xf32>, vector<16x32xf32> -> vector<16x32xf32>
    %c1432 = arith.constant 1432 : index
    %c0_343 = arith.constant 0 : index
    %998 = vector.load %arg2[%c1432, %c0_343] : memref<1904x128xf32, #tpu.memory_space<vmem>>, vector<1x32xf32>
    %999 = vector.broadcast %998 : vector<1x32xf32> to vector<16x32xf32>
    %1000 = arith.addf %997, %999 : vector<16x32xf32>
    %1001 = arith.addf %988, %1000 : vector<16x32xf32>
    %cst_344 = arith.constant dense<0.000000e+00> : vector<16xf32>
    %1002 = vector.multi_reduction <add>, %1001, %cst_344 [1] : vector<16x32xf32> to vector<16xf32>
    %1003 = vector.shape_cast %1002 : vector<16xf32> to vector<16x1xf32>
    %cst_345 = arith.constant 3.200000e+01 : f32
    %1004 = vector.broadcast %cst_345 : f32 to vector<16x1xf32>
    %1005 = arith.divf %1003, %1004 : vector<16x1xf32>
    %1006 = vector.broadcast %1005 : vector<16x1xf32> to vector<16x32xf32>
    %1007 = arith.subf %1001, %1006 : vector<16x32xf32>
    %1008 = arith.mulf %1007, %1007 : vector<16x32xf32>
    %cst_346 = arith.constant dense<0.000000e+00> : vector<16xf32>
    %1009 = vector.multi_reduction <add>, %1008, %cst_346 [1] : vector<16x32xf32> to vector<16xf32>
    %1010 = vector.shape_cast %1009 : vector<16xf32> to vector<16x1xf32>
    %cst_347 = arith.constant 3.200000e+01 : f32
    %1011 = vector.broadcast %cst_347 : f32 to vector<16x1xf32>
    %1012 = arith.divf %1010, %1011 : vector<16x1xf32>
    %cst_348 = arith.constant 9.99999974E-6 : f32
    %1013 = vector.broadcast %cst_348 : f32 to vector<16x1xf32>
    %1014 = arith.addf %1012, %1013 : vector<16x1xf32>
    %1015 = math.rsqrt %1014 : vector<16x1xf32>
    %1016 = vector.broadcast %1005 : vector<16x1xf32> to vector<16x32xf32>
    %1017 = arith.subf %1001, %1016 : vector<16x32xf32>
    %1018 = vector.broadcast %1015 : vector<16x1xf32> to vector<16x32xf32>
    %1019 = arith.mulf %1017, %1018 : vector<16x32xf32>
    %c1472 = arith.constant 1472 : index
    %c0_349 = arith.constant 0 : index
    %1020 = vector.load %arg2[%c1472, %c0_349] : memref<1904x128xf32, #tpu.memory_space<vmem>>, vector<1x32xf32>
    %1021 = vector.broadcast %1020 : vector<1x32xf32> to vector<16x32xf32>
    %1022 = arith.mulf %1019, %1021 : vector<16x32xf32>
    %c1480 = arith.constant 1480 : index
    %c0_350 = arith.constant 0 : index
    %1023 = vector.load %arg2[%c1480, %c0_350] : memref<1904x128xf32, #tpu.memory_space<vmem>>, vector<1x32xf32>
    %1024 = vector.broadcast %1023 : vector<1x32xf32> to vector<16x32xf32>
    %1025 = arith.addf %1022, %1024 : vector<16x32xf32>
    %c1488 = arith.constant 1488 : index
    %c0_351 = arith.constant 0 : index
    %1026 = vector.load %arg2[%c1488, %c0_351] : memref<1904x128xf32, #tpu.memory_space<vmem>>, vector<32x96xf32>
    %c1520 = arith.constant 1520 : index
    %c0_352 = arith.constant 0 : index
    %1027 = vector.load %arg2[%c1520, %c0_352] : memref<1904x128xf32, #tpu.memory_space<vmem>>, vector<1x96xf32>
    %c1528 = arith.constant 1528 : index
    %c0_353 = arith.constant 0 : index
    %1028 = vector.load %arg2[%c1528, %c0_353] : memref<1904x128xf32, #tpu.memory_space<vmem>>, vector<32x32xf32>
    %c1560 = arith.constant 1560 : index
    %c0_354 = arith.constant 0 : index
    %1029 = vector.load %arg2[%c1560, %c0_354] : memref<1904x128xf32, #tpu.memory_space<vmem>>, vector<1x32xf32>
    %1030 = vector.extract_strided_slice %1026 {offsets = [0, 0], sizes = [32, 32], strides = [1, 1]} : vector<32x96xf32> to vector<32x32xf32>
    %cst_355 = arith.constant dense<0.000000e+00> : vector<16x32xf32>
    %1031 = tpu.matmul %1025, %1030, %cst_355 {dimension_numbers = #tpu.dot_dimension_numbers<[1], [0], [0], [1], [0, 0, 1, 1], [], []>} : vector<16x32xf32>, vector<32x32xf32>, vector<16x32xf32> -> vector<16x32xf32>
    %1032 = vector.extract_strided_slice %1027 {offsets = [0, 0], sizes = [1, 32], strides = [1, 1]} : vector<1x96xf32> to vector<1x32xf32>
    %1033 = vector.broadcast %1032 : vector<1x32xf32> to vector<16x32xf32>
    %1034 = arith.addf %1031, %1033 : vector<16x32xf32>
    %1035 = vector.extract_strided_slice %1026 {offsets = [0, 32], sizes = [32, 64], strides = [1, 1]} : vector<32x96xf32> to vector<32x64xf32>
    %cst_356 = arith.constant dense<0.000000e+00> : vector<16x64xf32>
    %1036 = tpu.matmul %1025, %1035, %cst_356 {dimension_numbers = #tpu.dot_dimension_numbers<[1], [0], [0], [1], [0, 0, 1, 1], [], []>} : vector<16x32xf32>, vector<32x64xf32>, vector<16x64xf32> -> vector<16x64xf32>
    %1037 = vector.extract_strided_slice %1027 {offsets = [0, 32], sizes = [1, 64], strides = [1, 1]} : vector<1x96xf32> to vector<1x64xf32>
    %1038 = vector.broadcast %1037 : vector<1x64xf32> to vector<16x64xf32>
    %1039 = arith.addf %1036, %1038 : vector<16x64xf32>
    %1040 = vector.extract_strided_slice %1039 {offsets = [0, 0], sizes = [16, 32], strides = [1, 1]} : vector<16x64xf32> to vector<16x32xf32>
    %1041 = vector.extract_strided_slice %1039 {offsets = [0, 32], sizes = [16, 32], strides = [1, 1]} : vector<16x64xf32> to vector<16x32xf32>
    %cst_357 = arith.constant 0.000000e+00 : f32
    %1042 = vector.broadcast %cst_357 : f32 to vector<8x32xf32>
    %1043 = vector.extract_strided_slice %1034 {offsets = [0, 0], sizes = [8, 8], strides = [1, 1]} : vector<16x32xf32> to vector<8x8xf32>
    %cst_358 = arith.constant 0.353553385 : f32
    %1044 = vector.broadcast %cst_358 : f32 to vector<8x8xf32>
    %1045 = arith.mulf %1043, %1044 : vector<8x8xf32>
    %1046 = vector.extract_strided_slice %1040 {offsets = [0, 0], sizes = [8, 8], strides = [1, 1]} : vector<16x32xf32> to vector<8x8xf32>
    %cst_359 = arith.constant dense<0.000000e+00> : vector<8x8xf32>
    %1047 = tpu.matmul %1045, %1046, %cst_359 {dimension_numbers = #tpu.dot_dimension_numbers<[1], [1], [0], [0], [0, 0, 1, 0], [], []>} : vector<8x8xf32>, vector<8x8xf32>, vector<8x8xf32> -> vector<8x8xf32>
    %cst_360 = arith.constant dense<0xFF800000> : vector<8xf32>
    %1048 = vector.multi_reduction <maximumf>, %1047, %cst_360 [1] : vector<8x8xf32> to vector<8xf32>
    %1049 = vector.shape_cast %1048 : vector<8xf32> to vector<8x1xf32>
    %1050 = vector.broadcast %1049 : vector<8x1xf32> to vector<8x8xf32>
    %1051 = arith.subf %1047, %1050 : vector<8x8xf32>
    %1052 = math.exp %1051 : vector<8x8xf32>
    %cst_361 = arith.constant dense<0.000000e+00> : vector<8xf32>
    %1053 = vector.multi_reduction <add>, %1052, %cst_361 [1] : vector<8x8xf32> to vector<8xf32>
    %1054 = vector.shape_cast %1053 : vector<8xf32> to vector<8x1xf32>
    %1055 = tpu.reciprocal %1054 {approx = true} : vector<8x1xf32> -> vector<8x1xf32>
    %1056 = vector.broadcast %1055 : vector<8x1xf32> to vector<8x8xf32>
    %1057 = arith.mulf %1052, %1056 : vector<8x8xf32>
    %1058 = vector.extract_strided_slice %1041 {offsets = [0, 0], sizes = [8, 8], strides = [1, 1]} : vector<16x32xf32> to vector<8x8xf32>
    %cst_362 = arith.constant dense<0.000000e+00> : vector<8x8xf32>
    %1059 = tpu.matmul %1057, %1058, %cst_362 {dimension_numbers = #tpu.dot_dimension_numbers<[1], [0], [0], [1], [0, 0, 1, 1], [], []>} : vector<8x8xf32>, vector<8x8xf32>, vector<8x8xf32> -> vector<8x8xf32>
    %1060 = vector.extract_strided_slice %1028 {offsets = [0, 0], sizes = [8, 32], strides = [1, 1]} : vector<32x32xf32> to vector<8x32xf32>
    %cst_363 = arith.constant dense<0.000000e+00> : vector<8x32xf32>
    %1061 = tpu.matmul %1059, %1060, %cst_363 {dimension_numbers = #tpu.dot_dimension_numbers<[1], [0], [0], [1], [0, 0, 1, 1], [], []>} : vector<8x8xf32>, vector<8x32xf32>, vector<8x32xf32> -> vector<8x32xf32>
    %1062 = arith.addf %1042, %1061 : vector<8x32xf32>
    %1063 = vector.extract_strided_slice %1034 {offsets = [0, 8], sizes = [8, 8], strides = [1, 1]} : vector<16x32xf32> to vector<8x8xf32>
    %cst_364 = arith.constant 0.353553385 : f32
    %1064 = vector.broadcast %cst_364 : f32 to vector<8x8xf32>
    %1065 = arith.mulf %1063, %1064 : vector<8x8xf32>
    %1066 = vector.extract_strided_slice %1040 {offsets = [0, 8], sizes = [8, 8], strides = [1, 1]} : vector<16x32xf32> to vector<8x8xf32>
    %cst_365 = arith.constant dense<0.000000e+00> : vector<8x8xf32>
    %1067 = tpu.matmul %1065, %1066, %cst_365 {dimension_numbers = #tpu.dot_dimension_numbers<[1], [1], [0], [0], [0, 0, 1, 0], [], []>} : vector<8x8xf32>, vector<8x8xf32>, vector<8x8xf32> -> vector<8x8xf32>
    %cst_366 = arith.constant dense<0xFF800000> : vector<8xf32>
    %1068 = vector.multi_reduction <maximumf>, %1067, %cst_366 [1] : vector<8x8xf32> to vector<8xf32>
    %1069 = vector.shape_cast %1068 : vector<8xf32> to vector<8x1xf32>
    %1070 = vector.broadcast %1069 : vector<8x1xf32> to vector<8x8xf32>
    %1071 = arith.subf %1067, %1070 : vector<8x8xf32>
    %1072 = math.exp %1071 : vector<8x8xf32>
    %cst_367 = arith.constant dense<0.000000e+00> : vector<8xf32>
    %1073 = vector.multi_reduction <add>, %1072, %cst_367 [1] : vector<8x8xf32> to vector<8xf32>
    %1074 = vector.shape_cast %1073 : vector<8xf32> to vector<8x1xf32>
    %1075 = tpu.reciprocal %1074 {approx = true} : vector<8x1xf32> -> vector<8x1xf32>
    %1076 = vector.broadcast %1075 : vector<8x1xf32> to vector<8x8xf32>
    %1077 = arith.mulf %1072, %1076 : vector<8x8xf32>
    %1078 = vector.extract_strided_slice %1041 {offsets = [0, 8], sizes = [8, 8], strides = [1, 1]} : vector<16x32xf32> to vector<8x8xf32>
    %cst_368 = arith.constant dense<0.000000e+00> : vector<8x8xf32>
    %1079 = tpu.matmul %1077, %1078, %cst_368 {dimension_numbers = #tpu.dot_dimension_numbers<[1], [0], [0], [1], [0, 0, 1, 1], [], []>} : vector<8x8xf32>, vector<8x8xf32>, vector<8x8xf32> -> vector<8x8xf32>
    %1080 = vector.extract_strided_slice %1028 {offsets = [8, 0], sizes = [8, 32], strides = [1, 1]} : vector<32x32xf32> to vector<8x32xf32>
    %cst_369 = arith.constant dense<0.000000e+00> : vector<8x32xf32>
    %1081 = tpu.matmul %1079, %1080, %cst_369 {dimension_numbers = #tpu.dot_dimension_numbers<[1], [0], [0], [1], [0, 0, 1, 1], [], []>} : vector<8x8xf32>, vector<8x32xf32>, vector<8x32xf32> -> vector<8x32xf32>
    %1082 = arith.addf %1062, %1081 : vector<8x32xf32>
    %1083 = vector.extract_strided_slice %1034 {offsets = [0, 16], sizes = [8, 8], strides = [1, 1]} : vector<16x32xf32> to vector<8x8xf32>
    %cst_370 = arith.constant 0.353553385 : f32
    %1084 = vector.broadcast %cst_370 : f32 to vector<8x8xf32>
    %1085 = arith.mulf %1083, %1084 : vector<8x8xf32>
    %1086 = vector.extract_strided_slice %1040 {offsets = [0, 16], sizes = [8, 8], strides = [1, 1]} : vector<16x32xf32> to vector<8x8xf32>
    %cst_371 = arith.constant dense<0.000000e+00> : vector<8x8xf32>
    %1087 = tpu.matmul %1085, %1086, %cst_371 {dimension_numbers = #tpu.dot_dimension_numbers<[1], [1], [0], [0], [0, 0, 1, 0], [], []>} : vector<8x8xf32>, vector<8x8xf32>, vector<8x8xf32> -> vector<8x8xf32>
    %cst_372 = arith.constant dense<0xFF800000> : vector<8xf32>
    %1088 = vector.multi_reduction <maximumf>, %1087, %cst_372 [1] : vector<8x8xf32> to vector<8xf32>
    %1089 = vector.shape_cast %1088 : vector<8xf32> to vector<8x1xf32>
    %1090 = vector.broadcast %1089 : vector<8x1xf32> to vector<8x8xf32>
    %1091 = arith.subf %1087, %1090 : vector<8x8xf32>
    %1092 = math.exp %1091 : vector<8x8xf32>
    %cst_373 = arith.constant dense<0.000000e+00> : vector<8xf32>
    %1093 = vector.multi_reduction <add>, %1092, %cst_373 [1] : vector<8x8xf32> to vector<8xf32>
    %1094 = vector.shape_cast %1093 : vector<8xf32> to vector<8x1xf32>
    %1095 = tpu.reciprocal %1094 {approx = true} : vector<8x1xf32> -> vector<8x1xf32>
    %1096 = vector.broadcast %1095 : vector<8x1xf32> to vector<8x8xf32>
    %1097 = arith.mulf %1092, %1096 : vector<8x8xf32>
    %1098 = vector.extract_strided_slice %1041 {offsets = [0, 16], sizes = [8, 8], strides = [1, 1]} : vector<16x32xf32> to vector<8x8xf32>
    %cst_374 = arith.constant dense<0.000000e+00> : vector<8x8xf32>
    %1099 = tpu.matmul %1097, %1098, %cst_374 {dimension_numbers = #tpu.dot_dimension_numbers<[1], [0], [0], [1], [0, 0, 1, 1], [], []>} : vector<8x8xf32>, vector<8x8xf32>, vector<8x8xf32> -> vector<8x8xf32>
    %1100 = vector.extract_strided_slice %1028 {offsets = [16, 0], sizes = [8, 32], strides = [1, 1]} : vector<32x32xf32> to vector<8x32xf32>
    %cst_375 = arith.constant dense<0.000000e+00> : vector<8x32xf32>
    %1101 = tpu.matmul %1099, %1100, %cst_375 {dimension_numbers = #tpu.dot_dimension_numbers<[1], [0], [0], [1], [0, 0, 1, 1], [], []>} : vector<8x8xf32>, vector<8x32xf32>, vector<8x32xf32> -> vector<8x32xf32>
    %1102 = arith.addf %1082, %1101 : vector<8x32xf32>
    %1103 = vector.extract_strided_slice %1034 {offsets = [0, 24], sizes = [8, 8], strides = [1, 1]} : vector<16x32xf32> to vector<8x8xf32>
    %cst_376 = arith.constant 0.353553385 : f32
    %1104 = vector.broadcast %cst_376 : f32 to vector<8x8xf32>
    %1105 = arith.mulf %1103, %1104 : vector<8x8xf32>
    %1106 = vector.extract_strided_slice %1040 {offsets = [0, 24], sizes = [8, 8], strides = [1, 1]} : vector<16x32xf32> to vector<8x8xf32>
    %cst_377 = arith.constant dense<0.000000e+00> : vector<8x8xf32>
    %1107 = tpu.matmul %1105, %1106, %cst_377 {dimension_numbers = #tpu.dot_dimension_numbers<[1], [1], [0], [0], [0, 0, 1, 0], [], []>} : vector<8x8xf32>, vector<8x8xf32>, vector<8x8xf32> -> vector<8x8xf32>
    %cst_378 = arith.constant dense<0xFF800000> : vector<8xf32>
    %1108 = vector.multi_reduction <maximumf>, %1107, %cst_378 [1] : vector<8x8xf32> to vector<8xf32>
    %1109 = vector.shape_cast %1108 : vector<8xf32> to vector<8x1xf32>
    %1110 = vector.broadcast %1109 : vector<8x1xf32> to vector<8x8xf32>
    %1111 = arith.subf %1107, %1110 : vector<8x8xf32>
    %1112 = math.exp %1111 : vector<8x8xf32>
    %cst_379 = arith.constant dense<0.000000e+00> : vector<8xf32>
    %1113 = vector.multi_reduction <add>, %1112, %cst_379 [1] : vector<8x8xf32> to vector<8xf32>
    %1114 = vector.shape_cast %1113 : vector<8xf32> to vector<8x1xf32>
    %1115 = tpu.reciprocal %1114 {approx = true} : vector<8x1xf32> -> vector<8x1xf32>
    %1116 = vector.broadcast %1115 : vector<8x1xf32> to vector<8x8xf32>
    %1117 = arith.mulf %1112, %1116 : vector<8x8xf32>
    %1118 = vector.extract_strided_slice %1041 {offsets = [0, 24], sizes = [8, 8], strides = [1, 1]} : vector<16x32xf32> to vector<8x8xf32>
    %cst_380 = arith.constant dense<0.000000e+00> : vector<8x8xf32>
    %1119 = tpu.matmul %1117, %1118, %cst_380 {dimension_numbers = #tpu.dot_dimension_numbers<[1], [0], [0], [1], [0, 0, 1, 1], [], []>} : vector<8x8xf32>, vector<8x8xf32>, vector<8x8xf32> -> vector<8x8xf32>
    %1120 = vector.extract_strided_slice %1028 {offsets = [24, 0], sizes = [8, 32], strides = [1, 1]} : vector<32x32xf32> to vector<8x32xf32>
    %cst_381 = arith.constant dense<0.000000e+00> : vector<8x32xf32>
    %1121 = tpu.matmul %1119, %1120, %cst_381 {dimension_numbers = #tpu.dot_dimension_numbers<[1], [0], [0], [1], [0, 0, 1, 1], [], []>} : vector<8x8xf32>, vector<8x32xf32>, vector<8x32xf32> -> vector<8x32xf32>
    %1122 = arith.addf %1102, %1121 : vector<8x32xf32>
    %cst_382 = arith.constant 0.000000e+00 : f32
    %1123 = vector.broadcast %cst_382 : f32 to vector<8x32xf32>
    %1124 = vector.extract_strided_slice %1034 {offsets = [8, 0], sizes = [8, 8], strides = [1, 1]} : vector<16x32xf32> to vector<8x8xf32>
    %cst_383 = arith.constant 0.353553385 : f32
    %1125 = vector.broadcast %cst_383 : f32 to vector<8x8xf32>
    %1126 = arith.mulf %1124, %1125 : vector<8x8xf32>
    %1127 = vector.extract_strided_slice %1040 {offsets = [8, 0], sizes = [8, 8], strides = [1, 1]} : vector<16x32xf32> to vector<8x8xf32>
    %cst_384 = arith.constant dense<0.000000e+00> : vector<8x8xf32>
    %1128 = tpu.matmul %1126, %1127, %cst_384 {dimension_numbers = #tpu.dot_dimension_numbers<[1], [1], [0], [0], [0, 0, 1, 0], [], []>} : vector<8x8xf32>, vector<8x8xf32>, vector<8x8xf32> -> vector<8x8xf32>
    %cst_385 = arith.constant dense<0xFF800000> : vector<8xf32>
    %1129 = vector.multi_reduction <maximumf>, %1128, %cst_385 [1] : vector<8x8xf32> to vector<8xf32>
    %1130 = vector.shape_cast %1129 : vector<8xf32> to vector<8x1xf32>
    %1131 = vector.broadcast %1130 : vector<8x1xf32> to vector<8x8xf32>
    %1132 = arith.subf %1128, %1131 : vector<8x8xf32>
    %1133 = math.exp %1132 : vector<8x8xf32>
    %cst_386 = arith.constant dense<0.000000e+00> : vector<8xf32>
    %1134 = vector.multi_reduction <add>, %1133, %cst_386 [1] : vector<8x8xf32> to vector<8xf32>
    %1135 = vector.shape_cast %1134 : vector<8xf32> to vector<8x1xf32>
    %1136 = tpu.reciprocal %1135 {approx = true} : vector<8x1xf32> -> vector<8x1xf32>
    %1137 = vector.broadcast %1136 : vector<8x1xf32> to vector<8x8xf32>
    %1138 = arith.mulf %1133, %1137 : vector<8x8xf32>
    %1139 = vector.extract_strided_slice %1041 {offsets = [8, 0], sizes = [8, 8], strides = [1, 1]} : vector<16x32xf32> to vector<8x8xf32>
    %cst_387 = arith.constant dense<0.000000e+00> : vector<8x8xf32>
    %1140 = tpu.matmul %1138, %1139, %cst_387 {dimension_numbers = #tpu.dot_dimension_numbers<[1], [0], [0], [1], [0, 0, 1, 1], [], []>} : vector<8x8xf32>, vector<8x8xf32>, vector<8x8xf32> -> vector<8x8xf32>
    %1141 = vector.extract_strided_slice %1028 {offsets = [0, 0], sizes = [8, 32], strides = [1, 1]} : vector<32x32xf32> to vector<8x32xf32>
    %cst_388 = arith.constant dense<0.000000e+00> : vector<8x32xf32>
    %1142 = tpu.matmul %1140, %1141, %cst_388 {dimension_numbers = #tpu.dot_dimension_numbers<[1], [0], [0], [1], [0, 0, 1, 1], [], []>} : vector<8x8xf32>, vector<8x32xf32>, vector<8x32xf32> -> vector<8x32xf32>
    %1143 = arith.addf %1123, %1142 : vector<8x32xf32>
    %1144 = vector.extract_strided_slice %1034 {offsets = [8, 8], sizes = [8, 8], strides = [1, 1]} : vector<16x32xf32> to vector<8x8xf32>
    %cst_389 = arith.constant 0.353553385 : f32
    %1145 = vector.broadcast %cst_389 : f32 to vector<8x8xf32>
    %1146 = arith.mulf %1144, %1145 : vector<8x8xf32>
    %1147 = vector.extract_strided_slice %1040 {offsets = [8, 8], sizes = [8, 8], strides = [1, 1]} : vector<16x32xf32> to vector<8x8xf32>
    %cst_390 = arith.constant dense<0.000000e+00> : vector<8x8xf32>
    %1148 = tpu.matmul %1146, %1147, %cst_390 {dimension_numbers = #tpu.dot_dimension_numbers<[1], [1], [0], [0], [0, 0, 1, 0], [], []>} : vector<8x8xf32>, vector<8x8xf32>, vector<8x8xf32> -> vector<8x8xf32>
    %cst_391 = arith.constant dense<0xFF800000> : vector<8xf32>
    %1149 = vector.multi_reduction <maximumf>, %1148, %cst_391 [1] : vector<8x8xf32> to vector<8xf32>
    %1150 = vector.shape_cast %1149 : vector<8xf32> to vector<8x1xf32>
    %1151 = vector.broadcast %1150 : vector<8x1xf32> to vector<8x8xf32>
    %1152 = arith.subf %1148, %1151 : vector<8x8xf32>
    %1153 = math.exp %1152 : vector<8x8xf32>
    %cst_392 = arith.constant dense<0.000000e+00> : vector<8xf32>
    %1154 = vector.multi_reduction <add>, %1153, %cst_392 [1] : vector<8x8xf32> to vector<8xf32>
    %1155 = vector.shape_cast %1154 : vector<8xf32> to vector<8x1xf32>
    %1156 = tpu.reciprocal %1155 {approx = true} : vector<8x1xf32> -> vector<8x1xf32>
    %1157 = vector.broadcast %1156 : vector<8x1xf32> to vector<8x8xf32>
    %1158 = arith.mulf %1153, %1157 : vector<8x8xf32>
    %1159 = vector.extract_strided_slice %1041 {offsets = [8, 8], sizes = [8, 8], strides = [1, 1]} : vector<16x32xf32> to vector<8x8xf32>
    %cst_393 = arith.constant dense<0.000000e+00> : vector<8x8xf32>
    %1160 = tpu.matmul %1158, %1159, %cst_393 {dimension_numbers = #tpu.dot_dimension_numbers<[1], [0], [0], [1], [0, 0, 1, 1], [], []>} : vector<8x8xf32>, vector<8x8xf32>, vector<8x8xf32> -> vector<8x8xf32>
    %1161 = vector.extract_strided_slice %1028 {offsets = [8, 0], sizes = [8, 32], strides = [1, 1]} : vector<32x32xf32> to vector<8x32xf32>
    %cst_394 = arith.constant dense<0.000000e+00> : vector<8x32xf32>
    %1162 = tpu.matmul %1160, %1161, %cst_394 {dimension_numbers = #tpu.dot_dimension_numbers<[1], [0], [0], [1], [0, 0, 1, 1], [], []>} : vector<8x8xf32>, vector<8x32xf32>, vector<8x32xf32> -> vector<8x32xf32>
    %1163 = arith.addf %1143, %1162 : vector<8x32xf32>
    %1164 = vector.extract_strided_slice %1034 {offsets = [8, 16], sizes = [8, 8], strides = [1, 1]} : vector<16x32xf32> to vector<8x8xf32>
    %cst_395 = arith.constant 0.353553385 : f32
    %1165 = vector.broadcast %cst_395 : f32 to vector<8x8xf32>
    %1166 = arith.mulf %1164, %1165 : vector<8x8xf32>
    %1167 = vector.extract_strided_slice %1040 {offsets = [8, 16], sizes = [8, 8], strides = [1, 1]} : vector<16x32xf32> to vector<8x8xf32>
    %cst_396 = arith.constant dense<0.000000e+00> : vector<8x8xf32>
    %1168 = tpu.matmul %1166, %1167, %cst_396 {dimension_numbers = #tpu.dot_dimension_numbers<[1], [1], [0], [0], [0, 0, 1, 0], [], []>} : vector<8x8xf32>, vector<8x8xf32>, vector<8x8xf32> -> vector<8x8xf32>
    %cst_397 = arith.constant dense<0xFF800000> : vector<8xf32>
    %1169 = vector.multi_reduction <maximumf>, %1168, %cst_397 [1] : vector<8x8xf32> to vector<8xf32>
    %1170 = vector.shape_cast %1169 : vector<8xf32> to vector<8x1xf32>
    %1171 = vector.broadcast %1170 : vector<8x1xf32> to vector<8x8xf32>
    %1172 = arith.subf %1168, %1171 : vector<8x8xf32>
    %1173 = math.exp %1172 : vector<8x8xf32>
    %cst_398 = arith.constant dense<0.000000e+00> : vector<8xf32>
    %1174 = vector.multi_reduction <add>, %1173, %cst_398 [1] : vector<8x8xf32> to vector<8xf32>
    %1175 = vector.shape_cast %1174 : vector<8xf32> to vector<8x1xf32>
    %1176 = tpu.reciprocal %1175 {approx = true} : vector<8x1xf32> -> vector<8x1xf32>
    %1177 = vector.broadcast %1176 : vector<8x1xf32> to vector<8x8xf32>
    %1178 = arith.mulf %1173, %1177 : vector<8x8xf32>
    %1179 = vector.extract_strided_slice %1041 {offsets = [8, 16], sizes = [8, 8], strides = [1, 1]} : vector<16x32xf32> to vector<8x8xf32>
    %cst_399 = arith.constant dense<0.000000e+00> : vector<8x8xf32>
    %1180 = tpu.matmul %1178, %1179, %cst_399 {dimension_numbers = #tpu.dot_dimension_numbers<[1], [0], [0], [1], [0, 0, 1, 1], [], []>} : vector<8x8xf32>, vector<8x8xf32>, vector<8x8xf32> -> vector<8x8xf32>
    %1181 = vector.extract_strided_slice %1028 {offsets = [16, 0], sizes = [8, 32], strides = [1, 1]} : vector<32x32xf32> to vector<8x32xf32>
    %cst_400 = arith.constant dense<0.000000e+00> : vector<8x32xf32>
    %1182 = tpu.matmul %1180, %1181, %cst_400 {dimension_numbers = #tpu.dot_dimension_numbers<[1], [0], [0], [1], [0, 0, 1, 1], [], []>} : vector<8x8xf32>, vector<8x32xf32>, vector<8x32xf32> -> vector<8x32xf32>
    %1183 = arith.addf %1163, %1182 : vector<8x32xf32>
    %1184 = vector.extract_strided_slice %1034 {offsets = [8, 24], sizes = [8, 8], strides = [1, 1]} : vector<16x32xf32> to vector<8x8xf32>
    %cst_401 = arith.constant 0.353553385 : f32
    %1185 = vector.broadcast %cst_401 : f32 to vector<8x8xf32>
    %1186 = arith.mulf %1184, %1185 : vector<8x8xf32>
    %1187 = vector.extract_strided_slice %1040 {offsets = [8, 24], sizes = [8, 8], strides = [1, 1]} : vector<16x32xf32> to vector<8x8xf32>
    %cst_402 = arith.constant dense<0.000000e+00> : vector<8x8xf32>
    %1188 = tpu.matmul %1186, %1187, %cst_402 {dimension_numbers = #tpu.dot_dimension_numbers<[1], [1], [0], [0], [0, 0, 1, 0], [], []>} : vector<8x8xf32>, vector<8x8xf32>, vector<8x8xf32> -> vector<8x8xf32>
    %cst_403 = arith.constant dense<0xFF800000> : vector<8xf32>
    %1189 = vector.multi_reduction <maximumf>, %1188, %cst_403 [1] : vector<8x8xf32> to vector<8xf32>
    %1190 = vector.shape_cast %1189 : vector<8xf32> to vector<8x1xf32>
    %1191 = vector.broadcast %1190 : vector<8x1xf32> to vector<8x8xf32>
    %1192 = arith.subf %1188, %1191 : vector<8x8xf32>
    %1193 = math.exp %1192 : vector<8x8xf32>
    %cst_404 = arith.constant dense<0.000000e+00> : vector<8xf32>
    %1194 = vector.multi_reduction <add>, %1193, %cst_404 [1] : vector<8x8xf32> to vector<8xf32>
    %1195 = vector.shape_cast %1194 : vector<8xf32> to vector<8x1xf32>
    %1196 = tpu.reciprocal %1195 {approx = true} : vector<8x1xf32> -> vector<8x1xf32>
    %1197 = vector.broadcast %1196 : vector<8x1xf32> to vector<8x8xf32>
    %1198 = arith.mulf %1193, %1197 : vector<8x8xf32>
    %1199 = vector.extract_strided_slice %1041 {offsets = [8, 24], sizes = [8, 8], strides = [1, 1]} : vector<16x32xf32> to vector<8x8xf32>
    %cst_405 = arith.constant dense<0.000000e+00> : vector<8x8xf32>
    %1200 = tpu.matmul %1198, %1199, %cst_405 {dimension_numbers = #tpu.dot_dimension_numbers<[1], [0], [0], [1], [0, 0, 1, 1], [], []>} : vector<8x8xf32>, vector<8x8xf32>, vector<8x8xf32> -> vector<8x8xf32>
    %1201 = vector.extract_strided_slice %1028 {offsets = [24, 0], sizes = [8, 32], strides = [1, 1]} : vector<32x32xf32> to vector<8x32xf32>
    %cst_406 = arith.constant dense<0.000000e+00> : vector<8x32xf32>
    %1202 = tpu.matmul %1200, %1201, %cst_406 {dimension_numbers = #tpu.dot_dimension_numbers<[1], [0], [0], [1], [0, 0, 1, 1], [], []>} : vector<8x8xf32>, vector<8x32xf32>, vector<8x32xf32> -> vector<8x32xf32>
    %1203 = arith.addf %1183, %1202 : vector<8x32xf32>
    %1204 = tpu.concatenate %1122, %1203 in 0 : vector<8x32xf32>, vector<8x32xf32> -> vector<16x32xf32>
    %1205 = vector.broadcast %1029 : vector<1x32xf32> to vector<16x32xf32>
    %1206 = arith.addf %1204, %1205 : vector<16x32xf32>
    %1207 = arith.addf %1025, %1206 : vector<16x32xf32>
    %cst_407 = arith.constant dense<0.000000e+00> : vector<16xf32>
    %1208 = vector.multi_reduction <add>, %1207, %cst_407 [1] : vector<16x32xf32> to vector<16xf32>
    %1209 = vector.shape_cast %1208 : vector<16xf32> to vector<16x1xf32>
    %cst_408 = arith.constant 3.200000e+01 : f32
    %1210 = vector.broadcast %cst_408 : f32 to vector<16x1xf32>
    %1211 = arith.divf %1209, %1210 : vector<16x1xf32>
    %1212 = vector.broadcast %1211 : vector<16x1xf32> to vector<16x32xf32>
    %1213 = arith.subf %1207, %1212 : vector<16x32xf32>
    %1214 = arith.mulf %1213, %1213 : vector<16x32xf32>
    %cst_409 = arith.constant dense<0.000000e+00> : vector<16xf32>
    %1215 = vector.multi_reduction <add>, %1214, %cst_409 [1] : vector<16x32xf32> to vector<16xf32>
    %1216 = vector.shape_cast %1215 : vector<16xf32> to vector<16x1xf32>
    %cst_410 = arith.constant 3.200000e+01 : f32
    %1217 = vector.broadcast %cst_410 : f32 to vector<16x1xf32>
    %1218 = arith.divf %1216, %1217 : vector<16x1xf32>
    %cst_411 = arith.constant 9.99999974E-6 : f32
    %1219 = vector.broadcast %cst_411 : f32 to vector<16x1xf32>
    %1220 = arith.addf %1218, %1219 : vector<16x1xf32>
    %1221 = math.rsqrt %1220 : vector<16x1xf32>
    %1222 = vector.broadcast %1211 : vector<16x1xf32> to vector<16x32xf32>
    %1223 = arith.subf %1207, %1222 : vector<16x32xf32>
    %1224 = vector.broadcast %1221 : vector<16x1xf32> to vector<16x32xf32>
    %1225 = arith.mulf %1223, %1224 : vector<16x32xf32>
    %c1824 = arith.constant 1824 : index
    %c0_412 = arith.constant 0 : index
    %1226 = vector.load %arg2[%c1824, %c0_412] : memref<1904x128xf32, #tpu.memory_space<vmem>>, vector<1x32xf32>
    %1227 = vector.broadcast %1226 : vector<1x32xf32> to vector<16x32xf32>
    %1228 = arith.mulf %1225, %1227 : vector<16x32xf32>
    %c1832 = arith.constant 1832 : index
    %c0_413 = arith.constant 0 : index
    %1229 = vector.load %arg2[%c1832, %c0_413] : memref<1904x128xf32, #tpu.memory_space<vmem>>, vector<1x32xf32>
    %1230 = vector.broadcast %1229 : vector<1x32xf32> to vector<16x32xf32>
    %1231 = arith.addf %1228, %1230 : vector<16x32xf32>
    %c1568 = arith.constant 1568 : index
    %c0_414 = arith.constant 0 : index
    %1232 = vector.load %arg2[%c1568, %c0_414] : memref<1904x128xf32, #tpu.memory_space<vmem>>, vector<32x96xf32>
    %c1600 = arith.constant 1600 : index
    %c0_415 = arith.constant 0 : index
    %1233 = vector.load %arg2[%c1600, %c0_415] : memref<1904x128xf32, #tpu.memory_space<vmem>>, vector<1x96xf32>
    %c1608 = arith.constant 1608 : index
    %c0_416 = arith.constant 0 : index
    %1234 = vector.load %arg2[%c1608, %c0_416] : memref<1904x128xf32, #tpu.memory_space<vmem>>, vector<32x32xf32>
    %c1640 = arith.constant 1640 : index
    %c0_417 = arith.constant 0 : index
    %1235 = vector.load %arg2[%c1640, %c0_417] : memref<1904x128xf32, #tpu.memory_space<vmem>>, vector<1x32xf32>
    %1236 = vector.extract_strided_slice %1232 {offsets = [0, 0], sizes = [32, 32], strides = [1, 1]} : vector<32x96xf32> to vector<32x32xf32>
    %cst_418 = arith.constant dense<0.000000e+00> : vector<16x32xf32>
    %1237 = tpu.matmul %1231, %1236, %cst_418 {dimension_numbers = #tpu.dot_dimension_numbers<[1], [0], [0], [1], [0, 0, 1, 1], [], []>} : vector<16x32xf32>, vector<32x32xf32>, vector<16x32xf32> -> vector<16x32xf32>
    %1238 = vector.extract_strided_slice %1233 {offsets = [0, 0], sizes = [1, 32], strides = [1, 1]} : vector<1x96xf32> to vector<1x32xf32>
    %1239 = vector.broadcast %1238 : vector<1x32xf32> to vector<16x32xf32>
    %1240 = arith.addf %1237, %1239 : vector<16x32xf32>
    %1241 = vector.extract_strided_slice %1232 {offsets = [0, 32], sizes = [32, 64], strides = [1, 1]} : vector<32x96xf32> to vector<32x64xf32>
    %cst_419 = arith.constant dense<0.000000e+00> : vector<16x64xf32>
    %1242 = tpu.matmul %576, %1241, %cst_419 {dimension_numbers = #tpu.dot_dimension_numbers<[1], [0], [0], [1], [0, 0, 1, 1], [], []>} : vector<16x32xf32>, vector<32x64xf32>, vector<16x64xf32> -> vector<16x64xf32>
    %1243 = vector.extract_strided_slice %1233 {offsets = [0, 32], sizes = [1, 64], strides = [1, 1]} : vector<1x96xf32> to vector<1x64xf32>
    %1244 = vector.broadcast %1243 : vector<1x64xf32> to vector<16x64xf32>
    %1245 = arith.addf %1242, %1244 : vector<16x64xf32>
    %1246 = vector.extract_strided_slice %1245 {offsets = [0, 0], sizes = [16, 32], strides = [1, 1]} : vector<16x64xf32> to vector<16x32xf32>
    %1247 = vector.extract_strided_slice %1245 {offsets = [0, 32], sizes = [16, 32], strides = [1, 1]} : vector<16x64xf32> to vector<16x32xf32>
    %cst_420 = arith.constant 0.000000e+00 : f32
    %1248 = vector.broadcast %cst_420 : f32 to vector<8x32xf32>
    %1249 = vector.extract_strided_slice %1240 {offsets = [0, 0], sizes = [8, 8], strides = [1, 1]} : vector<16x32xf32> to vector<8x8xf32>
    %cst_421 = arith.constant 0.353553385 : f32
    %1250 = vector.broadcast %cst_421 : f32 to vector<8x8xf32>
    %1251 = arith.mulf %1249, %1250 : vector<8x8xf32>
    %1252 = vector.extract_strided_slice %1246 {offsets = [0, 0], sizes = [8, 8], strides = [1, 1]} : vector<16x32xf32> to vector<8x8xf32>
    %cst_422 = arith.constant dense<0.000000e+00> : vector<8x8xf32>
    %1253 = tpu.matmul %1251, %1252, %cst_422 {dimension_numbers = #tpu.dot_dimension_numbers<[1], [1], [0], [0], [0, 0, 1, 0], [], []>} : vector<8x8xf32>, vector<8x8xf32>, vector<8x8xf32> -> vector<8x8xf32>
    %cst_423 = arith.constant dense<0xFF800000> : vector<8xf32>
    %1254 = vector.multi_reduction <maximumf>, %1253, %cst_423 [1] : vector<8x8xf32> to vector<8xf32>
    %1255 = vector.shape_cast %1254 : vector<8xf32> to vector<8x1xf32>
    %1256 = vector.broadcast %1255 : vector<8x1xf32> to vector<8x8xf32>
    %1257 = arith.subf %1253, %1256 : vector<8x8xf32>
    %1258 = math.exp %1257 : vector<8x8xf32>
    %cst_424 = arith.constant dense<0.000000e+00> : vector<8xf32>
    %1259 = vector.multi_reduction <add>, %1258, %cst_424 [1] : vector<8x8xf32> to vector<8xf32>
    %1260 = vector.shape_cast %1259 : vector<8xf32> to vector<8x1xf32>
    %1261 = tpu.reciprocal %1260 {approx = true} : vector<8x1xf32> -> vector<8x1xf32>
    %1262 = vector.broadcast %1261 : vector<8x1xf32> to vector<8x8xf32>
    %1263 = arith.mulf %1258, %1262 : vector<8x8xf32>
    %1264 = vector.extract_strided_slice %1247 {offsets = [0, 0], sizes = [8, 8], strides = [1, 1]} : vector<16x32xf32> to vector<8x8xf32>
    %cst_425 = arith.constant dense<0.000000e+00> : vector<8x8xf32>
    %1265 = tpu.matmul %1263, %1264, %cst_425 {dimension_numbers = #tpu.dot_dimension_numbers<[1], [0], [0], [1], [0, 0, 1, 1], [], []>} : vector<8x8xf32>, vector<8x8xf32>, vector<8x8xf32> -> vector<8x8xf32>
    %1266 = vector.extract_strided_slice %1234 {offsets = [0, 0], sizes = [8, 32], strides = [1, 1]} : vector<32x32xf32> to vector<8x32xf32>
    %cst_426 = arith.constant dense<0.000000e+00> : vector<8x32xf32>
    %1267 = tpu.matmul %1265, %1266, %cst_426 {dimension_numbers = #tpu.dot_dimension_numbers<[1], [0], [0], [1], [0, 0, 1, 1], [], []>} : vector<8x8xf32>, vector<8x32xf32>, vector<8x32xf32> -> vector<8x32xf32>
    %1268 = arith.addf %1248, %1267 : vector<8x32xf32>
    %1269 = vector.extract_strided_slice %1240 {offsets = [0, 8], sizes = [8, 8], strides = [1, 1]} : vector<16x32xf32> to vector<8x8xf32>
    %cst_427 = arith.constant 0.353553385 : f32
    %1270 = vector.broadcast %cst_427 : f32 to vector<8x8xf32>
    %1271 = arith.mulf %1269, %1270 : vector<8x8xf32>
    %1272 = vector.extract_strided_slice %1246 {offsets = [0, 8], sizes = [8, 8], strides = [1, 1]} : vector<16x32xf32> to vector<8x8xf32>
    %cst_428 = arith.constant dense<0.000000e+00> : vector<8x8xf32>
    %1273 = tpu.matmul %1271, %1272, %cst_428 {dimension_numbers = #tpu.dot_dimension_numbers<[1], [1], [0], [0], [0, 0, 1, 0], [], []>} : vector<8x8xf32>, vector<8x8xf32>, vector<8x8xf32> -> vector<8x8xf32>
    %cst_429 = arith.constant dense<0xFF800000> : vector<8xf32>
    %1274 = vector.multi_reduction <maximumf>, %1273, %cst_429 [1] : vector<8x8xf32> to vector<8xf32>
    %1275 = vector.shape_cast %1274 : vector<8xf32> to vector<8x1xf32>
    %1276 = vector.broadcast %1275 : vector<8x1xf32> to vector<8x8xf32>
    %1277 = arith.subf %1273, %1276 : vector<8x8xf32>
    %1278 = math.exp %1277 : vector<8x8xf32>
    %cst_430 = arith.constant dense<0.000000e+00> : vector<8xf32>
    %1279 = vector.multi_reduction <add>, %1278, %cst_430 [1] : vector<8x8xf32> to vector<8xf32>
    %1280 = vector.shape_cast %1279 : vector<8xf32> to vector<8x1xf32>
    %1281 = tpu.reciprocal %1280 {approx = true} : vector<8x1xf32> -> vector<8x1xf32>
    %1282 = vector.broadcast %1281 : vector<8x1xf32> to vector<8x8xf32>
    %1283 = arith.mulf %1278, %1282 : vector<8x8xf32>
    %1284 = vector.extract_strided_slice %1247 {offsets = [0, 8], sizes = [8, 8], strides = [1, 1]} : vector<16x32xf32> to vector<8x8xf32>
    %cst_431 = arith.constant dense<0.000000e+00> : vector<8x8xf32>
    %1285 = tpu.matmul %1283, %1284, %cst_431 {dimension_numbers = #tpu.dot_dimension_numbers<[1], [0], [0], [1], [0, 0, 1, 1], [], []>} : vector<8x8xf32>, vector<8x8xf32>, vector<8x8xf32> -> vector<8x8xf32>
    %1286 = vector.extract_strided_slice %1234 {offsets = [8, 0], sizes = [8, 32], strides = [1, 1]} : vector<32x32xf32> to vector<8x32xf32>
    %cst_432 = arith.constant dense<0.000000e+00> : vector<8x32xf32>
    %1287 = tpu.matmul %1285, %1286, %cst_432 {dimension_numbers = #tpu.dot_dimension_numbers<[1], [0], [0], [1], [0, 0, 1, 1], [], []>} : vector<8x8xf32>, vector<8x32xf32>, vector<8x32xf32> -> vector<8x32xf32>
    %1288 = arith.addf %1268, %1287 : vector<8x32xf32>
    %1289 = vector.extract_strided_slice %1240 {offsets = [0, 16], sizes = [8, 8], strides = [1, 1]} : vector<16x32xf32> to vector<8x8xf32>
    %cst_433 = arith.constant 0.353553385 : f32
    %1290 = vector.broadcast %cst_433 : f32 to vector<8x8xf32>
    %1291 = arith.mulf %1289, %1290 : vector<8x8xf32>
    %1292 = vector.extract_strided_slice %1246 {offsets = [0, 16], sizes = [8, 8], strides = [1, 1]} : vector<16x32xf32> to vector<8x8xf32>
    %cst_434 = arith.constant dense<0.000000e+00> : vector<8x8xf32>
    %1293 = tpu.matmul %1291, %1292, %cst_434 {dimension_numbers = #tpu.dot_dimension_numbers<[1], [1], [0], [0], [0, 0, 1, 0], [], []>} : vector<8x8xf32>, vector<8x8xf32>, vector<8x8xf32> -> vector<8x8xf32>
    %cst_435 = arith.constant dense<0xFF800000> : vector<8xf32>
    %1294 = vector.multi_reduction <maximumf>, %1293, %cst_435 [1] : vector<8x8xf32> to vector<8xf32>
    %1295 = vector.shape_cast %1294 : vector<8xf32> to vector<8x1xf32>
    %1296 = vector.broadcast %1295 : vector<8x1xf32> to vector<8x8xf32>
    %1297 = arith.subf %1293, %1296 : vector<8x8xf32>
    %1298 = math.exp %1297 : vector<8x8xf32>
    %cst_436 = arith.constant dense<0.000000e+00> : vector<8xf32>
    %1299 = vector.multi_reduction <add>, %1298, %cst_436 [1] : vector<8x8xf32> to vector<8xf32>
    %1300 = vector.shape_cast %1299 : vector<8xf32> to vector<8x1xf32>
    %1301 = tpu.reciprocal %1300 {approx = true} : vector<8x1xf32> -> vector<8x1xf32>
    %1302 = vector.broadcast %1301 : vector<8x1xf32> to vector<8x8xf32>
    %1303 = arith.mulf %1298, %1302 : vector<8x8xf32>
    %1304 = vector.extract_strided_slice %1247 {offsets = [0, 16], sizes = [8, 8], strides = [1, 1]} : vector<16x32xf32> to vector<8x8xf32>
    %cst_437 = arith.constant dense<0.000000e+00> : vector<8x8xf32>
    %1305 = tpu.matmul %1303, %1304, %cst_437 {dimension_numbers = #tpu.dot_dimension_numbers<[1], [0], [0], [1], [0, 0, 1, 1], [], []>} : vector<8x8xf32>, vector<8x8xf32>, vector<8x8xf32> -> vector<8x8xf32>
    %1306 = vector.extract_strided_slice %1234 {offsets = [16, 0], sizes = [8, 32], strides = [1, 1]} : vector<32x32xf32> to vector<8x32xf32>
    %cst_438 = arith.constant dense<0.000000e+00> : vector<8x32xf32>
    %1307 = tpu.matmul %1305, %1306, %cst_438 {dimension_numbers = #tpu.dot_dimension_numbers<[1], [0], [0], [1], [0, 0, 1, 1], [], []>} : vector<8x8xf32>, vector<8x32xf32>, vector<8x32xf32> -> vector<8x32xf32>
    %1308 = arith.addf %1288, %1307 : vector<8x32xf32>
    %1309 = vector.extract_strided_slice %1240 {offsets = [0, 24], sizes = [8, 8], strides = [1, 1]} : vector<16x32xf32> to vector<8x8xf32>
    %cst_439 = arith.constant 0.353553385 : f32
    %1310 = vector.broadcast %cst_439 : f32 to vector<8x8xf32>
    %1311 = arith.mulf %1309, %1310 : vector<8x8xf32>
    %1312 = vector.extract_strided_slice %1246 {offsets = [0, 24], sizes = [8, 8], strides = [1, 1]} : vector<16x32xf32> to vector<8x8xf32>
    %cst_440 = arith.constant dense<0.000000e+00> : vector<8x8xf32>
    %1313 = tpu.matmul %1311, %1312, %cst_440 {dimension_numbers = #tpu.dot_dimension_numbers<[1], [1], [0], [0], [0, 0, 1, 0], [], []>} : vector<8x8xf32>, vector<8x8xf32>, vector<8x8xf32> -> vector<8x8xf32>
    %cst_441 = arith.constant dense<0xFF800000> : vector<8xf32>
    %1314 = vector.multi_reduction <maximumf>, %1313, %cst_441 [1] : vector<8x8xf32> to vector<8xf32>
    %1315 = vector.shape_cast %1314 : vector<8xf32> to vector<8x1xf32>
    %1316 = vector.broadcast %1315 : vector<8x1xf32> to vector<8x8xf32>
    %1317 = arith.subf %1313, %1316 : vector<8x8xf32>
    %1318 = math.exp %1317 : vector<8x8xf32>
    %cst_442 = arith.constant dense<0.000000e+00> : vector<8xf32>
    %1319 = vector.multi_reduction <add>, %1318, %cst_442 [1] : vector<8x8xf32> to vector<8xf32>
    %1320 = vector.shape_cast %1319 : vector<8xf32> to vector<8x1xf32>
    %1321 = tpu.reciprocal %1320 {approx = true} : vector<8x1xf32> -> vector<8x1xf32>
    %1322 = vector.broadcast %1321 : vector<8x1xf32> to vector<8x8xf32>
    %1323 = arith.mulf %1318, %1322 : vector<8x8xf32>
    %1324 = vector.extract_strided_slice %1247 {offsets = [0, 24], sizes = [8, 8], strides = [1, 1]} : vector<16x32xf32> to vector<8x8xf32>
    %cst_443 = arith.constant dense<0.000000e+00> : vector<8x8xf32>
    %1325 = tpu.matmul %1323, %1324, %cst_443 {dimension_numbers = #tpu.dot_dimension_numbers<[1], [0], [0], [1], [0, 0, 1, 1], [], []>} : vector<8x8xf32>, vector<8x8xf32>, vector<8x8xf32> -> vector<8x8xf32>
    %1326 = vector.extract_strided_slice %1234 {offsets = [24, 0], sizes = [8, 32], strides = [1, 1]} : vector<32x32xf32> to vector<8x32xf32>
    %cst_444 = arith.constant dense<0.000000e+00> : vector<8x32xf32>
    %1327 = tpu.matmul %1325, %1326, %cst_444 {dimension_numbers = #tpu.dot_dimension_numbers<[1], [0], [0], [1], [0, 0, 1, 1], [], []>} : vector<8x8xf32>, vector<8x32xf32>, vector<8x32xf32> -> vector<8x32xf32>
    %1328 = arith.addf %1308, %1327 : vector<8x32xf32>
    %cst_445 = arith.constant 0.000000e+00 : f32
    %1329 = vector.broadcast %cst_445 : f32 to vector<8x32xf32>
    %1330 = vector.extract_strided_slice %1240 {offsets = [8, 0], sizes = [8, 8], strides = [1, 1]} : vector<16x32xf32> to vector<8x8xf32>
    %cst_446 = arith.constant 0.353553385 : f32
    %1331 = vector.broadcast %cst_446 : f32 to vector<8x8xf32>
    %1332 = arith.mulf %1330, %1331 : vector<8x8xf32>
    %1333 = vector.extract_strided_slice %1246 {offsets = [8, 0], sizes = [8, 8], strides = [1, 1]} : vector<16x32xf32> to vector<8x8xf32>
    %cst_447 = arith.constant dense<0.000000e+00> : vector<8x8xf32>
    %1334 = tpu.matmul %1332, %1333, %cst_447 {dimension_numbers = #tpu.dot_dimension_numbers<[1], [1], [0], [0], [0, 0, 1, 0], [], []>} : vector<8x8xf32>, vector<8x8xf32>, vector<8x8xf32> -> vector<8x8xf32>
    %cst_448 = arith.constant dense<0xFF800000> : vector<8xf32>
    %1335 = vector.multi_reduction <maximumf>, %1334, %cst_448 [1] : vector<8x8xf32> to vector<8xf32>
    %1336 = vector.shape_cast %1335 : vector<8xf32> to vector<8x1xf32>
    %1337 = vector.broadcast %1336 : vector<8x1xf32> to vector<8x8xf32>
    %1338 = arith.subf %1334, %1337 : vector<8x8xf32>
    %1339 = math.exp %1338 : vector<8x8xf32>
    %cst_449 = arith.constant dense<0.000000e+00> : vector<8xf32>
    %1340 = vector.multi_reduction <add>, %1339, %cst_449 [1] : vector<8x8xf32> to vector<8xf32>
    %1341 = vector.shape_cast %1340 : vector<8xf32> to vector<8x1xf32>
    %1342 = tpu.reciprocal %1341 {approx = true} : vector<8x1xf32> -> vector<8x1xf32>
    %1343 = vector.broadcast %1342 : vector<8x1xf32> to vector<8x8xf32>
    %1344 = arith.mulf %1339, %1343 : vector<8x8xf32>
    %1345 = vector.extract_strided_slice %1247 {offsets = [8, 0], sizes = [8, 8], strides = [1, 1]} : vector<16x32xf32> to vector<8x8xf32>
    %cst_450 = arith.constant dense<0.000000e+00> : vector<8x8xf32>
    %1346 = tpu.matmul %1344, %1345, %cst_450 {dimension_numbers = #tpu.dot_dimension_numbers<[1], [0], [0], [1], [0, 0, 1, 1], [], []>} : vector<8x8xf32>, vector<8x8xf32>, vector<8x8xf32> -> vector<8x8xf32>
    %1347 = vector.extract_strided_slice %1234 {offsets = [0, 0], sizes = [8, 32], strides = [1, 1]} : vector<32x32xf32> to vector<8x32xf32>
    %cst_451 = arith.constant dense<0.000000e+00> : vector<8x32xf32>
    %1348 = tpu.matmul %1346, %1347, %cst_451 {dimension_numbers = #tpu.dot_dimension_numbers<[1], [0], [0], [1], [0, 0, 1, 1], [], []>} : vector<8x8xf32>, vector<8x32xf32>, vector<8x32xf32> -> vector<8x32xf32>
    %1349 = arith.addf %1329, %1348 : vector<8x32xf32>
    %1350 = vector.extract_strided_slice %1240 {offsets = [8, 8], sizes = [8, 8], strides = [1, 1]} : vector<16x32xf32> to vector<8x8xf32>
    %cst_452 = arith.constant 0.353553385 : f32
    %1351 = vector.broadcast %cst_452 : f32 to vector<8x8xf32>
    %1352 = arith.mulf %1350, %1351 : vector<8x8xf32>
    %1353 = vector.extract_strided_slice %1246 {offsets = [8, 8], sizes = [8, 8], strides = [1, 1]} : vector<16x32xf32> to vector<8x8xf32>
    %cst_453 = arith.constant dense<0.000000e+00> : vector<8x8xf32>
    %1354 = tpu.matmul %1352, %1353, %cst_453 {dimension_numbers = #tpu.dot_dimension_numbers<[1], [1], [0], [0], [0, 0, 1, 0], [], []>} : vector<8x8xf32>, vector<8x8xf32>, vector<8x8xf32> -> vector<8x8xf32>
    %cst_454 = arith.constant dense<0xFF800000> : vector<8xf32>
    %1355 = vector.multi_reduction <maximumf>, %1354, %cst_454 [1] : vector<8x8xf32> to vector<8xf32>
    %1356 = vector.shape_cast %1355 : vector<8xf32> to vector<8x1xf32>
    %1357 = vector.broadcast %1356 : vector<8x1xf32> to vector<8x8xf32>
    %1358 = arith.subf %1354, %1357 : vector<8x8xf32>
    %1359 = math.exp %1358 : vector<8x8xf32>
    %cst_455 = arith.constant dense<0.000000e+00> : vector<8xf32>
    %1360 = vector.multi_reduction <add>, %1359, %cst_455 [1] : vector<8x8xf32> to vector<8xf32>
    %1361 = vector.shape_cast %1360 : vector<8xf32> to vector<8x1xf32>
    %1362 = tpu.reciprocal %1361 {approx = true} : vector<8x1xf32> -> vector<8x1xf32>
    %1363 = vector.broadcast %1362 : vector<8x1xf32> to vector<8x8xf32>
    %1364 = arith.mulf %1359, %1363 : vector<8x8xf32>
    %1365 = vector.extract_strided_slice %1247 {offsets = [8, 8], sizes = [8, 8], strides = [1, 1]} : vector<16x32xf32> to vector<8x8xf32>
    %cst_456 = arith.constant dense<0.000000e+00> : vector<8x8xf32>
    %1366 = tpu.matmul %1364, %1365, %cst_456 {dimension_numbers = #tpu.dot_dimension_numbers<[1], [0], [0], [1], [0, 0, 1, 1], [], []>} : vector<8x8xf32>, vector<8x8xf32>, vector<8x8xf32> -> vector<8x8xf32>
    %1367 = vector.extract_strided_slice %1234 {offsets = [8, 0], sizes = [8, 32], strides = [1, 1]} : vector<32x32xf32> to vector<8x32xf32>
    %cst_457 = arith.constant dense<0.000000e+00> : vector<8x32xf32>
    %1368 = tpu.matmul %1366, %1367, %cst_457 {dimension_numbers = #tpu.dot_dimension_numbers<[1], [0], [0], [1], [0, 0, 1, 1], [], []>} : vector<8x8xf32>, vector<8x32xf32>, vector<8x32xf32> -> vector<8x32xf32>
    %1369 = arith.addf %1349, %1368 : vector<8x32xf32>
    %1370 = vector.extract_strided_slice %1240 {offsets = [8, 16], sizes = [8, 8], strides = [1, 1]} : vector<16x32xf32> to vector<8x8xf32>
    %cst_458 = arith.constant 0.353553385 : f32
    %1371 = vector.broadcast %cst_458 : f32 to vector<8x8xf32>
    %1372 = arith.mulf %1370, %1371 : vector<8x8xf32>
    %1373 = vector.extract_strided_slice %1246 {offsets = [8, 16], sizes = [8, 8], strides = [1, 1]} : vector<16x32xf32> to vector<8x8xf32>
    %cst_459 = arith.constant dense<0.000000e+00> : vector<8x8xf32>
    %1374 = tpu.matmul %1372, %1373, %cst_459 {dimension_numbers = #tpu.dot_dimension_numbers<[1], [1], [0], [0], [0, 0, 1, 0], [], []>} : vector<8x8xf32>, vector<8x8xf32>, vector<8x8xf32> -> vector<8x8xf32>
    %cst_460 = arith.constant dense<0xFF800000> : vector<8xf32>
    %1375 = vector.multi_reduction <maximumf>, %1374, %cst_460 [1] : vector<8x8xf32> to vector<8xf32>
    %1376 = vector.shape_cast %1375 : vector<8xf32> to vector<8x1xf32>
    %1377 = vector.broadcast %1376 : vector<8x1xf32> to vector<8x8xf32>
    %1378 = arith.subf %1374, %1377 : vector<8x8xf32>
    %1379 = math.exp %1378 : vector<8x8xf32>
    %cst_461 = arith.constant dense<0.000000e+00> : vector<8xf32>
    %1380 = vector.multi_reduction <add>, %1379, %cst_461 [1] : vector<8x8xf32> to vector<8xf32>
    %1381 = vector.shape_cast %1380 : vector<8xf32> to vector<8x1xf32>
    %1382 = tpu.reciprocal %1381 {approx = true} : vector<8x1xf32> -> vector<8x1xf32>
    %1383 = vector.broadcast %1382 : vector<8x1xf32> to vector<8x8xf32>
    %1384 = arith.mulf %1379, %1383 : vector<8x8xf32>
    %1385 = vector.extract_strided_slice %1247 {offsets = [8, 16], sizes = [8, 8], strides = [1, 1]} : vector<16x32xf32> to vector<8x8xf32>
    %cst_462 = arith.constant dense<0.000000e+00> : vector<8x8xf32>
    %1386 = tpu.matmul %1384, %1385, %cst_462 {dimension_numbers = #tpu.dot_dimension_numbers<[1], [0], [0], [1], [0, 0, 1, 1], [], []>} : vector<8x8xf32>, vector<8x8xf32>, vector<8x8xf32> -> vector<8x8xf32>
    %1387 = vector.extract_strided_slice %1234 {offsets = [16, 0], sizes = [8, 32], strides = [1, 1]} : vector<32x32xf32> to vector<8x32xf32>
    %cst_463 = arith.constant dense<0.000000e+00> : vector<8x32xf32>
    %1388 = tpu.matmul %1386, %1387, %cst_463 {dimension_numbers = #tpu.dot_dimension_numbers<[1], [0], [0], [1], [0, 0, 1, 1], [], []>} : vector<8x8xf32>, vector<8x32xf32>, vector<8x32xf32> -> vector<8x32xf32>
    %1389 = arith.addf %1369, %1388 : vector<8x32xf32>
    %1390 = vector.extract_strided_slice %1240 {offsets = [8, 24], sizes = [8, 8], strides = [1, 1]} : vector<16x32xf32> to vector<8x8xf32>
    %cst_464 = arith.constant 0.353553385 : f32
    %1391 = vector.broadcast %cst_464 : f32 to vector<8x8xf32>
    %1392 = arith.mulf %1390, %1391 : vector<8x8xf32>
    %1393 = vector.extract_strided_slice %1246 {offsets = [8, 24], sizes = [8, 8], strides = [1, 1]} : vector<16x32xf32> to vector<8x8xf32>
    %cst_465 = arith.constant dense<0.000000e+00> : vector<8x8xf32>
    %1394 = tpu.matmul %1392, %1393, %cst_465 {dimension_numbers = #tpu.dot_dimension_numbers<[1], [1], [0], [0], [0, 0, 1, 0], [], []>} : vector<8x8xf32>, vector<8x8xf32>, vector<8x8xf32> -> vector<8x8xf32>
    %cst_466 = arith.constant dense<0xFF800000> : vector<8xf32>
    %1395 = vector.multi_reduction <maximumf>, %1394, %cst_466 [1] : vector<8x8xf32> to vector<8xf32>
    %1396 = vector.shape_cast %1395 : vector<8xf32> to vector<8x1xf32>
    %1397 = vector.broadcast %1396 : vector<8x1xf32> to vector<8x8xf32>
    %1398 = arith.subf %1394, %1397 : vector<8x8xf32>
    %1399 = math.exp %1398 : vector<8x8xf32>
    %cst_467 = arith.constant dense<0.000000e+00> : vector<8xf32>
    %1400 = vector.multi_reduction <add>, %1399, %cst_467 [1] : vector<8x8xf32> to vector<8xf32>
    %1401 = vector.shape_cast %1400 : vector<8xf32> to vector<8x1xf32>
    %1402 = tpu.reciprocal %1401 {approx = true} : vector<8x1xf32> -> vector<8x1xf32>
    %1403 = vector.broadcast %1402 : vector<8x1xf32> to vector<8x8xf32>
    %1404 = arith.mulf %1399, %1403 : vector<8x8xf32>
    %1405 = vector.extract_strided_slice %1247 {offsets = [8, 24], sizes = [8, 8], strides = [1, 1]} : vector<16x32xf32> to vector<8x8xf32>
    %cst_468 = arith.constant dense<0.000000e+00> : vector<8x8xf32>
    %1406 = tpu.matmul %1404, %1405, %cst_468 {dimension_numbers = #tpu.dot_dimension_numbers<[1], [0], [0], [1], [0, 0, 1, 1], [], []>} : vector<8x8xf32>, vector<8x8xf32>, vector<8x8xf32> -> vector<8x8xf32>
    %1407 = vector.extract_strided_slice %1234 {offsets = [24, 0], sizes = [8, 32], strides = [1, 1]} : vector<32x32xf32> to vector<8x32xf32>
    %cst_469 = arith.constant dense<0.000000e+00> : vector<8x32xf32>
    %1408 = tpu.matmul %1406, %1407, %cst_469 {dimension_numbers = #tpu.dot_dimension_numbers<[1], [0], [0], [1], [0, 0, 1, 1], [], []>} : vector<8x8xf32>, vector<8x32xf32>, vector<8x32xf32> -> vector<8x32xf32>
    %1409 = arith.addf %1389, %1408 : vector<8x32xf32>
    %1410 = tpu.concatenate %1328, %1409 in 0 : vector<8x32xf32>, vector<8x32xf32> -> vector<16x32xf32>
    %1411 = vector.broadcast %1235 : vector<1x32xf32> to vector<16x32xf32>
    %1412 = arith.addf %1410, %1411 : vector<16x32xf32>
    %1413 = arith.addf %1231, %1412 : vector<16x32xf32>
    %cst_470 = arith.constant dense<0.000000e+00> : vector<16xf32>
    %1414 = vector.multi_reduction <add>, %1413, %cst_470 [1] : vector<16x32xf32> to vector<16xf32>
    %1415 = vector.shape_cast %1414 : vector<16xf32> to vector<16x1xf32>
    %cst_471 = arith.constant 3.200000e+01 : f32
    %1416 = vector.broadcast %cst_471 : f32 to vector<16x1xf32>
    %1417 = arith.divf %1415, %1416 : vector<16x1xf32>
    %1418 = vector.broadcast %1417 : vector<16x1xf32> to vector<16x32xf32>
    %1419 = arith.subf %1413, %1418 : vector<16x32xf32>
    %1420 = arith.mulf %1419, %1419 : vector<16x32xf32>
    %cst_472 = arith.constant dense<0.000000e+00> : vector<16xf32>
    %1421 = vector.multi_reduction <add>, %1420, %cst_472 [1] : vector<16x32xf32> to vector<16xf32>
    %1422 = vector.shape_cast %1421 : vector<16xf32> to vector<16x1xf32>
    %cst_473 = arith.constant 3.200000e+01 : f32
    %1423 = vector.broadcast %cst_473 : f32 to vector<16x1xf32>
    %1424 = arith.divf %1422, %1423 : vector<16x1xf32>
    %cst_474 = arith.constant 9.99999974E-6 : f32
    %1425 = vector.broadcast %cst_474 : f32 to vector<16x1xf32>
    %1426 = arith.addf %1424, %1425 : vector<16x1xf32>
    %1427 = math.rsqrt %1426 : vector<16x1xf32>
    %1428 = vector.broadcast %1417 : vector<16x1xf32> to vector<16x32xf32>
    %1429 = arith.subf %1413, %1428 : vector<16x32xf32>
    %1430 = vector.broadcast %1427 : vector<16x1xf32> to vector<16x32xf32>
    %1431 = arith.mulf %1429, %1430 : vector<16x32xf32>
    %c1840 = arith.constant 1840 : index
    %c0_475 = arith.constant 0 : index
    %1432 = vector.load %arg2[%c1840, %c0_475] : memref<1904x128xf32, #tpu.memory_space<vmem>>, vector<1x32xf32>
    %1433 = vector.broadcast %1432 : vector<1x32xf32> to vector<16x32xf32>
    %1434 = arith.mulf %1431, %1433 : vector<16x32xf32>
    %c1848 = arith.constant 1848 : index
    %c0_476 = arith.constant 0 : index
    %1435 = vector.load %arg2[%c1848, %c0_476] : memref<1904x128xf32, #tpu.memory_space<vmem>>, vector<1x32xf32>
    %1436 = vector.broadcast %1435 : vector<1x32xf32> to vector<16x32xf32>
    %1437 = arith.addf %1434, %1436 : vector<16x32xf32>
    %c1648 = arith.constant 1648 : index
    %c0_477 = arith.constant 0 : index
    %1438 = vector.load %arg2[%c1648, %c0_477] : memref<1904x128xf32, #tpu.memory_space<vmem>>, vector<32x128xf32>
    %cst_478 = arith.constant dense<0.000000e+00> : vector<16x128xf32>
    %1439 = tpu.matmul %1437, %1438, %cst_478 {dimension_numbers = #tpu.dot_dimension_numbers<[1], [0], [0], [1], [0, 0, 1, 1], [], []>} : vector<16x32xf32>, vector<32x128xf32>, vector<16x128xf32> -> vector<16x128xf32>
    %c1680 = arith.constant 1680 : index
    %c0_479 = arith.constant 0 : index
    %1440 = vector.load %arg2[%c1680, %c0_479] : memref<1904x128xf32, #tpu.memory_space<vmem>>, vector<1x128xf32>
    %1441 = vector.broadcast %1440 : vector<1x128xf32> to vector<16x128xf32>
    %1442 = arith.addf %1439, %1441 : vector<16x128xf32>
    %cst_480 = arith.constant 0.000000e+00 : f32
    %1443 = vector.broadcast %cst_480 : f32 to vector<16x128xf32>
    %1444 = arith.maximumf %1442, %1443 : vector<16x128xf32>
    %c1688 = arith.constant 1688 : index
    %c0_481 = arith.constant 0 : index
    %1445 = vector.load %arg2[%c1688, %c0_481] : memref<1904x128xf32, #tpu.memory_space<vmem>>, vector<128x32xf32>
    %cst_482 = arith.constant dense<0.000000e+00> : vector<16x32xf32>
    %1446 = tpu.matmul %1444, %1445, %cst_482 {dimension_numbers = #tpu.dot_dimension_numbers<[1], [0], [0], [1], [0, 0, 1, 1], [], []>} : vector<16x128xf32>, vector<128x32xf32>, vector<16x32xf32> -> vector<16x32xf32>
    %c1816 = arith.constant 1816 : index
    %c0_483 = arith.constant 0 : index
    %1447 = vector.load %arg2[%c1816, %c0_483] : memref<1904x128xf32, #tpu.memory_space<vmem>>, vector<1x32xf32>
    %1448 = vector.broadcast %1447 : vector<1x32xf32> to vector<16x32xf32>
    %1449 = arith.addf %1446, %1448 : vector<16x32xf32>
    %1450 = arith.addf %1437, %1449 : vector<16x32xf32>
    %cst_484 = arith.constant dense<0.000000e+00> : vector<16xf32>
    %1451 = vector.multi_reduction <add>, %1450, %cst_484 [1] : vector<16x32xf32> to vector<16xf32>
    %1452 = vector.shape_cast %1451 : vector<16xf32> to vector<16x1xf32>
    %cst_485 = arith.constant 3.200000e+01 : f32
    %1453 = vector.broadcast %cst_485 : f32 to vector<16x1xf32>
    %1454 = arith.divf %1452, %1453 : vector<16x1xf32>
    %1455 = vector.broadcast %1454 : vector<16x1xf32> to vector<16x32xf32>
    %1456 = arith.subf %1450, %1455 : vector<16x32xf32>
    %1457 = arith.mulf %1456, %1456 : vector<16x32xf32>
    %cst_486 = arith.constant dense<0.000000e+00> : vector<16xf32>
    %1458 = vector.multi_reduction <add>, %1457, %cst_486 [1] : vector<16x32xf32> to vector<16xf32>
    %1459 = vector.shape_cast %1458 : vector<16xf32> to vector<16x1xf32>
    %cst_487 = arith.constant 3.200000e+01 : f32
    %1460 = vector.broadcast %cst_487 : f32 to vector<16x1xf32>
    %1461 = arith.divf %1459, %1460 : vector<16x1xf32>
    %cst_488 = arith.constant 9.99999974E-6 : f32
    %1462 = vector.broadcast %cst_488 : f32 to vector<16x1xf32>
    %1463 = arith.addf %1461, %1462 : vector<16x1xf32>
    %1464 = math.rsqrt %1463 : vector<16x1xf32>
    %1465 = vector.broadcast %1454 : vector<16x1xf32> to vector<16x32xf32>
    %1466 = arith.subf %1450, %1465 : vector<16x32xf32>
    %1467 = vector.broadcast %1464 : vector<16x1xf32> to vector<16x32xf32>
    %1468 = arith.mulf %1466, %1467 : vector<16x32xf32>
    %c1856 = arith.constant 1856 : index
    %c0_489 = arith.constant 0 : index
    %1469 = vector.load %arg2[%c1856, %c0_489] : memref<1904x128xf32, #tpu.memory_space<vmem>>, vector<1x32xf32>
    %1470 = vector.broadcast %1469 : vector<1x32xf32> to vector<16x32xf32>
    %1471 = arith.mulf %1468, %1470 : vector<16x32xf32>
    %c1864 = arith.constant 1864 : index
    %c0_490 = arith.constant 0 : index
    %1472 = vector.load %arg2[%c1864, %c0_490] : memref<1904x128xf32, #tpu.memory_space<vmem>>, vector<1x32xf32>
    %1473 = vector.broadcast %1472 : vector<1x32xf32> to vector<16x32xf32>
    %1474 = arith.addf %1471, %1473 : vector<16x32xf32>
    %cst_491 = arith.constant dense<0.000000e+00> : vector<16xf32>
    %1475 = vector.multi_reduction <add>, %1474, %cst_491 [1] : vector<16x32xf32> to vector<16xf32>
    %1476 = vector.shape_cast %1475 : vector<16xf32> to vector<16x1xf32>
    %cst_492 = arith.constant 3.200000e+01 : f32
    %1477 = vector.broadcast %cst_492 : f32 to vector<16x1xf32>
    %1478 = arith.divf %1476, %1477 : vector<16x1xf32>
    %1479 = vector.broadcast %1478 : vector<16x1xf32> to vector<16x32xf32>
    %1480 = arith.subf %1474, %1479 : vector<16x32xf32>
    %1481 = arith.mulf %1480, %1480 : vector<16x32xf32>
    %cst_493 = arith.constant dense<0.000000e+00> : vector<16xf32>
    %1482 = vector.multi_reduction <add>, %1481, %cst_493 [1] : vector<16x32xf32> to vector<16xf32>
    %1483 = vector.shape_cast %1482 : vector<16xf32> to vector<16x1xf32>
    %cst_494 = arith.constant 3.200000e+01 : f32
    %1484 = vector.broadcast %cst_494 : f32 to vector<16x1xf32>
    %1485 = arith.divf %1483, %1484 : vector<16x1xf32>
    %cst_495 = arith.constant 9.99999974E-6 : f32
    %1486 = vector.broadcast %cst_495 : f32 to vector<16x1xf32>
    %1487 = arith.addf %1485, %1486 : vector<16x1xf32>
    %1488 = math.rsqrt %1487 : vector<16x1xf32>
    %1489 = vector.broadcast %1478 : vector<16x1xf32> to vector<16x32xf32>
    %1490 = arith.subf %1474, %1489 : vector<16x32xf32>
    %1491 = vector.broadcast %1488 : vector<16x1xf32> to vector<16x32xf32>
    %1492 = arith.mulf %1490, %1491 : vector<16x32xf32>
    %c1888 = arith.constant 1888 : index
    %c0_496 = arith.constant 0 : index
    %1493 = vector.load %arg2[%c1888, %c0_496] : memref<1904x128xf32, #tpu.memory_space<vmem>>, vector<1x32xf32>
    %1494 = vector.broadcast %1493 : vector<1x32xf32> to vector<16x32xf32>
    %1495 = arith.mulf %1492, %1494 : vector<16x32xf32>
    %c1896 = arith.constant 1896 : index
    %c0_497 = arith.constant 0 : index
    %1496 = vector.load %arg2[%c1896, %c0_497] : memref<1904x128xf32, #tpu.memory_space<vmem>>, vector<1x32xf32>
    %1497 = vector.broadcast %1496 : vector<1x32xf32> to vector<16x32xf32>
    %1498 = arith.addf %1495, %1497 : vector<16x32xf32>
    %c0_498 = arith.constant 0 : index
    %c0_499 = arith.constant 0 : index
    %1499 = vector.load %arg3[%c0_498, %c0_499] : memref<40x512xf32, #tpu.memory_space<vmem>>, vector<32x512xf32>
    %cst_500 = arith.constant dense<0.000000e+00> : vector<16x512xf32>
    %1500 = tpu.matmul %1498, %1499, %cst_500 {dimension_numbers = #tpu.dot_dimension_numbers<[1], [0], [0], [1], [0, 0, 1, 1], [], []>} : vector<16x32xf32>, vector<32x512xf32>, vector<16x512xf32> -> vector<16x512xf32>
    %c32 = arith.constant 32 : index
    %c0_501 = arith.constant 0 : index
    %1501 = vector.load %arg3[%c32, %c0_501] : memref<40x512xf32, #tpu.memory_space<vmem>>, vector<1x512xf32>
    %1502 = vector.broadcast %1501 : vector<1x512xf32> to vector<16x512xf32>
    %1503 = arith.addf %1500, %1502 : vector<16x512xf32>
    %c0_502 = arith.constant 0 : index
    %c0_503 = arith.constant 0 : index
    %1504 = vector.load %arg4[%c0_502, %c0_503] : memref<16x512xf32, #tpu.memory_space<vmem>>, vector<16x512xf32>
    tpu.vector_store %arg4[%c0_502, %c0_503], %1503 {strides = array<i32>} : memref<16x512xf32, #tpu.memory_space<vmem>>, vector<16x512xf32>,
    return
  }
  func.func @transform_0(%arg0: i32, %arg1: memref<16xi32, #tpu.memory_space<smem>>) -> (i32, i32) {
    %c0_i32 = arith.constant 0 : i32
    %c0_i32_0 = arith.constant 0 : i32
    %c0_i32_1 = arith.constant 0 : i32
    return %c0_i32, %c0_i32_0 : i32, i32
  }
  func.func @transform_1(%arg0: i32, %arg1: memref<16xi32, #tpu.memory_space<smem>>) -> (i32, i32) {
    %c0_i32 = arith.constant 0 : i32
    %c0_i32_0 = arith.constant 0 : i32
    %c0_i32_1 = arith.constant 0 : i32
    return %c0_i32, %c0_i32_0 : i32, i32
  }
  func.func @transform_2(%arg0: i32, %arg1: memref<16xi32, #tpu.memory_space<smem>>) -> (i32, i32) {
    %c0_i32 = arith.constant 0 : i32
    %c0_i32_0 = arith.constant 0 : i32
    %c0_i32_1 = arith.constant 0 : i32
    return %c0_i32, %c0_i32_0 : i32, i32
  }
}

</mosaic_0001>

<llo_original>
// kernel: forward.1
$region0: #{forward.1}
  #allocation0 [shape = 'u32[]', space=smem, size = 0x4, offset = 0x4, fixed_abs, tag = 'smem constant byte address 0x4 - core index']
  #allocation1 [shape = 'u32[72,128]{1,0:T(1,128)}', space=vmem, size = 0x9000, scoped, tag = 'internal scratch']
  #allocation2 [shape = 'f32[16,32]{1,0:T(8,128)}', space=vmem, size = 0x2000, scoped, tag = 'scratch operand']
  #allocation3 [shape = 's32[1]{0}', space=sflag, size = 0x4, scoped, tag = 'scoped memory for forward.1']
  #allocation4 [shape = 'u8[512]{0}', space=smem, size = 0x200, scoped, tag = 'prefetched SMEM operand 0']
  %s0 = inlined_call_operand.vmem [shape: s32[16], index: 0, kind: input, shape index: {}]
  %s1 = inlined_call_operand.hbm [shape: f32[1904,128], index: 1, kind: input, shape index: {}]
  %s2 = inlined_call_operand.hbm [shape: f32[40,512], index: 2, kind: input, shape index: {}]
  %s3 = inlined_call_operand.hbm [shape: f32[16,512], index: 3, kind: output, shape index: {}]
  %s4 = sld [smem:[#allocation0]]
  $region26: #{forward.1} parent=0
    _
  %s6 = ssub.s32 1, %s4
  %s7 = scalar_select 0, %s6, %s4
  %s9 = sshll.u32 %s0, 4
  %s10 = int_to_ptr.vmem [resolvable:$true] %s9
  %12 = dma.vmem_to_smem %s10, 16, [#allocation4], [#allocation3]
  %14 = dma.done [#allocation3], 16
  %15 = sfence
  $region1: #{forward.1} parent=0
    #allocation5 [shape = 'u8[974848]{0}', space=vmem, size = 0xee000, scoped, tag = 'input window, operand 1, single buffered']
    #allocation6 [shape = 's32[1]{0}', space=sflag, size = 0x4, scoped, tag = 'scoped memory for forward.1']
    #allocation7 [shape = 's32[1]{0}', space=sflag, size = 0x4, scoped, tag = 'scoped memory for forward.1']
    #allocation8 [shape = 'u8[81920]{0}', space=vmem, size = 0x14000, scoped, tag = 'input window, operand 2, single buffered']
    #allocation9 [shape = 's32[1]{0}', space=sflag, size = 0x4, scoped, tag = 'scoped memory for forward.1']
    #allocation10 [shape = 'u8[32768]{0}', space=vmem, size = 0x8000, scoped, tag = 'output window, operand 0, single buffered']
    %16 = vsyncpa [#allocation6], 0
    %17 = vsyncpa [#allocation9], 0
    %18 = vsyncpa [#allocation7], 0
    // Predicated region
    $region2: #{forward.1} parent=1 // pred_check
      _
    $region3: #{forward.1} parent=1 // pred_check_branch
      %20 = sbr.rel (0) target = $region5
    $region4: #{forward.1} parent=1 // pred_region
      %22 = vsyncadd [#allocation6], 0
      %s23 = sshll.u32 %s1, 4
      %s24 = int_to_ptr.hbm [resolvable:$true] %s23
      %s25 = sshll.u32 [#allocation5], 4
      %s26 = int_to_ptr.vmem [resolvable:$true] %s25
      %31 = dma.hbm_to_vmem [thread:$0]  %s24, 30464, %s26, [#allocation6], 128, 128, 8
    $region5: #{forward.1} parent=1 // pred_fallthru
      _
    // Predicated region
    $region6: #{forward.1} parent=1 // pred_check
      _
    $region7: #{forward.1} parent=1 // pred_check_branch
      %33 = sbr.rel (0) target = $region9
    $region8: #{forward.1} parent=1 // pred_region
      %35 = vsyncadd [#allocation9], 0
      %s36 = sshll.u32 %s2, 4
      %s37 = int_to_ptr.hbm [resolvable:$true] %s36
      %s38 = sshll.u32 [#allocation8], 4
      %s39 = int_to_ptr.vmem [resolvable:$true] %s38
      %44 = dma.hbm_to_vmem [thread:$0]  %s37, 2560, %s39, [#allocation9], 512, 512, 32
    $region9: #{forward.1} parent=1 // pred_fallthru
      _
    // Predicated region
    $region10: #{forward.1} parent=1 // pred_check
      _
    $region11: #{forward.1} parent=1 // pred_check_branch
      %46 = sbr.rel (0) target = $region13
    $region12: #{forward.1} parent=1 // pred_region
      %48 = dma.done [#allocation6], 30464
    $region13: #{forward.1} parent=1 // pred_fallthru
      _
    // Predicated region
    $region14: #{forward.1} parent=1 // pred_check
      _
    $region15: #{forward.1} parent=1 // pred_check_branch
      %50 = sbr.rel (0) target = $region17
    $region16: #{forward.1} parent=1 // pred_region
      %52 = dma.done [#allocation9], 2560
    $region17: #{forward.1} parent=1 // pred_fallthru
      _
    %s53 = sld [smem:[#allocation4]]
    %s54 = scalar_lea.vmem [#allocation5], %s53
    %v55 = vld [vmem:[%s54] sm:$0x1]
    %vm56 = vcmask 253952
    %57 = vst.msk [vmem:[#allocation2] sm:$0x1] %vm56, %v55
    %s58 = sld [smem:[#allocation4 + $0x1]]
    %s59 = scalar_lea.vmem [#allocation5], %s58
    %v60 = vld [vmem:[%s59] sm:$0x1]
    %61 = vst.msk [vmem:[#allocation2 + $0x1] sm:$0x1] %vm56, %v60
    %s62 = sld [smem:[#allocation4 + $0x2]]
    %s63 = scalar_lea.vmem [#allocation5], %s62
    %v64 = vld [vmem:[%s63] sm:$0x1]
    %65 = vst.msk [vmem:[#allocation2 + $0x2] sm:$0x1] %vm56, %v64
    %s66 = sld [smem:[#allocation4 + $0x3]]
    %s67 = scalar_lea.vmem [#allocation5], %s66
    %v68 = vld [vmem:[%s67] sm:$0x1]
    %69 = vst.msk [vmem:[#allocation2 + $0x3] sm:$0x1] %vm56, %v68
    %s70 = sld [smem:[#allocation4 + $0x4]]
    %s71 = scalar_lea.vmem [#allocation5], %s70
    %v72 = vld [vmem:[%s71] sm:$0x1]
    %73 = vst.msk [vmem:[#allocation2 + $0x4] sm:$0x1] %vm56, %v72
    %s74 = sld [smem:[#allocation4 + $0x5]]
    %s75 = scalar_lea.vmem [#allocation5], %s74
    %v76 = vld [vmem:[%s75] sm:$0x1]
    %77 = vst.msk [vmem:[#allocation2 + $0x5] sm:$0x1] %vm56, %v76
    %s78 = sld [smem:[#allocation4 + $0x6]]
    %s79 = scalar_lea.vmem [#allocation5], %s78
    %v80 = vld [vmem:[%s79] sm:$0x1]
    %81 = vst.msk [vmem:[#allocation2 + $0x6] sm:$0x1] %vm56, %v80
    %s82 = sld [smem:[#allocation4 + $0x7]]
    %s83 = scalar_lea.vmem [#allocation5], %s82
    %v84 = vld [vmem:[%s83] sm:$0x1]
    %85 = vst.msk [vmem:[#allocation2 + $0x7] sm:$0x1] %vm56, %v84
    %s86 = sld [smem:[#allocation4 + $0x8]]
    %s87 = scalar_lea.vmem [#allocation5], %s86
    %v88 = vld [vmem:[%s87] sm:$0x1]
    %89 = vst.msk [vmem:[#allocation2 + $0x8] sm:$0x1] %vm56, %v88
    %s90 = sld [smem:[#allocation4 + $0x9]]
    %s91 = scalar_lea.vmem [#allocation5], %s90
    %v92 = vld [vmem:[%s91] sm:$0x1]
    %93 = vst.msk [vmem:[#allocation2 + $0x9] sm:$0x1] %vm56, %v92
    %s94 = sld [smem:[#allocation4 + $0xa]]
    %s95 = scalar_lea.vmem [#allocation5], %s94
    %v96 = vld [vmem:[%s95] sm:$0x1]
    %97 = vst.msk [vmem:[#allocation2 + $0xa] sm:$0x1] %vm56, %v96
    %s98 = sld [smem:[#allocation4 + $0xb]]
    %s99 = scalar_lea.vmem [#allocation5], %s98
    %v100 = vld [vmem:[%s99] sm:$0x1]
    %101 = vst.msk [vmem:[#allocation2 + $0xb] sm:$0x1] %vm56, %v100
    %s102 = sld [smem:[#allocation4 + $0xc]]
    %s103 = scalar_lea.vmem [#allocation5], %s102
    %v104 = vld [vmem:[%s103] sm:$0x1]
    %105 = vst.msk [vmem:[#allocation2 + $0xc] sm:$0x1] %vm56, %v104
    %s106 = sld [smem:[#allocation4 + $0xd]]
    %s107 = scalar_lea.vmem [#allocation5], %s106
    %v108 = vld [vmem:[%s107] sm:$0x1]
    %109 = vst.msk [vmem:[#allocation2 + $0xd] sm:$0x1] %vm56, %v108
    %s110 = sld [smem:[#allocation4 + $0xe]]
    %s111 = scalar_lea.vmem [#allocation5], %s110
    %v112 = vld [vmem:[%s111] sm:$0x1]
    %113 = vst.msk [vmem:[#allocation2 + $0xe] sm:$0x1] %vm56, %v112
    %s114 = sld [smem:[#allocation4 + $0xf]]
    %s115 = scalar_lea.vmem [#allocation5], %s114
    %v116 = vld [vmem:[%s115] sm:$0x1]
    %117 = vst.msk [vmem:[#allocation2 + $0xf] sm:$0x1] %vm56, %v116
    %v118 = vld [vmem:[#allocation2] sm:$0xff]
    %v119 = vld [vmem:[#allocation2 + $0x8] sm:$0xff]
    %v120 = vld [vmem:[#allocation5 + $0x200] sm:$0xff]
    %v121 = vld [vmem:[#allocation5 + $0x208] sm:$0xff]
    %v122 = vadd.f32 %v118, %v120
    %v123 = vadd.f32 %v119, %v121
    %v124 = vld [vmem:[#allocation5 + $0x210] sm:$0xff]
    %v125 = vld [vmem:[#allocation5 + $0x218] sm:$0xff]
    %v126 = vld [vmem:[#allocation5 + $0x220] sm:$0xff]
    %v127 = vld [vmem:[#allocation5 + $0x228] sm:$0xff]
    %v128 = vld [vmem:[#allocation5 + $0x230] sm:$0x1]
    %v129 = vld [vmem:[#allocation5 + $0x238] sm:$0xff]
    %v130 = vld [vmem:[#allocation5 + $0x240] sm:$0xff]
    %v131 = vld [vmem:[#allocation5 + $0x248] sm:$0xff]
    %v132 = vld [vmem:[#allocation5 + $0x250] sm:$0xff]
    %v133 = vld [vmem:[#allocation5 + $0x258] sm:$0x1]
    %v134 = vperm.slane %v128, 0
    %vm135 = vcmask 261120
    %v137 = vsel %vm135, %v122, 0
    %v140 = vsel %vm135, %v123, 0
    %142 = vmatpush.msra.mxu0 0.0
    %143 = vmatpush.msra.mxu0 0.0
    %144 = vmatpush.msra.mxu0 0.0
    %145 = vmatpush.msra.mxu0 0.0
    %146 = vmatpush.msra.mxu0 0.0
    %147 = vmatpush.msra.mxu0 0.0
    %148 = vmatpush.msra.mxu0 0.0
    %149 = vmatpush.msra.mxu0 0.0
    %150 = vmatpush.msra.mxu0 0.0
    %151 = vmatpush.msra.mxu0 0.0
    %152 = vmatpush.msra.mxu0 0.0
    %153 = vmatpush.msra.mxu0 0.0
    %154 = vmatpush.msra.mxu0 %v127
    %155 = vmatpush.msra.mxu0 %v126
    %156 = vmatpush.msra.mxu0 %v125
    %157 = vmatpush.msra.mxu0 %v124
    %158 = vmatmul.f32.gmra.mxu0 %v137
    %v159 = vpop.f32.mrf.mxu0
    %v160 = vadd.f32 %v134, %v159
    %161 = vmatmul.f32.gmra.mxu0 %v140
    %v162 = vpop.f32.mrf.mxu0
    %v163 = vadd.f32 %v134, %v162
    %164 = vdwg.mxu0
    %169 = vrot.lane.b32.xlu0 %v124, 96
    %v170 = vpop.permute.xlu0 %169
    %171 = vrot.lane.b32.xlu0 %v125, 96
    %v172 = vpop.permute.xlu0 %171
    %173 = vrot.lane.b32.xlu0 %v126, 96
    %v174 = vpop.permute.xlu0 %173
    %175 = vrot.lane.b32.xlu0 %v127, 96
    %v176 = vpop.permute.xlu0 %175
    %182 = vrot.lane.b32.xlu0 %v134, 96
    %v183 = vpop.permute.xlu0 %182
    %185 = vmatpush.msra.mxu0 0.0
    %186 = vmatpush.msra.mxu0 0.0
    %187 = vmatpush.msra.mxu0 0.0
    %188 = vmatpush.msra.mxu0 0.0
    %189 = vmatpush.msra.mxu0 0.0
    %190 = vmatpush.msra.mxu0 0.0
    %191 = vmatpush.msra.mxu0 0.0
    %192 = vmatpush.msra.mxu0 0.0
    %193 = vmatpush.msra.mxu0 0.0
    %194 = vmatpush.msra.mxu0 0.0
    %195 = vmatpush.msra.mxu0 0.0
    %196 = vmatpush.msra.mxu0 0.0
    %197 = vmatpush.msra.mxu0 %v176
    %198 = vmatpush.msra.mxu0 %v174
    %199 = vmatpush.msra.mxu0 %v172
    %200 = vmatpush.msra.mxu0 %v170
    %201 = vmatmul.f32.gmra.mxu0 %v137
    %v202 = vpop.f32.mrf.mxu0
    %v203 = vadd.f32 %v183, %v202
    %204 = vmatmul.f32.gmra.mxu0 %v140
    %v205 = vpop.f32.mrf.mxu0
    %v206 = vadd.f32 %v183, %v205
    %207 = vdwg.mxu0
    %v208 = vmul.f32 %v160, 0.35355338
    %vm209 = vcmask 64512
    %v211 = vsel %vm209, %v208, 0
    %v214 = vsel %vm209, %v203, 0
    %216 = vmatpush.xpose.msra.mxu0 0.0
    %217 = vmatpush.xpose.msra.mxu0 0.0
    %218 = vmatpush.xpose.msra.mxu0 0.0
    %219 = vmatpush.xpose.msra.mxu0 0.0
    %220 = vmatpush.xpose.msra.mxu0 0.0
    %221 = vmatpush.xpose.msra.mxu0 0.0
    %222 = vmatpush.xpose.msra.mxu0 0.0
    %223 = vmatpush.xpose.msra.mxu0 0.0
    %224 = vmatpush.xpose.msra.mxu0 0.0
    %225 = vmatpush.xpose.msra.mxu0 0.0
    %226 = vmatpush.xpose.msra.mxu0 0.0
    %227 = vmatpush.xpose.msra.mxu0 0.0
    %228 = vmatpush.xpose.msra.mxu0 0.0
    %229 = vmatpush.xpose.msra.mxu0 0.0
    %230 = vmatpush.xpose.msra.mxu0 0.0
    %231 = vmatpush.xpose.msra.mxu0 %v214
    %232 = vmatmul.f32.gmra.mxu0 %v211
    %v233 = vpop.f32.mrf.mxu0
    %v234 = vadd.f32 0.0, %v233
    %235 = vdwg.mxu0
    %v236 = vsel %vm209, %v234, -inf
    %237 = vmax.xlane.f32.xlu0 %v236
    %v238 = vpop.xlane.xlu0 %237
    %v239 = vsub.f32 %v234, %v238
    %v240 = vmul.f32 %v239, 1.442695
    %v241 = vpow.pop %v240
    %v242 = vsel %vm209, %v241, 0.0
    %243 = vadd.xlane.f32.xlu0 %v242
    %v244 = vpop.xlane.xlu0 %243
    %v245 = vrcp.pop %v244
    %v246 = vmul.f32 %v241, %v245
    %247 = vrot.lane.b32.xlu0 %v203, 96
    %v248 = vpop.permute.xlu0 %247
    %v251 = vsel %vm209, %v246, 0
    %253 = vmatpush.msra.mxu0 0.0
    %254 = vmatpush.msra.mxu0 0.0
    %255 = vmatpush.msra.mxu0 0.0
    %256 = vmatpush.msra.mxu0 0.0
    %257 = vmatpush.msra.mxu0 0.0
    %258 = vmatpush.msra.mxu0 0.0
    %259 = vmatpush.msra.mxu0 0.0
    %260 = vmatpush.msra.mxu0 0.0
    %261 = vmatpush.msra.mxu0 0.0
    %262 = vmatpush.msra.mxu0 0.0
    %263 = vmatpush.msra.mxu0 0.0
    %264 = vmatpush.msra.mxu0 0.0
    %265 = vmatpush.msra.mxu0 0.0
    %266 = vmatpush.msra.mxu0 0.0
    %267 = vmatpush.msra.mxu0 0.0
    %268 = vmatpush.msra.mxu0 %v248
    %269 = vmatmul.f32.gmra.mxu0 %v251
    %v270 = vpop.f32.mrf.mxu0
    %v271 = vadd.f32 0.0, %v270
    %272 = vdwg.mxu0
    %273 = vrot.lane.b32.xlu0 %v208, 120
    %v274 = vpop.permute.xlu0 %273
    %275 = vrot.lane.b32.xlu0 %v203, 120
    %v276 = vpop.permute.xlu0 %275
    %v277 = vsel %vm209, %v274, 0
    %v279 = vsel %vm209, %v276, 0
    %281 = vmatpush.xpose.msra.mxu0 0.0
    %282 = vmatpush.xpose.msra.mxu0 0.0
    %283 = vmatpush.xpose.msra.mxu0 0.0
    %284 = vmatpush.xpose.msra.mxu0 0.0
    %285 = vmatpush.xpose.msra.mxu0 0.0
    %286 = vmatpush.xpose.msra.mxu0 0.0
    %287 = vmatpush.xpose.msra.mxu0 0.0
    %288 = vmatpush.xpose.msra.mxu0 0.0
    %289 = vmatpush.xpose.msra.mxu0 0.0
    %290 = vmatpush.xpose.msra.mxu0 0.0
    %291 = vmatpush.xpose.msra.mxu0 0.0
    %292 = vmatpush.xpose.msra.mxu0 0.0
    %293 = vmatpush.xpose.msra.mxu0 0.0
    %294 = vmatpush.xpose.msra.mxu0 0.0
    %295 = vmatpush.xpose.msra.mxu0 0.0
    %296 = vmatpush.xpose.msra.mxu0 %v279
    %297 = vmatmul.f32.gmra.mxu0 %v277
    %v298 = vpop.f32.mrf.mxu0
    %v299 = vadd.f32 0.0, %v298
    %300 = vdwg.mxu0
    %v301 = vsel %vm209, %v299, -inf
    %302 = vmax.xlane.f32.xlu0 %v301
    %v303 = vpop.xlane.xlu0 %302
    %v304 = vsub.f32 %v299, %v303
    %v305 = vmul.f32 %v304, 1.442695
    %v306 = vpow.pop %v305
    %v307 = vsel %vm209, %v306, 0.0
    %308 = vadd.xlane.f32.xlu0 %v307
    %v309 = vpop.xlane.xlu0 %308
    %v310 = vrcp.pop %v309
    %v311 = vmul.f32 %v306, %v310
    %312 = vrot.lane.b32.xlu0 %v203, 88
    %v313 = vpop.permute.xlu0 %312
    %v316 = vsel %vm209, %v311, 0
    %318 = vmatpush.msra.mxu0 0.0
    %319 = vmatpush.msra.mxu0 0.0
    %320 = vmatpush.msra.mxu0 0.0
    %321 = vmatpush.msra.mxu0 0.0
    %322 = vmatpush.msra.mxu0 0.0
    %323 = vmatpush.msra.mxu0 0.0
    %324 = vmatpush.msra.mxu0 0.0
    %325 = vmatpush.msra.mxu0 0.0
    %326 = vmatpush.msra.mxu0 0.0
    %327 = vmatpush.msra.mxu0 0.0
    %328 = vmatpush.msra.mxu0 0.0
    %329 = vmatpush.msra.mxu0 0.0
    %330 = vmatpush.msra.mxu0 0.0
    %331 = vmatpush.msra.mxu0 0.0
    %332 = vmatpush.msra.mxu0 0.0
    %333 = vmatpush.msra.mxu0 %v313
    %334 = vmatmul.f32.gmra.mxu0 %v316
    %v335 = vpop.f32.mrf.mxu0
    %v336 = vadd.f32 0.0, %v335
    %337 = vdwg.mxu0
    %v339 = vsel %vm209, %v336, 0
    %341 = vmatpush.msra.mxu0 0.0
    %342 = vmatpush.msra.mxu0 0.0
    %343 = vmatpush.msra.mxu0 0.0
    %344 = vmatpush.msra.mxu0 0.0
    %345 = vmatpush.msra.mxu0 0.0
    %346 = vmatpush.msra.mxu0 0.0
    %347 = vmatpush.msra.mxu0 0.0
    %348 = vmatpush.msra.mxu0 0.0
    %349 = vmatpush.msra.mxu0 0.0
    %350 = vmatpush.msra.mxu0 0.0
    %351 = vmatpush.msra.mxu0 0.0
    %352 = vmatpush.msra.mxu0 0.0
    %353 = vmatpush.msra.mxu0 0.0
    %354 = vmatpush.msra.mxu0 0.0
    %355 = vmatpush.msra.mxu0 0.0
    %356 = vmatpush.msra.mxu0 %v130
    %357 = vmatmul.f32.gmra.mxu0 %v339
    %v358 = vpop.f32.mrf.mxu0
    %v359 = vadd.f32 0.0, %v358
    %360 = vdwg.mxu0
    %v362 = vsel %vm209, %v271, 0
    %364 = vmatpush.msra.mxu0 0.0
    %365 = vmatpush.msra.mxu0 0.0
    %366 = vmatpush.msra.mxu0 0.0
    %367 = vmatpush.msra.mxu0 0.0
    %368 = vmatpush.msra.mxu0 0.0
    %369 = vmatpush.msra.mxu0 0.0
    %370 = vmatpush.msra.mxu0 0.0
    %371 = vmatpush.msra.mxu0 0.0
    %372 = vmatpush.msra.mxu0 0.0
    %373 = vmatpush.msra.mxu0 0.0
    %374 = vmatpush.msra.mxu0 0.0
    %375 = vmatpush.msra.mxu0 0.0
    %376 = vmatpush.msra.mxu0 0.0
    %377 = vmatpush.msra.mxu0 0.0
    %378 = vmatpush.msra.mxu0 0.0
    %379 = vmatpush.msra.mxu0 %v129
    %380 = vmatmul.f32.gmra.mxu0 %v362
    %v381 = vpop.f32.mrf.mxu0
    %v382 = vadd.f32 %v359, %v381
    %383 = vdwg.mxu0
    %384 = vrot.lane.b32.xlu0 %v208, 112
    %v385 = vpop.permute.xlu0 %384
    %386 = vrot.lane.b32.xlu0 %v203, 112
    %v387 = vpop.permute.xlu0 %386
    %v388 = vsel %vm209, %v385, 0
    %v390 = vsel %vm209, %v387, 0
    %392 = vmatpush.xpose.msra.mxu0 0.0
    %393 = vmatpush.xpose.msra.mxu0 0.0
    %394 = vmatpush.xpose.msra.mxu0 0.0
    %395 = vmatpush.xpose.msra.mxu0 0.0
    %396 = vmatpush.xpose.msra.mxu0 0.0
    %397 = vmatpush.xpose.msra.mxu0 0.0
    %398 = vmatpush.xpose.msra.mxu0 0.0
    %399 = vmatpush.xpose.msra.mxu0 0.0
    %400 = vmatpush.xpose.msra.mxu0 0.0
    %401 = vmatpush.xpose.msra.mxu0 0.0
    %402 = vmatpush.xpose.msra.mxu0 0.0
    %403 = vmatpush.xpose.msra.mxu0 0.0
    %404 = vmatpush.xpose.msra.mxu0 0.0
    %405 = vmatpush.xpose.msra.mxu0 0.0
    %406 = vmatpush.xpose.msra.mxu0 0.0
    %407 = vmatpush.xpose.msra.mxu0 %v390
    %408 = vmatmul.f32.gmra.mxu0 %v388
    %v409 = vpop.f32.mrf.mxu0
    %v410 = vadd.f32 0.0, %v409
    %411 = vdwg.mxu0
    %v412 = vsel %vm209, %v410, -inf
    %413 = vmax.xlane.f32.xlu0 %v412
    %v414 = vpop.xlane.xlu0 %413
    %v415 = vsub.f32 %v410, %v414
    %v416 = vmul.f32 %v415, 1.442695
    %v417 = vpow.pop %v416
    %v418 = vsel %vm209, %v417, 0.0
    %419 = vadd.xlane.f32.xlu0 %v418
    %v420 = vpop.xlane.xlu0 %419
    %v421 = vrcp.pop %v420
    %v422 = vmul.f32 %v417, %v421
    %423 = vrot.lane.b32.xlu0 %v203, 80
    %v424 = vpop.permute.xlu0 %423
    %v427 = vsel %vm209, %v422, 0
    %429 = vmatpush.msra.mxu0 0.0
    %430 = vmatpush.msra.mxu0 0.0
    %431 = vmatpush.msra.mxu0 0.0
    %432 = vmatpush.msra.mxu0 0.0
    %433 = vmatpush.msra.mxu0 0.0
    %434 = vmatpush.msra.mxu0 0.0
    %435 = vmatpush.msra.mxu0 0.0
    %436 = vmatpush.msra.mxu0 0.0
    %437 = vmatpush.msra.mxu0 0.0
    %438 = vmatpush.msra.mxu0 0.0
    %439 = vmatpush.msra.mxu0 0.0
    %440 = vmatpush.msra.mxu0 0.0
    %441 = vmatpush.msra.mxu0 0.0
    %442 = vmatpush.msra.mxu0 0.0
    %443 = vmatpush.msra.mxu0 0.0
    %444 = vmatpush.msra.mxu0 %v424
    %445 = vmatmul.f32.gmra.mxu0 %v427
    %v446 = vpop.f32.mrf.mxu0
    %v447 = vadd.f32 0.0, %v446
    %448 = vdwg.mxu0
    %v450 = vsel %vm209, %v447, 0
    %452 = vmatpush.msra.mxu0 0.0
    %453 = vmatpush.msra.mxu0 0.0
    %454 = vmatpush.msra.mxu0 0.0
    %455 = vmatpush.msra.mxu0 0.0
    %456 = vmatpush.msra.mxu0 0.0
    %457 = vmatpush.msra.mxu0 0.0
    %458 = vmatpush.msra.mxu0 0.0
    %459 = vmatpush.msra.mxu0 0.0
    %460 = vmatpush.msra.mxu0 0.0
    %461 = vmatpush.msra.mxu0 0.0
    %462 = vmatpush.msra.mxu0 0.0
    %463 = vmatpush.msra.mxu0 0.0
    %464 = vmatpush.msra.mxu0 0.0
    %465 = vmatpush.msra.mxu0 0.0
    %466 = vmatpush.msra.mxu0 0.0
    %467 = vmatpush.msra.mxu0 %v131
    %468 = vmatmul.f32.gmra.mxu0 %v450
    %v469 = vpop.f32.mrf.mxu0
    %v470 = vadd.f32 0.0, %v469
    %471 = vdwg.mxu0
    %v472 = vadd.f32 %v382, %v470
    %473 = vrot.lane.b32.xlu0 %v208, 104
    %v474 = vpop.permute.xlu0 %473
    %475 = vrot.lane.b32.xlu0 %v203, 104
    %v476 = vpop.permute.xlu0 %475
    %v477 = vsel %vm209, %v474, 0
    %v479 = vsel %vm209, %v476, 0
    %481 = vmatpush.xpose.msra.mxu0 0.0
    %482 = vmatpush.xpose.msra.mxu0 0.0
    %483 = vmatpush.xpose.msra.mxu0 0.0
    %484 = vmatpush.xpose.msra.mxu0 0.0
    %485 = vmatpush.xpose.msra.mxu0 0.0
    %486 = vmatpush.xpose.msra.mxu0 0.0
    %487 = vmatpush.xpose.msra.mxu0 0.0
    %488 = vmatpush.xpose.msra.mxu0 0.0
    %489 = vmatpush.xpose.msra.mxu0 0.0
    %490 = vmatpush.xpose.msra.mxu0 0.0
    %491 = vmatpush.xpose.msra.mxu0 0.0
    %492 = vmatpush.xpose.msra.mxu0 0.0
    %493 = vmatpush.xpose.msra.mxu0 0.0
    %494 = vmatpush.xpose.msra.mxu0 0.0
    %495 = vmatpush.xpose.msra.mxu0 0.0
    %496 = vmatpush.xpose.msra.mxu0 %v479
    %497 = vmatmul.f32.gmra.mxu0 %v477
    %v498 = vpop.f32.mrf.mxu0
    %v499 = vadd.f32 0.0, %v498
    %500 = vdwg.mxu0
    %v501 = vsel %vm209, %v499, -inf
    %502 = vmax.xlane.f32.xlu0 %v501
    %v503 = vpop.xlane.xlu0 %502
    %v504 = vsub.f32 %v499, %v503
    %v505 = vmul.f32 %v504, 1.442695
    %v506 = vpow.pop %v505
    %v507 = vsel %vm209, %v506, 0.0
    %508 = vadd.xlane.f32.xlu0 %v507
    %v509 = vpop.xlane.xlu0 %508
    %v510 = vrcp.pop %v509
    %v511 = vmul.f32 %v506, %v510
    %512 = vrot.lane.b32.xlu0 %v203, 72
    %v513 = vpop.permute.xlu0 %512
    %v516 = vsel %vm209, %v511, 0
    %518 = vmatpush.msra.mxu0 0.0
    %519 = vmatpush.msra.mxu0 0.0
    %520 = vmatpush.msra.mxu0 0.0
    %521 = vmatpush.msra.mxu0 0.0
    %522 = vmatpush.msra.mxu0 0.0
    %523 = vmatpush.msra.mxu0 0.0
    %524 = vmatpush.msra.mxu0 0.0
    %525 = vmatpush.msra.mxu0 0.0
    %526 = vmatpush.msra.mxu0 0.0
    %527 = vmatpush.msra.mxu0 0.0
    %528 = vmatpush.msra.mxu0 0.0
    %529 = vmatpush.msra.mxu0 0.0
    %530 = vmatpush.msra.mxu0 0.0
    %531 = vmatpush.msra.mxu0 0.0
    %532 = vmatpush.msra.mxu0 0.0
    %533 = vmatpush.msra.mxu0 %v513
    %534 = vmatmul.f32.gmra.mxu0 %v516
    %v535 = vpop.f32.mrf.mxu0
    %v536 = vadd.f32 0.0, %v535
    %537 = vdwg.mxu0
    %v539 = vsel %vm209, %v536, 0
    %541 = vmatpush.msra.mxu0 0.0
    %542 = vmatpush.msra.mxu0 0.0
    %543 = vmatpush.msra.mxu0 0.0
    %544 = vmatpush.msra.mxu0 0.0
    %545 = vmatpush.msra.mxu0 0.0
    %546 = vmatpush.msra.mxu0 0.0
    %547 = vmatpush.msra.mxu0 0.0
    %548 = vmatpush.msra.mxu0 0.0
    %549 = vmatpush.msra.mxu0 0.0
    %550 = vmatpush.msra.mxu0 0.0
    %551 = vmatpush.msra.mxu0 0.0
    %552 = vmatpush.msra.mxu0 0.0
    %553 = vmatpush.msra.mxu0 0.0
    %554 = vmatpush.msra.mxu0 0.0
    %555 = vmatpush.msra.mxu0 0.0
    %556 = vmatpush.msra.mxu0 %v132
    %557 = vmatmul.f32.gmra.mxu0 %v539
    %v558 = vpop.f32.mrf.mxu0
    %v559 = vadd.f32 0.0, %v558
    %560 = vdwg.mxu0
    %v561 = vadd.f32 %v472, %v559
    %v562 = vmul.f32 %v163, 0.35355338
    %v564 = vsel %vm209, %v562, 0
    %v567 = vsel %vm209, %v206, 0
    %569 = vmatpush.xpose.msra.mxu0 0.0
    %570 = vmatpush.xpose.msra.mxu0 0.0
    %571 = vmatpush.xpose.msra.mxu0 0.0
    %572 = vmatpush.xpose.msra.mxu0 0.0
    %573 = vmatpush.xpose.msra.mxu0 0.0
    %574 = vmatpush.xpose.msra.mxu0 0.0
    %575 = vmatpush.xpose.msra.mxu0 0.0
    %576 = vmatpush.xpose.msra.mxu0 0.0
    %577 = vmatpush.xpose.msra.mxu0 0.0
    %578 = vmatpush.xpose.msra.mxu0 0.0
    %579 = vmatpush.xpose.msra.mxu0 0.0
    %580 = vmatpush.xpose.msra.mxu0 0.0
    %581 = vmatpush.xpose.msra.mxu0 0.0
    %582 = vmatpush.xpose.msra.mxu0 0.0
    %583 = vmatpush.xpose.msra.mxu0 0.0
    %584 = vmatpush.xpose.msra.mxu0 %v567
    %585 = vmatmul.f32.gmra.mxu0 %v564
    %v586 = vpop.f32.mrf.mxu0
    %v587 = vadd.f32 0.0, %v586
    %588 = vdwg.mxu0
    %v589 = vsel %vm209, %v587, -inf
    %590 = vmax.xlane.f32.xlu0 %v589
    %v591 = vpop.xlane.xlu0 %590
    %v592 = vsub.f32 %v587, %v591
    %v593 = vmul.f32 %v592, 1.442695
    %v594 = vpow.pop %v593
    %v595 = vsel %vm209, %v594, 0.0
    %596 = vadd.xlane.f32.xlu0 %v595
    %v597 = vpop.xlane.xlu0 %596
    %v598 = vrcp.pop %v597
    %v599 = vmul.f32 %v594, %v598
    %600 = vrot.lane.b32.xlu0 %v206, 96
    %v601 = vpop.permute.xlu0 %600
    %v604 = vsel %vm209, %v599, 0
    %606 = vmatpush.msra.mxu0 0.0
    %607 = vmatpush.msra.mxu0 0.0
    %608 = vmatpush.msra.mxu0 0.0
    %609 = vmatpush.msra.mxu0 0.0
    %610 = vmatpush.msra.mxu0 0.0
    %611 = vmatpush.msra.mxu0 0.0
    %612 = vmatpush.msra.mxu0 0.0
    %613 = vmatpush.msra.mxu0 0.0
    %614 = vmatpush.msra.mxu0 0.0
    %615 = vmatpush.msra.mxu0 0.0
    %616 = vmatpush.msra.mxu0 0.0
    %617 = vmatpush.msra.mxu0 0.0
    %618 = vmatpush.msra.mxu0 0.0
    %619 = vmatpush.msra.mxu0 0.0
    %620 = vmatpush.msra.mxu0 0.0
    %621 = vmatpush.msra.mxu0 %v601
    %622 = vmatmul.f32.gmra.mxu0 %v604
    %v623 = vpop.f32.mrf.mxu0
    %v624 = vadd.f32 0.0, %v623
    %625 = vdwg.mxu0
    %626 = vrot.lane.b32.xlu0 %v562, 120
    %v627 = vpop.permute.xlu0 %626
    %628 = vrot.lane.b32.xlu0 %v206, 120
    %v629 = vpop.permute.xlu0 %628
    %v630 = vsel %vm209, %v627, 0
    %v632 = vsel %vm209, %v629, 0
    %634 = vmatpush.xpose.msra.mxu0 0.0
    %635 = vmatpush.xpose.msra.mxu0 0.0
    %636 = vmatpush.xpose.msra.mxu0 0.0
    %637 = vmatpush.xpose.msra.mxu0 0.0
    %638 = vmatpush.xpose.msra.mxu0 0.0
    %639 = vmatpush.xpose.msra.mxu0 0.0
    %640 = vmatpush.xpose.msra.mxu0 0.0
    %641 = vmatpush.xpose.msra.mxu0 0.0
    %642 = vmatpush.xpose.msra.mxu0 0.0
    %643 = vmatpush.xpose.msra.mxu0 0.0
    %644 = vmatpush.xpose.msra.mxu0 0.0
    %645 = vmatpush.xpose.msra.mxu0 0.0
    %646 = vmatpush.xpose.msra.mxu0 0.0
    %647 = vmatpush.xpose.msra.mxu0 0.0
    %648 = vmatpush.xpose.msra.mxu0 0.0
    %649 = vmatpush.xpose.msra.mxu0 %v632
    %650 = vmatmul.f32.gmra.mxu0 %v630
    %v651 = vpop.f32.mrf.mxu0
    %v652 = vadd.f32 0.0, %v651
    %653 = vdwg.mxu0
    %v654 = vsel %vm209, %v652, -inf
    %655 = vmax.xlane.f32.xlu0 %v654
    %v656 = vpop.xlane.xlu0 %655
    %v657 = vsub.f32 %v652, %v656
    %v658 = vmul.f32 %v657, 1.442695
    %v659 = vpow.pop %v658
    %v660 = vsel %vm209, %v659, 0.0
    %661 = vadd.xlane.f32.xlu0 %v660
    %v662 = vpop.xlane.xlu0 %661
    %v663 = vrcp.pop %v662
    %v664 = vmul.f32 %v659, %v663
    %665 = vrot.lane.b32.xlu0 %v206, 88
    %v666 = vpop.permute.xlu0 %665
    %v669 = vsel %vm209, %v664, 0
    %671 = vmatpush.msra.mxu0 0.0
    %672 = vmatpush.msra.mxu0 0.0
    %673 = vmatpush.msra.mxu0 0.0
    %674 = vmatpush.msra.mxu0 0.0
    %675 = vmatpush.msra.mxu0 0.0
    %676 = vmatpush.msra.mxu0 0.0
    %677 = vmatpush.msra.mxu0 0.0
    %678 = vmatpush.msra.mxu0 0.0
    %679 = vmatpush.msra.mxu0 0.0
    %680 = vmatpush.msra.mxu0 0.0
    %681 = vmatpush.msra.mxu0 0.0
    %682 = vmatpush.msra.mxu0 0.0
    %683 = vmatpush.msra.mxu0 0.0
    %684 = vmatpush.msra.mxu0 0.0
    %685 = vmatpush.msra.mxu0 0.0
    %686 = vmatpush.msra.mxu0 %v666
    %687 = vmatmul.f32.gmra.mxu0 %v669
    %v688 = vpop.f32.mrf.mxu0
    %v689 = vadd.f32 0.0, %v688
    %690 = vdwg.mxu0
    %v692 = vsel %vm209, %v689, 0
    %694 = vmatpush.msra.mxu0 0.0
    %695 = vmatpush.msra.mxu0 0.0
    %696 = vmatpush.msra.mxu0 0.0
    %697 = vmatpush.msra.mxu0 0.0
    %698 = vmatpush.msra.mxu0 0.0
    %699 = vmatpush.msra.mxu0 0.0
    %700 = vmatpush.msra.mxu0 0.0
    %701 = vmatpush.msra.mxu0 0.0
    %702 = vmatpush.msra.mxu0 0.0
    %703 = vmatpush.msra.mxu0 0.0
    %704 = vmatpush.msra.mxu0 0.0
    %705 = vmatpush.msra.mxu0 0.0
    %706 = vmatpush.msra.mxu0 0.0
    %707 = vmatpush.msra.mxu0 0.0
    %708 = vmatpush.msra.mxu0 0.0
    %709 = vmatpush.msra.mxu0 %v130
    %710 = vmatmul.f32.gmra.mxu0 %v692
    %v711 = vpop.f32.mrf.mxu0
    %v712 = vadd.f32 0.0, %v711
    %713 = vdwg.mxu0
    %v715 = vsel %vm209, %v624, 0
    %717 = vmatpush.msra.mxu0 0.0
    %718 = vmatpush.msra.mxu0 0.0
    %719 = vmatpush.msra.mxu0 0.0
    %720 = vmatpush.msra.mxu0 0.0
    %721 = vmatpush.msra.mxu0 0.0
    %722 = vmatpush.msra.mxu0 0.0
    %723 = vmatpush.msra.mxu0 0.0
    %724 = vmatpush.msra.mxu0 0.0
    %725 = vmatpush.msra.mxu0 0.0
    %726 = vmatpush.msra.mxu0 0.0
    %727 = vmatpush.msra.mxu0 0.0
    %728 = vmatpush.msra.mxu0 0.0
    %729 = vmatpush.msra.mxu0 0.0
    %730 = vmatpush.msra.mxu0 0.0
    %731 = vmatpush.msra.mxu0 0.0
    %732 = vmatpush.msra.mxu0 %v129
    %733 = vmatmul.f32.gmra.mxu0 %v715
    %v734 = vpop.f32.mrf.mxu0
    %v735 = vadd.f32 %v712, %v734
    %736 = vdwg.mxu0
    %737 = vrot.lane.b32.xlu0 %v562, 112
    %v738 = vpop.permute.xlu0 %737
    %739 = vrot.lane.b32.xlu0 %v206, 112
    %v740 = vpop.permute.xlu0 %739
    %v741 = vsel %vm209, %v738, 0
    %v743 = vsel %vm209, %v740, 0
    %745 = vmatpush.xpose.msra.mxu0 0.0
    %746 = vmatpush.xpose.msra.mxu0 0.0
    %747 = vmatpush.xpose.msra.mxu0 0.0
    %748 = vmatpush.xpose.msra.mxu0 0.0
    %749 = vmatpush.xpose.msra.mxu0 0.0
    %750 = vmatpush.xpose.msra.mxu0 0.0
    %751 = vmatpush.xpose.msra.mxu0 0.0
    %752 = vmatpush.xpose.msra.mxu0 0.0
    %753 = vmatpush.xpose.msra.mxu0 0.0
    %754 = vmatpush.xpose.msra.mxu0 0.0
    %755 = vmatpush.xpose.msra.mxu0 0.0
    %756 = vmatpush.xpose.msra.mxu0 0.0
    %757 = vmatpush.xpose.msra.mxu0 0.0
    %758 = vmatpush.xpose.msra.mxu0 0.0
    %759 = vmatpush.xpose.msra.mxu0 0.0
    %760 = vmatpush.xpose.msra.mxu0 %v743
    %761 = vmatmul.f32.gmra.mxu0 %v741
    %v762 = vpop.f32.mrf.mxu0
    %v763 = vadd.f32 0.0, %v762
    %764 = vdwg.mxu0
    %v765 = vsel %vm209, %v763, -inf
    %766 = vmax.xlane.f32.xlu0 %v765
    %v767 = vpop.xlane.xlu0 %766
    %v768 = vsub.f32 %v763, %v767
    %v769 = vmul.f32 %v768, 1.442695
    %v770 = vpow.pop %v769
    %v771 = vsel %vm209, %v770, 0.0
    %772 = vadd.xlane.f32.xlu0 %v771
    %v773 = vpop.xlane.xlu0 %772
    %v774 = vrcp.pop %v773
    %v775 = vmul.f32 %v770, %v774
    %776 = vrot.lane.b32.xlu0 %v206, 80
    %v777 = vpop.permute.xlu0 %776
    %v780 = vsel %vm209, %v775, 0
    %782 = vmatpush.msra.mxu0 0.0
    %783 = vmatpush.msra.mxu0 0.0
    %784 = vmatpush.msra.mxu0 0.0
    %785 = vmatpush.msra.mxu0 0.0
    %786 = vmatpush.msra.mxu0 0.0
    %787 = vmatpush.msra.mxu0 0.0
    %788 = vmatpush.msra.mxu0 0.0
    %789 = vmatpush.msra.mxu0 0.0
    %790 = vmatpush.msra.mxu0 0.0
    %791 = vmatpush.msra.mxu0 0.0
    %792 = vmatpush.msra.mxu0 0.0
    %793 = vmatpush.msra.mxu0 0.0
    %794 = vmatpush.msra.mxu0 0.0
    %795 = vmatpush.msra.mxu0 0.0
    %796 = vmatpush.msra.mxu0 0.0
    %797 = vmatpush.msra.mxu0 %v777
    %798 = vmatmul.f32.gmra.mxu0 %v780
    %v799 = vpop.f32.mrf.mxu0
    %v800 = vadd.f32 0.0, %v799
    %801 = vdwg.mxu0
    %v803 = vsel %vm209, %v800, 0
    %805 = vmatpush.msra.mxu0 0.0
    %806 = vmatpush.msra.mxu0 0.0
    %807 = vmatpush.msra.mxu0 0.0
    %808 = vmatpush.msra.mxu0 0.0
    %809 = vmatpush.msra.mxu0 0.0
    %810 = vmatpush.msra.mxu0 0.0
    %811 = vmatpush.msra.mxu0 0.0
    %812 = vmatpush.msra.mxu0 0.0
    %813 = vmatpush.msra.mxu0 0.0
    %814 = vmatpush.msra.mxu0 0.0
    %815 = vmatpush.msra.mxu0 0.0
    %816 = vmatpush.msra.mxu0 0.0
    %817 = vmatpush.msra.mxu0 0.0
    %818 = vmatpush.msra.mxu0 0.0
    %819 = vmatpush.msra.mxu0 0.0
    %820 = vmatpush.msra.mxu0 %v131
    %821 = vmatmul.f32.gmra.mxu0 %v803
    %v822 = vpop.f32.mrf.mxu0
    %v823 = vadd.f32 0.0, %v822
    %824 = vdwg.mxu0
    %v825 = vadd.f32 %v735, %v823
    %826 = vrot.lane.b32.xlu0 %v562, 104
    %v827 = vpop.permute.xlu0 %826
    %828 = vrot.lane.b32.xlu0 %v206, 104
    %v829 = vpop.permute.xlu0 %828
    %v830 = vsel %vm209, %v827, 0
    %v832 = vsel %vm209, %v829, 0
    %834 = vmatpush.xpose.msra.mxu0 0.0
    %835 = vmatpush.xpose.msra.mxu0 0.0
    %836 = vmatpush.xpose.msra.mxu0 0.0
    %837 = vmatpush.xpose.msra.mxu0 0.0
    %838 = vmatpush.xpose.msra.mxu0 0.0
    %839 = vmatpush.xpose.msra.mxu0 0.0
    %840 = vmatpush.xpose.msra.mxu0 0.0
    %841 = vmatpush.xpose.msra.mxu0 0.0
    %842 = vmatpush.xpose.msra.mxu0 0.0
    %843 = vmatpush.xpose.msra.mxu0 0.0
    %844 = vmatpush.xpose.msra.mxu0 0.0
    %845 = vmatpush.xpose.msra.mxu0 0.0
    %846 = vmatpush.xpose.msra.mxu0 0.0
    %847 = vmatpush.xpose.msra.mxu0 0.0
    %848 = vmatpush.xpose.msra.mxu0 0.0
    %849 = vmatpush.xpose.msra.mxu0 %v832
    %850 = vmatmul.f32.gmra.mxu0 %v830
    %v851 = vpop.f32.mrf.mxu0
    %v852 = vadd.f32 0.0, %v851
    %853 = vdwg.mxu0
    %v854 = vsel %vm209, %v852, -inf
    %855 = vmax.xlane.f32.xlu0 %v854
    %v856 = vpop.xlane.xlu0 %855
    %v857 = vsub.f32 %v852, %v856
    %v858 = vmul.f32 %v857, 1.442695
    %v859 = vpow.pop %v858
    %v860 = vsel %vm209, %v859, 0.0
    %861 = vadd.xlane.f32.xlu0 %v860
    %v862 = vpop.xlane.xlu0 %861
    %v863 = vrcp.pop %v862
    %v864 = vmul.f32 %v859, %v863
    %865 = vrot.lane.b32.xlu0 %v206, 72
    %v866 = vpop.permute.xlu0 %865
    %v869 = vsel %vm209, %v864, 0
    %871 = vmatpush.msra.mxu0 0.0
    %872 = vmatpush.msra.mxu0 0.0
    %873 = vmatpush.msra.mxu0 0.0
    %874 = vmatpush.msra.mxu0 0.0
    %875 = vmatpush.msra.mxu0 0.0
    %876 = vmatpush.msra.mxu0 0.0
    %877 = vmatpush.msra.mxu0 0.0
    %878 = vmatpush.msra.mxu0 0.0
    %879 = vmatpush.msra.mxu0 0.0
    %880 = vmatpush.msra.mxu0 0.0
    %881 = vmatpush.msra.mxu0 0.0
    %882 = vmatpush.msra.mxu0 0.0
    %883 = vmatpush.msra.mxu0 0.0
    %884 = vmatpush.msra.mxu0 0.0
    %885 = vmatpush.msra.mxu0 0.0
    %886 = vmatpush.msra.mxu0 %v866
    %887 = vmatmul.f32.gmra.mxu0 %v869
    %v888 = vpop.f32.mrf.mxu0
    %v889 = vadd.f32 0.0, %v888
    %890 = vdwg.mxu0
    %v892 = vsel %vm209, %v889, 0
    %894 = vmatpush.msra.mxu0 0.0
    %895 = vmatpush.msra.mxu0 0.0
    %896 = vmatpush.msra.mxu0 0.0
    %897 = vmatpush.msra.mxu0 0.0
    %898 = vmatpush.msra.mxu0 0.0
    %899 = vmatpush.msra.mxu0 0.0
    %900 = vmatpush.msra.mxu0 0.0
    %901 = vmatpush.msra.mxu0 0.0
    %902 = vmatpush.msra.mxu0 0.0
    %903 = vmatpush.msra.mxu0 0.0
    %904 = vmatpush.msra.mxu0 0.0
    %905 = vmatpush.msra.mxu0 0.0
    %906 = vmatpush.msra.mxu0 0.0
    %907 = vmatpush.msra.mxu0 0.0
    %908 = vmatpush.msra.mxu0 0.0
    %909 = vmatpush.msra.mxu0 %v132
    %910 = vmatmul.f32.gmra.mxu0 %v892
    %v911 = vpop.f32.mrf.mxu0
    %v912 = vadd.f32 0.0, %v911
    %913 = vdwg.mxu0
    %v914 = vadd.f32 %v825, %v912
    %v915 = vperm.slane %v133, 0
    %v916 = vadd.f32 %v561, %v915
    %v917 = vadd.f32 %v914, %v915
    %v918 = vadd.f32 %v122, %v916
    %v919 = vadd.f32 %v123, %v917
    %v920 = vsel %vm135, %v918, 0.0
    %921 = vadd.xlane.f32.xlu0 %v920
    %v922 = vpop.xlane.xlu0 %921
    %v923 = vsel %vm135, %v919, 0.0
    %924 = vadd.xlane.f32.xlu0 %v923
    %v925 = vpop.xlane.xlu0 %924
    %v926 = vrcp.pop 32.0
    %v927 = vmul.f32 32.0, %v926
    %v928 = vsub.f32 1.0, %v927
    %v929 = vmul.f32 %v926, %v928
    %v930 = vadd.f32 %v926, %v929
    %vm931 = vweird.f32 %v926
    %v932 = vsel %vm931, %v926, %v930
    %v933 = vmul.f32 %v922, %v932
    %v934 = vmul.f32 %v925, %v932
    %v935 = vsub.f32 %v918, %v933
    %v936 = vsub.f32 %v919, %v934
    %v937 = vmul.f32 %v935, %v935
    %v938 = vmul.f32 %v936, %v936
    %v939 = vsel %vm135, %v937, 0.0
    %940 = vadd.xlane.f32.xlu0 %v939
    %v941 = vpop.xlane.xlu0 %940
    %v942 = vsel %vm135, %v938, 0.0
    %943 = vadd.xlane.f32.xlu0 %v942
    %v944 = vpop.xlane.xlu0 %943
    %v945 = vmul.f32 %v941, %v932
    %v946 = vmul.f32 %v944, %v932
    %v947 = vadd.f32 %v945, 1e-05
    %v948 = vadd.f32 %v946, 1e-05
    %v949 = vrsqrt.pop %v947
    %v950 = vmul.f32 %v949, %v947
    %v951 = vmul.f32 %v950, %v949
    %v952 = vmul.f32 0.5, %v951
    %v953 = vsub.f32 1.5, %v952
    %v954 = vmul.f32 %v949, %v953
    %vm955 = vweird.f32 %v947
    %vm956 = vweird.f32 %v949
    %vm957 = vmor %vm955, %vm956
    %v958 = vsel %vm957, %v949, %v954
    %v959 = vrsqrt.pop %v948
    %v960 = vmul.f32 %v959, %v948
    %v961 = vmul.f32 %v960, %v959
    %v962 = vmul.f32 0.5, %v961
    %v963 = vsub.f32 1.5, %v962
    %v964 = vmul.f32 %v959, %v963
    %vm965 = vweird.f32 %v948
    %vm966 = vweird.f32 %v959
    %vm967 = vmor %vm965, %vm966
    %v968 = vsel %vm967, %v959, %v964
    %v969 = vmul.f32 %v935, %v958
    %v970 = vmul.f32 %v936, %v968
    %v971 = vld [vmem:[#allocation5 + $0x310] sm:$0x1]
    %v972 = vperm.slane %v971, 0
    %v973 = vmul.f32 %v969, %v972
    %v974 = vmul.f32 %v970, %v972
    %v975 = vld [vmem:[#allocation5 + $0x318] sm:$0x1]
    %v976 = vperm.slane %v975, 0
    %v977 = vadd.f32 %v973, %v976
    %v978 = vadd.f32 %v974, %v976
    %v979 = vld [vmem:[#allocation5 + $0x260] sm:$0xff]
    %v980 = vld [vmem:[#allocation5 + $0x268] sm:$0xff]
    %v981 = vld [vmem:[#allocation5 + $0x270] sm:$0xff]
    %v982 = vld [vmem:[#allocation5 + $0x278] sm:$0xff]
    %v983 = vld [vmem:[#allocation5 + $0x280] sm:$0x1]
    %v984 = vperm.slane %v983, 0
    %v986 = vsel %vm135, %v977, 0
    %v989 = vsel %vm135, %v978, 0
    %991 = vmatpush.msra.mxu0 0.0
    %992 = vmatpush.msra.mxu0 0.0
    %993 = vmatpush.msra.mxu0 0.0
    %994 = vmatpush.msra.mxu0 0.0
    %995 = vmatpush.msra.mxu0 0.0
    %996 = vmatpush.msra.mxu0 0.0
    %997 = vmatpush.msra.mxu0 0.0
    %998 = vmatpush.msra.mxu0 0.0
    %999 = vmatpush.msra.mxu0 0.0
    %1000 = vmatpush.msra.mxu0 0.0
    %1001 = vmatpush.msra.mxu0 0.0
    %1002 = vmatpush.msra.mxu0 0.0
    %1003 = vmatpush.msra.mxu0 %v982
    %1004 = vmatpush.msra.mxu0 %v981
    %1005 = vmatpush.msra.mxu0 %v980
    %1006 = vmatpush.msra.mxu0 %v979
    %1007 = vmatmul.f32.gmra.mxu0 %v986
    %v1008 = vpop.f32.mrf.mxu0
    %v1009 = vadd.f32 %v984, %v1008
    %1010 = vmatmul.f32.gmra.mxu0 %v989
    %v1011 = vpop.f32.mrf.mxu0
    %v1012 = vadd.f32 %v984, %v1011
    %1013 = vdwg.mxu0
    %v1014 = vmax.f32 %v1009, 0.0
    %v1015 = vmax.f32 %v1012, 0.0
    %v1016 = vld [vmem:[#allocation5 + $0x288] sm:$0xff]
    %v1017 = vld [vmem:[#allocation5 + $0x290] sm:$0xff]
    %v1018 = vld [vmem:[#allocation5 + $0x298] sm:$0xff]
    %v1019 = vld [vmem:[#allocation5 + $0x2a0] sm:$0xff]
    %v1020 = vld [vmem:[#allocation5 + $0x2a8] sm:$0xff]
    %v1021 = vld [vmem:[#allocation5 + $0x2b0] sm:$0xff]
    %v1022 = vld [vmem:[#allocation5 + $0x2b8] sm:$0xff]
    %v1023 = vld [vmem:[#allocation5 + $0x2c0] sm:$0xff]
    %v1024 = vld [vmem:[#allocation5 + $0x2c8] sm:$0xff]
    %v1025 = vld [vmem:[#allocation5 + $0x2d0] sm:$0xff]
    %v1026 = vld [vmem:[#allocation5 + $0x2d8] sm:$0xff]
    %v1027 = vld [vmem:[#allocation5 + $0x2e0] sm:$0xff]
    %v1028 = vld [vmem:[#allocation5 + $0x2e8] sm:$0xff]
    %v1029 = vld [vmem:[#allocation5 + $0x2f0] sm:$0xff]
    %v1030 = vld [vmem:[#allocation5 + $0x2f8] sm:$0xff]
    %v1031 = vld [vmem:[#allocation5 + $0x300] sm:$0xff]
    %v1032 = vld [vmem:[#allocation5 + $0x308] sm:$0x1]
    %v1033 = vperm.slane %v1032, 0
    %1034 = vmatpush.msra.mxu0 %v1031
    %1035 = vmatpush.msra.mxu0 %v1030
    %1036 = vmatpush.msra.mxu0 %v1029
    %1037 = vmatpush.msra.mxu0 %v1028
    %1038 = vmatpush.msra.mxu0 %v1027
    %1039 = vmatpush.msra.mxu0 %v1026
    %1040 = vmatpush.msra.mxu0 %v1025
    %1041 = vmatpush.msra.mxu0 %v1024
    %1042 = vmatpush.msra.mxu0 %v1023
    %1043 = vmatpush.msra.mxu0 %v1022
    %1044 = vmatpush.msra.mxu0 %v1021
    %1045 = vmatpush.msra.mxu0 %v1020
    %1046 = vmatpush.msra.mxu0 %v1019
    %1047 = vmatpush.msra.mxu0 %v1018
    %1048 = vmatpush.msra.mxu0 %v1017
    %1049 = vmatpush.msra.mxu0 %v1016
    %1050 = vmatmul.f32.gmra.mxu0 %v1014
    %v1051 = vpop.f32.mrf.mxu0
    %v1052 = vadd.f32 %v1033, %v1051
    %1053 = vmatmul.f32.gmra.mxu0 %v1015
    %v1054 = vpop.f32.mrf.mxu0
    %v1055 = vadd.f32 %v1033, %v1054
    %1056 = vdwg.mxu0
    %v1057 = vadd.f32 %v977, %v1052
    %v1058 = vadd.f32 %v978, %v1055
    %v1059 = vsel %vm135, %v1057, 0.0
    %1060 = vadd.xlane.f32.xlu0 %v1059
    %v1061 = vpop.xlane.xlu0 %1060
    %v1062 = vsel %vm135, %v1058, 0.0
    %1063 = vadd.xlane.f32.xlu0 %v1062
    %v1064 = vpop.xlane.xlu0 %1063
    %v1065 = vmul.f32 %v1061, %v932
    %v1066 = vmul.f32 %v1064, %v932
    %v1067 = vsub.f32 %v1057, %v1065
    %v1068 = vsub.f32 %v1058, %v1066
    %v1069 = vmul.f32 %v1067, %v1067
    %v1070 = vmul.f32 %v1068, %v1068
    %v1071 = vsel %vm135, %v1069, 0.0
    %1072 = vadd.xlane.f32.xlu0 %v1071
    %v1073 = vpop.xlane.xlu0 %1072
    %v1074 = vsel %vm135, %v1070, 0.0
    %1075 = vadd.xlane.f32.xlu0 %v1074
    %v1076 = vpop.xlane.xlu0 %1075
    %v1077 = vmul.f32 %v1073, %v932
    %v1078 = vmul.f32 %v1076, %v932
    %v1079 = vadd.f32 %v1077, 1e-05
    %v1080 = vadd.f32 %v1078, 1e-05
    %v1081 = vrsqrt.pop %v1079
    %v1082 = vmul.f32 %v1081, %v1079
    %v1083 = vmul.f32 %v1082, %v1081
    %v1084 = vmul.f32 0.5, %v1083
    %v1085 = vsub.f32 1.5, %v1084
    %v1086 = vmul.f32 %v1081, %v1085
    %vm1087 = vweird.f32 %v1079
    %vm1088 = vweird.f32 %v1081
    %vm1089 = vmor %vm1087, %vm1088
    %v1090 = vsel %vm1089, %v1081, %v1086
    %v1091 = vrsqrt.pop %v1080
    %v1092 = vmul.f32 %v1091, %v1080
    %v1093 = vmul.f32 %v1092, %v1091
    %v1094 = vmul.f32 0.5, %v1093
    %v1095 = vsub.f32 1.5, %v1094
    %v1096 = vmul.f32 %v1091, %v1095
    %vm1097 = vweird.f32 %v1080
    %vm1098 = vweird.f32 %v1091
    %vm1099 = vmor %vm1097, %vm1098
    %v1100 = vsel %vm1099, %v1091, %v1096
    %v1101 = vmul.f32 %v1067, %v1090
    %v1102 = vmul.f32 %v1068, %v1100
    %v1103 = vld [vmem:[#allocation5 + $0x320] sm:$0x1]
    %v1104 = vperm.slane %v1103, 0
    %v1105 = vmul.f32 %v1101, %v1104
    %v1106 = vmul.f32 %v1102, %v1104
    %v1107 = vld [vmem:[#allocation5 + $0x328] sm:$0x1]
    %v1108 = vperm.slane %v1107, 0
    %v1109 = vadd.f32 %v1105, %v1108
    %v1110 = vadd.f32 %v1106, %v1108
    %v1111 = vld [vmem:[#allocation5 + $0x330] sm:$0xff]
    %v1112 = vld [vmem:[#allocation5 + $0x338] sm:$0xff]
    %v1113 = vld [vmem:[#allocation5 + $0x340] sm:$0xff]
    %v1114 = vld [vmem:[#allocation5 + $0x348] sm:$0xff]
    %v1115 = vld [vmem:[#allocation5 + $0x350] sm:$0x1]
    %v1116 = vld [vmem:[#allocation5 + $0x358] sm:$0xff]
    %v1117 = vld [vmem:[#allocation5 + $0x360] sm:$0xff]
    %v1118 = vld [vmem:[#allocation5 + $0x368] sm:$0xff]
    %v1119 = vld [vmem:[#allocation5 + $0x370] sm:$0xff]
    %v1120 = vld [vmem:[#allocation5 + $0x378] sm:$0x1]
    %v1121 = vperm.slane %v1115, 0
    %v1123 = vsel %vm135, %v1109, 0
    %v1126 = vsel %vm135, %v1110, 0
    %1128 = vmatpush.msra.mxu0 0.0
    %1129 = vmatpush.msra.mxu0 0.0
    %1130 = vmatpush.msra.mxu0 0.0
    %1131 = vmatpush.msra.mxu0 0.0
    %1132 = vmatpush.msra.mxu0 0.0
    %1133 = vmatpush.msra.mxu0 0.0
    %1134 = vmatpush.msra.mxu0 0.0
    %1135 = vmatpush.msra.mxu0 0.0
    %1136 = vmatpush.msra.mxu0 0.0
    %1137 = vmatpush.msra.mxu0 0.0
    %1138 = vmatpush.msra.mxu0 0.0
    %1139 = vmatpush.msra.mxu0 0.0
    %1140 = vmatpush.msra.mxu0 %v1114
    %1141 = vmatpush.msra.mxu0 %v1113
    %1142 = vmatpush.msra.mxu0 %v1112
    %1143 = vmatpush.msra.mxu0 %v1111
    %1144 = vmatmul.f32.gmra.mxu0 %v1123
    %v1145 = vpop.f32.mrf.mxu0
    %v1146 = vadd.f32 %v1121, %v1145
    %1147 = vmatmul.f32.gmra.mxu0 %v1126
    %v1148 = vpop.f32.mrf.mxu0
    %v1149 = vadd.f32 %v1121, %v1148
    %1150 = vdwg.mxu0
    %1155 = vrot.lane.b32.xlu0 %v1111, 96
    %v1156 = vpop.permute.xlu0 %1155
    %1157 = vrot.lane.b32.xlu0 %v1112, 96
    %v1158 = vpop.permute.xlu0 %1157
    %1159 = vrot.lane.b32.xlu0 %v1113, 96
    %v1160 = vpop.permute.xlu0 %1159
    %1161 = vrot.lane.b32.xlu0 %v1114, 96
    %v1162 = vpop.permute.xlu0 %1161
    %1168 = vrot.lane.b32.xlu0 %v1121, 96
    %v1169 = vpop.permute.xlu0 %1168
    %1171 = vmatpush.msra.mxu0 0.0
    %1172 = vmatpush.msra.mxu0 0.0
    %1173 = vmatpush.msra.mxu0 0.0
    %1174 = vmatpush.msra.mxu0 0.0
    %1175 = vmatpush.msra.mxu0 0.0
    %1176 = vmatpush.msra.mxu0 0.0
    %1177 = vmatpush.msra.mxu0 0.0
    %1178 = vmatpush.msra.mxu0 0.0
    %1179 = vmatpush.msra.mxu0 0.0
    %1180 = vmatpush.msra.mxu0 0.0
    %1181 = vmatpush.msra.mxu0 0.0
    %1182 = vmatpush.msra.mxu0 0.0
    %1183 = vmatpush.msra.mxu0 %v1162
    %1184 = vmatpush.msra.mxu0 %v1160
    %1185 = vmatpush.msra.mxu0 %v1158
    %1186 = vmatpush.msra.mxu0 %v1156
    %1187 = vmatmul.f32.gmra.mxu0 %v1123
    %v1188 = vpop.f32.mrf.mxu0
    %v1189 = vadd.f32 %v1169, %v1188
    %1190 = vmatmul.f32.gmra.mxu0 %v1126
    %v1191 = vpop.f32.mrf.mxu0
    %v1192 = vadd.f32 %v1169, %v1191
    %1193 = vdwg.mxu0
    %v1194 = vmul.f32 %v1146, 0.35355338
    %v1196 = vsel %vm209, %v1194, 0
    %v1199 = vsel %vm209, %v1189, 0
    %1201 = vmatpush.xpose.msra.mxu0 0.0
    %1202 = vmatpush.xpose.msra.mxu0 0.0
    %1203 = vmatpush.xpose.msra.mxu0 0.0
    %1204 = vmatpush.xpose.msra.mxu0 0.0
    %1205 = vmatpush.xpose.msra.mxu0 0.0
    %1206 = vmatpush.xpose.msra.mxu0 0.0
    %1207 = vmatpush.xpose.msra.mxu0 0.0
    %1208 = vmatpush.xpose.msra.mxu0 0.0
    %1209 = vmatpush.xpose.msra.mxu0 0.0
    %1210 = vmatpush.xpose.msra.mxu0 0.0
    %1211 = vmatpush.xpose.msra.mxu0 0.0
    %1212 = vmatpush.xpose.msra.mxu0 0.0
    %1213 = vmatpush.xpose.msra.mxu0 0.0
    %1214 = vmatpush.xpose.msra.mxu0 0.0
    %1215 = vmatpush.xpose.msra.mxu0 0.0
    %1216 = vmatpush.xpose.msra.mxu0 %v1199
    %1217 = vmatmul.f32.gmra.mxu0 %v1196
    %v1218 = vpop.f32.mrf.mxu0
    %v1219 = vadd.f32 0.0, %v1218
    %1220 = vdwg.mxu0
    %v1221 = vsel %vm209, %v1219, -inf
    %1222 = vmax.xlane.f32.xlu0 %v1221
    %v1223 = vpop.xlane.xlu0 %1222
    %v1224 = vsub.f32 %v1219, %v1223
    %v1225 = vmul.f32 %v1224, 1.442695
    %v1226 = vpow.pop %v1225
    %v1227 = vsel %vm209, %v1226, 0.0
    %1228 = vadd.xlane.f32.xlu0 %v1227
    %v1229 = vpop.xlane.xlu0 %1228
    %v1230 = vrcp.pop %v1229
    %v1231 = vmul.f32 %v1226, %v1230
    %1232 = vrot.lane.b32.xlu0 %v1189, 96
    %v1233 = vpop.permute.xlu0 %1232
    %v1236 = vsel %vm209, %v1231, 0
    %1238 = vmatpush.msra.mxu0 0.0
    %1239 = vmatpush.msra.mxu0 0.0
    %1240 = vmatpush.msra.mxu0 0.0
    %1241 = vmatpush.msra.mxu0 0.0
    %1242 = vmatpush.msra.mxu0 0.0
    %1243 = vmatpush.msra.mxu0 0.0
    %1244 = vmatpush.msra.mxu0 0.0
    %1245 = vmatpush.msra.mxu0 0.0
    %1246 = vmatpush.msra.mxu0 0.0
    %1247 = vmatpush.msra.mxu0 0.0
    %1248 = vmatpush.msra.mxu0 0.0
    %1249 = vmatpush.msra.mxu0 0.0
    %1250 = vmatpush.msra.mxu0 0.0
    %1251 = vmatpush.msra.mxu0 0.0
    %1252 = vmatpush.msra.mxu0 0.0
    %1253 = vmatpush.msra.mxu0 %v1233
    %1254 = vmatmul.f32.gmra.mxu0 %v1236
    %v1255 = vpop.f32.mrf.mxu0
    %v1256 = vadd.f32 0.0, %v1255
    %1257 = vdwg.mxu0
    %1258 = vrot.lane.b32.xlu0 %v1194, 120
    %v1259 = vpop.permute.xlu0 %1258
    %1260 = vrot.lane.b32.xlu0 %v1189, 120
    %v1261 = vpop.permute.xlu0 %1260
    %v1262 = vsel %vm209, %v1259, 0
    %v1264 = vsel %vm209, %v1261, 0
    %1266 = vmatpush.xpose.msra.mxu0 0.0
    %1267 = vmatpush.xpose.msra.mxu0 0.0
    %1268 = vmatpush.xpose.msra.mxu0 0.0
    %1269 = vmatpush.xpose.msra.mxu0 0.0
    %1270 = vmatpush.xpose.msra.mxu0 0.0
    %1271 = vmatpush.xpose.msra.mxu0 0.0
    %1272 = vmatpush.xpose.msra.mxu0 0.0
    %1273 = vmatpush.xpose.msra.mxu0 0.0
    %1274 = vmatpush.xpose.msra.mxu0 0.0
    %1275 = vmatpush.xpose.msra.mxu0 0.0
    %1276 = vmatpush.xpose.msra.mxu0 0.0
    %1277 = vmatpush.xpose.msra.mxu0 0.0
    %1278 = vmatpush.xpose.msra.mxu0 0.0
    %1279 = vmatpush.xpose.msra.mxu0 0.0
    %1280 = vmatpush.xpose.msra.mxu0 0.0
    %1281 = vmatpush.xpose.msra.mxu0 %v1264
    %1282 = vmatmul.f32.gmra.mxu0 %v1262
    %v1283 = vpop.f32.mrf.mxu0
    %v1284 = vadd.f32 0.0, %v1283
    %1285 = vdwg.mxu0
    %v1286 = vsel %vm209, %v1284, -inf
    %1287 = vmax.xlane.f32.xlu0 %v1286
    %v1288 = vpop.xlane.xlu0 %1287
    %v1289 = vsub.f32 %v1284, %v1288
    %v1290 = vmul.f32 %v1289, 1.442695
    %v1291 = vpow.pop %v1290
    %v1292 = vsel %vm209, %v1291, 0.0
    %1293 = vadd.xlane.f32.xlu0 %v1292
    %v1294 = vpop.xlane.xlu0 %1293
    %v1295 = vrcp.pop %v1294
    %v1296 = vmul.f32 %v1291, %v1295
    %1297 = vrot.lane.b32.xlu0 %v1189, 88
    %v1298 = vpop.permute.xlu0 %1297
    %v1301 = vsel %vm209, %v1296, 0
    %1303 = vmatpush.msra.mxu0 0.0
    %1304 = vmatpush.msra.mxu0 0.0
    %1305 = vmatpush.msra.mxu0 0.0
    %1306 = vmatpush.msra.mxu0 0.0
    %1307 = vmatpush.msra.mxu0 0.0
    %1308 = vmatpush.msra.mxu0 0.0
    %1309 = vmatpush.msra.mxu0 0.0
    %1310 = vmatpush.msra.mxu0 0.0
    %1311 = vmatpush.msra.mxu0 0.0
    %1312 = vmatpush.msra.mxu0 0.0
    %1313 = vmatpush.msra.mxu0 0.0
    %1314 = vmatpush.msra.mxu0 0.0
    %1315 = vmatpush.msra.mxu0 0.0
    %1316 = vmatpush.msra.mxu0 0.0
    %1317 = vmatpush.msra.mxu0 0.0
    %1318 = vmatpush.msra.mxu0 %v1298
    %1319 = vmatmul.f32.gmra.mxu0 %v1301
    %v1320 = vpop.f32.mrf.mxu0
    %v1321 = vadd.f32 0.0, %v1320
    %1322 = vdwg.mxu0
    %v1324 = vsel %vm209, %v1321, 0
    %1326 = vmatpush.msra.mxu0 0.0
    %1327 = vmatpush.msra.mxu0 0.0
    %1328 = vmatpush.msra.mxu0 0.0
    %1329 = vmatpush.msra.mxu0 0.0
    %1330 = vmatpush.msra.mxu0 0.0
    %1331 = vmatpush.msra.mxu0 0.0
    %1332 = vmatpush.msra.mxu0 0.0
    %1333 = vmatpush.msra.mxu0 0.0
    %1334 = vmatpush.msra.mxu0 0.0
    %1335 = vmatpush.msra.mxu0 0.0
    %1336 = vmatpush.msra.mxu0 0.0
    %1337 = vmatpush.msra.mxu0 0.0
    %1338 = vmatpush.msra.mxu0 0.0
    %1339 = vmatpush.msra.mxu0 0.0
    %1340 = vmatpush.msra.mxu0 0.0
    %1341 = vmatpush.msra.mxu0 %v1117
    %1342 = vmatmul.f32.gmra.mxu0 %v1324
    %v1343 = vpop.f32.mrf.mxu0
    %v1344 = vadd.f32 0.0, %v1343
    %1345 = vdwg.mxu0
    %v1347 = vsel %vm209, %v1256, 0
    %1349 = vmatpush.msra.mxu0 0.0
    %1350 = vmatpush.msra.mxu0 0.0
    %1351 = vmatpush.msra.mxu0 0.0
    %1352 = vmatpush.msra.mxu0 0.0
    %1353 = vmatpush.msra.mxu0 0.0
    %1354 = vmatpush.msra.mxu0 0.0
    %1355 = vmatpush.msra.mxu0 0.0
    %1356 = vmatpush.msra.mxu0 0.0
    %1357 = vmatpush.msra.mxu0 0.0
    %1358 = vmatpush.msra.mxu0 0.0
    %1359 = vmatpush.msra.mxu0 0.0
    %1360 = vmatpush.msra.mxu0 0.0
    %1361 = vmatpush.msra.mxu0 0.0
    %1362 = vmatpush.msra.mxu0 0.0
    %1363 = vmatpush.msra.mxu0 0.0
    %1364 = vmatpush.msra.mxu0 %v1116
    %1365 = vmatmul.f32.gmra.mxu0 %v1347
    %v1366 = vpop.f32.mrf.mxu0
    %v1367 = vadd.f32 %v1344, %v1366
    %1368 = vdwg.mxu0
    %1369 = vrot.lane.b32.xlu0 %v1194, 112
    %v1370 = vpop.permute.xlu0 %1369
    %1371 = vrot.lane.b32.xlu0 %v1189, 112
    %v1372 = vpop.permute.xlu0 %1371
    %v1373 = vsel %vm209, %v1370, 0
    %v1375 = vsel %vm209, %v1372, 0
    %1377 = vmatpush.xpose.msra.mxu0 0.0
    %1378 = vmatpush.xpose.msra.mxu0 0.0
    %1379 = vmatpush.xpose.msra.mxu0 0.0
    %1380 = vmatpush.xpose.msra.mxu0 0.0
    %1381 = vmatpush.xpose.msra.mxu0 0.0
    %1382 = vmatpush.xpose.msra.mxu0 0.0
    %1383 = vmatpush.xpose.msra.mxu0 0.0
    %1384 = vmatpush.xpose.msra.mxu0 0.0
    %1385 = vmatpush.xpose.msra.mxu0 0.0
    %1386 = vmatpush.xpose.msra.mxu0 0.0
    %1387 = vmatpush.xpose.msra.mxu0 0.0
    %1388 = vmatpush.xpose.msra.mxu0 0.0
    %1389 = vmatpush.xpose.msra.mxu0 0.0
    %1390 = vmatpush.xpose.msra.mxu0 0.0
    %1391 = vmatpush.xpose.msra.mxu0 0.0
    %1392 = vmatpush.xpose.msra.mxu0 %v1375
    %1393 = vmatmul.f32.gmra.mxu0 %v1373
    %v1394 = vpop.f32.mrf.mxu0
    %v1395 = vadd.f32 0.0, %v1394
    %1396 = vdwg.mxu0
    %v1397 = vsel %vm209, %v1395, -inf
    %1398 = vmax.xlane.f32.xlu0 %v1397
    %v1399 = vpop.xlane.xlu0 %1398
    %v1400 = vsub.f32 %v1395, %v1399
    %v1401 = vmul.f32 %v1400, 1.442695
    %v1402 = vpow.pop %v1401
    %v1403 = vsel %vm209, %v1402, 0.0
    %1404 = vadd.xlane.f32.xlu0 %v1403
    %v1405 = vpop.xlane.xlu0 %1404
    %v1406 = vrcp.pop %v1405
    %v1407 = vmul.f32 %v1402, %v1406
    %1408 = vrot.lane.b32.xlu0 %v1189, 80
    %v1409 = vpop.permute.xlu0 %1408
    %v1412 = vsel %vm209, %v1407, 0
    %1414 = vmatpush.msra.mxu0 0.0
    %1415 = vmatpush.msra.mxu0 0.0
    %1416 = vmatpush.msra.mxu0 0.0
    %1417 = vmatpush.msra.mxu0 0.0
    %1418 = vmatpush.msra.mxu0 0.0
    %1419 = vmatpush.msra.mxu0 0.0
    %1420 = vmatpush.msra.mxu0 0.0
    %1421 = vmatpush.msra.mxu0 0.0
    %1422 = vmatpush.msra.mxu0 0.0
    %1423 = vmatpush.msra.mxu0 0.0
    %1424 = vmatpush.msra.mxu0 0.0
    %1425 = vmatpush.msra.mxu0 0.0
    %1426 = vmatpush.msra.mxu0 0.0
    %1427 = vmatpush.msra.mxu0 0.0
    %1428 = vmatpush.msra.mxu0 0.0
    %1429 = vmatpush.msra.mxu0 %v1409
    %1430 = vmatmul.f32.gmra.mxu0 %v1412
    %v1431 = vpop.f32.mrf.mxu0
    %v1432 = vadd.f32 0.0, %v1431
    %1433 = vdwg.mxu0
    %v1435 = vsel %vm209, %v1432, 0
    %1437 = vmatpush.msra.mxu0 0.0
    %1438 = vmatpush.msra.mxu0 0.0
    %1439 = vmatpush.msra.mxu0 0.0
    %1440 = vmatpush.msra.mxu0 0.0
    %1441 = vmatpush.msra.mxu0 0.0
    %1442 = vmatpush.msra.mxu0 0.0
    %1443 = vmatpush.msra.mxu0 0.0
    %1444 = vmatpush.msra.mxu0 0.0
    %1445 = vmatpush.msra.mxu0 0.0
    %1446 = vmatpush.msra.mxu0 0.0
    %1447 = vmatpush.msra.mxu0 0.0
    %1448 = vmatpush.msra.mxu0 0.0
    %1449 = vmatpush.msra.mxu0 0.0
    %1450 = vmatpush.msra.mxu0 0.0
    %1451 = vmatpush.msra.mxu0 0.0
    %1452 = vmatpush.msra.mxu0 %v1118
    %1453 = vmatmul.f32.gmra.mxu0 %v1435
    %v1454 = vpop.f32.mrf.mxu0
    %v1455 = vadd.f32 0.0, %v1454
    %1456 = vdwg.mxu0
    %v1457 = vadd.f32 %v1367, %v1455
    %1458 = vrot.lane.b32.xlu0 %v1194, 104
    %v1459 = vpop.permute.xlu0 %1458
    %1460 = vrot.lane.b32.xlu0 %v1189, 104
    %v1461 = vpop.permute.xlu0 %1460
    %v1462 = vsel %vm209, %v1459, 0
    %v1464 = vsel %vm209, %v1461, 0
    %1466 = vmatpush.xpose.msra.mxu0 0.0
    %1467 = vmatpush.xpose.msra.mxu0 0.0
    %1468 = vmatpush.xpose.msra.mxu0 0.0
    %1469 = vmatpush.xpose.msra.mxu0 0.0
    %1470 = vmatpush.xpose.msra.mxu0 0.0
    %1471 = vmatpush.xpose.msra.mxu0 0.0
    %1472 = vmatpush.xpose.msra.mxu0 0.0
    %1473 = vmatpush.xpose.msra.mxu0 0.0
    %1474 = vmatpush.xpose.msra.mxu0 0.0
    %1475 = vmatpush.xpose.msra.mxu0 0.0
    %1476 = vmatpush.xpose.msra.mxu0 0.0
    %1477 = vmatpush.xpose.msra.mxu0 0.0
    %1478 = vmatpush.xpose.msra.mxu0 0.0
    %1479 = vmatpush.xpose.msra.mxu0 0.0
    %1480 = vmatpush.xpose.msra.mxu0 0.0
    %1481 = vmatpush.xpose.msra.mxu0 %v1464
    %1482 = vmatmul.f32.gmra.mxu0 %v1462
    %v1483 = vpop.f32.mrf.mxu0
    %v1484 = vadd.f32 0.0, %v1483
    %1485 = vdwg.mxu0
    %v1486 = vsel %vm209, %v1484, -inf
    %1487 = vmax.xlane.f32.xlu0 %v1486
    %v1488 = vpop.xlane.xlu0 %1487
    %v1489 = vsub.f32 %v1484, %v1488
    %v1490 = vmul.f32 %v1489, 1.442695
    %v1491 = vpow.pop %v1490
    %v1492 = vsel %vm209, %v1491, 0.0
    %1493 = vadd.xlane.f32.xlu0 %v1492
    %v1494 = vpop.xlane.xlu0 %1493
    %v1495 = vrcp.pop %v1494
    %v1496 = vmul.f32 %v1491, %v1495
    %1497 = vrot.lane.b32.xlu0 %v1189, 72
    %v1498 = vpop.permute.xlu0 %1497
    %v1501 = vsel %vm209, %v1496, 0
    %1503 = vmatpush.msra.mxu0 0.0
    %1504 = vmatpush.msra.mxu0 0.0
    %1505 = vmatpush.msra.mxu0 0.0
    %1506 = vmatpush.msra.mxu0 0.0
    %1507 = vmatpush.msra.mxu0 0.0
    %1508 = vmatpush.msra.mxu0 0.0
    %1509 = vmatpush.msra.mxu0 0.0
    %1510 = vmatpush.msra.mxu0 0.0
    %1511 = vmatpush.msra.mxu0 0.0
    %1512 = vmatpush.msra.mxu0 0.0
    %1513 = vmatpush.msra.mxu0 0.0
    %1514 = vmatpush.msra.mxu0 0.0
    %1515 = vmatpush.msra.mxu0 0.0
    %1516 = vmatpush.msra.mxu0 0.0
    %1517 = vmatpush.msra.mxu0 0.0
    %1518 = vmatpush.msra.mxu0 %v1498
    %1519 = vmatmul.f32.gmra.mxu0 %v1501
    %v1520 = vpop.f32.mrf.mxu0
    %v1521 = vadd.f32 0.0, %v1520
    %1522 = vdwg.mxu0
    %v1524 = vsel %vm209, %v1521, 0
    %1526 = vmatpush.msra.mxu0 0.0
    %1527 = vmatpush.msra.mxu0 0.0
    %1528 = vmatpush.msra.mxu0 0.0
    %1529 = vmatpush.msra.mxu0 0.0
    %1530 = vmatpush.msra.mxu0 0.0
    %1531 = vmatpush.msra.mxu0 0.0
    %1532 = vmatpush.msra.mxu0 0.0
    %1533 = vmatpush.msra.mxu0 0.0
    %1534 = vmatpush.msra.mxu0 0.0
    %1535 = vmatpush.msra.mxu0 0.0
    %1536 = vmatpush.msra.mxu0 0.0
    %1537 = vmatpush.msra.mxu0 0.0
    %1538 = vmatpush.msra.mxu0 0.0
    %1539 = vmatpush.msra.mxu0 0.0
    %1540 = vmatpush.msra.mxu0 0.0
    %1541 = vmatpush.msra.mxu0 %v1119
    %1542 = vmatmul.f32.gmra.mxu0 %v1524
    %v1543 = vpop.f32.mrf.mxu0
    %v1544 = vadd.f32 0.0, %v1543
    %1545 = vdwg.mxu0
    %v1546 = vadd.f32 %v1457, %v1544
    %v1547 = vmul.f32 %v1149, 0.35355338
    %v1549 = vsel %vm209, %v1547, 0
    %v1552 = vsel %vm209, %v1192, 0
    %1554 = vmatpush.xpose.msra.mxu0 0.0
    %1555 = vmatpush.xpose.msra.mxu0 0.0
    %1556 = vmatpush.xpose.msra.mxu0 0.0
    %1557 = vmatpush.xpose.msra.mxu0 0.0
    %1558 = vmatpush.xpose.msra.mxu0 0.0
    %1559 = vmatpush.xpose.msra.mxu0 0.0
    %1560 = vmatpush.xpose.msra.mxu0 0.0
    %1561 = vmatpush.xpose.msra.mxu0 0.0
    %1562 = vmatpush.xpose.msra.mxu0 0.0
    %1563 = vmatpush.xpose.msra.mxu0 0.0
    %1564 = vmatpush.xpose.msra.mxu0 0.0
    %1565 = vmatpush.xpose.msra.mxu0 0.0
    %1566 = vmatpush.xpose.msra.mxu0 0.0
    %1567 = vmatpush.xpose.msra.mxu0 0.0
    %1568 = vmatpush.xpose.msra.mxu0 0.0
    %1569 = vmatpush.xpose.msra.mxu0 %v1552
    %1570 = vmatmul.f32.gmra.mxu0 %v1549
    %v1571 = vpop.f32.mrf.mxu0
    %v1572 = vadd.f32 0.0, %v1571
    %1573 = vdwg.mxu0
    %v1574 = vsel %vm209, %v1572, -inf
    %1575 = vmax.xlane.f32.xlu0 %v1574
    %v1576 = vpop.xlane.xlu0 %1575
    %v1577 = vsub.f32 %v1572, %v1576
    %v1578 = vmul.f32 %v1577, 1.442695
    %v1579 = vpow.pop %v1578
    %v1580 = vsel %vm209, %v1579, 0.0
    %1581 = vadd.xlane.f32.xlu0 %v1580
    %v1582 = vpop.xlane.xlu0 %1581
    %v1583 = vrcp.pop %v1582
    %v1584 = vmul.f32 %v1579, %v1583
    %1585 = vrot.lane.b32.xlu0 %v1192, 96
    %v1586 = vpop.permute.xlu0 %1585
    %v1589 = vsel %vm209, %v1584, 0
    %1591 = vmatpush.msra.mxu0 0.0
    %1592 = vmatpush.msra.mxu0 0.0
    %1593 = vmatpush.msra.mxu0 0.0
    %1594 = vmatpush.msra.mxu0 0.0
    %1595 = vmatpush.msra.mxu0 0.0
    %1596 = vmatpush.msra.mxu0 0.0
    %1597 = vmatpush.msra.mxu0 0.0
    %1598 = vmatpush.msra.mxu0 0.0
    %1599 = vmatpush.msra.mxu0 0.0
    %1600 = vmatpush.msra.mxu0 0.0
    %1601 = vmatpush.msra.mxu0 0.0
    %1602 = vmatpush.msra.mxu0 0.0
    %1603 = vmatpush.msra.mxu0 0.0
    %1604 = vmatpush.msra.mxu0 0.0
    %1605 = vmatpush.msra.mxu0 0.0
    %1606 = vmatpush.msra.mxu0 %v1586
    %1607 = vmatmul.f32.gmra.mxu0 %v1589
    %v1608 = vpop.f32.mrf.mxu0
    %v1609 = vadd.f32 0.0, %v1608
    %1610 = vdwg.mxu0
    %1611 = vrot.lane.b32.xlu0 %v1547, 120
    %v1612 = vpop.permute.xlu0 %1611
    %1613 = vrot.lane.b32.xlu0 %v1192, 120
    %v1614 = vpop.permute.xlu0 %1613
    %v1615 = vsel %vm209, %v1612, 0
    %v1617 = vsel %vm209, %v1614, 0
    %1619 = vmatpush.xpose.msra.mxu0 0.0
    %1620 = vmatpush.xpose.msra.mxu0 0.0
    %1621 = vmatpush.xpose.msra.mxu0 0.0
    %1622 = vmatpush.xpose.msra.mxu0 0.0
    %1623 = vmatpush.xpose.msra.mxu0 0.0
    %1624 = vmatpush.xpose.msra.mxu0 0.0
    %1625 = vmatpush.xpose.msra.mxu0 0.0
    %1626 = vmatpush.xpose.msra.mxu0 0.0
    %1627 = vmatpush.xpose.msra.mxu0 0.0
    %1628 = vmatpush.xpose.msra.mxu0 0.0
    %1629 = vmatpush.xpose.msra.mxu0 0.0
    %1630 = vmatpush.xpose.msra.mxu0 0.0
    %1631 = vmatpush.xpose.msra.mxu0 0.0
    %1632 = vmatpush.xpose.msra.mxu0 0.0
    %1633 = vmatpush.xpose.msra.mxu0 0.0
    %1634 = vmatpush.xpose.msra.mxu0 %v1617
    %1635 = vmatmul.f32.gmra.mxu0 %v1615
    %v1636 = vpop.f32.mrf.mxu0
    %v1637 = vadd.f32 0.0, %v1636
    %1638 = vdwg.mxu0
    %v1639 = vsel %vm209, %v1637, -inf
    %1640 = vmax.xlane.f32.xlu0 %v1639
    %v1641 = vpop.xlane.xlu0 %1640
    %v1642 = vsub.f32 %v1637, %v1641
    %v1643 = vmul.f32 %v1642, 1.442695
    %v1644 = vpow.pop %v1643
    %v1645 = vsel %vm209, %v1644, 0.0
    %1646 = vadd.xlane.f32.xlu0 %v1645
    %v1647 = vpop.xlane.xlu0 %1646
    %v1648 = vrcp.pop %v1647
    %v1649 = vmul.f32 %v1644, %v1648
    %1650 = vrot.lane.b32.xlu0 %v1192, 88
    %v1651 = vpop.permute.xlu0 %1650
    %v1654 = vsel %vm209, %v1649, 0
    %1656 = vmatpush.msra.mxu0 0.0
    %1657 = vmatpush.msra.mxu0 0.0
    %1658 = vmatpush.msra.mxu0 0.0
    %1659 = vmatpush.msra.mxu0 0.0
    %1660 = vmatpush.msra.mxu0 0.0
    %1661 = vmatpush.msra.mxu0 0.0
    %1662 = vmatpush.msra.mxu0 0.0
    %1663 = vmatpush.msra.mxu0 0.0
    %1664 = vmatpush.msra.mxu0 0.0
    %1665 = vmatpush.msra.mxu0 0.0
    %1666 = vmatpush.msra.mxu0 0.0
    %1667 = vmatpush.msra.mxu0 0.0
    %1668 = vmatpush.msra.mxu0 0.0
    %1669 = vmatpush.msra.mxu0 0.0
    %1670 = vmatpush.msra.mxu0 0.0
    %1671 = vmatpush.msra.mxu0 %v1651
    %1672 = vmatmul.f32.gmra.mxu0 %v1654
    %v1673 = vpop.f32.mrf.mxu0
    %v1674 = vadd.f32 0.0, %v1673
    %1675 = vdwg.mxu0
    %v1677 = vsel %vm209, %v1674, 0
    %1679 = vmatpush.msra.mxu0 0.0
    %1680 = vmatpush.msra.mxu0 0.0
    %1681 = vmatpush.msra.mxu0 0.0
    %1682 = vmatpush.msra.mxu0 0.0
    %1683 = vmatpush.msra.mxu0 0.0
    %1684 = vmatpush.msra.mxu0 0.0
    %1685 = vmatpush.msra.mxu0 0.0
    %1686 = vmatpush.msra.mxu0 0.0
    %1687 = vmatpush.msra.mxu0 0.0
    %1688 = vmatpush.msra.mxu0 0.0
    %1689 = vmatpush.msra.mxu0 0.0
    %1690 = vmatpush.msra.mxu0 0.0
    %1691 = vmatpush.msra.mxu0 0.0
    %1692 = vmatpush.msra.mxu0 0.0
    %1693 = vmatpush.msra.mxu0 0.0
    %1694 = vmatpush.msra.mxu0 %v1117
    %1695 = vmatmul.f32.gmra.mxu0 %v1677
    %v1696 = vpop.f32.mrf.mxu0
    %v1697 = vadd.f32 0.0, %v1696
    %1698 = vdwg.mxu0
    %v1700 = vsel %vm209, %v1609, 0
    %1702 = vmatpush.msra.mxu0 0.0
    %1703 = vmatpush.msra.mxu0 0.0
    %1704 = vmatpush.msra.mxu0 0.0
    %1705 = vmatpush.msra.mxu0 0.0
    %1706 = vmatpush.msra.mxu0 0.0
    %1707 = vmatpush.msra.mxu0 0.0
    %1708 = vmatpush.msra.mxu0 0.0
    %1709 = vmatpush.msra.mxu0 0.0
    %1710 = vmatpush.msra.mxu0 0.0
    %1711 = vmatpush.msra.mxu0 0.0
    %1712 = vmatpush.msra.mxu0 0.0
    %1713 = vmatpush.msra.mxu0 0.0
    %1714 = vmatpush.msra.mxu0 0.0
    %1715 = vmatpush.msra.mxu0 0.0
    %1716 = vmatpush.msra.mxu0 0.0
    %1717 = vmatpush.msra.mxu0 %v1116
    %1718 = vmatmul.f32.gmra.mxu0 %v1700
    %v1719 = vpop.f32.mrf.mxu0
    %v1720 = vadd.f32 %v1697, %v1719
    %1721 = vdwg.mxu0
    %1722 = vrot.lane.b32.xlu0 %v1547, 112
    %v1723 = vpop.permute.xlu0 %1722
    %1724 = vrot.lane.b32.xlu0 %v1192, 112
    %v1725 = vpop.permute.xlu0 %1724
    %v1726 = vsel %vm209, %v1723, 0
    %v1728 = vsel %vm209, %v1725, 0
    %1730 = vmatpush.xpose.msra.mxu0 0.0
    %1731 = vmatpush.xpose.msra.mxu0 0.0
    %1732 = vmatpush.xpose.msra.mxu0 0.0
    %1733 = vmatpush.xpose.msra.mxu0 0.0
    %1734 = vmatpush.xpose.msra.mxu0 0.0
    %1735 = vmatpush.xpose.msra.mxu0 0.0
    %1736 = vmatpush.xpose.msra.mxu0 0.0
    %1737 = vmatpush.xpose.msra.mxu0 0.0
    %1738 = vmatpush.xpose.msra.mxu0 0.0
    %1739 = vmatpush.xpose.msra.mxu0 0.0
    %1740 = vmatpush.xpose.msra.mxu0 0.0
    %1741 = vmatpush.xpose.msra.mxu0 0.0
    %1742 = vmatpush.xpose.msra.mxu0 0.0
    %1743 = vmatpush.xpose.msra.mxu0 0.0
    %1744 = vmatpush.xpose.msra.mxu0 0.0
    %1745 = vmatpush.xpose.msra.mxu0 %v1728
    %1746 = vmatmul.f32.gmra.mxu0 %v1726
    %v1747 = vpop.f32.mrf.mxu0
    %v1748 = vadd.f32 0.0, %v1747
    %1749 = vdwg.mxu0
    %v1750 = vsel %vm209, %v1748, -inf
    %1751 = vmax.xlane.f32.xlu0 %v1750
    %v1752 = vpop.xlane.xlu0 %1751
    %v1753 = vsub.f32 %v1748, %v1752
    %v1754 = vmul.f32 %v1753, 1.442695
    %v1755 = vpow.pop %v1754
    %v1756 = vsel %vm209, %v1755, 0.0
    %1757 = vadd.xlane.f32.xlu0 %v1756
    %v1758 = vpop.xlane.xlu0 %1757
    %v1759 = vrcp.pop %v1758
    %v1760 = vmul.f32 %v1755, %v1759
    %1761 = vrot.lane.b32.xlu0 %v1192, 80
    %v1762 = vpop.permute.xlu0 %1761
    %v1765 = vsel %vm209, %v1760, 0
    %1767 = vmatpush.msra.mxu0 0.0
    %1768 = vmatpush.msra.mxu0 0.0
    %1769 = vmatpush.msra.mxu0 0.0
    %1770 = vmatpush.msra.mxu0 0.0
    %1771 = vmatpush.msra.mxu0 0.0
    %1772 = vmatpush.msra.mxu0 0.0
    %1773 = vmatpush.msra.mxu0 0.0
    %1774 = vmatpush.msra.mxu0 0.0
    %1775 = vmatpush.msra.mxu0 0.0
    %1776 = vmatpush.msra.mxu0 0.0
    %1777 = vmatpush.msra.mxu0 0.0
    %1778 = vmatpush.msra.mxu0 0.0
    %1779 = vmatpush.msra.mxu0 0.0
    %1780 = vmatpush.msra.mxu0 0.0
    %1781 = vmatpush.msra.mxu0 0.0
    %1782 = vmatpush.msra.mxu0 %v1762
    %1783 = vmatmul.f32.gmra.mxu0 %v1765
    %v1784 = vpop.f32.mrf.mxu0
    %v1785 = vadd.f32 0.0, %v1784
    %1786 = vdwg.mxu0
    %v1788 = vsel %vm209, %v1785, 0
    %1790 = vmatpush.msra.mxu0 0.0
    %1791 = vmatpush.msra.mxu0 0.0
    %1792 = vmatpush.msra.mxu0 0.0
    %1793 = vmatpush.msra.mxu0 0.0
    %1794 = vmatpush.msra.mxu0 0.0
    %1795 = vmatpush.msra.mxu0 0.0
    %1796 = vmatpush.msra.mxu0 0.0
    %1797 = vmatpush.msra.mxu0 0.0
    %1798 = vmatpush.msra.mxu0 0.0
    %1799 = vmatpush.msra.mxu0 0.0
    %1800 = vmatpush.msra.mxu0 0.0
    %1801 = vmatpush.msra.mxu0 0.0
    %1802 = vmatpush.msra.mxu0 0.0
    %1803 = vmatpush.msra.mxu0 0.0
    %1804 = vmatpush.msra.mxu0 0.0
    %1805 = vmatpush.msra.mxu0 %v1118
    %1806 = vmatmul.f32.gmra.mxu0 %v1788
    %v1807 = vpop.f32.mrf.mxu0
    %v1808 = vadd.f32 0.0, %v1807
    %1809 = vdwg.mxu0
    %v1810 = vadd.f32 %v1720, %v1808
    %1811 = vrot.lane.b32.xlu0 %v1547, 104
    %v1812 = vpop.permute.xlu0 %1811
    %1813 = vrot.lane.b32.xlu0 %v1192, 104
    %v1814 = vpop.permute.xlu0 %1813
    %v1815 = vsel %vm209, %v1812, 0
    %v1817 = vsel %vm209, %v1814, 0
    %1819 = vmatpush.xpose.msra.mxu0 0.0
    %1820 = vmatpush.xpose.msra.mxu0 0.0
    %1821 = vmatpush.xpose.msra.mxu0 0.0
    %1822 = vmatpush.xpose.msra.mxu0 0.0
    %1823 = vmatpush.xpose.msra.mxu0 0.0
    %1824 = vmatpush.xpose.msra.mxu0 0.0
    %1825 = vmatpush.xpose.msra.mxu0 0.0
    %1826 = vmatpush.xpose.msra.mxu0 0.0
    %1827 = vmatpush.xpose.msra.mxu0 0.0
    %1828 = vmatpush.xpose.msra.mxu0 0.0
    %1829 = vmatpush.xpose.msra.mxu0 0.0
    %1830 = vmatpush.xpose.msra.mxu0 0.0
    %1831 = vmatpush.xpose.msra.mxu0 0.0
    %1832 = vmatpush.xpose.msra.mxu0 0.0
    %1833 = vmatpush.xpose.msra.mxu0 0.0
    %1834 = vmatpush.xpose.msra.mxu0 %v1817
    %1835 = vmatmul.f32.gmra.mxu0 %v1815
    %v1836 = vpop.f32.mrf.mxu0
    %v1837 = vadd.f32 0.0, %v1836
    %1838 = vdwg.mxu0
    %v1839 = vsel %vm209, %v1837, -inf
    %1840 = vmax.xlane.f32.xlu0 %v1839
    %v1841 = vpop.xlane.xlu0 %1840
    %v1842 = vsub.f32 %v1837, %v1841
    %v1843 = vmul.f32 %v1842, 1.442695
    %v1844 = vpow.pop %v1843
    %v1845 = vsel %vm209, %v1844, 0.0
    %1846 = vadd.xlane.f32.xlu0 %v1845
    %v1847 = vpop.xlane.xlu0 %1846
    %v1848 = vrcp.pop %v1847
    %v1849 = vmul.f32 %v1844, %v1848
    %1850 = vrot.lane.b32.xlu0 %v1192, 72
    %v1851 = vpop.permute.xlu0 %1850
    %v1854 = vsel %vm209, %v1849, 0
    %1856 = vmatpush.msra.mxu0 0.0
    %1857 = vmatpush.msra.mxu0 0.0
    %1858 = vmatpush.msra.mxu0 0.0
    %1859 = vmatpush.msra.mxu0 0.0
    %1860 = vmatpush.msra.mxu0 0.0
    %1861 = vmatpush.msra.mxu0 0.0
    %1862 = vmatpush.msra.mxu0 0.0
    %1863 = vmatpush.msra.mxu0 0.0
    %1864 = vmatpush.msra.mxu0 0.0
    %1865 = vmatpush.msra.mxu0 0.0
    %1866 = vmatpush.msra.mxu0 0.0
    %1867 = vmatpush.msra.mxu0 0.0
    %1868 = vmatpush.msra.mxu0 0.0
    %1869 = vmatpush.msra.mxu0 0.0
    %1870 = vmatpush.msra.mxu0 0.0
    %1871 = vmatpush.msra.mxu0 %v1851
    %1872 = vmatmul.f32.gmra.mxu0 %v1854
    %v1873 = vpop.f32.mrf.mxu0
    %v1874 = vadd.f32 0.0, %v1873
    %1875 = vdwg.mxu0
    %v1877 = vsel %vm209, %v1874, 0
    %1879 = vmatpush.msra.mxu0 0.0
    %1880 = vmatpush.msra.mxu0 0.0
    %1881 = vmatpush.msra.mxu0 0.0
    %1882 = vmatpush.msra.mxu0 0.0
    %1883 = vmatpush.msra.mxu0 0.0
    %1884 = vmatpush.msra.mxu0 0.0
    %1885 = vmatpush.msra.mxu0 0.0
    %1886 = vmatpush.msra.mxu0 0.0
    %1887 = vmatpush.msra.mxu0 0.0
    %1888 = vmatpush.msra.mxu0 0.0
    %1889 = vmatpush.msra.mxu0 0.0
    %1890 = vmatpush.msra.mxu0 0.0
    %1891 = vmatpush.msra.mxu0 0.0
    %1892 = vmatpush.msra.mxu0 0.0
    %1893 = vmatpush.msra.mxu0 0.0
    %1894 = vmatpush.msra.mxu0 %v1119
    %1895 = vmatmul.f32.gmra.mxu0 %v1877
    %v1896 = vpop.f32.mrf.mxu0
    %v1897 = vadd.f32 0.0, %v1896
    %1898 = vdwg.mxu0
    %v1899 = vadd.f32 %v1810, %v1897
    %v1900 = vperm.slane %v1120, 0
    %v1901 = vadd.f32 %v1546, %v1900
    %v1902 = vadd.f32 %v1899, %v1900
    %v1903 = vadd.f32 %v1109, %v1901
    %v1904 = vadd.f32 %v1110, %v1902
    %v1905 = vsel %vm135, %v1903, 0.0
    %1906 = vadd.xlane.f32.xlu0 %v1905
    %v1907 = vpop.xlane.xlu0 %1906
    %v1908 = vsel %vm135, %v1904, 0.0
    %1909 = vadd.xlane.f32.xlu0 %v1908
    %v1910 = vpop.xlane.xlu0 %1909
    %v1911 = vmul.f32 %v1907, %v932
    %v1912 = vmul.f32 %v1910, %v932
    %v1913 = vsub.f32 %v1903, %v1911
    %v1914 = vsub.f32 %v1904, %v1912
    %v1915 = vmul.f32 %v1913, %v1913
    %v1916 = vmul.f32 %v1914, %v1914
    %v1917 = vsel %vm135, %v1915, 0.0
    %1918 = vadd.xlane.f32.xlu0 %v1917
    %v1919 = vpop.xlane.xlu0 %1918
    %v1920 = vsel %vm135, %v1916, 0.0
    %1921 = vadd.xlane.f32.xlu0 %v1920
    %v1922 = vpop.xlane.xlu0 %1921
    %v1923 = vmul.f32 %v1919, %v932
    %v1924 = vmul.f32 %v1922, %v932
    %v1925 = vadd.f32 %v1923, 1e-05
    %v1926 = vadd.f32 %v1924, 1e-05
    %v1927 = vrsqrt.pop %v1925
    %v1928 = vmul.f32 %v1927, %v1925
    %v1929 = vmul.f32 %v1928, %v1927
    %v1930 = vmul.f32 0.5, %v1929
    %v1931 = vsub.f32 1.5, %v1930
    %v1932 = vmul.f32 %v1927, %v1931
    %vm1933 = vweird.f32 %v1925
    %vm1934 = vweird.f32 %v1927
    %vm1935 = vmor %vm1933, %vm1934
    %v1936 = vsel %vm1935, %v1927, %v1932
    %v1937 = vrsqrt.pop %v1926
    %v1938 = vmul.f32 %v1937, %v1926
    %v1939 = vmul.f32 %v1938, %v1937
    %v1940 = vmul.f32 0.5, %v1939
    %v1941 = vsub.f32 1.5, %v1940
    %v1942 = vmul.f32 %v1937, %v1941
    %vm1943 = vweird.f32 %v1926
    %vm1944 = vweird.f32 %v1937
    %vm1945 = vmor %vm1943, %vm1944
    %v1946 = vsel %vm1945, %v1937, %v1942
    %v1947 = vmul.f32 %v1913, %v1936
    %v1948 = vmul.f32 %v1914, %v1946
    %v1949 = vld [vmem:[#allocation5 + $0x430] sm:$0x1]
    %v1950 = vperm.slane %v1949, 0
    %v1951 = vmul.f32 %v1947, %v1950
    %v1952 = vmul.f32 %v1948, %v1950
    %v1953 = vld [vmem:[#allocation5 + $0x438] sm:$0x1]
    %v1954 = vperm.slane %v1953, 0
    %v1955 = vadd.f32 %v1951, %v1954
    %v1956 = vadd.f32 %v1952, %v1954
    %v1957 = vld [vmem:[#allocation5 + $0x380] sm:$0xff]
    %v1958 = vld [vmem:[#allocation5 + $0x388] sm:$0xff]
    %v1959 = vld [vmem:[#allocation5 + $0x390] sm:$0xff]
    %v1960 = vld [vmem:[#allocation5 + $0x398] sm:$0xff]
    %v1961 = vld [vmem:[#allocation5 + $0x3a0] sm:$0x1]
    %v1962 = vperm.slane %v1961, 0
    %v1964 = vsel %vm135, %v1955, 0
    %v1967 = vsel %vm135, %v1956, 0
    %1969 = vmatpush.msra.mxu0 0.0
    %1970 = vmatpush.msra.mxu0 0.0
    %1971 = vmatpush.msra.mxu0 0.0
    %1972 = vmatpush.msra.mxu0 0.0
    %1973 = vmatpush.msra.mxu0 0.0
    %1974 = vmatpush.msra.mxu0 0.0
    %1975 = vmatpush.msra.mxu0 0.0
    %1976 = vmatpush.msra.mxu0 0.0
    %1977 = vmatpush.msra.mxu0 0.0
    %1978 = vmatpush.msra.mxu0 0.0
    %1979 = vmatpush.msra.mxu0 0.0
    %1980 = vmatpush.msra.mxu0 0.0
    %1981 = vmatpush.msra.mxu0 %v1960
    %1982 = vmatpush.msra.mxu0 %v1959
    %1983 = vmatpush.msra.mxu0 %v1958
    %1984 = vmatpush.msra.mxu0 %v1957
    %1985 = vmatmul.f32.gmra.mxu0 %v1964
    %v1986 = vpop.f32.mrf.mxu0
    %v1987 = vadd.f32 %v1962, %v1986
    %1988 = vmatmul.f32.gmra.mxu0 %v1967
    %v1989 = vpop.f32.mrf.mxu0
    %v1990 = vadd.f32 %v1962, %v1989
    %1991 = vdwg.mxu0
    %v1992 = vmax.f32 %v1987, 0.0
    %v1993 = vmax.f32 %v1990, 0.0
    %v1994 = vld [vmem:[#allocation5 + $0x3a8] sm:$0xff]
    %v1995 = vld [vmem:[#allocation5 + $0x3b0] sm:$0xff]
    %v1996 = vld [vmem:[#allocation5 + $0x3b8] sm:$0xff]
    %v1997 = vld [vmem:[#allocation5 + $0x3c0] sm:$0xff]
    %v1998 = vld [vmem:[#allocation5 + $0x3c8] sm:$0xff]
    %v1999 = vld [vmem:[#allocation5 + $0x3d0] sm:$0xff]
    %v2000 = vld [vmem:[#allocation5 + $0x3d8] sm:$0xff]
    %v2001 = vld [vmem:[#allocation5 + $0x3e0] sm:$0xff]
    %v2002 = vld [vmem:[#allocation5 + $0x3e8] sm:$0xff]
    %v2003 = vld [vmem:[#allocation5 + $0x3f0] sm:$0xff]
    %v2004 = vld [vmem:[#allocation5 + $0x3f8] sm:$0xff]
    %v2005 = vld [vmem:[#allocation5 + $0x400] sm:$0xff]
    %v2006 = vld [vmem:[#allocation5 + $0x408] sm:$0xff]
    %v2007 = vld [vmem:[#allocation5 + $0x410] sm:$0xff]
    %v2008 = vld [vmem:[#allocation5 + $0x418] sm:$0xff]
    %v2009 = vld [vmem:[#allocation5 + $0x420] sm:$0xff]
    %v2010 = vld [vmem:[#allocation5 + $0x428] sm:$0x1]
    %v2011 = vperm.slane %v2010, 0
    %2012 = vmatpush.msra.mxu0 %v2009
    %2013 = vmatpush.msra.mxu0 %v2008
    %2014 = vmatpush.msra.mxu0 %v2007
    %2015 = vmatpush.msra.mxu0 %v2006
    %2016 = vmatpush.msra.mxu0 %v2005
    %2017 = vmatpush.msra.mxu0 %v2004
    %2018 = vmatpush.msra.mxu0 %v2003
    %2019 = vmatpush.msra.mxu0 %v2002
    %2020 = vmatpush.msra.mxu0 %v2001
    %2021 = vmatpush.msra.mxu0 %v2000
    %2022 = vmatpush.msra.mxu0 %v1999
    %2023 = vmatpush.msra.mxu0 %v1998
    %2024 = vmatpush.msra.mxu0 %v1997
    %2025 = vmatpush.msra.mxu0 %v1996
    %2026 = vmatpush.msra.mxu0 %v1995
    %2027 = vmatpush.msra.mxu0 %v1994
    %2028 = vmatmul.f32.gmra.mxu0 %v1992
    %v2029 = vpop.f32.mrf.mxu0
    %v2030 = vadd.f32 %v2011, %v2029
    %2031 = vmatmul.f32.gmra.mxu0 %v1993
    %v2032 = vpop.f32.mrf.mxu0
    %v2033 = vadd.f32 %v2011, %v2032
    %2034 = vdwg.mxu0
    %v2035 = vadd.f32 %v1955, %v2030
    %v2036 = vadd.f32 %v1956, %v2033
    %v2037 = vsel %vm135, %v2035, 0.0
    %2038 = vadd.xlane.f32.xlu0 %v2037
    %v2039 = vpop.xlane.xlu0 %2038
    %v2040 = vsel %vm135, %v2036, 0.0
    %2041 = vadd.xlane.f32.xlu0 %v2040
    %v2042 = vpop.xlane.xlu0 %2041
    %v2043 = vmul.f32 %v2039, %v932
    %v2044 = vmul.f32 %v2042, %v932
    %v2045 = vsub.f32 %v2035, %v2043
    %v2046 = vsub.f32 %v2036, %v2044
    %v2047 = vmul.f32 %v2045, %v2045
    %v2048 = vmul.f32 %v2046, %v2046
    %v2049 = vsel %vm135, %v2047, 0.0
    %2050 = vadd.xlane.f32.xlu0 %v2049
    %v2051 = vpop.xlane.xlu0 %2050
    %v2052 = vsel %vm135, %v2048, 0.0
    %2053 = vadd.xlane.f32.xlu0 %v2052
    %v2054 = vpop.xlane.xlu0 %2053
    %v2055 = vmul.f32 %v2051, %v932
    %v2056 = vmul.f32 %v2054, %v932
    %v2057 = vadd.f32 %v2055, 1e-05
    %v2058 = vadd.f32 %v2056, 1e-05
    %v2059 = vrsqrt.pop %v2057
    %v2060 = vmul.f32 %v2059, %v2057
    %v2061 = vmul.f32 %v2060, %v2059
    %v2062 = vmul.f32 0.5, %v2061
    %v2063 = vsub.f32 1.5, %v2062
    %v2064 = vmul.f32 %v2059, %v2063
    %vm2065 = vweird.f32 %v2057
    %vm2066 = vweird.f32 %v2059
    %vm2067 = vmor %vm2065, %vm2066
    %v2068 = vsel %vm2067, %v2059, %v2064
    %v2069 = vrsqrt.pop %v2058
    %v2070 = vmul.f32 %v2069, %v2058
    %v2071 = vmul.f32 %v2070, %v2069
    %v2072 = vmul.f32 0.5, %v2071
    %v2073 = vsub.f32 1.5, %v2072
    %v2074 = vmul.f32 %v2069, %v2073
    %vm2075 = vweird.f32 %v2058
    %vm2076 = vweird.f32 %v2069
    %vm2077 = vmor %vm2075, %vm2076
    %v2078 = vsel %vm2077, %v2069, %v2074
    %v2079 = vmul.f32 %v2045, %v2068
    %v2080 = vmul.f32 %v2046, %v2078
    %v2081 = vld [vmem:[#allocation5 + $0x440] sm:$0x1]
    %v2082 = vperm.slane %v2081, 0
    %v2083 = vmul.f32 %v2079, %v2082
    %v2084 = vmul.f32 %v2080, %v2082
    %v2085 = vld [vmem:[#allocation5 + $0x448] sm:$0x1]
    %v2086 = vperm.slane %v2085, 0
    %v2087 = vadd.f32 %v2083, %v2086
    %v2088 = vadd.f32 %v2084, %v2086
    %v2089 = vsel %vm135, %v2087, 0.0
    %2090 = vadd.xlane.f32.xlu0 %v2089
    %v2091 = vpop.xlane.xlu0 %2090
    %v2092 = vsel %vm135, %v2088, 0.0
    %2093 = vadd.xlane.f32.xlu0 %v2092
    %v2094 = vpop.xlane.xlu0 %2093
    %v2095 = vmul.f32 %v2091, %v932
    %v2096 = vmul.f32 %v2094, %v932
    %v2097 = vsub.f32 %v2087, %v2095
    %v2098 = vsub.f32 %v2088, %v2096
    %v2099 = vmul.f32 %v2097, %v2097
    %v2100 = vmul.f32 %v2098, %v2098
    %v2101 = vsel %vm135, %v2099, 0.0
    %2102 = vadd.xlane.f32.xlu0 %v2101
    %v2103 = vpop.xlane.xlu0 %2102
    %v2104 = vsel %vm135, %v2100, 0.0
    %2105 = vadd.xlane.f32.xlu0 %v2104
    %v2106 = vpop.xlane.xlu0 %2105
    %v2107 = vmul.f32 %v2103, %v932
    %v2108 = vmul.f32 %v2106, %v932
    %v2109 = vadd.f32 %v2107, 1e-05
    %v2110 = vadd.f32 %v2108, 1e-05
    %v2111 = vrsqrt.pop %v2109
    %v2112 = vmul.f32 %v2111, %v2109
    %v2113 = vmul.f32 %v2112, %v2111
    %v2114 = vmul.f32 0.5, %v2113
    %v2115 = vsub.f32 1.5, %v2114
    %v2116 = vmul.f32 %v2111, %v2115
    %vm2117 = vweird.f32 %v2109
    %vm2118 = vweird.f32 %v2111
    %vm2119 = vmor %vm2117, %vm2118
    %v2120 = vsel %vm2119, %v2111, %v2116
    %v2121 = vrsqrt.pop %v2110
    %v2122 = vmul.f32 %v2121, %v2110
    %v2123 = vmul.f32 %v2122, %v2121
    %v2124 = vmul.f32 0.5, %v2123
    %v2125 = vsub.f32 1.5, %v2124
    %v2126 = vmul.f32 %v2121, %v2125
    %vm2127 = vweird.f32 %v2110
    %vm2128 = vweird.f32 %v2121
    %vm2129 = vmor %vm2127, %vm2128
    %v2130 = vsel %vm2129, %v2121, %v2126
    %v2131 = vmul.f32 %v2097, %v2120
    %v2132 = vmul.f32 %v2098, %v2130
    %v2133 = vld [vmem:[#allocation5 + $0x750] sm:$0x1]
    %v2134 = vperm.slane %v2133, 0
    %v2135 = vmul.f32 %v2131, %v2134
    %v2136 = vmul.f32 %v2132, %v2134
    %v2137 = vld [vmem:[#allocation5 + $0x758] sm:$0x1]
    %v2138 = vperm.slane %v2137, 0
    %v2139 = vadd.f32 %v2135, %v2138
    %v2140 = vadd.f32 %v2136, %v2138
    %v2141 = vld [vmem:[#allocation5 + $0x450] sm:$0xff]
    %v2142 = vld [vmem:[#allocation5 + $0x458] sm:$0xff]
    %v2143 = vld [vmem:[#allocation5 + $0x460] sm:$0xff]
    %v2144 = vld [vmem:[#allocation5 + $0x468] sm:$0xff]
    %v2145 = vld [vmem:[#allocation5 + $0x470] sm:$0x1]
    %v2146 = vld [vmem:[#allocation5 + $0x478] sm:$0xff]
    %v2147 = vld [vmem:[#allocation5 + $0x480] sm:$0xff]
    %v2148 = vld [vmem:[#allocation5 + $0x488] sm:$0xff]
    %v2149 = vld [vmem:[#allocation5 + $0x490] sm:$0xff]
    %v2150 = vld [vmem:[#allocation5 + $0x498] sm:$0x1]
    %v2151 = vperm.slane %v2145, 0
    %2152 = vmatpush.msra.mxu0 0.0
    %2153 = vmatpush.msra.mxu0 0.0
    %2154 = vmatpush.msra.mxu0 0.0
    %2155 = vmatpush.msra.mxu0 0.0
    %2156 = vmatpush.msra.mxu0 0.0
    %2157 = vmatpush.msra.mxu0 0.0
    %2158 = vmatpush.msra.mxu0 0.0
    %2159 = vmatpush.msra.mxu0 0.0
    %2160 = vmatpush.msra.mxu0 0.0
    %2161 = vmatpush.msra.mxu0 0.0
    %2162 = vmatpush.msra.mxu0 0.0
    %2163 = vmatpush.msra.mxu0 0.0
    %2164 = vmatpush.msra.mxu0 %v2144
    %2165 = vmatpush.msra.mxu0 %v2143
    %2166 = vmatpush.msra.mxu0 %v2142
    %2167 = vmatpush.msra.mxu0 %v2141
    %2168 = vmatmul.f32.gmra.mxu0 %v137
    %v2169 = vpop.f32.mrf.mxu0
    %v2170 = vadd.f32 %v2151, %v2169
    %2171 = vmatmul.f32.gmra.mxu0 %v140
    %v2172 = vpop.f32.mrf.mxu0
    %v2173 = vadd.f32 %v2151, %v2172
    %2174 = vdwg.mxu0
    %2179 = vrot.lane.b32.xlu0 %v2141, 96
    %v2180 = vpop.permute.xlu0 %2179
    %2181 = vrot.lane.b32.xlu0 %v2142, 96
    %v2182 = vpop.permute.xlu0 %2181
    %2183 = vrot.lane.b32.xlu0 %v2143, 96
    %v2184 = vpop.permute.xlu0 %2183
    %2185 = vrot.lane.b32.xlu0 %v2144, 96
    %v2186 = vpop.permute.xlu0 %2185
    %2192 = vrot.lane.b32.xlu0 %v2151, 96
    %v2193 = vpop.permute.xlu0 %2192
    %2195 = vmatpush.msra.mxu0 0.0
    %2196 = vmatpush.msra.mxu0 0.0
    %2197 = vmatpush.msra.mxu0 0.0
    %2198 = vmatpush.msra.mxu0 0.0
    %2199 = vmatpush.msra.mxu0 0.0
    %2200 = vmatpush.msra.mxu0 0.0
    %2201 = vmatpush.msra.mxu0 0.0
    %2202 = vmatpush.msra.mxu0 0.0
    %2203 = vmatpush.msra.mxu0 0.0
    %2204 = vmatpush.msra.mxu0 0.0
    %2205 = vmatpush.msra.mxu0 0.0
    %2206 = vmatpush.msra.mxu0 0.0
    %2207 = vmatpush.msra.mxu0 %v2186
    %2208 = vmatpush.msra.mxu0 %v2184
    %2209 = vmatpush.msra.mxu0 %v2182
    %2210 = vmatpush.msra.mxu0 %v2180
    %2211 = vmatmul.f32.gmra.mxu0 %v137
    %v2212 = vpop.f32.mrf.mxu0
    %v2213 = vadd.f32 %v2193, %v2212
    %2214 = vmatmul.f32.gmra.mxu0 %v140
    %v2215 = vpop.f32.mrf.mxu0
    %v2216 = vadd.f32 %v2193, %v2215
    %2217 = vdwg.mxu0
    %v2218 = vmul.f32 %v2170, 0.35355338
    %v2220 = vsel %vm209, %v2218, 0
    %v2223 = vsel %vm209, %v2213, 0
    %2225 = vmatpush.xpose.msra.mxu0 0.0
    %2226 = vmatpush.xpose.msra.mxu0 0.0
    %2227 = vmatpush.xpose.msra.mxu0 0.0
    %2228 = vmatpush.xpose.msra.mxu0 0.0
    %2229 = vmatpush.xpose.msra.mxu0 0.0
    %2230 = vmatpush.xpose.msra.mxu0 0.0
    %2231 = vmatpush.xpose.msra.mxu0 0.0
    %2232 = vmatpush.xpose.msra.mxu0 0.0
    %2233 = vmatpush.xpose.msra.mxu0 0.0
    %2234 = vmatpush.xpose.msra.mxu0 0.0
    %2235 = vmatpush.xpose.msra.mxu0 0.0
    %2236 = vmatpush.xpose.msra.mxu0 0.0
    %2237 = vmatpush.xpose.msra.mxu0 0.0
    %2238 = vmatpush.xpose.msra.mxu0 0.0
    %2239 = vmatpush.xpose.msra.mxu0 0.0
    %2240 = vmatpush.xpose.msra.mxu0 %v2223
    %2241 = vmatmul.f32.gmra.mxu0 %v2220
    %v2242 = vpop.f32.mrf.mxu0
    %v2243 = vadd.f32 0.0, %v2242
    %2244 = vdwg.mxu0
    %v2245 = vsel %vm209, %v2243, -inf
    %2246 = vmax.xlane.f32.xlu0 %v2245
    %v2247 = vpop.xlane.xlu0 %2246
    %v2248 = vsub.f32 %v2243, %v2247
    %v2249 = vmul.f32 %v2248, 1.442695
    %v2250 = vpow.pop %v2249
    %v2251 = vsel %vm209, %v2250, 0.0
    %2252 = vadd.xlane.f32.xlu0 %v2251
    %v2253 = vpop.xlane.xlu0 %2252
    %v2254 = vrcp.pop %v2253
    %v2255 = vmul.f32 %v2250, %v2254
    %2256 = vrot.lane.b32.xlu0 %v2213, 96
    %v2257 = vpop.permute.xlu0 %2256
    %v2260 = vsel %vm209, %v2255, 0
    %2262 = vmatpush.msra.mxu0 0.0
    %2263 = vmatpush.msra.mxu0 0.0
    %2264 = vmatpush.msra.mxu0 0.0
    %2265 = vmatpush.msra.mxu0 0.0
    %2266 = vmatpush.msra.mxu0 0.0
    %2267 = vmatpush.msra.mxu0 0.0
    %2268 = vmatpush.msra.mxu0 0.0
    %2269 = vmatpush.msra.mxu0 0.0
    %2270 = vmatpush.msra.mxu0 0.0
    %2271 = vmatpush.msra.mxu0 0.0
    %2272 = vmatpush.msra.mxu0 0.0
    %2273 = vmatpush.msra.mxu0 0.0
    %2274 = vmatpush.msra.mxu0 0.0
    %2275 = vmatpush.msra.mxu0 0.0
    %2276 = vmatpush.msra.mxu0 0.0
    %2277 = vmatpush.msra.mxu0 %v2257
    %2278 = vmatmul.f32.gmra.mxu0 %v2260
    %v2279 = vpop.f32.mrf.mxu0
    %v2280 = vadd.f32 0.0, %v2279
    %2281 = vdwg.mxu0
    %2282 = vrot.lane.b32.xlu0 %v2218, 120
    %v2283 = vpop.permute.xlu0 %2282
    %2284 = vrot.lane.b32.xlu0 %v2213, 120
    %v2285 = vpop.permute.xlu0 %2284
    %v2286 = vsel %vm209, %v2283, 0
    %v2288 = vsel %vm209, %v2285, 0
    %2290 = vmatpush.xpose.msra.mxu0 0.0
    %2291 = vmatpush.xpose.msra.mxu0 0.0
    %2292 = vmatpush.xpose.msra.mxu0 0.0
    %2293 = vmatpush.xpose.msra.mxu0 0.0
    %2294 = vmatpush.xpose.msra.mxu0 0.0
    %2295 = vmatpush.xpose.msra.mxu0 0.0
    %2296 = vmatpush.xpose.msra.mxu0 0.0
    %2297 = vmatpush.xpose.msra.mxu0 0.0
    %2298 = vmatpush.xpose.msra.mxu0 0.0
    %2299 = vmatpush.xpose.msra.mxu0 0.0
    %2300 = vmatpush.xpose.msra.mxu0 0.0
    %2301 = vmatpush.xpose.msra.mxu0 0.0
    %2302 = vmatpush.xpose.msra.mxu0 0.0
    %2303 = vmatpush.xpose.msra.mxu0 0.0
    %2304 = vmatpush.xpose.msra.mxu0 0.0
    %2305 = vmatpush.xpose.msra.mxu0 %v2288
    %2306 = vmatmul.f32.gmra.mxu0 %v2286
    %v2307 = vpop.f32.mrf.mxu0
    %v2308 = vadd.f32 0.0, %v2307
    %2309 = vdwg.mxu0
    %v2310 = vsel %vm209, %v2308, -inf
    %2311 = vmax.xlane.f32.xlu0 %v2310
    %v2312 = vpop.xlane.xlu0 %2311
    %v2313 = vsub.f32 %v2308, %v2312
    %v2314 = vmul.f32 %v2313, 1.442695
    %v2315 = vpow.pop %v2314
    %v2316 = vsel %vm209, %v2315, 0.0
    %2317 = vadd.xlane.f32.xlu0 %v2316
    %v2318 = vpop.xlane.xlu0 %2317
    %v2319 = vrcp.pop %v2318
    %v2320 = vmul.f32 %v2315, %v2319
    %2321 = vrot.lane.b32.xlu0 %v2213, 88
    %v2322 = vpop.permute.xlu0 %2321
    %v2325 = vsel %vm209, %v2320, 0
    %2327 = vmatpush.msra.mxu0 0.0
    %2328 = vmatpush.msra.mxu0 0.0
    %2329 = vmatpush.msra.mxu0 0.0
    %2330 = vmatpush.msra.mxu0 0.0
    %2331 = vmatpush.msra.mxu0 0.0
    %2332 = vmatpush.msra.mxu0 0.0
    %2333 = vmatpush.msra.mxu0 0.0
    %2334 = vmatpush.msra.mxu0 0.0
    %2335 = vmatpush.msra.mxu0 0.0
    %2336 = vmatpush.msra.mxu0 0.0
    %2337 = vmatpush.msra.mxu0 0.0
    %2338 = vmatpush.msra.mxu0 0.0
    %2339 = vmatpush.msra.mxu0 0.0
    %2340 = vmatpush.msra.mxu0 0.0
    %2341 = vmatpush.msra.mxu0 0.0
    %2342 = vmatpush.msra.mxu0 %v2322
    %2343 = vmatmul.f32.gmra.mxu0 %v2325
    %v2344 = vpop.f32.mrf.mxu0
    %v2345 = vadd.f32 0.0, %v2344
    %2346 = vdwg.mxu0
    %v2348 = vsel %vm209, %v2345, 0
    %2350 = vmatpush.msra.mxu0 0.0
    %2351 = vmatpush.msra.mxu0 0.0
    %2352 = vmatpush.msra.mxu0 0.0
    %2353 = vmatpush.msra.mxu0 0.0
    %2354 = vmatpush.msra.mxu0 0.0
    %2355 = vmatpush.msra.mxu0 0.0
    %2356 = vmatpush.msra.mxu0 0.0
    %2357 = vmatpush.msra.mxu0 0.0
    %2358 = vmatpush.msra.mxu0 0.0
    %2359 = vmatpush.msra.mxu0 0.0
    %2360 = vmatpush.msra.mxu0 0.0
    %2361 = vmatpush.msra.mxu0 0.0
    %2362 = vmatpush.msra.mxu0 0.0
    %2363 = vmatpush.msra.mxu0 0.0
    %2364 = vmatpush.msra.mxu0 0.0
    %2365 = vmatpush.msra.mxu0 %v2147
    %2366 = vmatmul.f32.gmra.mxu0 %v2348
    %v2367 = vpop.f32.mrf.mxu0
    %v2368 = vadd.f32 0.0, %v2367
    %2369 = vdwg.mxu0
    %v2371 = vsel %vm209, %v2280, 0
    %2373 = vmatpush.msra.mxu0 0.0
    %2374 = vmatpush.msra.mxu0 0.0
    %2375 = vmatpush.msra.mxu0 0.0
    %2376 = vmatpush.msra.mxu0 0.0
    %2377 = vmatpush.msra.mxu0 0.0
    %2378 = vmatpush.msra.mxu0 0.0
    %2379 = vmatpush.msra.mxu0 0.0
    %2380 = vmatpush.msra.mxu0 0.0
    %2381 = vmatpush.msra.mxu0 0.0
    %2382 = vmatpush.msra.mxu0 0.0
    %2383 = vmatpush.msra.mxu0 0.0
    %2384 = vmatpush.msra.mxu0 0.0
    %2385 = vmatpush.msra.mxu0 0.0
    %2386 = vmatpush.msra.mxu0 0.0
    %2387 = vmatpush.msra.mxu0 0.0
    %2388 = vmatpush.msra.mxu0 %v2146
    %2389 = vmatmul.f32.gmra.mxu0 %v2371
    %v2390 = vpop.f32.mrf.mxu0
    %v2391 = vadd.f32 %v2368, %v2390
    %2392 = vdwg.mxu0
    %2393 = vrot.lane.b32.xlu0 %v2218, 112
    %v2394 = vpop.permute.xlu0 %2393
    %2395 = vrot.lane.b32.xlu0 %v2213, 112
    %v2396 = vpop.permute.xlu0 %2395
    %v2397 = vsel %vm209, %v2394, 0
    %v2399 = vsel %vm209, %v2396, 0
    %2401 = vmatpush.xpose.msra.mxu0 0.0
    %2402 = vmatpush.xpose.msra.mxu0 0.0
    %2403 = vmatpush.xpose.msra.mxu0 0.0
    %2404 = vmatpush.xpose.msra.mxu0 0.0
    %2405 = vmatpush.xpose.msra.mxu0 0.0
    %2406 = vmatpush.xpose.msra.mxu0 0.0
    %2407 = vmatpush.xpose.msra.mxu0 0.0
    %2408 = vmatpush.xpose.msra.mxu0 0.0
    %2409 = vmatpush.xpose.msra.mxu0 0.0
    %2410 = vmatpush.xpose.msra.mxu0 0.0
    %2411 = vmatpush.xpose.msra.mxu0 0.0
    %2412 = vmatpush.xpose.msra.mxu0 0.0
    %2413 = vmatpush.xpose.msra.mxu0 0.0
    %2414 = vmatpush.xpose.msra.mxu0 0.0
    %2415 = vmatpush.xpose.msra.mxu0 0.0
    %2416 = vmatpush.xpose.msra.mxu0 %v2399
    %2417 = vmatmul.f32.gmra.mxu0 %v2397
    %v2418 = vpop.f32.mrf.mxu0
    %v2419 = vadd.f32 0.0, %v2418
    %2420 = vdwg.mxu0
    %v2421 = vsel %vm209, %v2419, -inf
    %2422 = vmax.xlane.f32.xlu0 %v2421
    %v2423 = vpop.xlane.xlu0 %2422
    %v2424 = vsub.f32 %v2419, %v2423
    %v2425 = vmul.f32 %v2424, 1.442695
    %v2426 = vpow.pop %v2425
    %v2427 = vsel %vm209, %v2426, 0.0
    %2428 = vadd.xlane.f32.xlu0 %v2427
    %v2429 = vpop.xlane.xlu0 %2428
    %v2430 = vrcp.pop %v2429
    %v2431 = vmul.f32 %v2426, %v2430
    %2432 = vrot.lane.b32.xlu0 %v2213, 80
    %v2433 = vpop.permute.xlu0 %2432
    %v2436 = vsel %vm209, %v2431, 0
    %2438 = vmatpush.msra.mxu0 0.0
    %2439 = vmatpush.msra.mxu0 0.0
    %2440 = vmatpush.msra.mxu0 0.0
    %2441 = vmatpush.msra.mxu0 0.0
    %2442 = vmatpush.msra.mxu0 0.0
    %2443 = vmatpush.msra.mxu0 0.0
    %2444 = vmatpush.msra.mxu0 0.0
    %2445 = vmatpush.msra.mxu0 0.0
    %2446 = vmatpush.msra.mxu0 0.0
    %2447 = vmatpush.msra.mxu0 0.0
    %2448 = vmatpush.msra.mxu0 0.0
    %2449 = vmatpush.msra.mxu0 0.0
    %2450 = vmatpush.msra.mxu0 0.0
    %2451 = vmatpush.msra.mxu0 0.0
    %2452 = vmatpush.msra.mxu0 0.0
    %2453 = vmatpush.msra.mxu0 %v2433
    %2454 = vmatmul.f32.gmra.mxu0 %v2436
    %v2455 = vpop.f32.mrf.mxu0
    %v2456 = vadd.f32 0.0, %v2455
    %2457 = vdwg.mxu0
    %v2459 = vsel %vm209, %v2456, 0
    %2461 = vmatpush.msra.mxu0 0.0
    %2462 = vmatpush.msra.mxu0 0.0
    %2463 = vmatpush.msra.mxu0 0.0
    %2464 = vmatpush.msra.mxu0 0.0
    %2465 = vmatpush.msra.mxu0 0.0
    %2466 = vmatpush.msra.mxu0 0.0
    %2467 = vmatpush.msra.mxu0 0.0
    %2468 = vmatpush.msra.mxu0 0.0
    %2469 = vmatpush.msra.mxu0 0.0
    %2470 = vmatpush.msra.mxu0 0.0
    %2471 = vmatpush.msra.mxu0 0.0
    %2472 = vmatpush.msra.mxu0 0.0
    %2473 = vmatpush.msra.mxu0 0.0
    %2474 = vmatpush.msra.mxu0 0.0
    %2475 = vmatpush.msra.mxu0 0.0
    %2476 = vmatpush.msra.mxu0 %v2148
    %2477 = vmatmul.f32.gmra.mxu0 %v2459
    %v2478 = vpop.f32.mrf.mxu0
    %v2479 = vadd.f32 0.0, %v2478
    %2480 = vdwg.mxu0
    %v2481 = vadd.f32 %v2391, %v2479
    %2482 = vrot.lane.b32.xlu0 %v2218, 104
    %v2483 = vpop.permute.xlu0 %2482
    %2484 = vrot.lane.b32.xlu0 %v2213, 104
    %v2485 = vpop.permute.xlu0 %2484
    %v2486 = vsel %vm209, %v2483, 0
    %v2488 = vsel %vm209, %v2485, 0
    %2490 = vmatpush.xpose.msra.mxu0 0.0
    %2491 = vmatpush.xpose.msra.mxu0 0.0
    %2492 = vmatpush.xpose.msra.mxu0 0.0
    %2493 = vmatpush.xpose.msra.mxu0 0.0
    %2494 = vmatpush.xpose.msra.mxu0 0.0
    %2495 = vmatpush.xpose.msra.mxu0 0.0
    %2496 = vmatpush.xpose.msra.mxu0 0.0
    %2497 = vmatpush.xpose.msra.mxu0 0.0
    %2498 = vmatpush.xpose.msra.mxu0 0.0
    %2499 = vmatpush.xpose.msra.mxu0 0.0
    %2500 = vmatpush.xpose.msra.mxu0 0.0
    %2501 = vmatpush.xpose.msra.mxu0 0.0
    %2502 = vmatpush.xpose.msra.mxu0 0.0
    %2503 = vmatpush.xpose.msra.mxu0 0.0
    %2504 = vmatpush.xpose.msra.mxu0 0.0
    %2505 = vmatpush.xpose.msra.mxu0 %v2488
    %2506 = vmatmul.f32.gmra.mxu0 %v2486
    %v2507 = vpop.f32.mrf.mxu0
    %v2508 = vadd.f32 0.0, %v2507
    %2509 = vdwg.mxu0
    %v2510 = vsel %vm209, %v2508, -inf
    %2511 = vmax.xlane.f32.xlu0 %v2510
    %v2512 = vpop.xlane.xlu0 %2511
    %v2513 = vsub.f32 %v2508, %v2512
    %v2514 = vmul.f32 %v2513, 1.442695
    %v2515 = vpow.pop %v2514
    %v2516 = vsel %vm209, %v2515, 0.0
    %2517 = vadd.xlane.f32.xlu0 %v2516
    %v2518 = vpop.xlane.xlu0 %2517
    %v2519 = vrcp.pop %v2518
    %v2520 = vmul.f32 %v2515, %v2519
    %2521 = vrot.lane.b32.xlu0 %v2213, 72
    %v2522 = vpop.permute.xlu0 %2521
    %v2525 = vsel %vm209, %v2520, 0
    %2527 = vmatpush.msra.mxu0 0.0
    %2528 = vmatpush.msra.mxu0 0.0
    %2529 = vmatpush.msra.mxu0 0.0
    %2530 = vmatpush.msra.mxu0 0.0
    %2531 = vmatpush.msra.mxu0 0.0
    %2532 = vmatpush.msra.mxu0 0.0
    %2533 = vmatpush.msra.mxu0 0.0
    %2534 = vmatpush.msra.mxu0 0.0
    %2535 = vmatpush.msra.mxu0 0.0
    %2536 = vmatpush.msra.mxu0 0.0
    %2537 = vmatpush.msra.mxu0 0.0
    %2538 = vmatpush.msra.mxu0 0.0
    %2539 = vmatpush.msra.mxu0 0.0
    %2540 = vmatpush.msra.mxu0 0.0
    %2541 = vmatpush.msra.mxu0 0.0
    %2542 = vmatpush.msra.mxu0 %v2522
    %2543 = vmatmul.f32.gmra.mxu0 %v2525
    %v2544 = vpop.f32.mrf.mxu0
    %v2545 = vadd.f32 0.0, %v2544
    %2546 = vdwg.mxu0
    %v2548 = vsel %vm209, %v2545, 0
    %2550 = vmatpush.msra.mxu0 0.0
    %2551 = vmatpush.msra.mxu0 0.0
    %2552 = vmatpush.msra.mxu0 0.0
    %2553 = vmatpush.msra.mxu0 0.0
    %2554 = vmatpush.msra.mxu0 0.0
    %2555 = vmatpush.msra.mxu0 0.0
    %2556 = vmatpush.msra.mxu0 0.0
    %2557 = vmatpush.msra.mxu0 0.0
    %2558 = vmatpush.msra.mxu0 0.0
    %2559 = vmatpush.msra.mxu0 0.0
    %2560 = vmatpush.msra.mxu0 0.0
    %2561 = vmatpush.msra.mxu0 0.0
    %2562 = vmatpush.msra.mxu0 0.0
    %2563 = vmatpush.msra.mxu0 0.0
    %2564 = vmatpush.msra.mxu0 0.0
    %2565 = vmatpush.msra.mxu0 %v2149
    %2566 = vmatmul.f32.gmra.mxu0 %v2548
    %v2567 = vpop.f32.mrf.mxu0
    %v2568 = vadd.f32 0.0, %v2567
    %2569 = vdwg.mxu0
    %v2570 = vadd.f32 %v2481, %v2568
    %v2571 = vmul.f32 %v2173, 0.35355338
    %v2573 = vsel %vm209, %v2571, 0
    %v2576 = vsel %vm209, %v2216, 0
    %2578 = vmatpush.xpose.msra.mxu0 0.0
    %2579 = vmatpush.xpose.msra.mxu0 0.0
    %2580 = vmatpush.xpose.msra.mxu0 0.0
    %2581 = vmatpush.xpose.msra.mxu0 0.0
    %2582 = vmatpush.xpose.msra.mxu0 0.0
    %2583 = vmatpush.xpose.msra.mxu0 0.0
    %2584 = vmatpush.xpose.msra.mxu0 0.0
    %2585 = vmatpush.xpose.msra.mxu0 0.0
    %2586 = vmatpush.xpose.msra.mxu0 0.0
    %2587 = vmatpush.xpose.msra.mxu0 0.0
    %2588 = vmatpush.xpose.msra.mxu0 0.0
    %2589 = vmatpush.xpose.msra.mxu0 0.0
    %2590 = vmatpush.xpose.msra.mxu0 0.0
    %2591 = vmatpush.xpose.msra.mxu0 0.0
    %2592 = vmatpush.xpose.msra.mxu0 0.0
    %2593 = vmatpush.xpose.msra.mxu0 %v2576
    %2594 = vmatmul.f32.gmra.mxu0 %v2573
    %v2595 = vpop.f32.mrf.mxu0
    %v2596 = vadd.f32 0.0, %v2595
    %2597 = vdwg.mxu0
    %v2598 = vsel %vm209, %v2596, -inf
    %2599 = vmax.xlane.f32.xlu0 %v2598
    %v2600 = vpop.xlane.xlu0 %2599
    %v2601 = vsub.f32 %v2596, %v2600
    %v2602 = vmul.f32 %v2601, 1.442695
    %v2603 = vpow.pop %v2602
    %v2604 = vsel %vm209, %v2603, 0.0
    %2605 = vadd.xlane.f32.xlu0 %v2604
    %v2606 = vpop.xlane.xlu0 %2605
    %v2607 = vrcp.pop %v2606
    %v2608 = vmul.f32 %v2603, %v2607
    %2609 = vrot.lane.b32.xlu0 %v2216, 96
    %v2610 = vpop.permute.xlu0 %2609
    %v2613 = vsel %vm209, %v2608, 0
    %2615 = vmatpush.msra.mxu0 0.0
    %2616 = vmatpush.msra.mxu0 0.0
    %2617 = vmatpush.msra.mxu0 0.0
    %2618 = vmatpush.msra.mxu0 0.0
    %2619 = vmatpush.msra.mxu0 0.0
    %2620 = vmatpush.msra.mxu0 0.0
    %2621 = vmatpush.msra.mxu0 0.0
    %2622 = vmatpush.msra.mxu0 0.0
    %2623 = vmatpush.msra.mxu0 0.0
    %2624 = vmatpush.msra.mxu0 0.0
    %2625 = vmatpush.msra.mxu0 0.0
    %2626 = vmatpush.msra.mxu0 0.0
    %2627 = vmatpush.msra.mxu0 0.0
    %2628 = vmatpush.msra.mxu0 0.0
    %2629 = vmatpush.msra.mxu0 0.0
    %2630 = vmatpush.msra.mxu0 %v2610
    %2631 = vmatmul.f32.gmra.mxu0 %v2613
    %v2632 = vpop.f32.mrf.mxu0
    %v2633 = vadd.f32 0.0, %v2632
    %2634 = vdwg.mxu0
    %2635 = vrot.lane.b32.xlu0 %v2571, 120
    %v2636 = vpop.permute.xlu0 %2635
    %2637 = vrot.lane.b32.xlu0 %v2216, 120
    %v2638 = vpop.permute.xlu0 %2637
    %v2639 = vsel %vm209, %v2636, 0
    %v2641 = vsel %vm209, %v2638, 0
    %2643 = vmatpush.xpose.msra.mxu0 0.0
    %2644 = vmatpush.xpose.msra.mxu0 0.0
    %2645 = vmatpush.xpose.msra.mxu0 0.0
    %2646 = vmatpush.xpose.msra.mxu0 0.0
    %2647 = vmatpush.xpose.msra.mxu0 0.0
    %2648 = vmatpush.xpose.msra.mxu0 0.0
    %2649 = vmatpush.xpose.msra.mxu0 0.0
    %2650 = vmatpush.xpose.msra.mxu0 0.0
    %2651 = vmatpush.xpose.msra.mxu0 0.0
    %2652 = vmatpush.xpose.msra.mxu0 0.0
    %2653 = vmatpush.xpose.msra.mxu0 0.0
    %2654 = vmatpush.xpose.msra.mxu0 0.0
    %2655 = vmatpush.xpose.msra.mxu0 0.0
    %2656 = vmatpush.xpose.msra.mxu0 0.0
    %2657 = vmatpush.xpose.msra.mxu0 0.0
    %2658 = vmatpush.xpose.msra.mxu0 %v2641
    %2659 = vmatmul.f32.gmra.mxu0 %v2639
    %v2660 = vpop.f32.mrf.mxu0
    %v2661 = vadd.f32 0.0, %v2660
    %2662 = vdwg.mxu0
    %v2663 = vsel %vm209, %v2661, -inf
    %2664 = vmax.xlane.f32.xlu0 %v2663
    %v2665 = vpop.xlane.xlu0 %2664
    %v2666 = vsub.f32 %v2661, %v2665
    %v2667 = vmul.f32 %v2666, 1.442695
    %v2668 = vpow.pop %v2667
    %v2669 = vsel %vm209, %v2668, 0.0
    %2670 = vadd.xlane.f32.xlu0 %v2669
    %v2671 = vpop.xlane.xlu0 %2670
    %v2672 = vrcp.pop %v2671
    %v2673 = vmul.f32 %v2668, %v2672
    %2674 = vrot.lane.b32.xlu0 %v2216, 88
    %v2675 = vpop.permute.xlu0 %2674
    %v2678 = vsel %vm209, %v2673, 0
    %2680 = vmatpush.msra.mxu0 0.0
    %2681 = vmatpush.msra.mxu0 0.0
    %2682 = vmatpush.msra.mxu0 0.0
    %2683 = vmatpush.msra.mxu0 0.0
    %2684 = vmatpush.msra.mxu0 0.0
    %2685 = vmatpush.msra.mxu0 0.0
    %2686 = vmatpush.msra.mxu0 0.0
    %2687 = vmatpush.msra.mxu0 0.0
    %2688 = vmatpush.msra.mxu0 0.0
    %2689 = vmatpush.msra.mxu0 0.0
    %2690 = vmatpush.msra.mxu0 0.0
    %2691 = vmatpush.msra.mxu0 0.0
    %2692 = vmatpush.msra.mxu0 0.0
    %2693 = vmatpush.msra.mxu0 0.0
    %2694 = vmatpush.msra.mxu0 0.0
    %2695 = vmatpush.msra.mxu0 %v2675
    %2696 = vmatmul.f32.gmra.mxu0 %v2678
    %v2697 = vpop.f32.mrf.mxu0
    %v2698 = vadd.f32 0.0, %v2697
    %2699 = vdwg.mxu0
    %v2701 = vsel %vm209, %v2698, 0
    %2703 = vmatpush.msra.mxu0 0.0
    %2704 = vmatpush.msra.mxu0 0.0
    %2705 = vmatpush.msra.mxu0 0.0
    %2706 = vmatpush.msra.mxu0 0.0
    %2707 = vmatpush.msra.mxu0 0.0
    %2708 = vmatpush.msra.mxu0 0.0
    %2709 = vmatpush.msra.mxu0 0.0
    %2710 = vmatpush.msra.mxu0 0.0
    %2711 = vmatpush.msra.mxu0 0.0
    %2712 = vmatpush.msra.mxu0 0.0
    %2713 = vmatpush.msra.mxu0 0.0
    %2714 = vmatpush.msra.mxu0 0.0
    %2715 = vmatpush.msra.mxu0 0.0
    %2716 = vmatpush.msra.mxu0 0.0
    %2717 = vmatpush.msra.mxu0 0.0
    %2718 = vmatpush.msra.mxu0 %v2147
    %2719 = vmatmul.f32.gmra.mxu0 %v2701
    %v2720 = vpop.f32.mrf.mxu0
    %v2721 = vadd.f32 0.0, %v2720
    %2722 = vdwg.mxu0
    %v2724 = vsel %vm209, %v2633, 0
    %2726 = vmatpush.msra.mxu0 0.0
    %2727 = vmatpush.msra.mxu0 0.0
    %2728 = vmatpush.msra.mxu0 0.0
    %2729 = vmatpush.msra.mxu0 0.0
    %2730 = vmatpush.msra.mxu0 0.0
    %2731 = vmatpush.msra.mxu0 0.0
    %2732 = vmatpush.msra.mxu0 0.0
    %2733 = vmatpush.msra.mxu0 0.0
    %2734 = vmatpush.msra.mxu0 0.0
    %2735 = vmatpush.msra.mxu0 0.0
    %2736 = vmatpush.msra.mxu0 0.0
    %2737 = vmatpush.msra.mxu0 0.0
    %2738 = vmatpush.msra.mxu0 0.0
    %2739 = vmatpush.msra.mxu0 0.0
    %2740 = vmatpush.msra.mxu0 0.0
    %2741 = vmatpush.msra.mxu0 %v2146
    %2742 = vmatmul.f32.gmra.mxu0 %v2724
    %v2743 = vpop.f32.mrf.mxu0
    %v2744 = vadd.f32 %v2721, %v2743
    %2745 = vdwg.mxu0
    %2746 = vrot.lane.b32.xlu0 %v2571, 112
    %v2747 = vpop.permute.xlu0 %2746
    %2748 = vrot.lane.b32.xlu0 %v2216, 112
    %v2749 = vpop.permute.xlu0 %2748
    %v2750 = vsel %vm209, %v2747, 0
    %v2752 = vsel %vm209, %v2749, 0
    %2754 = vmatpush.xpose.msra.mxu0 0.0
    %2755 = vmatpush.xpose.msra.mxu0 0.0
    %2756 = vmatpush.xpose.msra.mxu0 0.0
    %2757 = vmatpush.xpose.msra.mxu0 0.0
    %2758 = vmatpush.xpose.msra.mxu0 0.0
    %2759 = vmatpush.xpose.msra.mxu0 0.0
    %2760 = vmatpush.xpose.msra.mxu0 0.0
    %2761 = vmatpush.xpose.msra.mxu0 0.0
    %2762 = vmatpush.xpose.msra.mxu0 0.0
    %2763 = vmatpush.xpose.msra.mxu0 0.0
    %2764 = vmatpush.xpose.msra.mxu0 0.0
    %2765 = vmatpush.xpose.msra.mxu0 0.0
    %2766 = vmatpush.xpose.msra.mxu0 0.0
    %2767 = vmatpush.xpose.msra.mxu0 0.0
    %2768 = vmatpush.xpose.msra.mxu0 0.0
    %2769 = vmatpush.xpose.msra.mxu0 %v2752
    %2770 = vmatmul.f32.gmra.mxu0 %v2750
    %v2771 = vpop.f32.mrf.mxu0
    %v2772 = vadd.f32 0.0, %v2771
    %2773 = vdwg.mxu0
    %v2774 = vsel %vm209, %v2772, -inf
    %2775 = vmax.xlane.f32.xlu0 %v2774
    %v2776 = vpop.xlane.xlu0 %2775
    %v2777 = vsub.f32 %v2772, %v2776
    %v2778 = vmul.f32 %v2777, 1.442695
    %v2779 = vpow.pop %v2778
    %v2780 = vsel %vm209, %v2779, 0.0
    %2781 = vadd.xlane.f32.xlu0 %v2780
    %v2782 = vpop.xlane.xlu0 %2781
    %v2783 = vrcp.pop %v2782
    %v2784 = vmul.f32 %v2779, %v2783
    %2785 = vrot.lane.b32.xlu0 %v2216, 80
    %v2786 = vpop.permute.xlu0 %2785
    %v2789 = vsel %vm209, %v2784, 0
    %2791 = vmatpush.msra.mxu0 0.0
    %2792 = vmatpush.msra.mxu0 0.0
    %2793 = vmatpush.msra.mxu0 0.0
    %2794 = vmatpush.msra.mxu0 0.0
    %2795 = vmatpush.msra.mxu0 0.0
    %2796 = vmatpush.msra.mxu0 0.0
    %2797 = vmatpush.msra.mxu0 0.0
    %2798 = vmatpush.msra.mxu0 0.0
    %2799 = vmatpush.msra.mxu0 0.0
    %2800 = vmatpush.msra.mxu0 0.0
    %2801 = vmatpush.msra.mxu0 0.0
    %2802 = vmatpush.msra.mxu0 0.0
    %2803 = vmatpush.msra.mxu0 0.0
    %2804 = vmatpush.msra.mxu0 0.0
    %2805 = vmatpush.msra.mxu0 0.0
    %2806 = vmatpush.msra.mxu0 %v2786
    %2807 = vmatmul.f32.gmra.mxu0 %v2789
    %v2808 = vpop.f32.mrf.mxu0
    %v2809 = vadd.f32 0.0, %v2808
    %2810 = vdwg.mxu0
    %v2812 = vsel %vm209, %v2809, 0
    %2814 = vmatpush.msra.mxu0 0.0
    %2815 = vmatpush.msra.mxu0 0.0
    %2816 = vmatpush.msra.mxu0 0.0
    %2817 = vmatpush.msra.mxu0 0.0
    %2818 = vmatpush.msra.mxu0 0.0
    %2819 = vmatpush.msra.mxu0 0.0
    %2820 = vmatpush.msra.mxu0 0.0
    %2821 = vmatpush.msra.mxu0 0.0
    %2822 = vmatpush.msra.mxu0 0.0
    %2823 = vmatpush.msra.mxu0 0.0
    %2824 = vmatpush.msra.mxu0 0.0
    %2825 = vmatpush.msra.mxu0 0.0
    %2826 = vmatpush.msra.mxu0 0.0
    %2827 = vmatpush.msra.mxu0 0.0
    %2828 = vmatpush.msra.mxu0 0.0
    %2829 = vmatpush.msra.mxu0 %v2148
    %2830 = vmatmul.f32.gmra.mxu0 %v2812
    %v2831 = vpop.f32.mrf.mxu0
    %v2832 = vadd.f32 0.0, %v2831
    %2833 = vdwg.mxu0
    %v2834 = vadd.f32 %v2744, %v2832
    %2835 = vrot.lane.b32.xlu0 %v2571, 104
    %v2836 = vpop.permute.xlu0 %2835
    %2837 = vrot.lane.b32.xlu0 %v2216, 104
    %v2838 = vpop.permute.xlu0 %2837
    %v2839 = vsel %vm209, %v2836, 0
    %v2841 = vsel %vm209, %v2838, 0
    %2843 = vmatpush.xpose.msra.mxu0 0.0
    %2844 = vmatpush.xpose.msra.mxu0 0.0
    %2845 = vmatpush.xpose.msra.mxu0 0.0
    %2846 = vmatpush.xpose.msra.mxu0 0.0
    %2847 = vmatpush.xpose.msra.mxu0 0.0
    %2848 = vmatpush.xpose.msra.mxu0 0.0
    %2849 = vmatpush.xpose.msra.mxu0 0.0
    %2850 = vmatpush.xpose.msra.mxu0 0.0
    %2851 = vmatpush.xpose.msra.mxu0 0.0
    %2852 = vmatpush.xpose.msra.mxu0 0.0
    %2853 = vmatpush.xpose.msra.mxu0 0.0
    %2854 = vmatpush.xpose.msra.mxu0 0.0
    %2855 = vmatpush.xpose.msra.mxu0 0.0
    %2856 = vmatpush.xpose.msra.mxu0 0.0
    %2857 = vmatpush.xpose.msra.mxu0 0.0
    %2858 = vmatpush.xpose.msra.mxu0 %v2841
    %2859 = vmatmul.f32.gmra.mxu0 %v2839
    %v2860 = vpop.f32.mrf.mxu0
    %v2861 = vadd.f32 0.0, %v2860
    %2862 = vdwg.mxu0
    %v2863 = vsel %vm209, %v2861, -inf
    %2864 = vmax.xlane.f32.xlu0 %v2863
    %v2865 = vpop.xlane.xlu0 %2864
    %v2866 = vsub.f32 %v2861, %v2865
    %v2867 = vmul.f32 %v2866, 1.442695
    %v2868 = vpow.pop %v2867
    %v2869 = vsel %vm209, %v2868, 0.0
    %2870 = vadd.xlane.f32.xlu0 %v2869
    %v2871 = vpop.xlane.xlu0 %2870
    %v2872 = vrcp.pop %v2871
    %v2873 = vmul.f32 %v2868, %v2872
    %2874 = vrot.lane.b32.xlu0 %v2216, 72
    %v2875 = vpop.permute.xlu0 %2874
    %v2878 = vsel %vm209, %v2873, 0
    %2880 = vmatpush.msra.mxu0 0.0
    %2881 = vmatpush.msra.mxu0 0.0
    %2882 = vmatpush.msra.mxu0 0.0
    %2883 = vmatpush.msra.mxu0 0.0
    %2884 = vmatpush.msra.mxu0 0.0
    %2885 = vmatpush.msra.mxu0 0.0
    %2886 = vmatpush.msra.mxu0 0.0
    %2887 = vmatpush.msra.mxu0 0.0
    %2888 = vmatpush.msra.mxu0 0.0
    %2889 = vmatpush.msra.mxu0 0.0
    %2890 = vmatpush.msra.mxu0 0.0
    %2891 = vmatpush.msra.mxu0 0.0
    %2892 = vmatpush.msra.mxu0 0.0
    %2893 = vmatpush.msra.mxu0 0.0
    %2894 = vmatpush.msra.mxu0 0.0
    %2895 = vmatpush.msra.mxu0 %v2875
    %2896 = vmatmul.f32.gmra.mxu0 %v2878
    %v2897 = vpop.f32.mrf.mxu0
    %v2898 = vadd.f32 0.0, %v2897
    %2899 = vdwg.mxu0
    %v2901 = vsel %vm209, %v2898, 0
    %2903 = vmatpush.msra.mxu0 0.0
    %2904 = vmatpush.msra.mxu0 0.0
    %2905 = vmatpush.msra.mxu0 0.0
    %2906 = vmatpush.msra.mxu0 0.0
    %2907 = vmatpush.msra.mxu0 0.0
    %2908 = vmatpush.msra.mxu0 0.0
    %2909 = vmatpush.msra.mxu0 0.0
    %2910 = vmatpush.msra.mxu0 0.0
    %2911 = vmatpush.msra.mxu0 0.0
    %2912 = vmatpush.msra.mxu0 0.0
    %2913 = vmatpush.msra.mxu0 0.0
    %2914 = vmatpush.msra.mxu0 0.0
    %2915 = vmatpush.msra.mxu0 0.0
    %2916 = vmatpush.msra.mxu0 0.0
    %2917 = vmatpush.msra.mxu0 0.0
    %2918 = vmatpush.msra.mxu0 %v2149
    %2919 = vmatmul.f32.gmra.mxu0 %v2901
    %v2920 = vpop.f32.mrf.mxu0
    %v2921 = vadd.f32 0.0, %v2920
    %2922 = vdwg.mxu0
    %v2923 = vadd.f32 %v2834, %v2921
    %v2924 = vperm.slane %v2150, 0
    %v2925 = vadd.f32 %v2570, %v2924
    %v2926 = vadd.f32 %v2923, %v2924
    %v2927 = vadd.f32 %v122, %v2925
    %v2928 = vadd.f32 %v123, %v2926
    %v2929 = vsel %vm135, %v2927, 0.0
    %2930 = vadd.xlane.f32.xlu0 %v2929
    %v2931 = vpop.xlane.xlu0 %2930
    %v2932 = vsel %vm135, %v2928, 0.0
    %2933 = vadd.xlane.f32.xlu0 %v2932
    %v2934 = vpop.xlane.xlu0 %2933
    %v2935 = vmul.f32 %v2931, %v932
    %v2936 = vmul.f32 %v2934, %v932
    %v2937 = vsub.f32 %v2927, %v2935
    %v2938 = vsub.f32 %v2928, %v2936
    %v2939 = vmul.f32 %v2937, %v2937
    %v2940 = vmul.f32 %v2938, %v2938
    %v2941 = vsel %vm135, %v2939, 0.0
    %2942 = vadd.xlane.f32.xlu0 %v2941
    %v2943 = vpop.xlane.xlu0 %2942
    %v2944 = vsel %vm135, %v2940, 0.0
    %2945 = vadd.xlane.f32.xlu0 %v2944
    %v2946 = vpop.xlane.xlu0 %2945
    %v2947 = vmul.f32 %v2943, %v932
    %v2948 = vmul.f32 %v2946, %v932
    %v2949 = vadd.f32 %v2947, 1e-05
    %v2950 = vadd.f32 %v2948, 1e-05
    %v2951 = vrsqrt.pop %v2949
    %v2952 = vmul.f32 %v2951, %v2949
    %v2953 = vmul.f32 %v2952, %v2951
    %v2954 = vmul.f32 0.5, %v2953
    %v2955 = vsub.f32 1.5, %v2954
    %v2956 = vmul.f32 %v2951, %v2955
    %vm2957 = vweird.f32 %v2949
    %vm2958 = vweird.f32 %v2951
    %vm2959 = vmor %vm2957, %vm2958
    %v2960 = vsel %vm2959, %v2951, %v2956
    %v2961 = vrsqrt.pop %v2950
    %v2962 = vmul.f32 %v2961, %v2950
    %v2963 = vmul.f32 %v2962, %v2961
    %v2964 = vmul.f32 0.5, %v2963
    %v2965 = vsub.f32 1.5, %v2964
    %v2966 = vmul.f32 %v2961, %v2965
    %vm2967 = vweird.f32 %v2950
    %vm2968 = vweird.f32 %v2961
    %vm2969 = vmor %vm2967, %vm2968
    %v2970 = vsel %vm2969, %v2961, %v2966
    %v2971 = vmul.f32 %v2937, %v2960
    %v2972 = vmul.f32 %v2938, %v2970
    %v2973 = vld [vmem:[#allocation5 + $0x5a0] sm:$0x1]
    %v2974 = vperm.slane %v2973, 0
    %v2975 = vmul.f32 %v2971, %v2974
    %v2976 = vmul.f32 %v2972, %v2974
    %v2977 = vld [vmem:[#allocation5 + $0x5a8] sm:$0x1]
    %v2978 = vperm.slane %v2977, 0
    %v2979 = vadd.f32 %v2975, %v2978
    %v2980 = vadd.f32 %v2976, %v2978
    %v2981 = vld [vmem:[#allocation5 + $0x4a0] sm:$0xff]
    %v2982 = vld [vmem:[#allocation5 + $0x4a8] sm:$0xff]
    %v2983 = vld [vmem:[#allocation5 + $0x4b0] sm:$0xff]
    %v2984 = vld [vmem:[#allocation5 + $0x4b8] sm:$0xff]
    %v2985 = vld [vmem:[#allocation5 + $0x4c0] sm:$0x1]
    %v2986 = vld [vmem:[#allocation5 + $0x4c8] sm:$0xff]
    %v2987 = vld [vmem:[#allocation5 + $0x4d0] sm:$0xff]
    %v2988 = vld [vmem:[#allocation5 + $0x4d8] sm:$0xff]
    %v2989 = vld [vmem:[#allocation5 + $0x4e0] sm:$0xff]
    %v2990 = vld [vmem:[#allocation5 + $0x4e8] sm:$0x1]
    %v2991 = vperm.slane %v2985, 0
    %v2993 = vsel %vm135, %v2979, 0
    %v2996 = vsel %vm135, %v2980, 0
    %2998 = vmatpush.msra.mxu0 0.0
    %2999 = vmatpush.msra.mxu0 0.0
    %3000 = vmatpush.msra.mxu0 0.0
    %3001 = vmatpush.msra.mxu0 0.0
    %3002 = vmatpush.msra.mxu0 0.0
    %3003 = vmatpush.msra.mxu0 0.0
    %3004 = vmatpush.msra.mxu0 0.0
    %3005 = vmatpush.msra.mxu0 0.0
    %3006 = vmatpush.msra.mxu0 0.0
    %3007 = vmatpush.msra.mxu0 0.0
    %3008 = vmatpush.msra.mxu0 0.0
    %3009 = vmatpush.msra.mxu0 0.0
    %3010 = vmatpush.msra.mxu0 %v2984
    %3011 = vmatpush.msra.mxu0 %v2983
    %3012 = vmatpush.msra.mxu0 %v2982
    %3013 = vmatpush.msra.mxu0 %v2981
    %3014 = vmatmul.f32.gmra.mxu0 %v2993
    %v3015 = vpop.f32.mrf.mxu0
    %v3016 = vadd.f32 %v2991, %v3015
    %3017 = vmatmul.f32.gmra.mxu0 %v2996
    %v3018 = vpop.f32.mrf.mxu0
    %v3019 = vadd.f32 %v2991, %v3018
    %3020 = vdwg.mxu0
    %3025 = vrot.lane.b32.xlu0 %v2981, 96
    %v3026 = vpop.permute.xlu0 %3025
    %3027 = vrot.lane.b32.xlu0 %v2982, 96
    %v3028 = vpop.permute.xlu0 %3027
    %3029 = vrot.lane.b32.xlu0 %v2983, 96
    %v3030 = vpop.permute.xlu0 %3029
    %3031 = vrot.lane.b32.xlu0 %v2984, 96
    %v3032 = vpop.permute.xlu0 %3031
    %3038 = vrot.lane.b32.xlu0 %v2991, 96
    %v3039 = vpop.permute.xlu0 %3038
    %v3042 = vsel %vm135, %v2139, 0
    %v3045 = vsel %vm135, %v2140, 0
    %3047 = vmatpush.msra.mxu0 0.0
    %3048 = vmatpush.msra.mxu0 0.0
    %3049 = vmatpush.msra.mxu0 0.0
    %3050 = vmatpush.msra.mxu0 0.0
    %3051 = vmatpush.msra.mxu0 0.0
    %3052 = vmatpush.msra.mxu0 0.0
    %3053 = vmatpush.msra.mxu0 0.0
    %3054 = vmatpush.msra.mxu0 0.0
    %3055 = vmatpush.msra.mxu0 0.0
    %3056 = vmatpush.msra.mxu0 0.0
    %3057 = vmatpush.msra.mxu0 0.0
    %3058 = vmatpush.msra.mxu0 0.0
    %3059 = vmatpush.msra.mxu0 %v3032
    %3060 = vmatpush.msra.mxu0 %v3030
    %3061 = vmatpush.msra.mxu0 %v3028
    %3062 = vmatpush.msra.mxu0 %v3026
    %3063 = vmatmul.f32.gmra.mxu0 %v3042
    %v3064 = vpop.f32.mrf.mxu0
    %v3065 = vadd.f32 %v3039, %v3064
    %3066 = vmatmul.f32.gmra.mxu0 %v3045
    %v3067 = vpop.f32.mrf.mxu0
    %v3068 = vadd.f32 %v3039, %v3067
    %3069 = vdwg.mxu0
    %v3070 = vmul.f32 %v3016, 0.35355338
    %v3072 = vsel %vm209, %v3070, 0
    %v3075 = vsel %vm209, %v3065, 0
    %3077 = vmatpush.xpose.msra.mxu0 0.0
    %3078 = vmatpush.xpose.msra.mxu0 0.0
    %3079 = vmatpush.xpose.msra.mxu0 0.0
    %3080 = vmatpush.xpose.msra.mxu0 0.0
    %3081 = vmatpush.xpose.msra.mxu0 0.0
    %3082 = vmatpush.xpose.msra.mxu0 0.0
    %3083 = vmatpush.xpose.msra.mxu0 0.0
    %3084 = vmatpush.xpose.msra.mxu0 0.0
    %3085 = vmatpush.xpose.msra.mxu0 0.0
    %3086 = vmatpush.xpose.msra.mxu0 0.0
    %3087 = vmatpush.xpose.msra.mxu0 0.0
    %3088 = vmatpush.xpose.msra.mxu0 0.0
    %3089 = vmatpush.xpose.msra.mxu0 0.0
    %3090 = vmatpush.xpose.msra.mxu0 0.0
    %3091 = vmatpush.xpose.msra.mxu0 0.0
    %3092 = vmatpush.xpose.msra.mxu0 %v3075
    %3093 = vmatmul.f32.gmra.mxu0 %v3072
    %v3094 = vpop.f32.mrf.mxu0
    %v3095 = vadd.f32 0.0, %v3094
    %3096 = vdwg.mxu0
    %v3097 = vsel %vm209, %v3095, -inf
    %3098 = vmax.xlane.f32.xlu0 %v3097
    %v3099 = vpop.xlane.xlu0 %3098
    %v3100 = vsub.f32 %v3095, %v3099
    %v3101 = vmul.f32 %v3100, 1.442695
    %v3102 = vpow.pop %v3101
    %v3103 = vsel %vm209, %v3102, 0.0
    %3104 = vadd.xlane.f32.xlu0 %v3103
    %v3105 = vpop.xlane.xlu0 %3104
    %v3106 = vrcp.pop %v3105
    %v3107 = vmul.f32 %v3102, %v3106
    %3108 = vrot.lane.b32.xlu0 %v3065, 96
    %v3109 = vpop.permute.xlu0 %3108
    %v3112 = vsel %vm209, %v3107, 0
    %3114 = vmatpush.msra.mxu0 0.0
    %3115 = vmatpush.msra.mxu0 0.0
    %3116 = vmatpush.msra.mxu0 0.0
    %3117 = vmatpush.msra.mxu0 0.0
    %3118 = vmatpush.msra.mxu0 0.0
    %3119 = vmatpush.msra.mxu0 0.0
    %3120 = vmatpush.msra.mxu0 0.0
    %3121 = vmatpush.msra.mxu0 0.0
    %3122 = vmatpush.msra.mxu0 0.0
    %3123 = vmatpush.msra.mxu0 0.0
    %3124 = vmatpush.msra.mxu0 0.0
    %3125 = vmatpush.msra.mxu0 0.0
    %3126 = vmatpush.msra.mxu0 0.0
    %3127 = vmatpush.msra.mxu0 0.0
    %3128 = vmatpush.msra.mxu0 0.0
    %3129 = vmatpush.msra.mxu0 %v3109
    %3130 = vmatmul.f32.gmra.mxu0 %v3112
    %v3131 = vpop.f32.mrf.mxu0
    %v3132 = vadd.f32 0.0, %v3131
    %3133 = vdwg.mxu0
    %3134 = vrot.lane.b32.xlu0 %v3070, 120
    %v3135 = vpop.permute.xlu0 %3134
    %3136 = vrot.lane.b32.xlu0 %v3065, 120
    %v3137 = vpop.permute.xlu0 %3136
    %v3138 = vsel %vm209, %v3135, 0
    %v3140 = vsel %vm209, %v3137, 0
    %3142 = vmatpush.xpose.msra.mxu0 0.0
    %3143 = vmatpush.xpose.msra.mxu0 0.0
    %3144 = vmatpush.xpose.msra.mxu0 0.0
    %3145 = vmatpush.xpose.msra.mxu0 0.0
    %3146 = vmatpush.xpose.msra.mxu0 0.0
    %3147 = vmatpush.xpose.msra.mxu0 0.0
    %3148 = vmatpush.xpose.msra.mxu0 0.0
    %3149 = vmatpush.xpose.msra.mxu0 0.0
    %3150 = vmatpush.xpose.msra.mxu0 0.0
    %3151 = vmatpush.xpose.msra.mxu0 0.0
    %3152 = vmatpush.xpose.msra.mxu0 0.0
    %3153 = vmatpush.xpose.msra.mxu0 0.0
    %3154 = vmatpush.xpose.msra.mxu0 0.0
    %3155 = vmatpush.xpose.msra.mxu0 0.0
    %3156 = vmatpush.xpose.msra.mxu0 0.0
    %3157 = vmatpush.xpose.msra.mxu0 %v3140
    %3158 = vmatmul.f32.gmra.mxu0 %v3138
    %v3159 = vpop.f32.mrf.mxu0
    %v3160 = vadd.f32 0.0, %v3159
    %3161 = vdwg.mxu0
    %v3162 = vsel %vm209, %v3160, -inf
    %3163 = vmax.xlane.f32.xlu0 %v3162
    %v3164 = vpop.xlane.xlu0 %3163
    %v3165 = vsub.f32 %v3160, %v3164
    %v3166 = vmul.f32 %v3165, 1.442695
    %v3167 = vpow.pop %v3166
    %v3168 = vsel %vm209, %v3167, 0.0
    %3169 = vadd.xlane.f32.xlu0 %v3168
    %v3170 = vpop.xlane.xlu0 %3169
    %v3171 = vrcp.pop %v3170
    %v3172 = vmul.f32 %v3167, %v3171
    %3173 = vrot.lane.b32.xlu0 %v3065, 88
    %v3174 = vpop.permute.xlu0 %3173
    %v3177 = vsel %vm209, %v3172, 0
    %3179 = vmatpush.msra.mxu0 0.0
    %3180 = vmatpush.msra.mxu0 0.0
    %3181 = vmatpush.msra.mxu0 0.0
    %3182 = vmatpush.msra.mxu0 0.0
    %3183 = vmatpush.msra.mxu0 0.0
    %3184 = vmatpush.msra.mxu0 0.0
    %3185 = vmatpush.msra.mxu0 0.0
    %3186 = vmatpush.msra.mxu0 0.0
    %3187 = vmatpush.msra.mxu0 0.0
    %3188 = vmatpush.msra.mxu0 0.0
    %3189 = vmatpush.msra.mxu0 0.0
    %3190 = vmatpush.msra.mxu0 0.0
    %3191 = vmatpush.msra.mxu0 0.0
    %3192 = vmatpush.msra.mxu0 0.0
    %3193 = vmatpush.msra.mxu0 0.0
    %3194 = vmatpush.msra.mxu0 %v3174
    %3195 = vmatmul.f32.gmra.mxu0 %v3177
    %v3196 = vpop.f32.mrf.mxu0
    %v3197 = vadd.f32 0.0, %v3196
    %3198 = vdwg.mxu0
    %v3200 = vsel %vm209, %v3197, 0
    %3202 = vmatpush.msra.mxu0 0.0
    %3203 = vmatpush.msra.mxu0 0.0
    %3204 = vmatpush.msra.mxu0 0.0
    %3205 = vmatpush.msra.mxu0 0.0
    %3206 = vmatpush.msra.mxu0 0.0
    %3207 = vmatpush.msra.mxu0 0.0
    %3208 = vmatpush.msra.mxu0 0.0
    %3209 = vmatpush.msra.mxu0 0.0
    %3210 = vmatpush.msra.mxu0 0.0
    %3211 = vmatpush.msra.mxu0 0.0
    %3212 = vmatpush.msra.mxu0 0.0
    %3213 = vmatpush.msra.mxu0 0.0
    %3214 = vmatpush.msra.mxu0 0.0
    %3215 = vmatpush.msra.mxu0 0.0
    %3216 = vmatpush.msra.mxu0 0.0
    %3217 = vmatpush.msra.mxu0 %v2987
    %3218 = vmatmul.f32.gmra.mxu0 %v3200
    %v3219 = vpop.f32.mrf.mxu0
    %v3220 = vadd.f32 0.0, %v3219
    %3221 = vdwg.mxu0
    %v3223 = vsel %vm209, %v3132, 0
    %3225 = vmatpush.msra.mxu0 0.0
    %3226 = vmatpush.msra.mxu0 0.0
    %3227 = vmatpush.msra.mxu0 0.0
    %3228 = vmatpush.msra.mxu0 0.0
    %3229 = vmatpush.msra.mxu0 0.0
    %3230 = vmatpush.msra.mxu0 0.0
    %3231 = vmatpush.msra.mxu0 0.0
    %3232 = vmatpush.msra.mxu0 0.0
    %3233 = vmatpush.msra.mxu0 0.0
    %3234 = vmatpush.msra.mxu0 0.0
    %3235 = vmatpush.msra.mxu0 0.0
    %3236 = vmatpush.msra.mxu0 0.0
    %3237 = vmatpush.msra.mxu0 0.0
    %3238 = vmatpush.msra.mxu0 0.0
    %3239 = vmatpush.msra.mxu0 0.0
    %3240 = vmatpush.msra.mxu0 %v2986
    %3241 = vmatmul.f32.gmra.mxu0 %v3223
    %v3242 = vpop.f32.mrf.mxu0
    %v3243 = vadd.f32 %v3220, %v3242
    %3244 = vdwg.mxu0
    %3245 = vrot.lane.b32.xlu0 %v3070, 112
    %v3246 = vpop.permute.xlu0 %3245
    %3247 = vrot.lane.b32.xlu0 %v3065, 112
    %v3248 = vpop.permute.xlu0 %3247
    %v3249 = vsel %vm209, %v3246, 0
    %v3251 = vsel %vm209, %v3248, 0
    %3253 = vmatpush.xpose.msra.mxu0 0.0
    %3254 = vmatpush.xpose.msra.mxu0 0.0
    %3255 = vmatpush.xpose.msra.mxu0 0.0
    %3256 = vmatpush.xpose.msra.mxu0 0.0
    %3257 = vmatpush.xpose.msra.mxu0 0.0
    %3258 = vmatpush.xpose.msra.mxu0 0.0
    %3259 = vmatpush.xpose.msra.mxu0 0.0
    %3260 = vmatpush.xpose.msra.mxu0 0.0
    %3261 = vmatpush.xpose.msra.mxu0 0.0
    %3262 = vmatpush.xpose.msra.mxu0 0.0
    %3263 = vmatpush.xpose.msra.mxu0 0.0
    %3264 = vmatpush.xpose.msra.mxu0 0.0
    %3265 = vmatpush.xpose.msra.mxu0 0.0
    %3266 = vmatpush.xpose.msra.mxu0 0.0
    %3267 = vmatpush.xpose.msra.mxu0 0.0
    %3268 = vmatpush.xpose.msra.mxu0 %v3251
    %3269 = vmatmul.f32.gmra.mxu0 %v3249
    %v3270 = vpop.f32.mrf.mxu0
    %v3271 = vadd.f32 0.0, %v3270
    %3272 = vdwg.mxu0
    %v3273 = vsel %vm209, %v3271, -inf
    %3274 = vmax.xlane.f32.xlu0 %v3273
    %v3275 = vpop.xlane.xlu0 %3274
    %v3276 = vsub.f32 %v3271, %v3275
    %v3277 = vmul.f32 %v3276, 1.442695
    %v3278 = vpow.pop %v3277
    %v3279 = vsel %vm209, %v3278, 0.0
    %3280 = vadd.xlane.f32.xlu0 %v3279
    %v3281 = vpop.xlane.xlu0 %3280
    %v3282 = vrcp.pop %v3281
    %v3283 = vmul.f32 %v3278, %v3282
    %3284 = vrot.lane.b32.xlu0 %v3065, 80
    %v3285 = vpop.permute.xlu0 %3284
    %v3288 = vsel %vm209, %v3283, 0
    %3290 = vmatpush.msra.mxu0 0.0
    %3291 = vmatpush.msra.mxu0 0.0
    %3292 = vmatpush.msra.mxu0 0.0
    %3293 = vmatpush.msra.mxu0 0.0
    %3294 = vmatpush.msra.mxu0 0.0
    %3295 = vmatpush.msra.mxu0 0.0
    %3296 = vmatpush.msra.mxu0 0.0
    %3297 = vmatpush.msra.mxu0 0.0
    %3298 = vmatpush.msra.mxu0 0.0
    %3299 = vmatpush.msra.mxu0 0.0
    %3300 = vmatpush.msra.mxu0 0.0
    %3301 = vmatpush.msra.mxu0 0.0
    %3302 = vmatpush.msra.mxu0 0.0
    %3303 = vmatpush.msra.mxu0 0.0
    %3304 = vmatpush.msra.mxu0 0.0
    %3305 = vmatpush.msra.mxu0 %v3285
    %3306 = vmatmul.f32.gmra.mxu0 %v3288
    %v3307 = vpop.f32.mrf.mxu0
    %v3308 = vadd.f32 0.0, %v3307
    %3309 = vdwg.mxu0
    %v3311 = vsel %vm209, %v3308, 0
    %3313 = vmatpush.msra.mxu0 0.0
    %3314 = vmatpush.msra.mxu0 0.0
    %3315 = vmatpush.msra.mxu0 0.0
    %3316 = vmatpush.msra.mxu0 0.0
    %3317 = vmatpush.msra.mxu0 0.0
    %3318 = vmatpush.msra.mxu0 0.0
    %3319 = vmatpush.msra.mxu0 0.0
    %3320 = vmatpush.msra.mxu0 0.0
    %3321 = vmatpush.msra.mxu0 0.0
    %3322 = vmatpush.msra.mxu0 0.0
    %3323 = vmatpush.msra.mxu0 0.0
    %3324 = vmatpush.msra.mxu0 0.0
    %3325 = vmatpush.msra.mxu0 0.0
    %3326 = vmatpush.msra.mxu0 0.0
    %3327 = vmatpush.msra.mxu0 0.0
    %3328 = vmatpush.msra.mxu0 %v2988
    %3329 = vmatmul.f32.gmra.mxu0 %v3311
    %v3330 = vpop.f32.mrf.mxu0
    %v3331 = vadd.f32 0.0, %v3330
    %3332 = vdwg.mxu0
    %v3333 = vadd.f32 %v3243, %v3331
    %3334 = vrot.lane.b32.xlu0 %v3070, 104
    %v3335 = vpop.permute.xlu0 %3334
    %3336 = vrot.lane.b32.xlu0 %v3065, 104
    %v3337 = vpop.permute.xlu0 %3336
    %v3338 = vsel %vm209, %v3335, 0
    %v3340 = vsel %vm209, %v3337, 0
    %3342 = vmatpush.xpose.msra.mxu0 0.0
    %3343 = vmatpush.xpose.msra.mxu0 0.0
    %3344 = vmatpush.xpose.msra.mxu0 0.0
    %3345 = vmatpush.xpose.msra.mxu0 0.0
    %3346 = vmatpush.xpose.msra.mxu0 0.0
    %3347 = vmatpush.xpose.msra.mxu0 0.0
    %3348 = vmatpush.xpose.msra.mxu0 0.0
    %3349 = vmatpush.xpose.msra.mxu0 0.0
    %3350 = vmatpush.xpose.msra.mxu0 0.0
    %3351 = vmatpush.xpose.msra.mxu0 0.0
    %3352 = vmatpush.xpose.msra.mxu0 0.0
    %3353 = vmatpush.xpose.msra.mxu0 0.0
    %3354 = vmatpush.xpose.msra.mxu0 0.0
    %3355 = vmatpush.xpose.msra.mxu0 0.0
    %3356 = vmatpush.xpose.msra.mxu0 0.0
    %3357 = vmatpush.xpose.msra.mxu0 %v3340
    %3358 = vmatmul.f32.gmra.mxu0 %v3338
    %v3359 = vpop.f32.mrf.mxu0
    %v3360 = vadd.f32 0.0, %v3359
    %3361 = vdwg.mxu0
    %v3362 = vsel %vm209, %v3360, -inf
    %3363 = vmax.xlane.f32.xlu0 %v3362
    %v3364 = vpop.xlane.xlu0 %3363
    %v3365 = vsub.f32 %v3360, %v3364
    %v3366 = vmul.f32 %v3365, 1.442695
    %v3367 = vpow.pop %v3366
    %v3368 = vsel %vm209, %v3367, 0.0
    %3369 = vadd.xlane.f32.xlu0 %v3368
    %v3370 = vpop.xlane.xlu0 %3369
    %v3371 = vrcp.pop %v3370
    %v3372 = vmul.f32 %v3367, %v3371
    %3373 = vrot.lane.b32.xlu0 %v3065, 72
    %v3374 = vpop.permute.xlu0 %3373
    %v3377 = vsel %vm209, %v3372, 0
    %3379 = vmatpush.msra.mxu0 0.0
    %3380 = vmatpush.msra.mxu0 0.0
    %3381 = vmatpush.msra.mxu0 0.0
    %3382 = vmatpush.msra.mxu0 0.0
    %3383 = vmatpush.msra.mxu0 0.0
    %3384 = vmatpush.msra.mxu0 0.0
    %3385 = vmatpush.msra.mxu0 0.0
    %3386 = vmatpush.msra.mxu0 0.0
    %3387 = vmatpush.msra.mxu0 0.0
    %3388 = vmatpush.msra.mxu0 0.0
    %3389 = vmatpush.msra.mxu0 0.0
    %3390 = vmatpush.msra.mxu0 0.0
    %3391 = vmatpush.msra.mxu0 0.0
    %3392 = vmatpush.msra.mxu0 0.0
    %3393 = vmatpush.msra.mxu0 0.0
    %3394 = vmatpush.msra.mxu0 %v3374
    %3395 = vmatmul.f32.gmra.mxu0 %v3377
    %v3396 = vpop.f32.mrf.mxu0
    %v3397 = vadd.f32 0.0, %v3396
    %3398 = vdwg.mxu0
    %v3400 = vsel %vm209, %v3397, 0
    %3402 = vmatpush.msra.mxu0 0.0
    %3403 = vmatpush.msra.mxu0 0.0
    %3404 = vmatpush.msra.mxu0 0.0
    %3405 = vmatpush.msra.mxu0 0.0
    %3406 = vmatpush.msra.mxu0 0.0
    %3407 = vmatpush.msra.mxu0 0.0
    %3408 = vmatpush.msra.mxu0 0.0
    %3409 = vmatpush.msra.mxu0 0.0
    %3410 = vmatpush.msra.mxu0 0.0
    %3411 = vmatpush.msra.mxu0 0.0
    %3412 = vmatpush.msra.mxu0 0.0
    %3413 = vmatpush.msra.mxu0 0.0
    %3414 = vmatpush.msra.mxu0 0.0
    %3415 = vmatpush.msra.mxu0 0.0
    %3416 = vmatpush.msra.mxu0 0.0
    %3417 = vmatpush.msra.mxu0 %v2989
    %3418 = vmatmul.f32.gmra.mxu0 %v3400
    %v3419 = vpop.f32.mrf.mxu0
    %v3420 = vadd.f32 0.0, %v3419
    %3421 = vdwg.mxu0
    %v3422 = vadd.f32 %v3333, %v3420
    %v3423 = vmul.f32 %v3019, 0.35355338
    %v3425 = vsel %vm209, %v3423, 0
    %v3428 = vsel %vm209, %v3068, 0
    %3430 = vmatpush.xpose.msra.mxu0 0.0
    %3431 = vmatpush.xpose.msra.mxu0 0.0
    %3432 = vmatpush.xpose.msra.mxu0 0.0
    %3433 = vmatpush.xpose.msra.mxu0 0.0
    %3434 = vmatpush.xpose.msra.mxu0 0.0
    %3435 = vmatpush.xpose.msra.mxu0 0.0
    %3436 = vmatpush.xpose.msra.mxu0 0.0
    %3437 = vmatpush.xpose.msra.mxu0 0.0
    %3438 = vmatpush.xpose.msra.mxu0 0.0
    %3439 = vmatpush.xpose.msra.mxu0 0.0
    %3440 = vmatpush.xpose.msra.mxu0 0.0
    %3441 = vmatpush.xpose.msra.mxu0 0.0
    %3442 = vmatpush.xpose.msra.mxu0 0.0
    %3443 = vmatpush.xpose.msra.mxu0 0.0
    %3444 = vmatpush.xpose.msra.mxu0 0.0
    %3445 = vmatpush.xpose.msra.mxu0 %v3428
    %3446 = vmatmul.f32.gmra.mxu0 %v3425
    %v3447 = vpop.f32.mrf.mxu0
    %v3448 = vadd.f32 0.0, %v3447
    %3449 = vdwg.mxu0
    %v3450 = vsel %vm209, %v3448, -inf
    %3451 = vmax.xlane.f32.xlu0 %v3450
    %v3452 = vpop.xlane.xlu0 %3451
    %v3453 = vsub.f32 %v3448, %v3452
    %v3454 = vmul.f32 %v3453, 1.442695
    %v3455 = vpow.pop %v3454
    %v3456 = vsel %vm209, %v3455, 0.0
    %3457 = vadd.xlane.f32.xlu0 %v3456
    %v3458 = vpop.xlane.xlu0 %3457
    %v3459 = vrcp.pop %v3458
    %v3460 = vmul.f32 %v3455, %v3459
    %3461 = vrot.lane.b32.xlu0 %v3068, 96
    %v3462 = vpop.permute.xlu0 %3461
    %v3465 = vsel %vm209, %v3460, 0
    %3467 = vmatpush.msra.mxu0 0.0
    %3468 = vmatpush.msra.mxu0 0.0
    %3469 = vmatpush.msra.mxu0 0.0
    %3470 = vmatpush.msra.mxu0 0.0
    %3471 = vmatpush.msra.mxu0 0.0
    %3472 = vmatpush.msra.mxu0 0.0
    %3473 = vmatpush.msra.mxu0 0.0
    %3474 = vmatpush.msra.mxu0 0.0
    %3475 = vmatpush.msra.mxu0 0.0
    %3476 = vmatpush.msra.mxu0 0.0
    %3477 = vmatpush.msra.mxu0 0.0
    %3478 = vmatpush.msra.mxu0 0.0
    %3479 = vmatpush.msra.mxu0 0.0
    %3480 = vmatpush.msra.mxu0 0.0
    %3481 = vmatpush.msra.mxu0 0.0
    %3482 = vmatpush.msra.mxu0 %v3462
    %3483 = vmatmul.f32.gmra.mxu0 %v3465
    %v3484 = vpop.f32.mrf.mxu0
    %v3485 = vadd.f32 0.0, %v3484
    %3486 = vdwg.mxu0
    %3487 = vrot.lane.b32.xlu0 %v3423, 120
    %v3488 = vpop.permute.xlu0 %3487
    %3489 = vrot.lane.b32.xlu0 %v3068, 120
    %v3490 = vpop.permute.xlu0 %3489
    %v3491 = vsel %vm209, %v3488, 0
    %v3493 = vsel %vm209, %v3490, 0
    %3495 = vmatpush.xpose.msra.mxu0 0.0
    %3496 = vmatpush.xpose.msra.mxu0 0.0
    %3497 = vmatpush.xpose.msra.mxu0 0.0
    %3498 = vmatpush.xpose.msra.mxu0 0.0
    %3499 = vmatpush.xpose.msra.mxu0 0.0
    %3500 = vmatpush.xpose.msra.mxu0 0.0
    %3501 = vmatpush.xpose.msra.mxu0 0.0
    %3502 = vmatpush.xpose.msra.mxu0 0.0
    %3503 = vmatpush.xpose.msra.mxu0 0.0
    %3504 = vmatpush.xpose.msra.mxu0 0.0
    %3505 = vmatpush.xpose.msra.mxu0 0.0
    %3506 = vmatpush.xpose.msra.mxu0 0.0
    %3507 = vmatpush.xpose.msra.mxu0 0.0
    %3508 = vmatpush.xpose.msra.mxu0 0.0
    %3509 = vmatpush.xpose.msra.mxu0 0.0
    %3510 = vmatpush.xpose.msra.mxu0 %v3493
    %3511 = vmatmul.f32.gmra.mxu0 %v3491
    %v3512 = vpop.f32.mrf.mxu0
    %v3513 = vadd.f32 0.0, %v3512
    %3514 = vdwg.mxu0
    %v3515 = vsel %vm209, %v3513, -inf
    %3516 = vmax.xlane.f32.xlu0 %v3515
    %v3517 = vpop.xlane.xlu0 %3516
    %v3518 = vsub.f32 %v3513, %v3517
    %v3519 = vmul.f32 %v3518, 1.442695
    %v3520 = vpow.pop %v3519
    %v3521 = vsel %vm209, %v3520, 0.0
    %3522 = vadd.xlane.f32.xlu0 %v3521
    %v3523 = vpop.xlane.xlu0 %3522
    %v3524 = vrcp.pop %v3523
    %v3525 = vmul.f32 %v3520, %v3524
    %3526 = vrot.lane.b32.xlu0 %v3068, 88
    %v3527 = vpop.permute.xlu0 %3526
    %v3530 = vsel %vm209, %v3525, 0
    %3532 = vmatpush.msra.mxu0 0.0
    %3533 = vmatpush.msra.mxu0 0.0
    %3534 = vmatpush.msra.mxu0 0.0
    %3535 = vmatpush.msra.mxu0 0.0
    %3536 = vmatpush.msra.mxu0 0.0
    %3537 = vmatpush.msra.mxu0 0.0
    %3538 = vmatpush.msra.mxu0 0.0
    %3539 = vmatpush.msra.mxu0 0.0
    %3540 = vmatpush.msra.mxu0 0.0
    %3541 = vmatpush.msra.mxu0 0.0
    %3542 = vmatpush.msra.mxu0 0.0
    %3543 = vmatpush.msra.mxu0 0.0
    %3544 = vmatpush.msra.mxu0 0.0
    %3545 = vmatpush.msra.mxu0 0.0
    %3546 = vmatpush.msra.mxu0 0.0
    %3547 = vmatpush.msra.mxu0 %v3527
    %3548 = vmatmul.f32.gmra.mxu0 %v3530
    %v3549 = vpop.f32.mrf.mxu0
    %v3550 = vadd.f32 0.0, %v3549
    %3551 = vdwg.mxu0
    %v3553 = vsel %vm209, %v3550, 0
    %3555 = vmatpush.msra.mxu0 0.0
    %3556 = vmatpush.msra.mxu0 0.0
    %3557 = vmatpush.msra.mxu0 0.0
    %3558 = vmatpush.msra.mxu0 0.0
    %3559 = vmatpush.msra.mxu0 0.0
    %3560 = vmatpush.msra.mxu0 0.0
    %3561 = vmatpush.msra.mxu0 0.0
    %3562 = vmatpush.msra.mxu0 0.0
    %3563 = vmatpush.msra.mxu0 0.0
    %3564 = vmatpush.msra.mxu0 0.0
    %3565 = vmatpush.msra.mxu0 0.0
    %3566 = vmatpush.msra.mxu0 0.0
    %3567 = vmatpush.msra.mxu0 0.0
    %3568 = vmatpush.msra.mxu0 0.0
    %3569 = vmatpush.msra.mxu0 0.0
    %3570 = vmatpush.msra.mxu0 %v2987
    %3571 = vmatmul.f32.gmra.mxu0 %v3553
    %v3572 = vpop.f32.mrf.mxu0
    %v3573 = vadd.f32 0.0, %v3572
    %3574 = vdwg.mxu0
    %v3576 = vsel %vm209, %v3485, 0
    %3578 = vmatpush.msra.mxu0 0.0
    %3579 = vmatpush.msra.mxu0 0.0
    %3580 = vmatpush.msra.mxu0 0.0
    %3581 = vmatpush.msra.mxu0 0.0
    %3582 = vmatpush.msra.mxu0 0.0
    %3583 = vmatpush.msra.mxu0 0.0
    %3584 = vmatpush.msra.mxu0 0.0
    %3585 = vmatpush.msra.mxu0 0.0
    %3586 = vmatpush.msra.mxu0 0.0
    %3587 = vmatpush.msra.mxu0 0.0
    %3588 = vmatpush.msra.mxu0 0.0
    %3589 = vmatpush.msra.mxu0 0.0
    %3590 = vmatpush.msra.mxu0 0.0
    %3591 = vmatpush.msra.mxu0 0.0
    %3592 = vmatpush.msra.mxu0 0.0
    %3593 = vmatpush.msra.mxu0 %v2986
    %3594 = vmatmul.f32.gmra.mxu0 %v3576
    %v3595 = vpop.f32.mrf.mxu0
    %v3596 = vadd.f32 %v3573, %v3595
    %3597 = vdwg.mxu0
    %3598 = vrot.lane.b32.xlu0 %v3423, 112
    %v3599 = vpop.permute.xlu0 %3598
    %3600 = vrot.lane.b32.xlu0 %v3068, 112
    %v3601 = vpop.permute.xlu0 %3600
    %v3602 = vsel %vm209, %v3599, 0
    %v3604 = vsel %vm209, %v3601, 0
    %3606 = vmatpush.xpose.msra.mxu0 0.0
    %3607 = vmatpush.xpose.msra.mxu0 0.0
    %3608 = vmatpush.xpose.msra.mxu0 0.0
    %3609 = vmatpush.xpose.msra.mxu0 0.0
    %3610 = vmatpush.xpose.msra.mxu0 0.0
    %3611 = vmatpush.xpose.msra.mxu0 0.0
    %3612 = vmatpush.xpose.msra.mxu0 0.0
    %3613 = vmatpush.xpose.msra.mxu0 0.0
    %3614 = vmatpush.xpose.msra.mxu0 0.0
    %3615 = vmatpush.xpose.msra.mxu0 0.0
    %3616 = vmatpush.xpose.msra.mxu0 0.0
    %3617 = vmatpush.xpose.msra.mxu0 0.0
    %3618 = vmatpush.xpose.msra.mxu0 0.0
    %3619 = vmatpush.xpose.msra.mxu0 0.0
    %3620 = vmatpush.xpose.msra.mxu0 0.0
    %3621 = vmatpush.xpose.msra.mxu0 %v3604
    %3622 = vmatmul.f32.gmra.mxu0 %v3602
    %v3623 = vpop.f32.mrf.mxu0
    %v3624 = vadd.f32 0.0, %v3623
    %3625 = vdwg.mxu0
    %v3626 = vsel %vm209, %v3624, -inf
    %3627 = vmax.xlane.f32.xlu0 %v3626
    %v3628 = vpop.xlane.xlu0 %3627
    %v3629 = vsub.f32 %v3624, %v3628
    %v3630 = vmul.f32 %v3629, 1.442695
    %v3631 = vpow.pop %v3630
    %v3632 = vsel %vm209, %v3631, 0.0
    %3633 = vadd.xlane.f32.xlu0 %v3632
    %v3634 = vpop.xlane.xlu0 %3633
    %v3635 = vrcp.pop %v3634
    %v3636 = vmul.f32 %v3631, %v3635
    %3637 = vrot.lane.b32.xlu0 %v3068, 80
    %v3638 = vpop.permute.xlu0 %3637
    %v3641 = vsel %vm209, %v3636, 0
    %3643 = vmatpush.msra.mxu0 0.0
    %3644 = vmatpush.msra.mxu0 0.0
    %3645 = vmatpush.msra.mxu0 0.0
    %3646 = vmatpush.msra.mxu0 0.0
    %3647 = vmatpush.msra.mxu0 0.0
    %3648 = vmatpush.msra.mxu0 0.0
    %3649 = vmatpush.msra.mxu0 0.0
    %3650 = vmatpush.msra.mxu0 0.0
    %3651 = vmatpush.msra.mxu0 0.0
    %3652 = vmatpush.msra.mxu0 0.0
    %3653 = vmatpush.msra.mxu0 0.0
    %3654 = vmatpush.msra.mxu0 0.0
    %3655 = vmatpush.msra.mxu0 0.0
    %3656 = vmatpush.msra.mxu0 0.0
    %3657 = vmatpush.msra.mxu0 0.0
    %3658 = vmatpush.msra.mxu0 %v3638
    %3659 = vmatmul.f32.gmra.mxu0 %v3641
    %v3660 = vpop.f32.mrf.mxu0
    %v3661 = vadd.f32 0.0, %v3660
    %3662 = vdwg.mxu0
    %v3664 = vsel %vm209, %v3661, 0
    %3666 = vmatpush.msra.mxu0 0.0
    %3667 = vmatpush.msra.mxu0 0.0
    %3668 = vmatpush.msra.mxu0 0.0
    %3669 = vmatpush.msra.mxu0 0.0
    %3670 = vmatpush.msra.mxu0 0.0
    %3671 = vmatpush.msra.mxu0 0.0
    %3672 = vmatpush.msra.mxu0 0.0
    %3673 = vmatpush.msra.mxu0 0.0
    %3674 = vmatpush.msra.mxu0 0.0
    %3675 = vmatpush.msra.mxu0 0.0
    %3676 = vmatpush.msra.mxu0 0.0
    %3677 = vmatpush.msra.mxu0 0.0
    %3678 = vmatpush.msra.mxu0 0.0
    %3679 = vmatpush.msra.mxu0 0.0
    %3680 = vmatpush.msra.mxu0 0.0
    %3681 = vmatpush.msra.mxu0 %v2988
    %3682 = vmatmul.f32.gmra.mxu0 %v3664
    %v3683 = vpop.f32.mrf.mxu0
    %v3684 = vadd.f32 0.0, %v3683
    %3685 = vdwg.mxu0
    %v3686 = vadd.f32 %v3596, %v3684
    %3687 = vrot.lane.b32.xlu0 %v3423, 104
    %v3688 = vpop.permute.xlu0 %3687
    %3689 = vrot.lane.b32.xlu0 %v3068, 104
    %v3690 = vpop.permute.xlu0 %3689
    %v3691 = vsel %vm209, %v3688, 0
    %v3693 = vsel %vm209, %v3690, 0
    %3695 = vmatpush.xpose.msra.mxu0 0.0
    %3696 = vmatpush.xpose.msra.mxu0 0.0
    %3697 = vmatpush.xpose.msra.mxu0 0.0
    %3698 = vmatpush.xpose.msra.mxu0 0.0
    %3699 = vmatpush.xpose.msra.mxu0 0.0
    %3700 = vmatpush.xpose.msra.mxu0 0.0
    %3701 = vmatpush.xpose.msra.mxu0 0.0
    %3702 = vmatpush.xpose.msra.mxu0 0.0
    %3703 = vmatpush.xpose.msra.mxu0 0.0
    %3704 = vmatpush.xpose.msra.mxu0 0.0
    %3705 = vmatpush.xpose.msra.mxu0 0.0
    %3706 = vmatpush.xpose.msra.mxu0 0.0
    %3707 = vmatpush.xpose.msra.mxu0 0.0
    %3708 = vmatpush.xpose.msra.mxu0 0.0
    %3709 = vmatpush.xpose.msra.mxu0 0.0
    %3710 = vmatpush.xpose.msra.mxu0 %v3693
    %3711 = vmatmul.f32.gmra.mxu0 %v3691
    %v3712 = vpop.f32.mrf.mxu0
    %v3713 = vadd.f32 0.0, %v3712
    %3714 = vdwg.mxu0
    %v3715 = vsel %vm209, %v3713, -inf
    %3716 = vmax.xlane.f32.xlu0 %v3715
    %v3717 = vpop.xlane.xlu0 %3716
    %v3718 = vsub.f32 %v3713, %v3717
    %v3719 = vmul.f32 %v3718, 1.442695
    %v3720 = vpow.pop %v3719
    %v3721 = vsel %vm209, %v3720, 0.0
    %3722 = vadd.xlane.f32.xlu0 %v3721
    %v3723 = vpop.xlane.xlu0 %3722
    %v3724 = vrcp.pop %v3723
    %v3725 = vmul.f32 %v3720, %v3724
    %3726 = vrot.lane.b32.xlu0 %v3068, 72
    %v3727 = vpop.permute.xlu0 %3726
    %v3730 = vsel %vm209, %v3725, 0
    %3732 = vmatpush.msra.mxu0 0.0
    %3733 = vmatpush.msra.mxu0 0.0
    %3734 = vmatpush.msra.mxu0 0.0
    %3735 = vmatpush.msra.mxu0 0.0
    %3736 = vmatpush.msra.mxu0 0.0
    %3737 = vmatpush.msra.mxu0 0.0
    %3738 = vmatpush.msra.mxu0 0.0
    %3739 = vmatpush.msra.mxu0 0.0
    %3740 = vmatpush.msra.mxu0 0.0
    %3741 = vmatpush.msra.mxu0 0.0
    %3742 = vmatpush.msra.mxu0 0.0
    %3743 = vmatpush.msra.mxu0 0.0
    %3744 = vmatpush.msra.mxu0 0.0
    %3745 = vmatpush.msra.mxu0 0.0
    %3746 = vmatpush.msra.mxu0 0.0
    %3747 = vmatpush.msra.mxu0 %v3727
    %3748 = vmatmul.f32.gmra.mxu0 %v3730
    %v3749 = vpop.f32.mrf.mxu0
    %v3750 = vadd.f32 0.0, %v3749
    %3751 = vdwg.mxu0
    %v3753 = vsel %vm209, %v3750, 0
    %3755 = vmatpush.msra.mxu0 0.0
    %3756 = vmatpush.msra.mxu0 0.0
    %3757 = vmatpush.msra.mxu0 0.0
    %3758 = vmatpush.msra.mxu0 0.0
    %3759 = vmatpush.msra.mxu0 0.0
    %3760 = vmatpush.msra.mxu0 0.0
    %3761 = vmatpush.msra.mxu0 0.0
    %3762 = vmatpush.msra.mxu0 0.0
    %3763 = vmatpush.msra.mxu0 0.0
    %3764 = vmatpush.msra.mxu0 0.0
    %3765 = vmatpush.msra.mxu0 0.0
    %3766 = vmatpush.msra.mxu0 0.0
    %3767 = vmatpush.msra.mxu0 0.0
    %3768 = vmatpush.msra.mxu0 0.0
    %3769 = vmatpush.msra.mxu0 0.0
    %3770 = vmatpush.msra.mxu0 %v2989
    %3771 = vmatmul.f32.gmra.mxu0 %v3753
    %v3772 = vpop.f32.mrf.mxu0
    %v3773 = vadd.f32 0.0, %v3772
    %3774 = vdwg.mxu0
    %v3775 = vadd.f32 %v3686, %v3773
    %v3776 = vperm.slane %v2990, 0
    %v3777 = vadd.f32 %v3422, %v3776
    %v3778 = vadd.f32 %v3775, %v3776
    %v3779 = vadd.f32 %v2979, %v3777
    %v3780 = vadd.f32 %v2980, %v3778
    %v3781 = vsel %vm135, %v3779, 0.0
    %3782 = vadd.xlane.f32.xlu0 %v3781
    %v3783 = vpop.xlane.xlu0 %3782
    %v3784 = vsel %vm135, %v3780, 0.0
    %3785 = vadd.xlane.f32.xlu0 %v3784
    %v3786 = vpop.xlane.xlu0 %3785
    %v3787 = vmul.f32 %v3783, %v932
    %v3788 = vmul.f32 %v3786, %v932
    %v3789 = vsub.f32 %v3779, %v3787
    %v3790 = vsub.f32 %v3780, %v3788
    %v3791 = vmul.f32 %v3789, %v3789
    %v3792 = vmul.f32 %v3790, %v3790
    %v3793 = vsel %vm135, %v3791, 0.0
    %3794 = vadd.xlane.f32.xlu0 %v3793
    %v3795 = vpop.xlane.xlu0 %3794
    %v3796 = vsel %vm135, %v3792, 0.0
    %3797 = vadd.xlane.f32.xlu0 %v3796
    %v3798 = vpop.xlane.xlu0 %3797
    %v3799 = vmul.f32 %v3795, %v932
    %v3800 = vmul.f32 %v3798, %v932
    %v3801 = vadd.f32 %v3799, 1e-05
    %v3802 = vadd.f32 %v3800, 1e-05
    %v3803 = vrsqrt.pop %v3801
    %v3804 = vmul.f32 %v3803, %v3801
    %v3805 = vmul.f32 %v3804, %v3803
    %v3806 = vmul.f32 0.5, %v3805
    %v3807 = vsub.f32 1.5, %v3806
    %v3808 = vmul.f32 %v3803, %v3807
    %vm3809 = vweird.f32 %v3801
    %vm3810 = vweird.f32 %v3803
    %vm3811 = vmor %vm3809, %vm3810
    %v3812 = vsel %vm3811, %v3803, %v3808
    %v3813 = vrsqrt.pop %v3802
    %v3814 = vmul.f32 %v3813, %v3802
    %v3815 = vmul.f32 %v3814, %v3813
    %v3816 = vmul.f32 0.5, %v3815
    %v3817 = vsub.f32 1.5, %v3816
    %v3818 = vmul.f32 %v3813, %v3817
    %vm3819 = vweird.f32 %v3802
    %vm3820 = vweird.f32 %v3813
    %vm3821 = vmor %vm3819, %vm3820
    %v3822 = vsel %vm3821, %v3813, %v3818
    %v3823 = vmul.f32 %v3789, %v3812
    %v3824 = vmul.f32 %v3790, %v3822
    %v3825 = vld [vmem:[#allocation5 + $0x5b0] sm:$0x1]
    %v3826 = vperm.slane %v3825, 0
    %v3827 = vmul.f32 %v3823, %v3826
    %v3828 = vmul.f32 %v3824, %v3826
    %v3829 = vld [vmem:[#allocation5 + $0x5b8] sm:$0x1]
    %v3830 = vperm.slane %v3829, 0
    %v3831 = vadd.f32 %v3827, %v3830
    %v3832 = vadd.f32 %v3828, %v3830
    %v3833 = vld [vmem:[#allocation5 + $0x4f0] sm:$0xff]
    %v3834 = vld [vmem:[#allocation5 + $0x4f8] sm:$0xff]
    %v3835 = vld [vmem:[#allocation5 + $0x500] sm:$0xff]
    %v3836 = vld [vmem:[#allocation5 + $0x508] sm:$0xff]
    %v3837 = vld [vmem:[#allocation5 + $0x510] sm:$0x1]
    %v3838 = vperm.slane %v3837, 0
    %v3840 = vsel %vm135, %v3831, 0
    %v3843 = vsel %vm135, %v3832, 0
    %3845 = vmatpush.msra.mxu0 0.0
    %3846 = vmatpush.msra.mxu0 0.0
    %3847 = vmatpush.msra.mxu0 0.0
    %3848 = vmatpush.msra.mxu0 0.0
    %3849 = vmatpush.msra.mxu0 0.0
    %3850 = vmatpush.msra.mxu0 0.0
    %3851 = vmatpush.msra.mxu0 0.0
    %3852 = vmatpush.msra.mxu0 0.0
    %3853 = vmatpush.msra.mxu0 0.0
    %3854 = vmatpush.msra.mxu0 0.0
    %3855 = vmatpush.msra.mxu0 0.0
    %3856 = vmatpush.msra.mxu0 0.0
    %3857 = vmatpush.msra.mxu0 %v3836
    %3858 = vmatpush.msra.mxu0 %v3835
    %3859 = vmatpush.msra.mxu0 %v3834
    %3860 = vmatpush.msra.mxu0 %v3833
    %3861 = vmatmul.f32.gmra.mxu0 %v3840
    %v3862 = vpop.f32.mrf.mxu0
    %v3863 = vadd.f32 %v3838, %v3862
    %3864 = vmatmul.f32.gmra.mxu0 %v3843
    %v3865 = vpop.f32.mrf.mxu0
    %v3866 = vadd.f32 %v3838, %v3865
    %3867 = vdwg.mxu0
    %v3868 = vmax.f32 %v3863, 0.0
    %v3869 = vmax.f32 %v3866, 0.0
    %v3870 = vld [vmem:[#allocation5 + $0x518] sm:$0xff]
    %v3871 = vld [vmem:[#allocation5 + $0x520] sm:$0xff]
    %v3872 = vld [vmem:[#allocation5 + $0x528] sm:$0xff]
    %v3873 = vld [vmem:[#allocation5 + $0x530] sm:$0xff]
    %v3874 = vld [vmem:[#allocation5 + $0x538] sm:$0xff]
    %v3875 = vld [vmem:[#allocation5 + $0x540] sm:$0xff]
    %v3876 = vld [vmem:[#allocation5 + $0x548] sm:$0xff]
    %v3877 = vld [vmem:[#allocation5 + $0x550] sm:$0xff]
    %v3878 = vld [vmem:[#allocation5 + $0x558] sm:$0xff]
    %v3879 = vld [vmem:[#allocation5 + $0x560] sm:$0xff]
    %v3880 = vld [vmem:[#allocation5 + $0x568] sm:$0xff]
    %v3881 = vld [vmem:[#allocation5 + $0x570] sm:$0xff]
    %v3882 = vld [vmem:[#allocation5 + $0x578] sm:$0xff]
    %v3883 = vld [vmem:[#allocation5 + $0x580] sm:$0xff]
    %v3884 = vld [vmem:[#allocation5 + $0x588] sm:$0xff]
    %v3885 = vld [vmem:[#allocation5 + $0x590] sm:$0xff]
    %v3886 = vld [vmem:[#allocation5 + $0x598] sm:$0x1]
    %v3887 = vperm.slane %v3886, 0
    %3888 = vmatpush.msra.mxu0 %v3885
    %3889 = vmatpush.msra.mxu0 %v3884
    %3890 = vmatpush.msra.mxu0 %v3883
    %3891 = vmatpush.msra.mxu0 %v3882
    %3892 = vmatpush.msra.mxu0 %v3881
    %3893 = vmatpush.msra.mxu0 %v3880
    %3894 = vmatpush.msra.mxu0 %v3879
    %3895 = vmatpush.msra.mxu0 %v3878
    %3896 = vmatpush.msra.mxu0 %v3877
    %3897 = vmatpush.msra.mxu0 %v3876
    %3898 = vmatpush.msra.mxu0 %v3875
    %3899 = vmatpush.msra.mxu0 %v3874
    %3900 = vmatpush.msra.mxu0 %v3873
    %3901 = vmatpush.msra.mxu0 %v3872
    %3902 = vmatpush.msra.mxu0 %v3871
    %3903 = vmatpush.msra.mxu0 %v3870
    %3904 = vmatmul.f32.gmra.mxu0 %v3868
    %v3905 = vpop.f32.mrf.mxu0
    %v3906 = vadd.f32 %v3887, %v3905
    %3907 = vmatmul.f32.gmra.mxu0 %v3869
    %v3908 = vpop.f32.mrf.mxu0
    %v3909 = vadd.f32 %v3887, %v3908
    %3910 = vdwg.mxu0
    %v3911 = vadd.f32 %v3831, %v3906
    %v3912 = vadd.f32 %v3832, %v3909
    %v3913 = vsel %vm135, %v3911, 0.0
    %3914 = vadd.xlane.f32.xlu0 %v3913
    %v3915 = vpop.xlane.xlu0 %3914
    %v3916 = vsel %vm135, %v3912, 0.0
    %3917 = vadd.xlane.f32.xlu0 %v3916
    %v3918 = vpop.xlane.xlu0 %3917
    %v3919 = vmul.f32 %v3915, %v932
    %v3920 = vmul.f32 %v3918, %v932
    %v3921 = vsub.f32 %v3911, %v3919
    %v3922 = vsub.f32 %v3912, %v3920
    %v3923 = vmul.f32 %v3921, %v3921
    %v3924 = vmul.f32 %v3922, %v3922
    %v3925 = vsel %vm135, %v3923, 0.0
    %3926 = vadd.xlane.f32.xlu0 %v3925
    %v3927 = vpop.xlane.xlu0 %3926
    %v3928 = vsel %vm135, %v3924, 0.0
    %3929 = vadd.xlane.f32.xlu0 %v3928
    %v3930 = vpop.xlane.xlu0 %3929
    %v3931 = vmul.f32 %v3927, %v932
    %v3932 = vmul.f32 %v3930, %v932
    %v3933 = vadd.f32 %v3931, 1e-05
    %v3934 = vadd.f32 %v3932, 1e-05
    %v3935 = vrsqrt.pop %v3933
    %v3936 = vmul.f32 %v3935, %v3933
    %v3937 = vmul.f32 %v3936, %v3935
    %v3938 = vmul.f32 0.5, %v3937
    %v3939 = vsub.f32 1.5, %v3938
    %v3940 = vmul.f32 %v3935, %v3939
    %vm3941 = vweird.f32 %v3933
    %vm3942 = vweird.f32 %v3935
    %vm3943 = vmor %vm3941, %vm3942
    %v3944 = vsel %vm3943, %v3935, %v3940
    %v3945 = vrsqrt.pop %v3934
    %v3946 = vmul.f32 %v3945, %v3934
    %v3947 = vmul.f32 %v3946, %v3945
    %v3948 = vmul.f32 0.5, %v3947
    %v3949 = vsub.f32 1.5, %v3948
    %v3950 = vmul.f32 %v3945, %v3949
    %vm3951 = vweird.f32 %v3934
    %vm3952 = vweird.f32 %v3945
    %vm3953 = vmor %vm3951, %vm3952
    %v3954 = vsel %vm3953, %v3945, %v3950
    %v3955 = vmul.f32 %v3921, %v3944
    %v3956 = vmul.f32 %v3922, %v3954
    %v3957 = vld [vmem:[#allocation5 + $0x5c0] sm:$0x1]
    %v3958 = vperm.slane %v3957, 0
    %v3959 = vmul.f32 %v3955, %v3958
    %v3960 = vmul.f32 %v3956, %v3958
    %v3961 = vld [vmem:[#allocation5 + $0x5c8] sm:$0x1]
    %v3962 = vperm.slane %v3961, 0
    %v3963 = vadd.f32 %v3959, %v3962
    %v3964 = vadd.f32 %v3960, %v3962
    %v3965 = vld [vmem:[#allocation5 + $0x5d0] sm:$0xff]
    %v3966 = vld [vmem:[#allocation5 + $0x5d8] sm:$0xff]
    %v3967 = vld [vmem:[#allocation5 + $0x5e0] sm:$0xff]
    %v3968 = vld [vmem:[#allocation5 + $0x5e8] sm:$0xff]
    %v3969 = vld [vmem:[#allocation5 + $0x5f0] sm:$0x1]
    %v3970 = vld [vmem:[#allocation5 + $0x5f8] sm:$0xff]
    %v3971 = vld [vmem:[#allocation5 + $0x600] sm:$0xff]
    %v3972 = vld [vmem:[#allocation5 + $0x608] sm:$0xff]
    %v3973 = vld [vmem:[#allocation5 + $0x610] sm:$0xff]
    %v3974 = vld [vmem:[#allocation5 + $0x618] sm:$0x1]
    %v3975 = vperm.slane %v3969, 0
    %v3977 = vsel %vm135, %v3963, 0
    %v3980 = vsel %vm135, %v3964, 0
    %3982 = vmatpush.msra.mxu0 0.0
    %3983 = vmatpush.msra.mxu0 0.0
    %3984 = vmatpush.msra.mxu0 0.0
    %3985 = vmatpush.msra.mxu0 0.0
    %3986 = vmatpush.msra.mxu0 0.0
    %3987 = vmatpush.msra.mxu0 0.0
    %3988 = vmatpush.msra.mxu0 0.0
    %3989 = vmatpush.msra.mxu0 0.0
    %3990 = vmatpush.msra.mxu0 0.0
    %3991 = vmatpush.msra.mxu0 0.0
    %3992 = vmatpush.msra.mxu0 0.0
    %3993 = vmatpush.msra.mxu0 0.0
    %3994 = vmatpush.msra.mxu0 %v3968
    %3995 = vmatpush.msra.mxu0 %v3967
    %3996 = vmatpush.msra.mxu0 %v3966
    %3997 = vmatpush.msra.mxu0 %v3965
    %3998 = vmatmul.f32.gmra.mxu0 %v3977
    %v3999 = vpop.f32.mrf.mxu0
    %v4000 = vadd.f32 %v3975, %v3999
    %4001 = vmatmul.f32.gmra.mxu0 %v3980
    %v4002 = vpop.f32.mrf.mxu0
    %v4003 = vadd.f32 %v3975, %v4002
    %4004 = vdwg.mxu0
    %4009 = vrot.lane.b32.xlu0 %v3965, 96
    %v4010 = vpop.permute.xlu0 %4009
    %4011 = vrot.lane.b32.xlu0 %v3966, 96
    %v4012 = vpop.permute.xlu0 %4011
    %4013 = vrot.lane.b32.xlu0 %v3967, 96
    %v4014 = vpop.permute.xlu0 %4013
    %4015 = vrot.lane.b32.xlu0 %v3968, 96
    %v4016 = vpop.permute.xlu0 %4015
    %4022 = vrot.lane.b32.xlu0 %v3975, 96
    %v4023 = vpop.permute.xlu0 %4022
    %4025 = vmatpush.msra.mxu0 0.0
    %4026 = vmatpush.msra.mxu0 0.0
    %4027 = vmatpush.msra.mxu0 0.0
    %4028 = vmatpush.msra.mxu0 0.0
    %4029 = vmatpush.msra.mxu0 0.0
    %4030 = vmatpush.msra.mxu0 0.0
    %4031 = vmatpush.msra.mxu0 0.0
    %4032 = vmatpush.msra.mxu0 0.0
    %4033 = vmatpush.msra.mxu0 0.0
    %4034 = vmatpush.msra.mxu0 0.0
    %4035 = vmatpush.msra.mxu0 0.0
    %4036 = vmatpush.msra.mxu0 0.0
    %4037 = vmatpush.msra.mxu0 %v4016
    %4038 = vmatpush.msra.mxu0 %v4014
    %4039 = vmatpush.msra.mxu0 %v4012
    %4040 = vmatpush.msra.mxu0 %v4010
    %4041 = vmatmul.f32.gmra.mxu0 %v3977
    %v4042 = vpop.f32.mrf.mxu0
    %v4043 = vadd.f32 %v4023, %v4042
    %4044 = vmatmul.f32.gmra.mxu0 %v3980
    %v4045 = vpop.f32.mrf.mxu0
    %v4046 = vadd.f32 %v4023, %v4045
    %4047 = vdwg.mxu0
    %v4048 = vmul.f32 %v4000, 0.35355338
    %v4050 = vsel %vm209, %v4048, 0
    %v4053 = vsel %vm209, %v4043, 0
    %4055 = vmatpush.xpose.msra.mxu0 0.0
    %4056 = vmatpush.xpose.msra.mxu0 0.0
    %4057 = vmatpush.xpose.msra.mxu0 0.0
    %4058 = vmatpush.xpose.msra.mxu0 0.0
    %4059 = vmatpush.xpose.msra.mxu0 0.0
    %4060 = vmatpush.xpose.msra.mxu0 0.0
    %4061 = vmatpush.xpose.msra.mxu0 0.0
    %4062 = vmatpush.xpose.msra.mxu0 0.0
    %4063 = vmatpush.xpose.msra.mxu0 0.0
    %4064 = vmatpush.xpose.msra.mxu0 0.0
    %4065 = vmatpush.xpose.msra.mxu0 0.0
    %4066 = vmatpush.xpose.msra.mxu0 0.0
    %4067 = vmatpush.xpose.msra.mxu0 0.0
    %4068 = vmatpush.xpose.msra.mxu0 0.0
    %4069 = vmatpush.xpose.msra.mxu0 0.0
    %4070 = vmatpush.xpose.msra.mxu0 %v4053
    %4071 = vmatmul.f32.gmra.mxu0 %v4050
    %v4072 = vpop.f32.mrf.mxu0
    %v4073 = vadd.f32 0.0, %v4072
    %4074 = vdwg.mxu0
    %v4075 = vsel %vm209, %v4073, -inf
    %4076 = vmax.xlane.f32.xlu0 %v4075
    %v4077 = vpop.xlane.xlu0 %4076
    %v4078 = vsub.f32 %v4073, %v4077
    %v4079 = vmul.f32 %v4078, 1.442695
    %v4080 = vpow.pop %v4079
    %v4081 = vsel %vm209, %v4080, 0.0
    %4082 = vadd.xlane.f32.xlu0 %v4081
    %v4083 = vpop.xlane.xlu0 %4082
    %v4084 = vrcp.pop %v4083
    %v4085 = vmul.f32 %v4080, %v4084
    %4086 = vrot.lane.b32.xlu0 %v4043, 96
    %v4087 = vpop.permute.xlu0 %4086
    %v4090 = vsel %vm209, %v4085, 0
    %4092 = vmatpush.msra.mxu0 0.0
    %4093 = vmatpush.msra.mxu0 0.0
    %4094 = vmatpush.msra.mxu0 0.0
    %4095 = vmatpush.msra.mxu0 0.0
    %4096 = vmatpush.msra.mxu0 0.0
    %4097 = vmatpush.msra.mxu0 0.0
    %4098 = vmatpush.msra.mxu0 0.0
    %4099 = vmatpush.msra.mxu0 0.0
    %4100 = vmatpush.msra.mxu0 0.0
    %4101 = vmatpush.msra.mxu0 0.0
    %4102 = vmatpush.msra.mxu0 0.0
    %4103 = vmatpush.msra.mxu0 0.0
    %4104 = vmatpush.msra.mxu0 0.0
    %4105 = vmatpush.msra.mxu0 0.0
    %4106 = vmatpush.msra.mxu0 0.0
    %4107 = vmatpush.msra.mxu0 %v4087
    %4108 = vmatmul.f32.gmra.mxu0 %v4090
    %v4109 = vpop.f32.mrf.mxu0
    %v4110 = vadd.f32 0.0, %v4109
    %4111 = vdwg.mxu0
    %4112 = vrot.lane.b32.xlu0 %v4048, 120
    %v4113 = vpop.permute.xlu0 %4112
    %4114 = vrot.lane.b32.xlu0 %v4043, 120
    %v4115 = vpop.permute.xlu0 %4114
    %v4116 = vsel %vm209, %v4113, 0
    %v4118 = vsel %vm209, %v4115, 0
    %4120 = vmatpush.xpose.msra.mxu0 0.0
    %4121 = vmatpush.xpose.msra.mxu0 0.0
    %4122 = vmatpush.xpose.msra.mxu0 0.0
    %4123 = vmatpush.xpose.msra.mxu0 0.0
    %4124 = vmatpush.xpose.msra.mxu0 0.0
    %4125 = vmatpush.xpose.msra.mxu0 0.0
    %4126 = vmatpush.xpose.msra.mxu0 0.0
    %4127 = vmatpush.xpose.msra.mxu0 0.0
    %4128 = vmatpush.xpose.msra.mxu0 0.0
    %4129 = vmatpush.xpose.msra.mxu0 0.0
    %4130 = vmatpush.xpose.msra.mxu0 0.0
    %4131 = vmatpush.xpose.msra.mxu0 0.0
    %4132 = vmatpush.xpose.msra.mxu0 0.0
    %4133 = vmatpush.xpose.msra.mxu0 0.0
    %4134 = vmatpush.xpose.msra.mxu0 0.0
    %4135 = vmatpush.xpose.msra.mxu0 %v4118
    %4136 = vmatmul.f32.gmra.mxu0 %v4116
    %v4137 = vpop.f32.mrf.mxu0
    %v4138 = vadd.f32 0.0, %v4137
    %4139 = vdwg.mxu0
    %v4140 = vsel %vm209, %v4138, -inf
    %4141 = vmax.xlane.f32.xlu0 %v4140
    %v4142 = vpop.xlane.xlu0 %4141
    %v4143 = vsub.f32 %v4138, %v4142
    %v4144 = vmul.f32 %v4143, 1.442695
    %v4145 = vpow.pop %v4144
    %v4146 = vsel %vm209, %v4145, 0.0
    %4147 = vadd.xlane.f32.xlu0 %v4146
    %v4148 = vpop.xlane.xlu0 %4147
    %v4149 = vrcp.pop %v4148
    %v4150 = vmul.f32 %v4145, %v4149
    %4151 = vrot.lane.b32.xlu0 %v4043, 88
    %v4152 = vpop.permute.xlu0 %4151
    %v4155 = vsel %vm209, %v4150, 0
    %4157 = vmatpush.msra.mxu0 0.0
    %4158 = vmatpush.msra.mxu0 0.0
    %4159 = vmatpush.msra.mxu0 0.0
    %4160 = vmatpush.msra.mxu0 0.0
    %4161 = vmatpush.msra.mxu0 0.0
    %4162 = vmatpush.msra.mxu0 0.0
    %4163 = vmatpush.msra.mxu0 0.0
    %4164 = vmatpush.msra.mxu0 0.0
    %4165 = vmatpush.msra.mxu0 0.0
    %4166 = vmatpush.msra.mxu0 0.0
    %4167 = vmatpush.msra.mxu0 0.0
    %4168 = vmatpush.msra.mxu0 0.0
    %4169 = vmatpush.msra.mxu0 0.0
    %4170 = vmatpush.msra.mxu0 0.0
    %4171 = vmatpush.msra.mxu0 0.0
    %4172 = vmatpush.msra.mxu0 %v4152
    %4173 = vmatmul.f32.gmra.mxu0 %v4155
    %v4174 = vpop.f32.mrf.mxu0
    %v4175 = vadd.f32 0.0, %v4174
    %4176 = vdwg.mxu0
    %v4178 = vsel %vm209, %v4175, 0
    %4180 = vmatpush.msra.mxu0 0.0
    %4181 = vmatpush.msra.mxu0 0.0
    %4182 = vmatpush.msra.mxu0 0.0
    %4183 = vmatpush.msra.mxu0 0.0
    %4184 = vmatpush.msra.mxu0 0.0
    %4185 = vmatpush.msra.mxu0 0.0
    %4186 = vmatpush.msra.mxu0 0.0
    %4187 = vmatpush.msra.mxu0 0.0
    %4188 = vmatpush.msra.mxu0 0.0
    %4189 = vmatpush.msra.mxu0 0.0
    %4190 = vmatpush.msra.mxu0 0.0
    %4191 = vmatpush.msra.mxu0 0.0
    %4192 = vmatpush.msra.mxu0 0.0
    %4193 = vmatpush.msra.mxu0 0.0
    %4194 = vmatpush.msra.mxu0 0.0
    %4195 = vmatpush.msra.mxu0 %v3971
    %4196 = vmatmul.f32.gmra.mxu0 %v4178
    %v4197 = vpop.f32.mrf.mxu0
    %v4198 = vadd.f32 0.0, %v4197
    %4199 = vdwg.mxu0
    %v4201 = vsel %vm209, %v4110, 0
    %4203 = vmatpush.msra.mxu0 0.0
    %4204 = vmatpush.msra.mxu0 0.0
    %4205 = vmatpush.msra.mxu0 0.0
    %4206 = vmatpush.msra.mxu0 0.0
    %4207 = vmatpush.msra.mxu0 0.0
    %4208 = vmatpush.msra.mxu0 0.0
    %4209 = vmatpush.msra.mxu0 0.0
    %4210 = vmatpush.msra.mxu0 0.0
    %4211 = vmatpush.msra.mxu0 0.0
    %4212 = vmatpush.msra.mxu0 0.0
    %4213 = vmatpush.msra.mxu0 0.0
    %4214 = vmatpush.msra.mxu0 0.0
    %4215 = vmatpush.msra.mxu0 0.0
    %4216 = vmatpush.msra.mxu0 0.0
    %4217 = vmatpush.msra.mxu0 0.0
    %4218 = vmatpush.msra.mxu0 %v3970
    %4219 = vmatmul.f32.gmra.mxu0 %v4201
    %v4220 = vpop.f32.mrf.mxu0
    %v4221 = vadd.f32 %v4198, %v4220
    %4222 = vdwg.mxu0
    %4223 = vrot.lane.b32.xlu0 %v4048, 112
    %v4224 = vpop.permute.xlu0 %4223
    %4225 = vrot.lane.b32.xlu0 %v4043, 112
    %v4226 = vpop.permute.xlu0 %4225
    %v4227 = vsel %vm209, %v4224, 0
    %v4229 = vsel %vm209, %v4226, 0
    %4231 = vmatpush.xpose.msra.mxu0 0.0
    %4232 = vmatpush.xpose.msra.mxu0 0.0
    %4233 = vmatpush.xpose.msra.mxu0 0.0
    %4234 = vmatpush.xpose.msra.mxu0 0.0
    %4235 = vmatpush.xpose.msra.mxu0 0.0
    %4236 = vmatpush.xpose.msra.mxu0 0.0
    %4237 = vmatpush.xpose.msra.mxu0 0.0
    %4238 = vmatpush.xpose.msra.mxu0 0.0
    %4239 = vmatpush.xpose.msra.mxu0 0.0
    %4240 = vmatpush.xpose.msra.mxu0 0.0
    %4241 = vmatpush.xpose.msra.mxu0 0.0
    %4242 = vmatpush.xpose.msra.mxu0 0.0
    %4243 = vmatpush.xpose.msra.mxu0 0.0
    %4244 = vmatpush.xpose.msra.mxu0 0.0
    %4245 = vmatpush.xpose.msra.mxu0 0.0
    %4246 = vmatpush.xpose.msra.mxu0 %v4229
    %4247 = vmatmul.f32.gmra.mxu0 %v4227
    %v4248 = vpop.f32.mrf.mxu0
    %v4249 = vadd.f32 0.0, %v4248
    %4250 = vdwg.mxu0
    %v4251 = vsel %vm209, %v4249, -inf
    %4252 = vmax.xlane.f32.xlu0 %v4251
    %v4253 = vpop.xlane.xlu0 %4252
    %v4254 = vsub.f32 %v4249, %v4253
    %v4255 = vmul.f32 %v4254, 1.442695
    %v4256 = vpow.pop %v4255
    %v4257 = vsel %vm209, %v4256, 0.0
    %4258 = vadd.xlane.f32.xlu0 %v4257
    %v4259 = vpop.xlane.xlu0 %4258
    %v4260 = vrcp.pop %v4259
    %v4261 = vmul.f32 %v4256, %v4260
    %4262 = vrot.lane.b32.xlu0 %v4043, 80
    %v4263 = vpop.permute.xlu0 %4262
    %v4266 = vsel %vm209, %v4261, 0
    %4268 = vmatpush.msra.mxu0 0.0
    %4269 = vmatpush.msra.mxu0 0.0
    %4270 = vmatpush.msra.mxu0 0.0
    %4271 = vmatpush.msra.mxu0 0.0
    %4272 = vmatpush.msra.mxu0 0.0
    %4273 = vmatpush.msra.mxu0 0.0
    %4274 = vmatpush.msra.mxu0 0.0
    %4275 = vmatpush.msra.mxu0 0.0
    %4276 = vmatpush.msra.mxu0 0.0
    %4277 = vmatpush.msra.mxu0 0.0
    %4278 = vmatpush.msra.mxu0 0.0
    %4279 = vmatpush.msra.mxu0 0.0
    %4280 = vmatpush.msra.mxu0 0.0
    %4281 = vmatpush.msra.mxu0 0.0
    %4282 = vmatpush.msra.mxu0 0.0
    %4283 = vmatpush.msra.mxu0 %v4263
    %4284 = vmatmul.f32.gmra.mxu0 %v4266
    %v4285 = vpop.f32.mrf.mxu0
    %v4286 = vadd.f32 0.0, %v4285
    %4287 = vdwg.mxu0
    %v4289 = vsel %vm209, %v4286, 0
    %4291 = vmatpush.msra.mxu0 0.0
    %4292 = vmatpush.msra.mxu0 0.0
    %4293 = vmatpush.msra.mxu0 0.0
    %4294 = vmatpush.msra.mxu0 0.0
    %4295 = vmatpush.msra.mxu0 0.0
    %4296 = vmatpush.msra.mxu0 0.0
    %4297 = vmatpush.msra.mxu0 0.0
    %4298 = vmatpush.msra.mxu0 0.0
    %4299 = vmatpush.msra.mxu0 0.0
    %4300 = vmatpush.msra.mxu0 0.0
    %4301 = vmatpush.msra.mxu0 0.0
    %4302 = vmatpush.msra.mxu0 0.0
    %4303 = vmatpush.msra.mxu0 0.0
    %4304 = vmatpush.msra.mxu0 0.0
    %4305 = vmatpush.msra.mxu0 0.0
    %4306 = vmatpush.msra.mxu0 %v3972
    %4307 = vmatmul.f32.gmra.mxu0 %v4289
    %v4308 = vpop.f32.mrf.mxu0
    %v4309 = vadd.f32 0.0, %v4308
    %4310 = vdwg.mxu0
    %v4311 = vadd.f32 %v4221, %v4309
    %4312 = vrot.lane.b32.xlu0 %v4048, 104
    %v4313 = vpop.permute.xlu0 %4312
    %4314 = vrot.lane.b32.xlu0 %v4043, 104
    %v4315 = vpop.permute.xlu0 %4314
    %v4316 = vsel %vm209, %v4313, 0
    %v4318 = vsel %vm209, %v4315, 0
    %4320 = vmatpush.xpose.msra.mxu0 0.0
    %4321 = vmatpush.xpose.msra.mxu0 0.0
    %4322 = vmatpush.xpose.msra.mxu0 0.0
    %4323 = vmatpush.xpose.msra.mxu0 0.0
    %4324 = vmatpush.xpose.msra.mxu0 0.0
    %4325 = vmatpush.xpose.msra.mxu0 0.0
    %4326 = vmatpush.xpose.msra.mxu0 0.0
    %4327 = vmatpush.xpose.msra.mxu0 0.0
    %4328 = vmatpush.xpose.msra.mxu0 0.0
    %4329 = vmatpush.xpose.msra.mxu0 0.0
    %4330 = vmatpush.xpose.msra.mxu0 0.0
    %4331 = vmatpush.xpose.msra.mxu0 0.0
    %4332 = vmatpush.xpose.msra.mxu0 0.0
    %4333 = vmatpush.xpose.msra.mxu0 0.0
    %4334 = vmatpush.xpose.msra.mxu0 0.0
    %4335 = vmatpush.xpose.msra.mxu0 %v4318
    %4336 = vmatmul.f32.gmra.mxu0 %v4316
    %v4337 = vpop.f32.mrf.mxu0
    %v4338 = vadd.f32 0.0, %v4337
    %4339 = vdwg.mxu0
    %v4340 = vsel %vm209, %v4338, -inf
    %4341 = vmax.xlane.f32.xlu0 %v4340
    %v4342 = vpop.xlane.xlu0 %4341
    %v4343 = vsub.f32 %v4338, %v4342
    %v4344 = vmul.f32 %v4343, 1.442695
    %v4345 = vpow.pop %v4344
    %v4346 = vsel %vm209, %v4345, 0.0
    %4347 = vadd.xlane.f32.xlu0 %v4346
    %v4348 = vpop.xlane.xlu0 %4347
    %v4349 = vrcp.pop %v4348
    %v4350 = vmul.f32 %v4345, %v4349
    %4351 = vrot.lane.b32.xlu0 %v4043, 72
    %v4352 = vpop.permute.xlu0 %4351
    %v4355 = vsel %vm209, %v4350, 0
    %4357 = vmatpush.msra.mxu0 0.0
    %4358 = vmatpush.msra.mxu0 0.0
    %4359 = vmatpush.msra.mxu0 0.0
    %4360 = vmatpush.msra.mxu0 0.0
    %4361 = vmatpush.msra.mxu0 0.0
    %4362 = vmatpush.msra.mxu0 0.0
    %4363 = vmatpush.msra.mxu0 0.0
    %4364 = vmatpush.msra.mxu0 0.0
    %4365 = vmatpush.msra.mxu0 0.0
    %4366 = vmatpush.msra.mxu0 0.0
    %4367 = vmatpush.msra.mxu0 0.0
    %4368 = vmatpush.msra.mxu0 0.0
    %4369 = vmatpush.msra.mxu0 0.0
    %4370 = vmatpush.msra.mxu0 0.0
    %4371 = vmatpush.msra.mxu0 0.0
    %4372 = vmatpush.msra.mxu0 %v4352
    %4373 = vmatmul.f32.gmra.mxu0 %v4355
    %v4374 = vpop.f32.mrf.mxu0
    %v4375 = vadd.f32 0.0, %v4374
    %4376 = vdwg.mxu0
    %v4378 = vsel %vm209, %v4375, 0
    %4380 = vmatpush.msra.mxu0 0.0
    %4381 = vmatpush.msra.mxu0 0.0
    %4382 = vmatpush.msra.mxu0 0.0
    %4383 = vmatpush.msra.mxu0 0.0
    %4384 = vmatpush.msra.mxu0 0.0
    %4385 = vmatpush.msra.mxu0 0.0
    %4386 = vmatpush.msra.mxu0 0.0
    %4387 = vmatpush.msra.mxu0 0.0
    %4388 = vmatpush.msra.mxu0 0.0
    %4389 = vmatpush.msra.mxu0 0.0
    %4390 = vmatpush.msra.mxu0 0.0
    %4391 = vmatpush.msra.mxu0 0.0
    %4392 = vmatpush.msra.mxu0 0.0
    %4393 = vmatpush.msra.mxu0 0.0
    %4394 = vmatpush.msra.mxu0 0.0
    %4395 = vmatpush.msra.mxu0 %v3973
    %4396 = vmatmul.f32.gmra.mxu0 %v4378
    %v4397 = vpop.f32.mrf.mxu0
    %v4398 = vadd.f32 0.0, %v4397
    %4399 = vdwg.mxu0
    %v4400 = vadd.f32 %v4311, %v4398
    %v4401 = vmul.f32 %v4003, 0.35355338
    %v4403 = vsel %vm209, %v4401, 0
    %v4406 = vsel %vm209, %v4046, 0
    %4408 = vmatpush.xpose.msra.mxu0 0.0
    %4409 = vmatpush.xpose.msra.mxu0 0.0
    %4410 = vmatpush.xpose.msra.mxu0 0.0
    %4411 = vmatpush.xpose.msra.mxu0 0.0
    %4412 = vmatpush.xpose.msra.mxu0 0.0
    %4413 = vmatpush.xpose.msra.mxu0 0.0
    %4414 = vmatpush.xpose.msra.mxu0 0.0
    %4415 = vmatpush.xpose.msra.mxu0 0.0
    %4416 = vmatpush.xpose.msra.mxu0 0.0
    %4417 = vmatpush.xpose.msra.mxu0 0.0
    %4418 = vmatpush.xpose.msra.mxu0 0.0
    %4419 = vmatpush.xpose.msra.mxu0 0.0
    %4420 = vmatpush.xpose.msra.mxu0 0.0
    %4421 = vmatpush.xpose.msra.mxu0 0.0
    %4422 = vmatpush.xpose.msra.mxu0 0.0
    %4423 = vmatpush.xpose.msra.mxu0 %v4406
    %4424 = vmatmul.f32.gmra.mxu0 %v4403
    %v4425 = vpop.f32.mrf.mxu0
    %v4426 = vadd.f32 0.0, %v4425
    %4427 = vdwg.mxu0
    %v4428 = vsel %vm209, %v4426, -inf
    %4429 = vmax.xlane.f32.xlu0 %v4428
    %v4430 = vpop.xlane.xlu0 %4429
    %v4431 = vsub.f32 %v4426, %v4430
    %v4432 = vmul.f32 %v4431, 1.442695
    %v4433 = vpow.pop %v4432
    %v4434 = vsel %vm209, %v4433, 0.0
    %4435 = vadd.xlane.f32.xlu0 %v4434
    %v4436 = vpop.xlane.xlu0 %4435
    %v4437 = vrcp.pop %v4436
    %v4438 = vmul.f32 %v4433, %v4437
    %4439 = vrot.lane.b32.xlu0 %v4046, 96
    %v4440 = vpop.permute.xlu0 %4439
    %v4443 = vsel %vm209, %v4438, 0
    %4445 = vmatpush.msra.mxu0 0.0
    %4446 = vmatpush.msra.mxu0 0.0
    %4447 = vmatpush.msra.mxu0 0.0
    %4448 = vmatpush.msra.mxu0 0.0
    %4449 = vmatpush.msra.mxu0 0.0
    %4450 = vmatpush.msra.mxu0 0.0
    %4451 = vmatpush.msra.mxu0 0.0
    %4452 = vmatpush.msra.mxu0 0.0
    %4453 = vmatpush.msra.mxu0 0.0
    %4454 = vmatpush.msra.mxu0 0.0
    %4455 = vmatpush.msra.mxu0 0.0
    %4456 = vmatpush.msra.mxu0 0.0
    %4457 = vmatpush.msra.mxu0 0.0
    %4458 = vmatpush.msra.mxu0 0.0
    %4459 = vmatpush.msra.mxu0 0.0
    %4460 = vmatpush.msra.mxu0 %v4440
    %4461 = vmatmul.f32.gmra.mxu0 %v4443
    %v4462 = vpop.f32.mrf.mxu0
    %v4463 = vadd.f32 0.0, %v4462
    %4464 = vdwg.mxu0
    %4465 = vrot.lane.b32.xlu0 %v4401, 120
    %v4466 = vpop.permute.xlu0 %4465
    %4467 = vrot.lane.b32.xlu0 %v4046, 120
    %v4468 = vpop.permute.xlu0 %4467
    %v4469 = vsel %vm209, %v4466, 0
    %v4471 = vsel %vm209, %v4468, 0
    %4473 = vmatpush.xpose.msra.mxu0 0.0
    %4474 = vmatpush.xpose.msra.mxu0 0.0
    %4475 = vmatpush.xpose.msra.mxu0 0.0
    %4476 = vmatpush.xpose.msra.mxu0 0.0
    %4477 = vmatpush.xpose.msra.mxu0 0.0
    %4478 = vmatpush.xpose.msra.mxu0 0.0
    %4479 = vmatpush.xpose.msra.mxu0 0.0
    %4480 = vmatpush.xpose.msra.mxu0 0.0
    %4481 = vmatpush.xpose.msra.mxu0 0.0
    %4482 = vmatpush.xpose.msra.mxu0 0.0
    %4483 = vmatpush.xpose.msra.mxu0 0.0
    %4484 = vmatpush.xpose.msra.mxu0 0.0
    %4485 = vmatpush.xpose.msra.mxu0 0.0
    %4486 = vmatpush.xpose.msra.mxu0 0.0
    %4487 = vmatpush.xpose.msra.mxu0 0.0
    %4488 = vmatpush.xpose.msra.mxu0 %v4471
    %4489 = vmatmul.f32.gmra.mxu0 %v4469
    %v4490 = vpop.f32.mrf.mxu0
    %v4491 = vadd.f32 0.0, %v4490
    %4492 = vdwg.mxu0
    %v4493 = vsel %vm209, %v4491, -inf
    %4494 = vmax.xlane.f32.xlu0 %v4493
    %v4495 = vpop.xlane.xlu0 %4494
    %v4496 = vsub.f32 %v4491, %v4495
    %v4497 = vmul.f32 %v4496, 1.442695
    %v4498 = vpow.pop %v4497
    %v4499 = vsel %vm209, %v4498, 0.0
    %4500 = vadd.xlane.f32.xlu0 %v4499
    %v4501 = vpop.xlane.xlu0 %4500
    %v4502 = vrcp.pop %v4501
    %v4503 = vmul.f32 %v4498, %v4502
    %4504 = vrot.lane.b32.xlu0 %v4046, 88
    %v4505 = vpop.permute.xlu0 %4504
    %v4508 = vsel %vm209, %v4503, 0
    %4510 = vmatpush.msra.mxu0 0.0
    %4511 = vmatpush.msra.mxu0 0.0
    %4512 = vmatpush.msra.mxu0 0.0
    %4513 = vmatpush.msra.mxu0 0.0
    %4514 = vmatpush.msra.mxu0 0.0
    %4515 = vmatpush.msra.mxu0 0.0
    %4516 = vmatpush.msra.mxu0 0.0
    %4517 = vmatpush.msra.mxu0 0.0
    %4518 = vmatpush.msra.mxu0 0.0
    %4519 = vmatpush.msra.mxu0 0.0
    %4520 = vmatpush.msra.mxu0 0.0
    %4521 = vmatpush.msra.mxu0 0.0
    %4522 = vmatpush.msra.mxu0 0.0
    %4523 = vmatpush.msra.mxu0 0.0
    %4524 = vmatpush.msra.mxu0 0.0
    %4525 = vmatpush.msra.mxu0 %v4505
    %4526 = vmatmul.f32.gmra.mxu0 %v4508
    %v4527 = vpop.f32.mrf.mxu0
    %v4528 = vadd.f32 0.0, %v4527
    %4529 = vdwg.mxu0
    %v4531 = vsel %vm209, %v4528, 0
    %4533 = vmatpush.msra.mxu0 0.0
    %4534 = vmatpush.msra.mxu0 0.0
    %4535 = vmatpush.msra.mxu0 0.0
    %4536 = vmatpush.msra.mxu0 0.0
    %4537 = vmatpush.msra.mxu0 0.0
    %4538 = vmatpush.msra.mxu0 0.0
    %4539 = vmatpush.msra.mxu0 0.0
    %4540 = vmatpush.msra.mxu0 0.0
    %4541 = vmatpush.msra.mxu0 0.0
    %4542 = vmatpush.msra.mxu0 0.0
    %4543 = vmatpush.msra.mxu0 0.0
    %4544 = vmatpush.msra.mxu0 0.0
    %4545 = vmatpush.msra.mxu0 0.0
    %4546 = vmatpush.msra.mxu0 0.0
    %4547 = vmatpush.msra.mxu0 0.0
    %4548 = vmatpush.msra.mxu0 %v3971
    %4549 = vmatmul.f32.gmra.mxu0 %v4531
    %v4550 = vpop.f32.mrf.mxu0
    %v4551 = vadd.f32 0.0, %v4550
    %4552 = vdwg.mxu0
    %v4554 = vsel %vm209, %v4463, 0
    %4556 = vmatpush.msra.mxu0 0.0
    %4557 = vmatpush.msra.mxu0 0.0
    %4558 = vmatpush.msra.mxu0 0.0
    %4559 = vmatpush.msra.mxu0 0.0
    %4560 = vmatpush.msra.mxu0 0.0
    %4561 = vmatpush.msra.mxu0 0.0
    %4562 = vmatpush.msra.mxu0 0.0
    %4563 = vmatpush.msra.mxu0 0.0
    %4564 = vmatpush.msra.mxu0 0.0
    %4565 = vmatpush.msra.mxu0 0.0
    %4566 = vmatpush.msra.mxu0 0.0
    %4567 = vmatpush.msra.mxu0 0.0
    %4568 = vmatpush.msra.mxu0 0.0
    %4569 = vmatpush.msra.mxu0 0.0
    %4570 = vmatpush.msra.mxu0 0.0
    %4571 = vmatpush.msra.mxu0 %v3970
    %4572 = vmatmul.f32.gmra.mxu0 %v4554
    %v4573 = vpop.f32.mrf.mxu0
    %v4574 = vadd.f32 %v4551, %v4573
    %4575 = vdwg.mxu0
    %4576 = vrot.lane.b32.xlu0 %v4401, 112
    %v4577 = vpop.permute.xlu0 %4576
    %4578 = vrot.lane.b32.xlu0 %v4046, 112
    %v4579 = vpop.permute.xlu0 %4578
    %v4580 = vsel %vm209, %v4577, 0
    %v4582 = vsel %vm209, %v4579, 0
    %4584 = vmatpush.xpose.msra.mxu0 0.0
    %4585 = vmatpush.xpose.msra.mxu0 0.0
    %4586 = vmatpush.xpose.msra.mxu0 0.0
    %4587 = vmatpush.xpose.msra.mxu0 0.0
    %4588 = vmatpush.xpose.msra.mxu0 0.0
    %4589 = vmatpush.xpose.msra.mxu0 0.0
    %4590 = vmatpush.xpose.msra.mxu0 0.0
    %4591 = vmatpush.xpose.msra.mxu0 0.0
    %4592 = vmatpush.xpose.msra.mxu0 0.0
    %4593 = vmatpush.xpose.msra.mxu0 0.0
    %4594 = vmatpush.xpose.msra.mxu0 0.0
    %4595 = vmatpush.xpose.msra.mxu0 0.0
    %4596 = vmatpush.xpose.msra.mxu0 0.0
    %4597 = vmatpush.xpose.msra.mxu0 0.0
    %4598 = vmatpush.xpose.msra.mxu0 0.0
    %4599 = vmatpush.xpose.msra.mxu0 %v4582
    %4600 = vmatmul.f32.gmra.mxu0 %v4580
    %v4601 = vpop.f32.mrf.mxu0
    %v4602 = vadd.f32 0.0, %v4601
    %4603 = vdwg.mxu0
    %v4604 = vsel %vm209, %v4602, -inf
    %4605 = vmax.xlane.f32.xlu0 %v4604
    %v4606 = vpop.xlane.xlu0 %4605
    %v4607 = vsub.f32 %v4602, %v4606
    %v4608 = vmul.f32 %v4607, 1.442695
    %v4609 = vpow.pop %v4608
    %v4610 = vsel %vm209, %v4609, 0.0
    %4611 = vadd.xlane.f32.xlu0 %v4610
    %v4612 = vpop.xlane.xlu0 %4611
    %v4613 = vrcp.pop %v4612
    %v4614 = vmul.f32 %v4609, %v4613
    %4615 = vrot.lane.b32.xlu0 %v4046, 80
    %v4616 = vpop.permute.xlu0 %4615
    %v4619 = vsel %vm209, %v4614, 0
    %4621 = vmatpush.msra.mxu0 0.0
    %4622 = vmatpush.msra.mxu0 0.0
    %4623 = vmatpush.msra.mxu0 0.0
    %4624 = vmatpush.msra.mxu0 0.0
    %4625 = vmatpush.msra.mxu0 0.0
    %4626 = vmatpush.msra.mxu0 0.0
    %4627 = vmatpush.msra.mxu0 0.0
    %4628 = vmatpush.msra.mxu0 0.0
    %4629 = vmatpush.msra.mxu0 0.0
    %4630 = vmatpush.msra.mxu0 0.0
    %4631 = vmatpush.msra.mxu0 0.0
    %4632 = vmatpush.msra.mxu0 0.0
    %4633 = vmatpush.msra.mxu0 0.0
    %4634 = vmatpush.msra.mxu0 0.0
    %4635 = vmatpush.msra.mxu0 0.0
    %4636 = vmatpush.msra.mxu0 %v4616
    %4637 = vmatmul.f32.gmra.mxu0 %v4619
    %v4638 = vpop.f32.mrf.mxu0
    %v4639 = vadd.f32 0.0, %v4638
    %4640 = vdwg.mxu0
    %v4642 = vsel %vm209, %v4639, 0
    %4644 = vmatpush.msra.mxu0 0.0
    %4645 = vmatpush.msra.mxu0 0.0
    %4646 = vmatpush.msra.mxu0 0.0
    %4647 = vmatpush.msra.mxu0 0.0
    %4648 = vmatpush.msra.mxu0 0.0
    %4649 = vmatpush.msra.mxu0 0.0
    %4650 = vmatpush.msra.mxu0 0.0
    %4651 = vmatpush.msra.mxu0 0.0
    %4652 = vmatpush.msra.mxu0 0.0
    %4653 = vmatpush.msra.mxu0 0.0
    %4654 = vmatpush.msra.mxu0 0.0
    %4655 = vmatpush.msra.mxu0 0.0
    %4656 = vmatpush.msra.mxu0 0.0
    %4657 = vmatpush.msra.mxu0 0.0
    %4658 = vmatpush.msra.mxu0 0.0
    %4659 = vmatpush.msra.mxu0 %v3972
    %4660 = vmatmul.f32.gmra.mxu0 %v4642
    %v4661 = vpop.f32.mrf.mxu0
    %v4662 = vadd.f32 0.0, %v4661
    %4663 = vdwg.mxu0
    %v4664 = vadd.f32 %v4574, %v4662
    %4665 = vrot.lane.b32.xlu0 %v4401, 104
    %v4666 = vpop.permute.xlu0 %4665
    %4667 = vrot.lane.b32.xlu0 %v4046, 104
    %v4668 = vpop.permute.xlu0 %4667
    %v4669 = vsel %vm209, %v4666, 0
    %v4671 = vsel %vm209, %v4668, 0
    %4673 = vmatpush.xpose.msra.mxu0 0.0
    %4674 = vmatpush.xpose.msra.mxu0 0.0
    %4675 = vmatpush.xpose.msra.mxu0 0.0
    %4676 = vmatpush.xpose.msra.mxu0 0.0
    %4677 = vmatpush.xpose.msra.mxu0 0.0
    %4678 = vmatpush.xpose.msra.mxu0 0.0
    %4679 = vmatpush.xpose.msra.mxu0 0.0
    %4680 = vmatpush.xpose.msra.mxu0 0.0
    %4681 = vmatpush.xpose.msra.mxu0 0.0
    %4682 = vmatpush.xpose.msra.mxu0 0.0
    %4683 = vmatpush.xpose.msra.mxu0 0.0
    %4684 = vmatpush.xpose.msra.mxu0 0.0
    %4685 = vmatpush.xpose.msra.mxu0 0.0
    %4686 = vmatpush.xpose.msra.mxu0 0.0
    %4687 = vmatpush.xpose.msra.mxu0 0.0
    %4688 = vmatpush.xpose.msra.mxu0 %v4671
    %4689 = vmatmul.f32.gmra.mxu0 %v4669
    %v4690 = vpop.f32.mrf.mxu0
    %v4691 = vadd.f32 0.0, %v4690
    %4692 = vdwg.mxu0
    %v4693 = vsel %vm209, %v4691, -inf
    %4694 = vmax.xlane.f32.xlu0 %v4693
    %v4695 = vpop.xlane.xlu0 %4694
    %v4696 = vsub.f32 %v4691, %v4695
    %v4697 = vmul.f32 %v4696, 1.442695
    %v4698 = vpow.pop %v4697
    %v4699 = vsel %vm209, %v4698, 0.0
    %4700 = vadd.xlane.f32.xlu0 %v4699
    %v4701 = vpop.xlane.xlu0 %4700
    %v4702 = vrcp.pop %v4701
    %v4703 = vmul.f32 %v4698, %v4702
    %4704 = vrot.lane.b32.xlu0 %v4046, 72
    %v4705 = vpop.permute.xlu0 %4704
    %v4708 = vsel %vm209, %v4703, 0
    %4710 = vmatpush.msra.mxu0 0.0
    %4711 = vmatpush.msra.mxu0 0.0
    %4712 = vmatpush.msra.mxu0 0.0
    %4713 = vmatpush.msra.mxu0 0.0
    %4714 = vmatpush.msra.mxu0 0.0
    %4715 = vmatpush.msra.mxu0 0.0
    %4716 = vmatpush.msra.mxu0 0.0
    %4717 = vmatpush.msra.mxu0 0.0
    %4718 = vmatpush.msra.mxu0 0.0
    %4719 = vmatpush.msra.mxu0 0.0
    %4720 = vmatpush.msra.mxu0 0.0
    %4721 = vmatpush.msra.mxu0 0.0
    %4722 = vmatpush.msra.mxu0 0.0
    %4723 = vmatpush.msra.mxu0 0.0
    %4724 = vmatpush.msra.mxu0 0.0
    %4725 = vmatpush.msra.mxu0 %v4705
    %4726 = vmatmul.f32.gmra.mxu0 %v4708
    %v4727 = vpop.f32.mrf.mxu0
    %v4728 = vadd.f32 0.0, %v4727
    %4729 = vdwg.mxu0
    %v4731 = vsel %vm209, %v4728, 0
    %4733 = vmatpush.msra.mxu0 0.0
    %4734 = vmatpush.msra.mxu0 0.0
    %4735 = vmatpush.msra.mxu0 0.0
    %4736 = vmatpush.msra.mxu0 0.0
    %4737 = vmatpush.msra.mxu0 0.0
    %4738 = vmatpush.msra.mxu0 0.0
    %4739 = vmatpush.msra.mxu0 0.0
    %4740 = vmatpush.msra.mxu0 0.0
    %4741 = vmatpush.msra.mxu0 0.0
    %4742 = vmatpush.msra.mxu0 0.0
    %4743 = vmatpush.msra.mxu0 0.0
    %4744 = vmatpush.msra.mxu0 0.0
    %4745 = vmatpush.msra.mxu0 0.0
    %4746 = vmatpush.msra.mxu0 0.0
    %4747 = vmatpush.msra.mxu0 0.0
    %4748 = vmatpush.msra.mxu0 %v3973
    %4749 = vmatmul.f32.gmra.mxu0 %v4731
    %v4750 = vpop.f32.mrf.mxu0
    %v4751 = vadd.f32 0.0, %v4750
    %4752 = vdwg.mxu0
    %v4753 = vadd.f32 %v4664, %v4751
    %v4754 = vperm.slane %v3974, 0
    %v4755 = vadd.f32 %v4400, %v4754
    %v4756 = vadd.f32 %v4753, %v4754
    %v4757 = vadd.f32 %v3963, %v4755
    %v4758 = vadd.f32 %v3964, %v4756
    %v4759 = vsel %vm135, %v4757, 0.0
    %4760 = vadd.xlane.f32.xlu0 %v4759
    %v4761 = vpop.xlane.xlu0 %4760
    %v4762 = vsel %vm135, %v4758, 0.0
    %4763 = vadd.xlane.f32.xlu0 %v4762
    %v4764 = vpop.xlane.xlu0 %4763
    %v4765 = vmul.f32 %v4761, %v932
    %v4766 = vmul.f32 %v4764, %v932
    %v4767 = vsub.f32 %v4757, %v4765
    %v4768 = vsub.f32 %v4758, %v4766
    %v4769 = vmul.f32 %v4767, %v4767
    %v4770 = vmul.f32 %v4768, %v4768
    %v4771 = vsel %vm135, %v4769, 0.0
    %4772 = vadd.xlane.f32.xlu0 %v4771
    %v4773 = vpop.xlane.xlu0 %4772
    %v4774 = vsel %vm135, %v4770, 0.0
    %4775 = vadd.xlane.f32.xlu0 %v4774
    %v4776 = vpop.xlane.xlu0 %4775
    %v4777 = vmul.f32 %v4773, %v932
    %v4778 = vmul.f32 %v4776, %v932
    %v4779 = vadd.f32 %v4777, 1e-05
    %v4780 = vadd.f32 %v4778, 1e-05
    %v4781 = vrsqrt.pop %v4779
    %v4782 = vmul.f32 %v4781, %v4779
    %v4783 = vmul.f32 %v4782, %v4781
    %v4784 = vmul.f32 0.5, %v4783
    %v4785 = vsub.f32 1.5, %v4784
    %v4786 = vmul.f32 %v4781, %v4785
    %vm4787 = vweird.f32 %v4779
    %vm4788 = vweird.f32 %v4781
    %vm4789 = vmor %vm4787, %vm4788
    %v4790 = vsel %vm4789, %v4781, %v4786
    %v4791 = vrsqrt.pop %v4780
    %v4792 = vmul.f32 %v4791, %v4780
    %v4793 = vmul.f32 %v4792, %v4791
    %v4794 = vmul.f32 0.5, %v4793
    %v4795 = vsub.f32 1.5, %v4794
    %v4796 = vmul.f32 %v4791, %v4795
    %vm4797 = vweird.f32 %v4780
    %vm4798 = vweird.f32 %v4791
    %vm4799 = vmor %vm4797, %vm4798
    %v4800 = vsel %vm4799, %v4791, %v4796
    %v4801 = vmul.f32 %v4767, %v4790
    %v4802 = vmul.f32 %v4768, %v4800
    %v4803 = vld [vmem:[#allocation5 + $0x720] sm:$0x1]
    %v4804 = vperm.slane %v4803, 0
    %v4805 = vmul.f32 %v4801, %v4804
    %v4806 = vmul.f32 %v4802, %v4804
    %v4807 = vld [vmem:[#allocation5 + $0x728] sm:$0x1]
    %v4808 = vperm.slane %v4807, 0
    %v4809 = vadd.f32 %v4805, %v4808
    %v4810 = vadd.f32 %v4806, %v4808
    %v4811 = vld [vmem:[#allocation5 + $0x620] sm:$0xff]
    %v4812 = vld [vmem:[#allocation5 + $0x628] sm:$0xff]
    %v4813 = vld [vmem:[#allocation5 + $0x630] sm:$0xff]
    %v4814 = vld [vmem:[#allocation5 + $0x638] sm:$0xff]
    %v4815 = vld [vmem:[#allocation5 + $0x640] sm:$0x1]
    %v4816 = vld [vmem:[#allocation5 + $0x648] sm:$0xff]
    %v4817 = vld [vmem:[#allocation5 + $0x650] sm:$0xff]
    %v4818 = vld [vmem:[#allocation5 + $0x658] sm:$0xff]
    %v4819 = vld [vmem:[#allocation5 + $0x660] sm:$0xff]
    %v4820 = vld [vmem:[#allocation5 + $0x668] sm:$0x1]
    %v4821 = vperm.slane %v4815, 0
    %v4823 = vsel %vm135, %v4809, 0
    %v4826 = vsel %vm135, %v4810, 0
    %4828 = vmatpush.msra.mxu0 0.0
    %4829 = vmatpush.msra.mxu0 0.0
    %4830 = vmatpush.msra.mxu0 0.0
    %4831 = vmatpush.msra.mxu0 0.0
    %4832 = vmatpush.msra.mxu0 0.0
    %4833 = vmatpush.msra.mxu0 0.0
    %4834 = vmatpush.msra.mxu0 0.0
    %4835 = vmatpush.msra.mxu0 0.0
    %4836 = vmatpush.msra.mxu0 0.0
    %4837 = vmatpush.msra.mxu0 0.0
    %4838 = vmatpush.msra.mxu0 0.0
    %4839 = vmatpush.msra.mxu0 0.0
    %4840 = vmatpush.msra.mxu0 %v4814
    %4841 = vmatpush.msra.mxu0 %v4813
    %4842 = vmatpush.msra.mxu0 %v4812
    %4843 = vmatpush.msra.mxu0 %v4811
    %4844 = vmatmul.f32.gmra.mxu0 %v4823
    %v4845 = vpop.f32.mrf.mxu0
    %v4846 = vadd.f32 %v4821, %v4845
    %4847 = vmatmul.f32.gmra.mxu0 %v4826
    %v4848 = vpop.f32.mrf.mxu0
    %v4849 = vadd.f32 %v4821, %v4848
    %4850 = vdwg.mxu0
    %4855 = vrot.lane.b32.xlu0 %v4811, 96
    %v4856 = vpop.permute.xlu0 %4855
    %4857 = vrot.lane.b32.xlu0 %v4812, 96
    %v4858 = vpop.permute.xlu0 %4857
    %4859 = vrot.lane.b32.xlu0 %v4813, 96
    %v4860 = vpop.permute.xlu0 %4859
    %4861 = vrot.lane.b32.xlu0 %v4814, 96
    %v4862 = vpop.permute.xlu0 %4861
    %4868 = vrot.lane.b32.xlu0 %v4821, 96
    %v4869 = vpop.permute.xlu0 %4868
    %4871 = vmatpush.msra.mxu0 0.0
    %4872 = vmatpush.msra.mxu0 0.0
    %4873 = vmatpush.msra.mxu0 0.0
    %4874 = vmatpush.msra.mxu0 0.0
    %4875 = vmatpush.msra.mxu0 0.0
    %4876 = vmatpush.msra.mxu0 0.0
    %4877 = vmatpush.msra.mxu0 0.0
    %4878 = vmatpush.msra.mxu0 0.0
    %4879 = vmatpush.msra.mxu0 0.0
    %4880 = vmatpush.msra.mxu0 0.0
    %4881 = vmatpush.msra.mxu0 0.0
    %4882 = vmatpush.msra.mxu0 0.0
    %4883 = vmatpush.msra.mxu0 %v4862
    %4884 = vmatpush.msra.mxu0 %v4860
    %4885 = vmatpush.msra.mxu0 %v4858
    %4886 = vmatpush.msra.mxu0 %v4856
    %4887 = vmatmul.f32.gmra.mxu0 %v3042
    %v4888 = vpop.f32.mrf.mxu0
    %v4889 = vadd.f32 %v4869, %v4888
    %4890 = vmatmul.f32.gmra.mxu0 %v3045
    %v4891 = vpop.f32.mrf.mxu0
    %v4892 = vadd.f32 %v4869, %v4891
    %4893 = vdwg.mxu0
    %v4894 = vmul.f32 %v4846, 0.35355338
    %v4896 = vsel %vm209, %v4894, 0
    %v4899 = vsel %vm209, %v4889, 0
    %4901 = vmatpush.xpose.msra.mxu0 0.0
    %4902 = vmatpush.xpose.msra.mxu0 0.0
    %4903 = vmatpush.xpose.msra.mxu0 0.0
    %4904 = vmatpush.xpose.msra.mxu0 0.0
    %4905 = vmatpush.xpose.msra.mxu0 0.0
    %4906 = vmatpush.xpose.msra.mxu0 0.0
    %4907 = vmatpush.xpose.msra.mxu0 0.0
    %4908 = vmatpush.xpose.msra.mxu0 0.0
    %4909 = vmatpush.xpose.msra.mxu0 0.0
    %4910 = vmatpush.xpose.msra.mxu0 0.0
    %4911 = vmatpush.xpose.msra.mxu0 0.0
    %4912 = vmatpush.xpose.msra.mxu0 0.0
    %4913 = vmatpush.xpose.msra.mxu0 0.0
    %4914 = vmatpush.xpose.msra.mxu0 0.0
    %4915 = vmatpush.xpose.msra.mxu0 0.0
    %4916 = vmatpush.xpose.msra.mxu0 %v4899
    %4917 = vmatmul.f32.gmra.mxu0 %v4896
    %v4918 = vpop.f32.mrf.mxu0
    %v4919 = vadd.f32 0.0, %v4918
    %4920 = vdwg.mxu0
    %v4921 = vsel %vm209, %v4919, -inf
    %4922 = vmax.xlane.f32.xlu0 %v4921
    %v4923 = vpop.xlane.xlu0 %4922
    %v4924 = vsub.f32 %v4919, %v4923
    %v4925 = vmul.f32 %v4924, 1.442695
    %v4926 = vpow.pop %v4925
    %v4927 = vsel %vm209, %v4926, 0.0
    %4928 = vadd.xlane.f32.xlu0 %v4927
    %v4929 = vpop.xlane.xlu0 %4928
    %v4930 = vrcp.pop %v4929
    %v4931 = vmul.f32 %v4926, %v4930
    %4932 = vrot.lane.b32.xlu0 %v4889, 96
    %v4933 = vpop.permute.xlu0 %4932
    %v4936 = vsel %vm209, %v4931, 0
    %4938 = vmatpush.msra.mxu0 0.0
    %4939 = vmatpush.msra.mxu0 0.0
    %4940 = vmatpush.msra.mxu0 0.0
    %4941 = vmatpush.msra.mxu0 0.0
    %4942 = vmatpush.msra.mxu0 0.0
    %4943 = vmatpush.msra.mxu0 0.0
    %4944 = vmatpush.msra.mxu0 0.0
    %4945 = vmatpush.msra.mxu0 0.0
    %4946 = vmatpush.msra.mxu0 0.0
    %4947 = vmatpush.msra.mxu0 0.0
    %4948 = vmatpush.msra.mxu0 0.0
    %4949 = vmatpush.msra.mxu0 0.0
    %4950 = vmatpush.msra.mxu0 0.0
    %4951 = vmatpush.msra.mxu0 0.0
    %4952 = vmatpush.msra.mxu0 0.0
    %4953 = vmatpush.msra.mxu0 %v4933
    %4954 = vmatmul.f32.gmra.mxu0 %v4936
    %v4955 = vpop.f32.mrf.mxu0
    %v4956 = vadd.f32 0.0, %v4955
    %4957 = vdwg.mxu0
    %4958 = vrot.lane.b32.xlu0 %v4894, 120
    %v4959 = vpop.permute.xlu0 %4958
    %4960 = vrot.lane.b32.xlu0 %v4889, 120
    %v4961 = vpop.permute.xlu0 %4960
    %v4962 = vsel %vm209, %v4959, 0
    %v4964 = vsel %vm209, %v4961, 0
    %4966 = vmatpush.xpose.msra.mxu0 0.0
    %4967 = vmatpush.xpose.msra.mxu0 0.0
    %4968 = vmatpush.xpose.msra.mxu0 0.0
    %4969 = vmatpush.xpose.msra.mxu0 0.0
    %4970 = vmatpush.xpose.msra.mxu0 0.0
    %4971 = vmatpush.xpose.msra.mxu0 0.0
    %4972 = vmatpush.xpose.msra.mxu0 0.0
    %4973 = vmatpush.xpose.msra.mxu0 0.0
    %4974 = vmatpush.xpose.msra.mxu0 0.0
    %4975 = vmatpush.xpose.msra.mxu0 0.0
    %4976 = vmatpush.xpose.msra.mxu0 0.0
    %4977 = vmatpush.xpose.msra.mxu0 0.0
    %4978 = vmatpush.xpose.msra.mxu0 0.0
    %4979 = vmatpush.xpose.msra.mxu0 0.0
    %4980 = vmatpush.xpose.msra.mxu0 0.0
    %4981 = vmatpush.xpose.msra.mxu0 %v4964
    %4982 = vmatmul.f32.gmra.mxu0 %v4962
    %v4983 = vpop.f32.mrf.mxu0
    %v4984 = vadd.f32 0.0, %v4983
    %4985 = vdwg.mxu0
    %v4986 = vsel %vm209, %v4984, -inf
    %4987 = vmax.xlane.f32.xlu0 %v4986
    %v4988 = vpop.xlane.xlu0 %4987
    %v4989 = vsub.f32 %v4984, %v4988
    %v4990 = vmul.f32 %v4989, 1.442695
    %v4991 = vpow.pop %v4990
    %v4992 = vsel %vm209, %v4991, 0.0
    %4993 = vadd.xlane.f32.xlu0 %v4992
    %v4994 = vpop.xlane.xlu0 %4993
    %v4995 = vrcp.pop %v4994
    %v4996 = vmul.f32 %v4991, %v4995
    %4997 = vrot.lane.b32.xlu0 %v4889, 88
    %v4998 = vpop.permute.xlu0 %4997
    %v5001 = vsel %vm209, %v4996, 0
    %5003 = vmatpush.msra.mxu0 0.0
    %5004 = vmatpush.msra.mxu0 0.0
    %5005 = vmatpush.msra.mxu0 0.0
    %5006 = vmatpush.msra.mxu0 0.0
    %5007 = vmatpush.msra.mxu0 0.0
    %5008 = vmatpush.msra.mxu0 0.0
    %5009 = vmatpush.msra.mxu0 0.0
    %5010 = vmatpush.msra.mxu0 0.0
    %5011 = vmatpush.msra.mxu0 0.0
    %5012 = vmatpush.msra.mxu0 0.0
    %5013 = vmatpush.msra.mxu0 0.0
    %5014 = vmatpush.msra.mxu0 0.0
    %5015 = vmatpush.msra.mxu0 0.0
    %5016 = vmatpush.msra.mxu0 0.0
    %5017 = vmatpush.msra.mxu0 0.0
    %5018 = vmatpush.msra.mxu0 %v4998
    %5019 = vmatmul.f32.gmra.mxu0 %v5001
    %v5020 = vpop.f32.mrf.mxu0
    %v5021 = vadd.f32 0.0, %v5020
    %5022 = vdwg.mxu0
    %v5024 = vsel %vm209, %v5021, 0
    %5026 = vmatpush.msra.mxu0 0.0
    %5027 = vmatpush.msra.mxu0 0.0
    %5028 = vmatpush.msra.mxu0 0.0
    %5029 = vmatpush.msra.mxu0 0.0
    %5030 = vmatpush.msra.mxu0 0.0
    %5031 = vmatpush.msra.mxu0 0.0
    %5032 = vmatpush.msra.mxu0 0.0
    %5033 = vmatpush.msra.mxu0 0.0
    %5034 = vmatpush.msra.mxu0 0.0
    %5035 = vmatpush.msra.mxu0 0.0
    %5036 = vmatpush.msra.mxu0 0.0
    %5037 = vmatpush.msra.mxu0 0.0
    %5038 = vmatpush.msra.mxu0 0.0
    %5039 = vmatpush.msra.mxu0 0.0
    %5040 = vmatpush.msra.mxu0 0.0
    %5041 = vmatpush.msra.mxu0 %v4817
    %5042 = vmatmul.f32.gmra.mxu0 %v5024
    %v5043 = vpop.f32.mrf.mxu0
    %v5044 = vadd.f32 0.0, %v5043
    %5045 = vdwg.mxu0
    %v5047 = vsel %vm209, %v4956, 0
    %5049 = vmatpush.msra.mxu0 0.0
    %5050 = vmatpush.msra.mxu0 0.0
    %5051 = vmatpush.msra.mxu0 0.0
    %5052 = vmatpush.msra.mxu0 0.0
    %5053 = vmatpush.msra.mxu0 0.0
    %5054 = vmatpush.msra.mxu0 0.0
    %5055 = vmatpush.msra.mxu0 0.0
    %5056 = vmatpush.msra.mxu0 0.0
    %5057 = vmatpush.msra.mxu0 0.0
    %5058 = vmatpush.msra.mxu0 0.0
    %5059 = vmatpush.msra.mxu0 0.0
    %5060 = vmatpush.msra.mxu0 0.0
    %5061 = vmatpush.msra.mxu0 0.0
    %5062 = vmatpush.msra.mxu0 0.0
    %5063 = vmatpush.msra.mxu0 0.0
    %5064 = vmatpush.msra.mxu0 %v4816
    %5065 = vmatmul.f32.gmra.mxu0 %v5047
    %v5066 = vpop.f32.mrf.mxu0
    %v5067 = vadd.f32 %v5044, %v5066
    %5068 = vdwg.mxu0
    %5069 = vrot.lane.b32.xlu0 %v4894, 112
    %v5070 = vpop.permute.xlu0 %5069
    %5071 = vrot.lane.b32.xlu0 %v4889, 112
    %v5072 = vpop.permute.xlu0 %5071
    %v5073 = vsel %vm209, %v5070, 0
    %v5075 = vsel %vm209, %v5072, 0
    %5077 = vmatpush.xpose.msra.mxu0 0.0
    %5078 = vmatpush.xpose.msra.mxu0 0.0
    %5079 = vmatpush.xpose.msra.mxu0 0.0
    %5080 = vmatpush.xpose.msra.mxu0 0.0
    %5081 = vmatpush.xpose.msra.mxu0 0.0
    %5082 = vmatpush.xpose.msra.mxu0 0.0
    %5083 = vmatpush.xpose.msra.mxu0 0.0
    %5084 = vmatpush.xpose.msra.mxu0 0.0
    %5085 = vmatpush.xpose.msra.mxu0 0.0
    %5086 = vmatpush.xpose.msra.mxu0 0.0
    %5087 = vmatpush.xpose.msra.mxu0 0.0
    %5088 = vmatpush.xpose.msra.mxu0 0.0
    %5089 = vmatpush.xpose.msra.mxu0 0.0
    %5090 = vmatpush.xpose.msra.mxu0 0.0
    %5091 = vmatpush.xpose.msra.mxu0 0.0
    %5092 = vmatpush.xpose.msra.mxu0 %v5075
    %5093 = vmatmul.f32.gmra.mxu0 %v5073
    %v5094 = vpop.f32.mrf.mxu0
    %v5095 = vadd.f32 0.0, %v5094
    %5096 = vdwg.mxu0
    %v5097 = vsel %vm209, %v5095, -inf
    %5098 = vmax.xlane.f32.xlu0 %v5097
    %v5099 = vpop.xlane.xlu0 %5098
    %v5100 = vsub.f32 %v5095, %v5099
    %v5101 = vmul.f32 %v5100, 1.442695
    %v5102 = vpow.pop %v5101
    %v5103 = vsel %vm209, %v5102, 0.0
    %5104 = vadd.xlane.f32.xlu0 %v5103
    %v5105 = vpop.xlane.xlu0 %5104
    %v5106 = vrcp.pop %v5105
    %v5107 = vmul.f32 %v5102, %v5106
    %5108 = vrot.lane.b32.xlu0 %v4889, 80
    %v5109 = vpop.permute.xlu0 %5108
    %v5112 = vsel %vm209, %v5107, 0
    %5114 = vmatpush.msra.mxu0 0.0
    %5115 = vmatpush.msra.mxu0 0.0
    %5116 = vmatpush.msra.mxu0 0.0
    %5117 = vmatpush.msra.mxu0 0.0
    %5118 = vmatpush.msra.mxu0 0.0
    %5119 = vmatpush.msra.mxu0 0.0
    %5120 = vmatpush.msra.mxu0 0.0
    %5121 = vmatpush.msra.mxu0 0.0
    %5122 = vmatpush.msra.mxu0 0.0
    %5123 = vmatpush.msra.mxu0 0.0
    %5124 = vmatpush.msra.mxu0 0.0
    %5125 = vmatpush.msra.mxu0 0.0
    %5126 = vmatpush.msra.mxu0 0.0
    %5127 = vmatpush.msra.mxu0 0.0
    %5128 = vmatpush.msra.mxu0 0.0
    %5129 = vmatpush.msra.mxu0 %v5109
    %5130 = vmatmul.f32.gmra.mxu0 %v5112
    %v5131 = vpop.f32.mrf.mxu0
    %v5132 = vadd.f32 0.0, %v5131
    %5133 = vdwg.mxu0
    %v5135 = vsel %vm209, %v5132, 0
    %5137 = vmatpush.msra.mxu0 0.0
    %5138 = vmatpush.msra.mxu0 0.0
    %5139 = vmatpush.msra.mxu0 0.0
    %5140 = vmatpush.msra.mxu0 0.0
    %5141 = vmatpush.msra.mxu0 0.0
    %5142 = vmatpush.msra.mxu0 0.0
    %5143 = vmatpush.msra.mxu0 0.0
    %5144 = vmatpush.msra.mxu0 0.0
    %5145 = vmatpush.msra.mxu0 0.0
    %5146 = vmatpush.msra.mxu0 0.0
    %5147 = vmatpush.msra.mxu0 0.0
    %5148 = vmatpush.msra.mxu0 0.0
    %5149 = vmatpush.msra.mxu0 0.0
    %5150 = vmatpush.msra.mxu0 0.0
    %5151 = vmatpush.msra.mxu0 0.0
    %5152 = vmatpush.msra.mxu0 %v4818
    %5153 = vmatmul.f32.gmra.mxu0 %v5135
    %v5154 = vpop.f32.mrf.mxu0
    %v5155 = vadd.f32 0.0, %v5154
    %5156 = vdwg.mxu0
    %v5157 = vadd.f32 %v5067, %v5155
    %5158 = vrot.lane.b32.xlu0 %v4894, 104
    %v5159 = vpop.permute.xlu0 %5158
    %5160 = vrot.lane.b32.xlu0 %v4889, 104
    %v5161 = vpop.permute.xlu0 %5160
    %v5162 = vsel %vm209, %v5159, 0
    %v5164 = vsel %vm209, %v5161, 0
    %5166 = vmatpush.xpose.msra.mxu0 0.0
    %5167 = vmatpush.xpose.msra.mxu0 0.0
    %5168 = vmatpush.xpose.msra.mxu0 0.0
    %5169 = vmatpush.xpose.msra.mxu0 0.0
    %5170 = vmatpush.xpose.msra.mxu0 0.0
    %5171 = vmatpush.xpose.msra.mxu0 0.0
    %5172 = vmatpush.xpose.msra.mxu0 0.0
    %5173 = vmatpush.xpose.msra.mxu0 0.0
    %5174 = vmatpush.xpose.msra.mxu0 0.0
    %5175 = vmatpush.xpose.msra.mxu0 0.0
    %5176 = vmatpush.xpose.msra.mxu0 0.0
    %5177 = vmatpush.xpose.msra.mxu0 0.0
    %5178 = vmatpush.xpose.msra.mxu0 0.0
    %5179 = vmatpush.xpose.msra.mxu0 0.0
    %5180 = vmatpush.xpose.msra.mxu0 0.0
    %5181 = vmatpush.xpose.msra.mxu0 %v5164
    %5182 = vmatmul.f32.gmra.mxu0 %v5162
    %v5183 = vpop.f32.mrf.mxu0
    %v5184 = vadd.f32 0.0, %v5183
    %5185 = vdwg.mxu0
    %v5186 = vsel %vm209, %v5184, -inf
    %5187 = vmax.xlane.f32.xlu0 %v5186
    %v5188 = vpop.xlane.xlu0 %5187
    %v5189 = vsub.f32 %v5184, %v5188
    %v5190 = vmul.f32 %v5189, 1.442695
    %v5191 = vpow.pop %v5190
    %v5192 = vsel %vm209, %v5191, 0.0
    %5193 = vadd.xlane.f32.xlu0 %v5192
    %v5194 = vpop.xlane.xlu0 %5193
    %v5195 = vrcp.pop %v5194
    %v5196 = vmul.f32 %v5191, %v5195
    %5197 = vrot.lane.b32.xlu0 %v4889, 72
    %v5198 = vpop.permute.xlu0 %5197
    %v5201 = vsel %vm209, %v5196, 0
    %5203 = vmatpush.msra.mxu0 0.0
    %5204 = vmatpush.msra.mxu0 0.0
    %5205 = vmatpush.msra.mxu0 0.0
    %5206 = vmatpush.msra.mxu0 0.0
    %5207 = vmatpush.msra.mxu0 0.0
    %5208 = vmatpush.msra.mxu0 0.0
    %5209 = vmatpush.msra.mxu0 0.0
    %5210 = vmatpush.msra.mxu0 0.0
    %5211 = vmatpush.msra.mxu0 0.0
    %5212 = vmatpush.msra.mxu0 0.0
    %5213 = vmatpush.msra.mxu0 0.0
    %5214 = vmatpush.msra.mxu0 0.0
    %5215 = vmatpush.msra.mxu0 0.0
    %5216 = vmatpush.msra.mxu0 0.0
    %5217 = vmatpush.msra.mxu0 0.0
    %5218 = vmatpush.msra.mxu0 %v5198
    %5219 = vmatmul.f32.gmra.mxu0 %v5201
    %v5220 = vpop.f32.mrf.mxu0
    %v5221 = vadd.f32 0.0, %v5220
    %5222 = vdwg.mxu0
    %v5224 = vsel %vm209, %v5221, 0
    %5226 = vmatpush.msra.mxu0 0.0
    %5227 = vmatpush.msra.mxu0 0.0
    %5228 = vmatpush.msra.mxu0 0.0
    %5229 = vmatpush.msra.mxu0 0.0
    %5230 = vmatpush.msra.mxu0 0.0
    %5231 = vmatpush.msra.mxu0 0.0
    %5232 = vmatpush.msra.mxu0 0.0
    %5233 = vmatpush.msra.mxu0 0.0
    %5234 = vmatpush.msra.mxu0 0.0
    %5235 = vmatpush.msra.mxu0 0.0
    %5236 = vmatpush.msra.mxu0 0.0
    %5237 = vmatpush.msra.mxu0 0.0
    %5238 = vmatpush.msra.mxu0 0.0
    %5239 = vmatpush.msra.mxu0 0.0
    %5240 = vmatpush.msra.mxu0 0.0
    %5241 = vmatpush.msra.mxu0 %v4819
    %5242 = vmatmul.f32.gmra.mxu0 %v5224
    %v5243 = vpop.f32.mrf.mxu0
    %v5244 = vadd.f32 0.0, %v5243
    %5245 = vdwg.mxu0
    %v5246 = vadd.f32 %v5157, %v5244
    %v5247 = vmul.f32 %v4849, 0.35355338
    %v5249 = vsel %vm209, %v5247, 0
    %v5252 = vsel %vm209, %v4892, 0
    %5254 = vmatpush.xpose.msra.mxu0 0.0
    %5255 = vmatpush.xpose.msra.mxu0 0.0
    %5256 = vmatpush.xpose.msra.mxu0 0.0
    %5257 = vmatpush.xpose.msra.mxu0 0.0
    %5258 = vmatpush.xpose.msra.mxu0 0.0
    %5259 = vmatpush.xpose.msra.mxu0 0.0
    %5260 = vmatpush.xpose.msra.mxu0 0.0
    %5261 = vmatpush.xpose.msra.mxu0 0.0
    %5262 = vmatpush.xpose.msra.mxu0 0.0
    %5263 = vmatpush.xpose.msra.mxu0 0.0
    %5264 = vmatpush.xpose.msra.mxu0 0.0
    %5265 = vmatpush.xpose.msra.mxu0 0.0
    %5266 = vmatpush.xpose.msra.mxu0 0.0
    %5267 = vmatpush.xpose.msra.mxu0 0.0
    %5268 = vmatpush.xpose.msra.mxu0 0.0
    %5269 = vmatpush.xpose.msra.mxu0 %v5252
    %5270 = vmatmul.f32.gmra.mxu0 %v5249
    %v5271 = vpop.f32.mrf.mxu0
    %v5272 = vadd.f32 0.0, %v5271
    %5273 = vdwg.mxu0
    %v5274 = vsel %vm209, %v5272, -inf
    %5275 = vmax.xlane.f32.xlu0 %v5274
    %v5276 = vpop.xlane.xlu0 %5275
    %v5277 = vsub.f32 %v5272, %v5276
    %v5278 = vmul.f32 %v5277, 1.442695
    %v5279 = vpow.pop %v5278
    %v5280 = vsel %vm209, %v5279, 0.0
    %5281 = vadd.xlane.f32.xlu0 %v5280
    %v5282 = vpop.xlane.xlu0 %5281
    %v5283 = vrcp.pop %v5282
    %v5284 = vmul.f32 %v5279, %v5283
    %5285 = vrot.lane.b32.xlu0 %v4892, 96
    %v5286 = vpop.permute.xlu0 %5285
    %v5289 = vsel %vm209, %v5284, 0
    %5291 = vmatpush.msra.mxu0 0.0
    %5292 = vmatpush.msra.mxu0 0.0
    %5293 = vmatpush.msra.mxu0 0.0
    %5294 = vmatpush.msra.mxu0 0.0
    %5295 = vmatpush.msra.mxu0 0.0
    %5296 = vmatpush.msra.mxu0 0.0
    %5297 = vmatpush.msra.mxu0 0.0
    %5298 = vmatpush.msra.mxu0 0.0
    %5299 = vmatpush.msra.mxu0 0.0
    %5300 = vmatpush.msra.mxu0 0.0
    %5301 = vmatpush.msra.mxu0 0.0
    %5302 = vmatpush.msra.mxu0 0.0
    %5303 = vmatpush.msra.mxu0 0.0
    %5304 = vmatpush.msra.mxu0 0.0
    %5305 = vmatpush.msra.mxu0 0.0
    %5306 = vmatpush.msra.mxu0 %v5286
    %5307 = vmatmul.f32.gmra.mxu0 %v5289
    %v5308 = vpop.f32.mrf.mxu0
    %v5309 = vadd.f32 0.0, %v5308
    %5310 = vdwg.mxu0
    %5311 = vrot.lane.b32.xlu0 %v5247, 120
    %v5312 = vpop.permute.xlu0 %5311
    %5313 = vrot.lane.b32.xlu0 %v4892, 120
    %v5314 = vpop.permute.xlu0 %5313
    %v5315 = vsel %vm209, %v5312, 0
    %v5317 = vsel %vm209, %v5314, 0
    %5319 = vmatpush.xpose.msra.mxu0 0.0
    %5320 = vmatpush.xpose.msra.mxu0 0.0
    %5321 = vmatpush.xpose.msra.mxu0 0.0
    %5322 = vmatpush.xpose.msra.mxu0 0.0
    %5323 = vmatpush.xpose.msra.mxu0 0.0
    %5324 = vmatpush.xpose.msra.mxu0 0.0
    %5325 = vmatpush.xpose.msra.mxu0 0.0
    %5326 = vmatpush.xpose.msra.mxu0 0.0
    %5327 = vmatpush.xpose.msra.mxu0 0.0
    %5328 = vmatpush.xpose.msra.mxu0 0.0
    %5329 = vmatpush.xpose.msra.mxu0 0.0
    %5330 = vmatpush.xpose.msra.mxu0 0.0
    %5331 = vmatpush.xpose.msra.mxu0 0.0
    %5332 = vmatpush.xpose.msra.mxu0 0.0
    %5333 = vmatpush.xpose.msra.mxu0 0.0
    %5334 = vmatpush.xpose.msra.mxu0 %v5317
    %5335 = vmatmul.f32.gmra.mxu0 %v5315
    %v5336 = vpop.f32.mrf.mxu0
    %v5337 = vadd.f32 0.0, %v5336
    %5338 = vdwg.mxu0
    %v5339 = vsel %vm209, %v5337, -inf
    %5340 = vmax.xlane.f32.xlu0 %v5339
    %v5341 = vpop.xlane.xlu0 %5340
    %v5342 = vsub.f32 %v5337, %v5341
    %v5343 = vmul.f32 %v5342, 1.442695
    %v5344 = vpow.pop %v5343
    %v5345 = vsel %vm209, %v5344, 0.0
    %5346 = vadd.xlane.f32.xlu0 %v5345
    %v5347 = vpop.xlane.xlu0 %5346
    %v5348 = vrcp.pop %v5347
    %v5349 = vmul.f32 %v5344, %v5348
    %5350 = vrot.lane.b32.xlu0 %v4892, 88
    %v5351 = vpop.permute.xlu0 %5350
    %v5354 = vsel %vm209, %v5349, 0
    %5356 = vmatpush.msra.mxu0 0.0
    %5357 = vmatpush.msra.mxu0 0.0
    %5358 = vmatpush.msra.mxu0 0.0
    %5359 = vmatpush.msra.mxu0 0.0
    %5360 = vmatpush.msra.mxu0 0.0
    %5361 = vmatpush.msra.mxu0 0.0
    %5362 = vmatpush.msra.mxu0 0.0
    %5363 = vmatpush.msra.mxu0 0.0
    %5364 = vmatpush.msra.mxu0 0.0
    %5365 = vmatpush.msra.mxu0 0.0
    %5366 = vmatpush.msra.mxu0 0.0
    %5367 = vmatpush.msra.mxu0 0.0
    %5368 = vmatpush.msra.mxu0 0.0
    %5369 = vmatpush.msra.mxu0 0.0
    %5370 = vmatpush.msra.mxu0 0.0
    %5371 = vmatpush.msra.mxu0 %v5351
    %5372 = vmatmul.f32.gmra.mxu0 %v5354
    %v5373 = vpop.f32.mrf.mxu0
    %v5374 = vadd.f32 0.0, %v5373
    %5375 = vdwg.mxu0
    %v5377 = vsel %vm209, %v5374, 0
    %5379 = vmatpush.msra.mxu0 0.0
    %5380 = vmatpush.msra.mxu0 0.0
    %5381 = vmatpush.msra.mxu0 0.0
    %5382 = vmatpush.msra.mxu0 0.0
    %5383 = vmatpush.msra.mxu0 0.0
    %5384 = vmatpush.msra.mxu0 0.0
    %5385 = vmatpush.msra.mxu0 0.0
    %5386 = vmatpush.msra.mxu0 0.0
    %5387 = vmatpush.msra.mxu0 0.0
    %5388 = vmatpush.msra.mxu0 0.0
    %5389 = vmatpush.msra.mxu0 0.0
    %5390 = vmatpush.msra.mxu0 0.0
    %5391 = vmatpush.msra.mxu0 0.0
    %5392 = vmatpush.msra.mxu0 0.0
    %5393 = vmatpush.msra.mxu0 0.0
    %5394 = vmatpush.msra.mxu0 %v4817
    %5395 = vmatmul.f32.gmra.mxu0 %v5377
    %v5396 = vpop.f32.mrf.mxu0
    %v5397 = vadd.f32 0.0, %v5396
    %5398 = vdwg.mxu0
    %v5400 = vsel %vm209, %v5309, 0
    %5402 = vmatpush.msra.mxu0 0.0
    %5403 = vmatpush.msra.mxu0 0.0
    %5404 = vmatpush.msra.mxu0 0.0
    %5405 = vmatpush.msra.mxu0 0.0
    %5406 = vmatpush.msra.mxu0 0.0
    %5407 = vmatpush.msra.mxu0 0.0
    %5408 = vmatpush.msra.mxu0 0.0
    %5409 = vmatpush.msra.mxu0 0.0
    %5410 = vmatpush.msra.mxu0 0.0
    %5411 = vmatpush.msra.mxu0 0.0
    %5412 = vmatpush.msra.mxu0 0.0
    %5413 = vmatpush.msra.mxu0 0.0
    %5414 = vmatpush.msra.mxu0 0.0
    %5415 = vmatpush.msra.mxu0 0.0
    %5416 = vmatpush.msra.mxu0 0.0
    %5417 = vmatpush.msra.mxu0 %v4816
    %5418 = vmatmul.f32.gmra.mxu0 %v5400
    %v5419 = vpop.f32.mrf.mxu0
    %v5420 = vadd.f32 %v5397, %v5419
    %5421 = vdwg.mxu0
    %5422 = vrot.lane.b32.xlu0 %v5247, 112
    %v5423 = vpop.permute.xlu0 %5422
    %5424 = vrot.lane.b32.xlu0 %v4892, 112
    %v5425 = vpop.permute.xlu0 %5424
    %v5426 = vsel %vm209, %v5423, 0
    %v5428 = vsel %vm209, %v5425, 0
    %5430 = vmatpush.xpose.msra.mxu0 0.0
    %5431 = vmatpush.xpose.msra.mxu0 0.0
    %5432 = vmatpush.xpose.msra.mxu0 0.0
    %5433 = vmatpush.xpose.msra.mxu0 0.0
    %5434 = vmatpush.xpose.msra.mxu0 0.0
    %5435 = vmatpush.xpose.msra.mxu0 0.0
    %5436 = vmatpush.xpose.msra.mxu0 0.0
    %5437 = vmatpush.xpose.msra.mxu0 0.0
    %5438 = vmatpush.xpose.msra.mxu0 0.0
    %5439 = vmatpush.xpose.msra.mxu0 0.0
    %5440 = vmatpush.xpose.msra.mxu0 0.0
    %5441 = vmatpush.xpose.msra.mxu0 0.0
    %5442 = vmatpush.xpose.msra.mxu0 0.0
    %5443 = vmatpush.xpose.msra.mxu0 0.0
    %5444 = vmatpush.xpose.msra.mxu0 0.0
    %5445 = vmatpush.xpose.msra.mxu0 %v5428
    %5446 = vmatmul.f32.gmra.mxu0 %v5426
    %v5447 = vpop.f32.mrf.mxu0
    %v5448 = vadd.f32 0.0, %v5447
    %5449 = vdwg.mxu0
    %v5450 = vsel %vm209, %v5448, -inf
    %5451 = vmax.xlane.f32.xlu0 %v5450
    %v5452 = vpop.xlane.xlu0 %5451
    %v5453 = vsub.f32 %v5448, %v5452
    %v5454 = vmul.f32 %v5453, 1.442695
    %v5455 = vpow.pop %v5454
    %v5456 = vsel %vm209, %v5455, 0.0
    %5457 = vadd.xlane.f32.xlu0 %v5456
    %v5458 = vpop.xlane.xlu0 %5457
    %v5459 = vrcp.pop %v5458
    %v5460 = vmul.f32 %v5455, %v5459
    %5461 = vrot.lane.b32.xlu0 %v4892, 80
    %v5462 = vpop.permute.xlu0 %5461
    %v5465 = vsel %vm209, %v5460, 0
    %5467 = vmatpush.msra.mxu0 0.0
    %5468 = vmatpush.msra.mxu0 0.0
    %5469 = vmatpush.msra.mxu0 0.0
    %5470 = vmatpush.msra.mxu0 0.0
    %5471 = vmatpush.msra.mxu0 0.0
    %5472 = vmatpush.msra.mxu0 0.0
    %5473 = vmatpush.msra.mxu0 0.0
    %5474 = vmatpush.msra.mxu0 0.0
    %5475 = vmatpush.msra.mxu0 0.0
    %5476 = vmatpush.msra.mxu0 0.0
    %5477 = vmatpush.msra.mxu0 0.0
    %5478 = vmatpush.msra.mxu0 0.0
    %5479 = vmatpush.msra.mxu0 0.0
    %5480 = vmatpush.msra.mxu0 0.0
    %5481 = vmatpush.msra.mxu0 0.0
    %5482 = vmatpush.msra.mxu0 %v5462
    %5483 = vmatmul.f32.gmra.mxu0 %v5465
    %v5484 = vpop.f32.mrf.mxu0
    %v5485 = vadd.f32 0.0, %v5484
    %5486 = vdwg.mxu0
    %v5488 = vsel %vm209, %v5485, 0
    %5490 = vmatpush.msra.mxu0 0.0
    %5491 = vmatpush.msra.mxu0 0.0
    %5492 = vmatpush.msra.mxu0 0.0
    %5493 = vmatpush.msra.mxu0 0.0
    %5494 = vmatpush.msra.mxu0 0.0
    %5495 = vmatpush.msra.mxu0 0.0
    %5496 = vmatpush.msra.mxu0 0.0
    %5497 = vmatpush.msra.mxu0 0.0
    %5498 = vmatpush.msra.mxu0 0.0
    %5499 = vmatpush.msra.mxu0 0.0
    %5500 = vmatpush.msra.mxu0 0.0
    %5501 = vmatpush.msra.mxu0 0.0
    %5502 = vmatpush.msra.mxu0 0.0
    %5503 = vmatpush.msra.mxu0 0.0
    %5504 = vmatpush.msra.mxu0 0.0
    %5505 = vmatpush.msra.mxu0 %v4818
    %5506 = vmatmul.f32.gmra.mxu0 %v5488
    %v5507 = vpop.f32.mrf.mxu0
    %v5508 = vadd.f32 0.0, %v5507
    %5509 = vdwg.mxu0
    %v5510 = vadd.f32 %v5420, %v5508
    %5511 = vrot.lane.b32.xlu0 %v5247, 104
    %v5512 = vpop.permute.xlu0 %5511
    %5513 = vrot.lane.b32.xlu0 %v4892, 104
    %v5514 = vpop.permute.xlu0 %5513
    %v5515 = vsel %vm209, %v5512, 0
    %v5517 = vsel %vm209, %v5514, 0
    %5519 = vmatpush.xpose.msra.mxu0 0.0
    %5520 = vmatpush.xpose.msra.mxu0 0.0
    %5521 = vmatpush.xpose.msra.mxu0 0.0
    %5522 = vmatpush.xpose.msra.mxu0 0.0
    %5523 = vmatpush.xpose.msra.mxu0 0.0
    %5524 = vmatpush.xpose.msra.mxu0 0.0
    %5525 = vmatpush.xpose.msra.mxu0 0.0
    %5526 = vmatpush.xpose.msra.mxu0 0.0
    %5527 = vmatpush.xpose.msra.mxu0 0.0
    %5528 = vmatpush.xpose.msra.mxu0 0.0
    %5529 = vmatpush.xpose.msra.mxu0 0.0
    %5530 = vmatpush.xpose.msra.mxu0 0.0
    %5531 = vmatpush.xpose.msra.mxu0 0.0
    %5532 = vmatpush.xpose.msra.mxu0 0.0
    %5533 = vmatpush.xpose.msra.mxu0 0.0
    %5534 = vmatpush.xpose.msra.mxu0 %v5517
    %5535 = vmatmul.f32.gmra.mxu0 %v5515
    %v5536 = vpop.f32.mrf.mxu0
    %v5537 = vadd.f32 0.0, %v5536
    %5538 = vdwg.mxu0
    %v5539 = vsel %vm209, %v5537, -inf
    %5540 = vmax.xlane.f32.xlu0 %v5539
    %v5541 = vpop.xlane.xlu0 %5540
    %v5542 = vsub.f32 %v5537, %v5541
    %v5543 = vmul.f32 %v5542, 1.442695
    %v5544 = vpow.pop %v5543
    %v5545 = vsel %vm209, %v5544, 0.0
    %5546 = vadd.xlane.f32.xlu0 %v5545
    %v5547 = vpop.xlane.xlu0 %5546
    %v5548 = vrcp.pop %v5547
    %v5549 = vmul.f32 %v5544, %v5548
    %5550 = vrot.lane.b32.xlu0 %v4892, 72
    %v5551 = vpop.permute.xlu0 %5550
    %v5554 = vsel %vm209, %v5549, 0
    %5556 = vmatpush.msra.mxu0 0.0
    %5557 = vmatpush.msra.mxu0 0.0
    %5558 = vmatpush.msra.mxu0 0.0
    %5559 = vmatpush.msra.mxu0 0.0
    %5560 = vmatpush.msra.mxu0 0.0
    %5561 = vmatpush.msra.mxu0 0.0
    %5562 = vmatpush.msra.mxu0 0.0
    %5563 = vmatpush.msra.mxu0 0.0
    %5564 = vmatpush.msra.mxu0 0.0
    %5565 = vmatpush.msra.mxu0 0.0
    %5566 = vmatpush.msra.mxu0 0.0
    %5567 = vmatpush.msra.mxu0 0.0
    %5568 = vmatpush.msra.mxu0 0.0
    %5569 = vmatpush.msra.mxu0 0.0
    %5570 = vmatpush.msra.mxu0 0.0
    %5571 = vmatpush.msra.mxu0 %v5551
    %5572 = vmatmul.f32.gmra.mxu0 %v5554
    %v5573 = vpop.f32.mrf.mxu0
    %v5574 = vadd.f32 0.0, %v5573
    %5575 = vdwg.mxu0
    %v5577 = vsel %vm209, %v5574, 0
    %5579 = vmatpush.msra.mxu0 0.0
    %5580 = vmatpush.msra.mxu0 0.0
    %5581 = vmatpush.msra.mxu0 0.0
    %5582 = vmatpush.msra.mxu0 0.0
    %5583 = vmatpush.msra.mxu0 0.0
    %5584 = vmatpush.msra.mxu0 0.0
    %5585 = vmatpush.msra.mxu0 0.0
    %5586 = vmatpush.msra.mxu0 0.0
    %5587 = vmatpush.msra.mxu0 0.0
    %5588 = vmatpush.msra.mxu0 0.0
    %5589 = vmatpush.msra.mxu0 0.0
    %5590 = vmatpush.msra.mxu0 0.0
    %5591 = vmatpush.msra.mxu0 0.0
    %5592 = vmatpush.msra.mxu0 0.0
    %5593 = vmatpush.msra.mxu0 0.0
    %5594 = vmatpush.msra.mxu0 %v4819
    %5595 = vmatmul.f32.gmra.mxu0 %v5577
    %v5596 = vpop.f32.mrf.mxu0
    %v5597 = vadd.f32 0.0, %v5596
    %5598 = vdwg.mxu0
    %v5599 = vadd.f32 %v5510, %v5597
    %v5600 = vperm.slane %v4820, 0
    %v5601 = vadd.f32 %v5246, %v5600
    %v5602 = vadd.f32 %v5599, %v5600
    %v5603 = vadd.f32 %v4809, %v5601
    %v5604 = vadd.f32 %v4810, %v5602
    %v5605 = vsel %vm135, %v5603, 0.0
    %5606 = vadd.xlane.f32.xlu0 %v5605
    %v5607 = vpop.xlane.xlu0 %5606
    %v5608 = vsel %vm135, %v5604, 0.0
    %5609 = vadd.xlane.f32.xlu0 %v5608
    %v5610 = vpop.xlane.xlu0 %5609
    %v5611 = vmul.f32 %v5607, %v932
    %v5612 = vmul.f32 %v5610, %v932
    %v5613 = vsub.f32 %v5603, %v5611
    %v5614 = vsub.f32 %v5604, %v5612
    %v5615 = vmul.f32 %v5613, %v5613
    %v5616 = vmul.f32 %v5614, %v5614
    %v5617 = vsel %vm135, %v5615, 0.0
    %5618 = vadd.xlane.f32.xlu0 %v5617
    %v5619 = vpop.xlane.xlu0 %5618
    %v5620 = vsel %vm135, %v5616, 0.0
    %5621 = vadd.xlane.f32.xlu0 %v5620
    %v5622 = vpop.xlane.xlu0 %5621
    %v5623 = vmul.f32 %v5619, %v932
    %v5624 = vmul.f32 %v5622, %v932
    %v5625 = vadd.f32 %v5623, 1e-05
    %v5626 = vadd.f32 %v5624, 1e-05
    %v5627 = vrsqrt.pop %v5625
    %v5628 = vmul.f32 %v5627, %v5625
    %v5629 = vmul.f32 %v5628, %v5627
    %v5630 = vmul.f32 0.5, %v5629
    %v5631 = vsub.f32 1.5, %v5630
    %v5632 = vmul.f32 %v5627, %v5631
    %vm5633 = vweird.f32 %v5625
    %vm5634 = vweird.f32 %v5627
    %vm5635 = vmor %vm5633, %vm5634
    %v5636 = vsel %vm5635, %v5627, %v5632
    %v5637 = vrsqrt.pop %v5626
    %v5638 = vmul.f32 %v5637, %v5626
    %v5639 = vmul.f32 %v5638, %v5637
    %v5640 = vmul.f32 0.5, %v5639
    %v5641 = vsub.f32 1.5, %v5640
    %v5642 = vmul.f32 %v5637, %v5641
    %vm5643 = vweird.f32 %v5626
    %vm5644 = vweird.f32 %v5637
    %vm5645 = vmor %vm5643, %vm5644
    %v5646 = vsel %vm5645, %v5637, %v5642
    %v5647 = vmul.f32 %v5613, %v5636
    %v5648 = vmul.f32 %v5614, %v5646
    %v5649 = vld [vmem:[#allocation5 + $0x730] sm:$0x1]
    %v5650 = vperm.slane %v5649, 0
    %v5651 = vmul.f32 %v5647, %v5650
    %v5652 = vmul.f32 %v5648, %v5650
    %v5653 = vld [vmem:[#allocation5 + $0x738] sm:$0x1]
    %v5654 = vperm.slane %v5653, 0
    %v5655 = vadd.f32 %v5651, %v5654
    %v5656 = vadd.f32 %v5652, %v5654
    %v5657 = vld [vmem:[#allocation5 + $0x670] sm:$0xff]
    %v5658 = vld [vmem:[#allocation5 + $0x678] sm:$0xff]
    %v5659 = vld [vmem:[#allocation5 + $0x680] sm:$0xff]
    %v5660 = vld [vmem:[#allocation5 + $0x688] sm:$0xff]
    %v5661 = vld [vmem:[#allocation5 + $0x690] sm:$0x1]
    %v5662 = vperm.slane %v5661, 0
    %v5664 = vsel %vm135, %v5655, 0
    %v5667 = vsel %vm135, %v5656, 0
    %5669 = vmatpush.msra.mxu0 0.0
    %5670 = vmatpush.msra.mxu0 0.0
    %5671 = vmatpush.msra.mxu0 0.0
    %5672 = vmatpush.msra.mxu0 0.0
    %5673 = vmatpush.msra.mxu0 0.0
    %5674 = vmatpush.msra.mxu0 0.0
    %5675 = vmatpush.msra.mxu0 0.0
    %5676 = vmatpush.msra.mxu0 0.0
    %5677 = vmatpush.msra.mxu0 0.0
    %5678 = vmatpush.msra.mxu0 0.0
    %5679 = vmatpush.msra.mxu0 0.0
    %5680 = vmatpush.msra.mxu0 0.0
    %5681 = vmatpush.msra.mxu0 %v5660
    %5682 = vmatpush.msra.mxu0 %v5659
    %5683 = vmatpush.msra.mxu0 %v5658
    %5684 = vmatpush.msra.mxu0 %v5657
    %5685 = vmatmul.f32.gmra.mxu0 %v5664
    %v5686 = vpop.f32.mrf.mxu0
    %v5687 = vadd.f32 %v5662, %v5686
    %5688 = vmatmul.f32.gmra.mxu0 %v5667
    %v5689 = vpop.f32.mrf.mxu0
    %v5690 = vadd.f32 %v5662, %v5689
    %5691 = vdwg.mxu0
    %v5692 = vmax.f32 %v5687, 0.0
    %v5693 = vmax.f32 %v5690, 0.0
    %v5694 = vld [vmem:[#allocation5 + $0x698] sm:$0xff]
    %v5695 = vld [vmem:[#allocation5 + $0x6a0] sm:$0xff]
    %v5696 = vld [vmem:[#allocation5 + $0x6a8] sm:$0xff]
    %v5697 = vld [vmem:[#allocation5 + $0x6b0] sm:$0xff]
    %v5698 = vld [vmem:[#allocation5 + $0x6b8] sm:$0xff]
    %v5699 = vld [vmem:[#allocation5 + $0x6c0] sm:$0xff]
    %v5700 = vld [vmem:[#allocation5 + $0x6c8] sm:$0xff]
    %v5701 = vld [vmem:[#allocation5 + $0x6d0] sm:$0xff]
    %v5702 = vld [vmem:[#allocation5 + $0x6d8] sm:$0xff]
    %v5703 = vld [vmem:[#allocation5 + $0x6e0] sm:$0xff]
    %v5704 = vld [vmem:[#allocation5 + $0x6e8] sm:$0xff]
    %v5705 = vld [vmem:[#allocation5 + $0x6f0] sm:$0xff]
    %v5706 = vld [vmem:[#allocation5 + $0x6f8] sm:$0xff]
    %v5707 = vld [vmem:[#allocation5 + $0x700] sm:$0xff]
    %v5708 = vld [vmem:[#allocation5 + $0x708] sm:$0xff]
    %v5709 = vld [vmem:[#allocation5 + $0x710] sm:$0xff]
    %v5710 = vld [vmem:[#allocation5 + $0x718] sm:$0x1]
    %v5711 = vperm.slane %v5710, 0
    %5712 = vmatpush.msra.mxu0 %v5709
    %5713 = vmatpush.msra.mxu0 %v5708
    %5714 = vmatpush.msra.mxu0 %v5707
    %5715 = vmatpush.msra.mxu0 %v5706
    %5716 = vmatpush.msra.mxu0 %v5705
    %5717 = vmatpush.msra.mxu0 %v5704
    %5718 = vmatpush.msra.mxu0 %v5703
    %5719 = vmatpush.msra.mxu0 %v5702
    %5720 = vmatpush.msra.mxu0 %v5701
    %5721 = vmatpush.msra.mxu0 %v5700
    %5722 = vmatpush.msra.mxu0 %v5699
    %5723 = vmatpush.msra.mxu0 %v5698
    %5724 = vmatpush.msra.mxu0 %v5697
    %5725 = vmatpush.msra.mxu0 %v5696
    %5726 = vmatpush.msra.mxu0 %v5695
    %5727 = vmatpush.msra.mxu0 %v5694
    %5728 = vmatmul.f32.gmra.mxu0 %v5692
    %v5729 = vpop.f32.mrf.mxu0
    %v5730 = vadd.f32 %v5711, %v5729
    %5731 = vmatmul.f32.gmra.mxu0 %v5693
    %v5732 = vpop.f32.mrf.mxu0
    %v5733 = vadd.f32 %v5711, %v5732
    %5734 = vdwg.mxu0
    %v5735 = vadd.f32 %v5655, %v5730
    %v5736 = vadd.f32 %v5656, %v5733
    %v5737 = vsel %vm135, %v5735, 0.0
    %5738 = vadd.xlane.f32.xlu0 %v5737
    %v5739 = vpop.xlane.xlu0 %5738
    %v5740 = vsel %vm135, %v5736, 0.0
    %5741 = vadd.xlane.f32.xlu0 %v5740
    %v5742 = vpop.xlane.xlu0 %5741
    %v5743 = vmul.f32 %v5739, %v932
    %v5744 = vmul.f32 %v5742, %v932
    %v5745 = vsub.f32 %v5735, %v5743
    %v5746 = vsub.f32 %v5736, %v5744
    %v5747 = vmul.f32 %v5745, %v5745
    %v5748 = vmul.f32 %v5746, %v5746
    %v5749 = vsel %vm135, %v5747, 0.0
    %5750 = vadd.xlane.f32.xlu0 %v5749
    %v5751 = vpop.xlane.xlu0 %5750
    %v5752 = vsel %vm135, %v5748, 0.0
    %5753 = vadd.xlane.f32.xlu0 %v5752
    %v5754 = vpop.xlane.xlu0 %5753
    %v5755 = vmul.f32 %v5751, %v932
    %v5756 = vmul.f32 %v5754, %v932
    %v5757 = vadd.f32 %v5755, 1e-05
    %v5758 = vadd.f32 %v5756, 1e-05
    %v5759 = vrsqrt.pop %v5757
    %v5760 = vmul.f32 %v5759, %v5757
    %v5761 = vmul.f32 %v5760, %v5759
    %v5762 = vmul.f32 0.5, %v5761
    %v5763 = vsub.f32 1.5, %v5762
    %v5764 = vmul.f32 %v5759, %v5763
    %vm5765 = vweird.f32 %v5757
    %vm5766 = vweird.f32 %v5759
    %vm5767 = vmor %vm5765, %vm5766
    %v5768 = vsel %vm5767, %v5759, %v5764
    %v5769 = vrsqrt.pop %v5758
    %v5770 = vmul.f32 %v5769, %v5758
    %v5771 = vmul.f32 %v5770, %v5769
    %v5772 = vmul.f32 0.5, %v5771
    %v5773 = vsub.f32 1.5, %v5772
    %v5774 = vmul.f32 %v5769, %v5773
    %vm5775 = vweird.f32 %v5758
    %vm5776 = vweird.f32 %v5769
    %vm5777 = vmor %vm5775, %vm5776
    %v5778 = vsel %vm5777, %v5769, %v5774
    %v5779 = vmul.f32 %v5745, %v5768
    %v5780 = vmul.f32 %v5746, %v5778
    %v5781 = vld [vmem:[#allocation5 + $0x740] sm:$0x1]
    %v5782 = vperm.slane %v5781, 0
    %v5783 = vmul.f32 %v5779, %v5782
    %v5784 = vmul.f32 %v5780, %v5782
    %v5785 = vld [vmem:[#allocation5 + $0x748] sm:$0x1]
    %v5786 = vperm.slane %v5785, 0
    %v5787 = vadd.f32 %v5783, %v5786
    %v5788 = vadd.f32 %v5784, %v5786
    %v5789 = vsel %vm135, %v5787, 0.0
    %5790 = vadd.xlane.f32.xlu0 %v5789
    %v5791 = vpop.xlane.xlu0 %5790
    %v5792 = vsel %vm135, %v5788, 0.0
    %5793 = vadd.xlane.f32.xlu0 %v5792
    %v5794 = vpop.xlane.xlu0 %5793
    %v5795 = vmul.f32 %v5791, %v932
    %v5796 = vmul.f32 %v5794, %v932
    %v5797 = vsub.f32 %v5787, %v5795
    %v5798 = vsub.f32 %v5788, %v5796
    %v5799 = vmul.f32 %v5797, %v5797
    %v5800 = vmul.f32 %v5798, %v5798
    %v5801 = vsel %vm135, %v5799, 0.0
    %5802 = vadd.xlane.f32.xlu0 %v5801
    %v5803 = vpop.xlane.xlu0 %5802
    %v5804 = vsel %vm135, %v5800, 0.0
    %5805 = vadd.xlane.f32.xlu0 %v5804
    %v5806 = vpop.xlane.xlu0 %5805
    %v5807 = vmul.f32 %v5803, %v932
    %v5808 = vmul.f32 %v5806, %v932
    %v5809 = vadd.f32 %v5807, 1e-05
    %v5810 = vadd.f32 %v5808, 1e-05
    %v5811 = vrsqrt.pop %v5809
    %v5812 = vmul.f32 %v5811, %v5809
    %v5813 = vmul.f32 %v5812, %v5811
    %v5814 = vmul.f32 0.5, %v5813
    %v5815 = vsub.f32 1.5, %v5814
    %v5816 = vmul.f32 %v5811, %v5815
    %vm5817 = vweird.f32 %v5809
    %vm5818 = vweird.f32 %v5811
    %vm5819 = vmor %vm5817, %vm5818
    %v5820 = vsel %vm5819, %v5811, %v5816
    %v5821 = vrsqrt.pop %v5810
    %v5822 = vmul.f32 %v5821, %v5810
    %v5823 = vmul.f32 %v5822, %v5821
    %v5824 = vmul.f32 0.5, %v5823
    %v5825 = vsub.f32 1.5, %v5824
    %v5826 = vmul.f32 %v5821, %v5825
    %vm5827 = vweird.f32 %v5810
    %vm5828 = vweird.f32 %v5821
    %vm5829 = vmor %vm5827, %vm5828
    %v5830 = vsel %vm5829, %v5821, %v5826
    %v5831 = vmul.f32 %v5797, %v5820
    %v5832 = vmul.f32 %v5798, %v5830
    %v5833 = vld [vmem:[#allocation5 + $0x760] sm:$0x1]
    %v5834 = vperm.slane %v5833, 0
    %v5835 = vmul.f32 %v5831, %v5834
    %v5836 = vmul.f32 %v5832, %v5834
    %v5837 = vld [vmem:[#allocation5 + $0x768] sm:$0x1]
    %v5838 = vperm.slane %v5837, 0
    %v5839 = vadd.f32 %v5835, %v5838
    %v5840 = vadd.f32 %v5836, %v5838
    %v5841 = vld [vmem:[#allocation8] sm:$0xff]
    %v5842 = vld [vmem:[#allocation8 + $0x8] sm:$0xff]
    %v5843 = vld [vmem:[#allocation8 + $0x10] sm:$0xff]
    %v5844 = vld [vmem:[#allocation8 + $0x18] sm:$0xff]
    %v5845 = vld [vmem:[#allocation8 + $0x20] sm:$0xff]
    %v5846 = vld [vmem:[#allocation8 + $0x28] sm:$0xff]
    %v5847 = vld [vmem:[#allocation8 + $0x30] sm:$0xff]
    %v5848 = vld [vmem:[#allocation8 + $0x38] sm:$0xff]
    %v5849 = vld [vmem:[#allocation8 + $0x40] sm:$0xff]
    %v5850 = vld [vmem:[#allocation8 + $0x48] sm:$0xff]
    %v5851 = vld [vmem:[#allocation8 + $0x50] sm:$0xff]
    %v5852 = vld [vmem:[#allocation8 + $0x58] sm:$0xff]
    %v5853 = vld [vmem:[#allocation8 + $0x60] sm:$0xff]
    %v5854 = vld [vmem:[#allocation8 + $0x68] sm:$0xff]
    %v5855 = vld [vmem:[#allocation8 + $0x70] sm:$0xff]
    %v5856 = vld [vmem:[#allocation8 + $0x78] sm:$0xff]
    %s5857 = scalar_lea.vmem [#allocation8], 128
    %v5858 = vld [vmem:[%s5857] ss:$8 sm:$0xf]
    %v5860 = vperm.slane %v5858, 0
    %v5861 = vperm.slane %v5858, 1
    %v5862 = vperm.slane %v5858, 2
    %v5863 = vperm.slane %v5858, 3
    %v5869 = vsel %vm135, %v5839, 0
    %v5872 = vsel %vm135, %v5840, 0
    %5874 = vmatpush.msra.mxu0 0.0
    %5875 = vmatpush.msra.mxu0 0.0
    %5876 = vmatpush.msra.mxu0 0.0
    %5877 = vmatpush.msra.mxu0 0.0
    %5878 = vmatpush.msra.mxu0 0.0
    %5879 = vmatpush.msra.mxu0 0.0
    %5880 = vmatpush.msra.mxu0 0.0
    %5881 = vmatpush.msra.mxu0 0.0
    %5882 = vmatpush.msra.mxu0 0.0
    %5883 = vmatpush.msra.mxu0 0.0
    %5884 = vmatpush.msra.mxu0 0.0
    %5885 = vmatpush.msra.mxu0 0.0
    %5886 = vmatpush.msra.mxu0 %v5853
    %5887 = vmatpush.msra.mxu0 %v5849
    %5888 = vmatpush.msra.mxu0 %v5845
    %5889 = vmatpush.msra.mxu0 %v5841
    %5890 = vmatmul.f32.gmra.mxu0 %v5869
    %v5891 = vpop.f32.mrf.mxu0
    %v5892 = vadd.f32 %v5860, %v5891
    %5893 = vmatmul.f32.gmra.mxu0 %v5872
    %v5894 = vpop.f32.mrf.mxu0
    %v5895 = vadd.f32 %v5860, %v5894
    %5896 = vdwg.mxu0
    %5897 = vmatpush.msra.mxu0 0.0
    %5898 = vmatpush.msra.mxu0 0.0
    %5899 = vmatpush.msra.mxu0 0.0
    %5900 = vmatpush.msra.mxu0 0.0
    %5901 = vmatpush.msra.mxu0 0.0
    %5902 = vmatpush.msra.mxu0 0.0
    %5903 = vmatpush.msra.mxu0 0.0
    %5904 = vmatpush.msra.mxu0 0.0
    %5905 = vmatpush.msra.mxu0 0.0
    %5906 = vmatpush.msra.mxu0 0.0
    %5907 = vmatpush.msra.mxu0 0.0
    %5908 = vmatpush.msra.mxu0 0.0
    %5909 = vmatpush.msra.mxu0 %v5854
    %5910 = vmatpush.msra.mxu0 %v5850
    %5911 = vmatpush.msra.mxu0 %v5846
    %5912 = vmatpush.msra.mxu0 %v5842
    %5913 = vmatmul.f32.gmra.mxu0 %v5869
    %v5914 = vpop.f32.mrf.mxu0
    %v5915 = vadd.f32 %v5861, %v5914
    %5916 = vmatmul.f32.gmra.mxu0 %v5872
    %v5917 = vpop.f32.mrf.mxu0
    %v5918 = vadd.f32 %v5861, %v5917
    %5919 = vdwg.mxu0
    %5920 = vmatpush.msra.mxu0 0.0
    %5921 = vmatpush.msra.mxu0 0.0
    %5922 = vmatpush.msra.mxu0 0.0
    %5923 = vmatpush.msra.mxu0 0.0
    %5924 = vmatpush.msra.mxu0 0.0
    %5925 = vmatpush.msra.mxu0 0.0
    %5926 = vmatpush.msra.mxu0 0.0
    %5927 = vmatpush.msra.mxu0 0.0
    %5928 = vmatpush.msra.mxu0 0.0
    %5929 = vmatpush.msra.mxu0 0.0
    %5930 = vmatpush.msra.mxu0 0.0
    %5931 = vmatpush.msra.mxu0 0.0
    %5932 = vmatpush.msra.mxu0 %v5855
    %5933 = vmatpush.msra.mxu0 %v5851
    %5934 = vmatpush.msra.mxu0 %v5847
    %5935 = vmatpush.msra.mxu0 %v5843
    %5936 = vmatmul.f32.gmra.mxu0 %v5869
    %v5937 = vpop.f32.mrf.mxu0
    %v5938 = vadd.f32 %v5862, %v5937
    %5939 = vmatmul.f32.gmra.mxu0 %v5872
    %v5940 = vpop.f32.mrf.mxu0
    %v5941 = vadd.f32 %v5862, %v5940
    %5942 = vdwg.mxu0
    %5943 = vmatpush.msra.mxu0 0.0
    %5944 = vmatpush.msra.mxu0 0.0
    %5945 = vmatpush.msra.mxu0 0.0
    %5946 = vmatpush.msra.mxu0 0.0
    %5947 = vmatpush.msra.mxu0 0.0
    %5948 = vmatpush.msra.mxu0 0.0
    %5949 = vmatpush.msra.mxu0 0.0
    %5950 = vmatpush.msra.mxu0 0.0
    %5951 = vmatpush.msra.mxu0 0.0
    %5952 = vmatpush.msra.mxu0 0.0
    %5953 = vmatpush.msra.mxu0 0.0
    %5954 = vmatpush.msra.mxu0 0.0
    %5955 = vmatpush.msra.mxu0 %v5856
    %5956 = vmatpush.msra.mxu0 %v5852
    %5957 = vmatpush.msra.mxu0 %v5848
    %5958 = vmatpush.msra.mxu0 %v5844
    %5959 = vmatmul.f32.gmra.mxu0 %v5869
    %v5960 = vpop.f32.mrf.mxu0
    %v5961 = vadd.f32 %v5863, %v5960
    %5962 = vmatmul.f32.gmra.mxu0 %v5872
    %v5963 = vpop.f32.mrf.mxu0
    %v5964 = vadd.f32 %v5863, %v5963
    %5965 = vdwg.mxu0
    %5966 = vst [vmem:[#allocation10] sm:$0xff] %v5892
    %5967 = vst [vmem:[#allocation10 + $0x8] sm:$0xff] %v5915
    %5968 = vst [vmem:[#allocation10 + $0x10] sm:$0xff] %v5938
    %5969 = vst [vmem:[#allocation10 + $0x18] sm:$0xff] %v5961
    %5970 = vst [vmem:[#allocation10 + $0x20] sm:$0xff] %v5895
    %5971 = vst [vmem:[#allocation10 + $0x28] sm:$0xff] %v5918
    %5972 = vst [vmem:[#allocation10 + $0x30] sm:$0xff] %v5941
    %5973 = vst [vmem:[#allocation10 + $0x38] sm:$0xff] %v5964
    // Predicated region
    $region18: #{forward.1} parent=1 // pred_check
      _
    $region19: #{forward.1} parent=1 // pred_check_branch
      %5975 = sbr.rel (0) target = $region21
    $region20: #{forward.1} parent=1 // pred_region
      %5977 = vsyncadd [#allocation7], 0
      %s5978 = sshll.u32 [#allocation10], 4
      %s5979 = int_to_ptr.vmem [resolvable:$true] %s5978
      %s5980 = sshll.u32 %s3, 4
      %s5981 = int_to_ptr.hbm [resolvable:$true] %s5980
      %5986 = dma.vmem_to_hbm [thread:$0]  %s5979, 1024, %s5981, [#allocation7], 512, 512, 32
    $region21: #{forward.1} parent=1 // pred_fallthru
      _
    // Predicated region
    $region22: #{forward.1} parent=1 // pred_check
      _
    $region23: #{forward.1} parent=1 // pred_check_branch
      %5988 = sbr.rel (0) target = $region25
    $region24: #{forward.1} parent=1 // pred_region
      %5990 = dma.done [#allocation7], 1024
    $region25: #{forward.1} parent=1 // pred_fallthru
      _
    %5991 = vsyncpa [#allocation6], 1
    %5992 = vsyncpa [#allocation9], 1
    %5993 = vsyncpa [#allocation7], 1

</llo_original>
